<compile_context>
chip_gen: v6e
topology: v6e:2x2x1
jax: 0.10.0
libtpu: 0.0.40
codegen_flags: <defaults>
</compile_context>

<pallas_src>
import functools

import jax
import jax.numpy as jnp
from jax import lax
from jax.experimental import pallas as pl
from jax.experimental.pallas import tpu as pltpu


# ----------------------------- Pallas kernel --------------------------------

def _mdn_head_kernel(x_ref, w_ref, b_ref, uh_ref, uwt_ref, o_ref,
                     ybuf, t1buf, pibuf, *, H, W, M, B):
    """One grid step == B batch elements.

    x_ref  : (B, k*k*Cin, H*W)  im2col patches (tap-major then Cin; spatial h-major)
    w_ref  : (3M, k*k*Cin)      stacked conv weights of the three heads
    b_ref  : (3M, 1)            stacked biases
    uh_ref : (Ho, H)            bilinear interp matrix, H axis (align_corners=True)
    uwt_ref: (W, Wo)            bilinear interp matrix (transposed), W axis
    o_ref  : (B, 3M, Ho, Wo)    output, NCHW layout (written directly)
    ybuf   : (3M, H*W)          VMEM scratch: conv output, channel-major
    t1buf  : (3M, H, Wo)        VMEM scratch: after W-direction upsample
    pibuf  : (M, Ho, Wo)        VMEM scratch: pre-softmax pi channels
    """
    C3 = 3 * M
    wmat = w_ref[...]
    bias = b_ref[...]
    uh = uh_ref[...]
    uwt = uwt_ref[...]

    for b in range(B):
        # ---- Conv2d(k x k, pad k//2) as a single im2col matmul, channel-major ----
        # (C3, k*k*Cin) @ (k*k*Cin, H*W) -> (C3, H*W); lane dim = H*W (lane-dense).
        ybuf[...] = (jnp.dot(wmat, x_ref[b], preferred_element_type=jnp.float32)
                     + bias)

        # ---- Separable bilinear upsample (align_corners=True) ----
        # W direction: per input row h, (C3, W) @ (W, Wo) -> (C3, Wo).
        for h in range(H):
            row = ybuf[:, h * W:(h + 1) * W]                       # (C3, W)
            t1buf[:, h, :] = jnp.dot(row, uwt,
                                     preferred_element_type=jnp.float32)

        # H direction: per channel, (Ho, H) @ (H, Wo) -> (Ho, Wo).
        # Mean / sigma heads are finished here and written straight into the
        # NCHW output slices (no concat copy); pi channels go to scratch for the
        # cross-channel softmax.
        for c in range(C3):
            zc = jnp.dot(uh, t1buf[c], preferred_element_type=jnp.float32)
            if c < M:
                pibuf[c] = zc                  # pi head: softmax later
            elif c < 2 * M:
                o_ref[b, c] = zc               # mean head: identity
            else:
                o_ref[b, c] = jnp.exp(zc)      # sigma head: exp

        # ---- pi head: softmax over its M channels (== SMP 'softmax2d') ----
        mx = pibuf[0]
        for c in range(1, M):
            mx = jnp.maximum(mx, pibuf[c])
        es = []
        ssum = None
        for c in range(M):
            e = jnp.exp(pibuf[c] - mx)
            es.append(e)
            ssum = e if ssum is None else ssum + e
        # Exact reciprocal; pl.reciprocal(ssum, approx=True) would move the divide
        # to the otherwise-idle EUP (kept exact to hold the tight check below).
        rinv = pl.reciprocal(ssum, approx=False)
        for c in range(M):
            o_ref[b, c] = es[c] * rinv


# ------------------------------ JAX wrapper ----------------------------------

def _bilinear_matrix(n_in: int, n_out: int) -> jnp.ndarray:
    """(n_out, n_in) interpolation matrix of nn.UpsamplingBilinear2d (align_corners=True)."""
    if n_out == 1 or n_in == 1:
        U = jnp.zeros((n_out, n_in), jnp.float32)
        return U.at[:, 0].set(1.0)
    src = jnp.arange(n_out, dtype=jnp.float32) * (n_in - 1) / (n_out - 1)
    i0 = jnp.clip(jnp.floor(src).astype(jnp.int32), 0, n_in - 1)
    i1 = jnp.minimum(i0 + 1, n_in - 1)
    frac = src - i0.astype(jnp.float32)
    oh0 = jax.nn.one_hot(i0, n_in, dtype=jnp.float32)
    oh1 = jax.nn.one_hot(i1, n_in, dtype=jnp.float32)
    return (1.0 - frac)[:, None] * oh0 + frac[:, None] * oh1


def plmdn_head_forward(x_nchw, w_all, b_all, *, kernel_size: int, upsampling: int,
                       batch_block: int = 2):
    """x_nchw: (N, Cin, H, W) f32.  w_all: (3M, Cin, k, k) OIHW.  b_all: (3M,).

    Returns (N, 3M, H*up, W*up) NCHW, matching the PyTorch module (no wrapper
    transpose: the kernel writes NCHW directly).
    """
    N, Cin, H, W = x_nchw.shape
    k = kernel_size
    p = k // 2
    C3 = w_all.shape[0]
    M = C3 // 3
    Ho, Wo = H * upsampling, W * upsampling
    B = batch_block
    assert N % B == 0, "batch must be divisible by batch_block"
    KC = k * k * Cin
    HW = H * W

    # --- glue (cheap, non-hot-path): im2col + weight repack + interp matrices ---
    x = x_nchw.astype(jnp.float32)
    xp = jnp.pad(x, ((0, 0), (0, 0), (p, p), (p, p)))            # (N, Cin, H+2p, W+2p)
    taps = [xp[:, :, kh:kh + H, kw:kw + W] for kh in range(k) for kw in range(k)]
    patches = jnp.stack(taps, axis=1).reshape(N, KC, HW)          # (N, k*k*Cin, H*W)

    # Wmat[o, t*Cin + c] = w_all[o, c, kh, kw]  with t = kh*k + kw (matches patches).
    wmat = jnp.transpose(w_all.astype(jnp.float32), (0, 2, 3, 1)).reshape(C3, KC)
    bias = b_all.astype(jnp.float32).reshape(C3, 1)

    uh = _bilinear_matrix(H, Ho)                                  # (Ho, H)
    uwt = _bilinear_matrix(W, Wo).T                               # (W, Wo)

    kernel = functools.partial(_mdn_head_kernel, H=H, W=W, M=M, B=B)

    return pl.pallas_call(
        kernel,
        out_shape=jax.ShapeDtypeStruct((N, C3, Ho, Wo), jnp.float32),
        grid=(N // B,),
        in_specs=[
            pl.BlockSpec((B, KC, HW), lambda n: (n, 0, 0)),       # im2col patches
            pl.BlockSpec((C3, KC), lambda n: (0, 0)),             # stacked weights
            pl.BlockSpec((C3, 1), lambda n: (0, 0)),              # stacked biases
            pl.BlockSpec((Ho, H), lambda n: (0, 0)),              # Uh
            pl.BlockSpec((W, Wo), lambda n: (0, 0)),              # Uw^T
        ],
        out_specs=pl.BlockSpec((B, C3, Ho, Wo), lambda n: (n, 0, 0, 0)),
        scratch_shapes=[
            pltpu.VMEM((C3, HW), jnp.float32),                    # conv output
            pltpu.VMEM((C3, H, Wo), jnp.float32),                 # after W-upsample
            pltpu.VMEM((M, Ho, Wo), jnp.float32),                 # pi pre-softmax
        ],
        compiler_params=pltpu.CompilerParams(
            dimension_semantics=("parallel",)),
    )(patches, wmat, bias, uh, uwt)


# ------------------------- pure-JAX reference (for check) --------------------

def plmdn_head_reference(x_nchw, w_all, b_all, *, kernel_size: int, upsampling: int):
    k = kernel_size
    p = k // 2
    C3 = w_all.shape[0]
    M = C3 // 3
    N, Cin, H, W = x_nchw.shape
    y = lax.conv_general_dilated(
        x_nchw.astype(jnp.float32), w_all.astype(jnp.float32),
        window_strides=(1, 1), padding=[(p, p), (p, p)],
        dimension_numbers=("NCHW", "OIHW", "NCHW"),
        precision=lax.Precision.HIGHEST)
    y = y + b_all[None, :, None, None]
    Uh = _bilinear_matrix(H, H * upsampling)
    Uw = _bilinear_matrix(W, W * upsampling)
    y = jnp.einsum("oh,nchw->ncow", Uh, y, precision=lax.Precision.HIGHEST)
    y = jnp.einsum("pw,ncow->ncop", Uw, y, precision=lax.Precision.HIGHEST)
    pi = jax.nn.softmax(y[:, :M], axis=1)
    return jnp.concatenate([pi, y[:, M:2 * M], jnp.exp(y[:, 2 * M:])], axis=1)


# ---------------------------------- main --------------------------------------

if __name__ == "__main__":
    # Small, module-consistent shapes (N=4 so 2 batch elements/grid step still
    # leaves >= 2 grid steps for megacore sharding).
    N, Cin, H, W = 4, 8, 16, 16
    M = 4                     # mixture_components
    kernel_size = 3
    upsampling = 2

    key = jax.random.PRNGKey(0)
    kx, kw_pi, kw_mu, kw_sg, kb_pi, kb_mu, kb_sg = jax.random.split(key, 7)

    x = jax.random.normal(kx, (N, Cin, H, W), jnp.float32)

    # Deterministic synthetic parameters (PyTorch OIHW conv weight layout).
    w_pi = 0.1 * jax.random.normal(kw_pi, (M, Cin, kernel_size, kernel_size), jnp.float32)
    w_mu = 0.1 * jax.random.normal(kw_mu, (M, Cin, kernel_size, kernel_size), jnp.float32)
    w_sg = 0.1 * jax.random.normal(kw_sg, (M, Cin, kernel_size, kernel_size), jnp.float32)
    b_pi = 0.1 * jax.random.normal(kb_pi, (M,), jnp.float32)
    b_mu = 0.1 * jax.random.normal(kb_mu, (M,), jnp.float32)
    b_sg = 0.1 * jax.random.normal(kb_sg, (M,), jnp.float32)

    w_all = jnp.concatenate([w_pi, w_mu, w_sg], axis=0)   # (3M, Cin, k, k)
    b_all = jnp.concatenate([b_pi, b_mu, b_sg], axis=0)   # (3M,)

    out = plmdn_head_forward(x, w_all, b_all,
                             kernel_size=kernel_size, upsampling=upsampling,
                             batch_block=2)
    out = jax.block_until_ready(out)

    ref = plmdn_head_reference(x, w_all, b_all,
                               kernel_size=kernel_size, upsampling=upsampling)
    ref = jax.block_until_ready(ref)

    assert out.shape == (N, 3 * M, H * upsampling, W * upsampling), out.shape
    max_err = float(jnp.max(jnp.abs(out - ref)))
    assert jnp.allclose(out, ref, atol=2e-4, rtol=2e-4), max_err

    print("KERNEL_OK")
</pallas_src>

<mosaic_0001>
module attributes {stable_mosaic.version = 11 : i64} {
  func.func @_mdn_head_kernel(%arg0: i32, %arg1: memref<2x72x256xf32, #tpu.memory_space<vmem>>, %arg2: memref<12x72xf32, #tpu.memory_space<vmem>>, %arg3: memref<12x1xf32, #tpu.memory_space<vmem>>, %arg4: memref<32x16xf32, #tpu.memory_space<vmem>>, %arg5: memref<16x32xf32, #tpu.memory_space<vmem>>, %arg6: memref<2x12x32x32xf32, #tpu.memory_space<vmem>>, %arg7: memref<12x256xf32, #tpu.memory_space<vmem>>, %arg8: memref<12x16x32xf32, #tpu.memory_space<vmem>>, %arg9: memref<4x32x32xf32, #tpu.memory_space<vmem>>) attributes {dimension_semantics = [#tpu.dimension_semantics<parallel>], iteration_bounds = array<i64: 2>, scalar_prefetch = 0 : i64, scratch_operands = 3 : i64, tpu.core_type = #tpu.core_type<tc>, window_params = [{transform_indices = @transform_0, window_bounds = array<i64: 2, 72, 256>}, {pipeline_mode = #tpu.pipeline_mode<synchronous>, transform_indices = @transform_1, window_bounds = array<i64: 12, 72>}, {pipeline_mode = #tpu.pipeline_mode<synchronous>, transform_indices = @transform_2, window_bounds = array<i64: 12, 1>}, {pipeline_mode = #tpu.pipeline_mode<synchronous>, transform_indices = @transform_3, window_bounds = array<i64: 32, 16>}, {pipeline_mode = #tpu.pipeline_mode<synchronous>, transform_indices = @transform_4, window_bounds = array<i64: 16, 32>}, {transform_indices = @transform_5, window_bounds = array<i64: 2, 12, 32, 32>}]} {
    %c0 = arith.constant 0 : index
    %c0_0 = arith.constant 0 : index
    %0 = vector.load %arg2[%c0, %c0_0] : memref<12x72xf32, #tpu.memory_space<vmem>>, vector<12x72xf32>
    %c0_1 = arith.constant 0 : index
    %c0_2 = arith.constant 0 : index
    %1 = vector.load %arg3[%c0_1, %c0_2] : memref<12x1xf32, #tpu.memory_space<vmem>>, vector<12x1xf32>
    %c0_3 = arith.constant 0 : index
    %c0_4 = arith.constant 0 : index
    %2 = vector.load %arg4[%c0_3, %c0_4] : memref<32x16xf32, #tpu.memory_space<vmem>>, vector<32x16xf32>
    %c0_5 = arith.constant 0 : index
    %c0_6 = arith.constant 0 : index
    %3 = vector.load %arg5[%c0_5, %c0_6] : memref<16x32xf32, #tpu.memory_space<vmem>>, vector<16x32xf32>
    %c0_7 = arith.constant 0 : index
    %c0_8 = arith.constant 0 : index
    %c0_9 = arith.constant 0 : index
    %4 = vector.load %arg1[%c0_7, %c0_8, %c0_9] : memref<2x72x256xf32, #tpu.memory_space<vmem>>, vector<1x72x256xf32>
    %5 = vector.shape_cast %4 : vector<1x72x256xf32> to vector<72x256xf32>
    %cst = arith.constant dense<0.000000e+00> : vector<12x256xf32>
    %6 = tpu.matmul %0, %5, %cst {dimension_numbers = #tpu.dot_dimension_numbers<[1], [0], [0], [1], [0, 0, 1, 1], [], []>} : vector<12x72xf32>, vector<72x256xf32>, vector<12x256xf32> -> vector<12x256xf32>
    %7 = vector.broadcast %1 : vector<12x1xf32> to vector<12x256xf32>
    %8 = arith.addf %6, %7 : vector<12x256xf32>
    %c0_10 = arith.constant 0 : index
    %c0_11 = arith.constant 0 : index
    %9 = vector.load %arg7[%c0_10, %c0_11] : memref<12x256xf32, #tpu.memory_space<vmem>>, vector<12x256xf32>
    tpu.vector_store %arg7[%c0_10, %c0_11], %8 {strides = array<i32>} : memref<12x256xf32, #tpu.memory_space<vmem>>, vector<12x256xf32>,
    %c0_12 = arith.constant 0 : index
    %c0_13 = arith.constant 0 : index
    %10 = vector.load %arg7[%c0_12, %c0_13] : memref<12x256xf32, #tpu.memory_space<vmem>>, vector<12x16xf32>
    %cst_14 = arith.constant dense<0.000000e+00> : vector<12x32xf32>
    %11 = tpu.matmul %10, %3, %cst_14 {dimension_numbers = #tpu.dot_dimension_numbers<[1], [0], [0], [1], [0, 0, 1, 1], [], []>} : vector<12x16xf32>, vector<16x32xf32>, vector<12x32xf32> -> vector<12x32xf32>
    %c0_15 = arith.constant 0 : index
    %c0_16 = arith.constant 0 : index
    %c0_17 = arith.constant 0 : index
    %12 = vector.load %arg8[%c0_15, %c0_16, %c0_17] : memref<12x16x32xf32, #tpu.memory_space<vmem>>, vector<12x1x32xf32>
    %13 = vector.shape_cast %12 : vector<12x1x32xf32> to vector<12x32xf32>
    %14 = vector.shape_cast %11 : vector<12x32xf32> to vector<12x1x32xf32>
    tpu.vector_store %arg8[%c0_15, %c0_16, %c0_17], %14 {strides = array<i32>} : memref<12x16x32xf32, #tpu.memory_space<vmem>>, vector<12x1x32xf32>,
    %c0_18 = arith.constant 0 : index
    %c16 = arith.constant 16 : index
    %15 = vector.load %arg7[%c0_18, %c16] : memref<12x256xf32, #tpu.memory_space<vmem>>, vector<12x16xf32>
    %cst_19 = arith.constant dense<0.000000e+00> : vector<12x32xf32>
    %16 = tpu.matmul %15, %3, %cst_19 {dimension_numbers = #tpu.dot_dimension_numbers<[1], [0], [0], [1], [0, 0, 1, 1], [], []>} : vector<12x16xf32>, vector<16x32xf32>, vector<12x32xf32> -> vector<12x32xf32>
    %c0_20 = arith.constant 0 : index
    %c1 = arith.constant 1 : index
    %c0_21 = arith.constant 0 : index
    %17 = vector.load %arg8[%c0_20, %c1, %c0_21] : memref<12x16x32xf32, #tpu.memory_space<vmem>>, vector<12x1x32xf32>
    %18 = vector.shape_cast %17 : vector<12x1x32xf32> to vector<12x32xf32>
    %19 = vector.shape_cast %16 : vector<12x32xf32> to vector<12x1x32xf32>
    tpu.vector_store %arg8[%c0_20, %c1, %c0_21], %19 {strides = array<i32>} : memref<12x16x32xf32, #tpu.memory_space<vmem>>, vector<12x1x32xf32>,
    %c0_22 = arith.constant 0 : index
    %c32 = arith.constant 32 : index
    %20 = vector.load %arg7[%c0_22, %c32] : memref<12x256xf32, #tpu.memory_space<vmem>>, vector<12x16xf32>
    %cst_23 = arith.constant dense<0.000000e+00> : vector<12x32xf32>
    %21 = tpu.matmul %20, %3, %cst_23 {dimension_numbers = #tpu.dot_dimension_numbers<[1], [0], [0], [1], [0, 0, 1, 1], [], []>} : vector<12x16xf32>, vector<16x32xf32>, vector<12x32xf32> -> vector<12x32xf32>
    %c0_24 = arith.constant 0 : index
    %c2 = arith.constant 2 : index
    %c0_25 = arith.constant 0 : index
    %22 = vector.load %arg8[%c0_24, %c2, %c0_25] : memref<12x16x32xf32, #tpu.memory_space<vmem>>, vector<12x1x32xf32>
    %23 = vector.shape_cast %22 : vector<12x1x32xf32> to vector<12x32xf32>
    %24 = vector.shape_cast %21 : vector<12x32xf32> to vector<12x1x32xf32>
    tpu.vector_store %arg8[%c0_24, %c2, %c0_25], %24 {strides = array<i32>} : memref<12x16x32xf32, #tpu.memory_space<vmem>>, vector<12x1x32xf32>,
    %c0_26 = arith.constant 0 : index
    %c48 = arith.constant 48 : index
    %25 = vector.load %arg7[%c0_26, %c48] : memref<12x256xf32, #tpu.memory_space<vmem>>, vector<12x16xf32>
    %cst_27 = arith.constant dense<0.000000e+00> : vector<12x32xf32>
    %26 = tpu.matmul %25, %3, %cst_27 {dimension_numbers = #tpu.dot_dimension_numbers<[1], [0], [0], [1], [0, 0, 1, 1], [], []>} : vector<12x16xf32>, vector<16x32xf32>, vector<12x32xf32> -> vector<12x32xf32>
    %c0_28 = arith.constant 0 : index
    %c3 = arith.constant 3 : index
    %c0_29 = arith.constant 0 : index
    %27 = vector.load %arg8[%c0_28, %c3, %c0_29] : memref<12x16x32xf32, #tpu.memory_space<vmem>>, vector<12x1x32xf32>
    %28 = vector.shape_cast %27 : vector<12x1x32xf32> to vector<12x32xf32>
    %29 = vector.shape_cast %26 : vector<12x32xf32> to vector<12x1x32xf32>
    tpu.vector_store %arg8[%c0_28, %c3, %c0_29], %29 {strides = array<i32>} : memref<12x16x32xf32, #tpu.memory_space<vmem>>, vector<12x1x32xf32>,
    %c0_30 = arith.constant 0 : index
    %c64 = arith.constant 64 : index
    %30 = vector.load %arg7[%c0_30, %c64] : memref<12x256xf32, #tpu.memory_space<vmem>>, vector<12x16xf32>
    %cst_31 = arith.constant dense<0.000000e+00> : vector<12x32xf32>
    %31 = tpu.matmul %30, %3, %cst_31 {dimension_numbers = #tpu.dot_dimension_numbers<[1], [0], [0], [1], [0, 0, 1, 1], [], []>} : vector<12x16xf32>, vector<16x32xf32>, vector<12x32xf32> -> vector<12x32xf32>
    %c0_32 = arith.constant 0 : index
    %c4 = arith.constant 4 : index
    %c0_33 = arith.constant 0 : index
    %32 = vector.load %arg8[%c0_32, %c4, %c0_33] : memref<12x16x32xf32, #tpu.memory_space<vmem>>, vector<12x1x32xf32>
    %33 = vector.shape_cast %32 : vector<12x1x32xf32> to vector<12x32xf32>
    %34 = vector.shape_cast %31 : vector<12x32xf32> to vector<12x1x32xf32>
    tpu.vector_store %arg8[%c0_32, %c4, %c0_33], %34 {strides = array<i32>} : memref<12x16x32xf32, #tpu.memory_space<vmem>>, vector<12x1x32xf32>,
    %c0_34 = arith.constant 0 : index
    %c80 = arith.constant 80 : index
    %35 = vector.load %arg7[%c0_34, %c80] : memref<12x256xf32, #tpu.memory_space<vmem>>, vector<12x16xf32>
    %cst_35 = arith.constant dense<0.000000e+00> : vector<12x32xf32>
    %36 = tpu.matmul %35, %3, %cst_35 {dimension_numbers = #tpu.dot_dimension_numbers<[1], [0], [0], [1], [0, 0, 1, 1], [], []>} : vector<12x16xf32>, vector<16x32xf32>, vector<12x32xf32> -> vector<12x32xf32>
    %c0_36 = arith.constant 0 : index
    %c5 = arith.constant 5 : index
    %c0_37 = arith.constant 0 : index
    %37 = vector.load %arg8[%c0_36, %c5, %c0_37] : memref<12x16x32xf32, #tpu.memory_space<vmem>>, vector<12x1x32xf32>
    %38 = vector.shape_cast %37 : vector<12x1x32xf32> to vector<12x32xf32>
    %39 = vector.shape_cast %36 : vector<12x32xf32> to vector<12x1x32xf32>
    tpu.vector_store %arg8[%c0_36, %c5, %c0_37], %39 {strides = array<i32>} : memref<12x16x32xf32, #tpu.memory_space<vmem>>, vector<12x1x32xf32>,
    %c0_38 = arith.constant 0 : index
    %c96 = arith.constant 96 : index
    %40 = vector.load %arg7[%c0_38, %c96] : memref<12x256xf32, #tpu.memory_space<vmem>>, vector<12x16xf32>
    %cst_39 = arith.constant dense<0.000000e+00> : vector<12x32xf32>
    %41 = tpu.matmul %40, %3, %cst_39 {dimension_numbers = #tpu.dot_dimension_numbers<[1], [0], [0], [1], [0, 0, 1, 1], [], []>} : vector<12x16xf32>, vector<16x32xf32>, vector<12x32xf32> -> vector<12x32xf32>
    %c0_40 = arith.constant 0 : index
    %c6 = arith.constant 6 : index
    %c0_41 = arith.constant 0 : index
    %42 = vector.load %arg8[%c0_40, %c6, %c0_41] : memref<12x16x32xf32, #tpu.memory_space<vmem>>, vector<12x1x32xf32>
    %43 = vector.shape_cast %42 : vector<12x1x32xf32> to vector<12x32xf32>
    %44 = vector.shape_cast %41 : vector<12x32xf32> to vector<12x1x32xf32>
    tpu.vector_store %arg8[%c0_40, %c6, %c0_41], %44 {strides = array<i32>} : memref<12x16x32xf32, #tpu.memory_space<vmem>>, vector<12x1x32xf32>,
    %c0_42 = arith.constant 0 : index
    %c112 = arith.constant 112 : index
    %45 = vector.load %arg7[%c0_42, %c112] : memref<12x256xf32, #tpu.memory_space<vmem>>, vector<12x16xf32>
    %cst_43 = arith.constant dense<0.000000e+00> : vector<12x32xf32>
    %46 = tpu.matmul %45, %3, %cst_43 {dimension_numbers = #tpu.dot_dimension_numbers<[1], [0], [0], [1], [0, 0, 1, 1], [], []>} : vector<12x16xf32>, vector<16x32xf32>, vector<12x32xf32> -> vector<12x32xf32>
    %c0_44 = arith.constant 0 : index
    %c7 = arith.constant 7 : index
    %c0_45 = arith.constant 0 : index
    %47 = vector.load %arg8[%c0_44, %c7, %c0_45] : memref<12x16x32xf32, #tpu.memory_space<vmem>>, vector<12x1x32xf32>
    %48 = vector.shape_cast %47 : vector<12x1x32xf32> to vector<12x32xf32>
    %49 = vector.shape_cast %46 : vector<12x32xf32> to vector<12x1x32xf32>
    tpu.vector_store %arg8[%c0_44, %c7, %c0_45], %49 {strides = array<i32>} : memref<12x16x32xf32, #tpu.memory_space<vmem>>, vector<12x1x32xf32>,
    %c0_46 = arith.constant 0 : index
    %c128 = arith.constant 128 : index
    %50 = vector.load %arg7[%c0_46, %c128] : memref<12x256xf32, #tpu.memory_space<vmem>>, vector<12x16xf32>
    %cst_47 = arith.constant dense<0.000000e+00> : vector<12x32xf32>
    %51 = tpu.matmul %50, %3, %cst_47 {dimension_numbers = #tpu.dot_dimension_numbers<[1], [0], [0], [1], [0, 0, 1, 1], [], []>} : vector<12x16xf32>, vector<16x32xf32>, vector<12x32xf32> -> vector<12x32xf32>
    %c0_48 = arith.constant 0 : index
    %c8 = arith.constant 8 : index
    %c0_49 = arith.constant 0 : index
    %52 = vector.load %arg8[%c0_48, %c8, %c0_49] : memref<12x16x32xf32, #tpu.memory_space<vmem>>, vector<12x1x32xf32>
    %53 = vector.shape_cast %52 : vector<12x1x32xf32> to vector<12x32xf32>
    %54 = vector.shape_cast %51 : vector<12x32xf32> to vector<12x1x32xf32>
    tpu.vector_store %arg8[%c0_48, %c8, %c0_49], %54 {strides = array<i32>} : memref<12x16x32xf32, #tpu.memory_space<vmem>>, vector<12x1x32xf32>,
    %c0_50 = arith.constant 0 : index
    %c144 = arith.constant 144 : index
    %55 = vector.load %arg7[%c0_50, %c144] : memref<12x256xf32, #tpu.memory_space<vmem>>, vector<12x16xf32>
    %cst_51 = arith.constant dense<0.000000e+00> : vector<12x32xf32>
    %56 = tpu.matmul %55, %3, %cst_51 {dimension_numbers = #tpu.dot_dimension_numbers<[1], [0], [0], [1], [0, 0, 1, 1], [], []>} : vector<12x16xf32>, vector<16x32xf32>, vector<12x32xf32> -> vector<12x32xf32>
    %c0_52 = arith.constant 0 : index
    %c9 = arith.constant 9 : index
    %c0_53 = arith.constant 0 : index
    %57 = vector.load %arg8[%c0_52, %c9, %c0_53] : memref<12x16x32xf32, #tpu.memory_space<vmem>>, vector<12x1x32xf32>
    %58 = vector.shape_cast %57 : vector<12x1x32xf32> to vector<12x32xf32>
    %59 = vector.shape_cast %56 : vector<12x32xf32> to vector<12x1x32xf32>
    tpu.vector_store %arg8[%c0_52, %c9, %c0_53], %59 {strides = array<i32>} : memref<12x16x32xf32, #tpu.memory_space<vmem>>, vector<12x1x32xf32>,
    %c0_54 = arith.constant 0 : index
    %c160 = arith.constant 160 : index
    %60 = vector.load %arg7[%c0_54, %c160] : memref<12x256xf32, #tpu.memory_space<vmem>>, vector<12x16xf32>
    %cst_55 = arith.constant dense<0.000000e+00> : vector<12x32xf32>
    %61 = tpu.matmul %60, %3, %cst_55 {dimension_numbers = #tpu.dot_dimension_numbers<[1], [0], [0], [1], [0, 0, 1, 1], [], []>} : vector<12x16xf32>, vector<16x32xf32>, vector<12x32xf32> -> vector<12x32xf32>
    %c0_56 = arith.constant 0 : index
    %c10 = arith.constant 10 : index
    %c0_57 = arith.constant 0 : index
    %62 = vector.load %arg8[%c0_56, %c10, %c0_57] : memref<12x16x32xf32, #tpu.memory_space<vmem>>, vector<12x1x32xf32>
    %63 = vector.shape_cast %62 : vector<12x1x32xf32> to vector<12x32xf32>
    %64 = vector.shape_cast %61 : vector<12x32xf32> to vector<12x1x32xf32>
    tpu.vector_store %arg8[%c0_56, %c10, %c0_57], %64 {strides = array<i32>} : memref<12x16x32xf32, #tpu.memory_space<vmem>>, vector<12x1x32xf32>,
    %c0_58 = arith.constant 0 : index
    %c176 = arith.constant 176 : index
    %65 = vector.load %arg7[%c0_58, %c176] : memref<12x256xf32, #tpu.memory_space<vmem>>, vector<12x16xf32>
    %cst_59 = arith.constant dense<0.000000e+00> : vector<12x32xf32>
    %66 = tpu.matmul %65, %3, %cst_59 {dimension_numbers = #tpu.dot_dimension_numbers<[1], [0], [0], [1], [0, 0, 1, 1], [], []>} : vector<12x16xf32>, vector<16x32xf32>, vector<12x32xf32> -> vector<12x32xf32>
    %c0_60 = arith.constant 0 : index
    %c11 = arith.constant 11 : index
    %c0_61 = arith.constant 0 : index
    %67 = vector.load %arg8[%c0_60, %c11, %c0_61] : memref<12x16x32xf32, #tpu.memory_space<vmem>>, vector<12x1x32xf32>
    %68 = vector.shape_cast %67 : vector<12x1x32xf32> to vector<12x32xf32>
    %69 = vector.shape_cast %66 : vector<12x32xf32> to vector<12x1x32xf32>
    tpu.vector_store %arg8[%c0_60, %c11, %c0_61], %69 {strides = array<i32>} : memref<12x16x32xf32, #tpu.memory_space<vmem>>, vector<12x1x32xf32>,
    %c0_62 = arith.constant 0 : index
    %c192 = arith.constant 192 : index
    %70 = vector.load %arg7[%c0_62, %c192] : memref<12x256xf32, #tpu.memory_space<vmem>>, vector<12x16xf32>
    %cst_63 = arith.constant dense<0.000000e+00> : vector<12x32xf32>
    %71 = tpu.matmul %70, %3, %cst_63 {dimension_numbers = #tpu.dot_dimension_numbers<[1], [0], [0], [1], [0, 0, 1, 1], [], []>} : vector<12x16xf32>, vector<16x32xf32>, vector<12x32xf32> -> vector<12x32xf32>
    %c0_64 = arith.constant 0 : index
    %c12 = arith.constant 12 : index
    %c0_65 = arith.constant 0 : index
    %72 = vector.load %arg8[%c0_64, %c12, %c0_65] : memref<12x16x32xf32, #tpu.memory_space<vmem>>, vector<12x1x32xf32>
    %73 = vector.shape_cast %72 : vector<12x1x32xf32> to vector<12x32xf32>
    %74 = vector.shape_cast %71 : vector<12x32xf32> to vector<12x1x32xf32>
    tpu.vector_store %arg8[%c0_64, %c12, %c0_65], %74 {strides = array<i32>} : memref<12x16x32xf32, #tpu.memory_space<vmem>>, vector<12x1x32xf32>,
    %c0_66 = arith.constant 0 : index
    %c208 = arith.constant 208 : index
    %75 = vector.load %arg7[%c0_66, %c208] : memref<12x256xf32, #tpu.memory_space<vmem>>, vector<12x16xf32>
    %cst_67 = arith.constant dense<0.000000e+00> : vector<12x32xf32>
    %76 = tpu.matmul %75, %3, %cst_67 {dimension_numbers = #tpu.dot_dimension_numbers<[1], [0], [0], [1], [0, 0, 1, 1], [], []>} : vector<12x16xf32>, vector<16x32xf32>, vector<12x32xf32> -> vector<12x32xf32>
    %c0_68 = arith.constant 0 : index
    %c13 = arith.constant 13 : index
    %c0_69 = arith.constant 0 : index
    %77 = vector.load %arg8[%c0_68, %c13, %c0_69] : memref<12x16x32xf32, #tpu.memory_space<vmem>>, vector<12x1x32xf32>
    %78 = vector.shape_cast %77 : vector<12x1x32xf32> to vector<12x32xf32>
    %79 = vector.shape_cast %76 : vector<12x32xf32> to vector<12x1x32xf32>
    tpu.vector_store %arg8[%c0_68, %c13, %c0_69], %79 {strides = array<i32>} : memref<12x16x32xf32, #tpu.memory_space<vmem>>, vector<12x1x32xf32>,
    %c0_70 = arith.constant 0 : index
    %c224 = arith.constant 224 : index
    %80 = vector.load %arg7[%c0_70, %c224] : memref<12x256xf32, #tpu.memory_space<vmem>>, vector<12x16xf32>
    %cst_71 = arith.constant dense<0.000000e+00> : vector<12x32xf32>
    %81 = tpu.matmul %80, %3, %cst_71 {dimension_numbers = #tpu.dot_dimension_numbers<[1], [0], [0], [1], [0, 0, 1, 1], [], []>} : vector<12x16xf32>, vector<16x32xf32>, vector<12x32xf32> -> vector<12x32xf32>
    %c0_72 = arith.constant 0 : index
    %c14 = arith.constant 14 : index
    %c0_73 = arith.constant 0 : index
    %82 = vector.load %arg8[%c0_72, %c14, %c0_73] : memref<12x16x32xf32, #tpu.memory_space<vmem>>, vector<12x1x32xf32>
    %83 = vector.shape_cast %82 : vector<12x1x32xf32> to vector<12x32xf32>
    %84 = vector.shape_cast %81 : vector<12x32xf32> to vector<12x1x32xf32>
    tpu.vector_store %arg8[%c0_72, %c14, %c0_73], %84 {strides = array<i32>} : memref<12x16x32xf32, #tpu.memory_space<vmem>>, vector<12x1x32xf32>,
    %c0_74 = arith.constant 0 : index
    %c240 = arith.constant 240 : index
    %85 = vector.load %arg7[%c0_74, %c240] : memref<12x256xf32, #tpu.memory_space<vmem>>, vector<12x16xf32>
    %cst_75 = arith.constant dense<0.000000e+00> : vector<12x32xf32>
    %86 = tpu.matmul %85, %3, %cst_75 {dimension_numbers = #tpu.dot_dimension_numbers<[1], [0], [0], [1], [0, 0, 1, 1], [], []>} : vector<12x16xf32>, vector<16x32xf32>, vector<12x32xf32> -> vector<12x32xf32>
    %c0_76 = arith.constant 0 : index
    %c15 = arith.constant 15 : index
    %c0_77 = arith.constant 0 : index
    %87 = vector.load %arg8[%c0_76, %c15, %c0_77] : memref<12x16x32xf32, #tpu.memory_space<vmem>>, vector<12x1x32xf32>
    %88 = vector.shape_cast %87 : vector<12x1x32xf32> to vector<12x32xf32>
    %89 = vector.shape_cast %86 : vector<12x32xf32> to vector<12x1x32xf32>
    tpu.vector_store %arg8[%c0_76, %c15, %c0_77], %89 {strides = array<i32>} : memref<12x16x32xf32, #tpu.memory_space<vmem>>, vector<12x1x32xf32>,
    %c0_78 = arith.constant 0 : index
    %c0_79 = arith.constant 0 : index
    %c0_80 = arith.constant 0 : index
    %90 = vector.load %arg8[%c0_78, %c0_79, %c0_80] : memref<12x16x32xf32, #tpu.memory_space<vmem>>, vector<1x16x32xf32>
    %91 = vector.shape_cast %90 : vector<1x16x32xf32> to vector<16x32xf32>
    %cst_81 = arith.constant dense<0.000000e+00> : vector<32x32xf32>
    %92 = tpu.matmul %2, %91, %cst_81 {dimension_numbers = #tpu.dot_dimension_numbers<[1], [0], [0], [1], [0, 0, 1, 1], [], []>} : vector<32x16xf32>, vector<16x32xf32>, vector<32x32xf32> -> vector<32x32xf32>
    %c0_82 = arith.constant 0 : index
    %c0_83 = arith.constant 0 : index
    %c0_84 = arith.constant 0 : index
    %93 = vector.load %arg9[%c0_82, %c0_83, %c0_84] : memref<4x32x32xf32, #tpu.memory_space<vmem>>, vector<1x32x32xf32>
    %94 = vector.shape_cast %93 : vector<1x32x32xf32> to vector<32x32xf32>
    %95 = vector.shape_cast %92 : vector<32x32xf32> to vector<1x32x32xf32>
    tpu.vector_store %arg9[%c0_82, %c0_83, %c0_84], %95 {strides = array<i32>} : memref<4x32x32xf32, #tpu.memory_space<vmem>>, vector<1x32x32xf32>,
    %c1_85 = arith.constant 1 : index
    %c0_86 = arith.constant 0 : index
    %c0_87 = arith.constant 0 : index
    %96 = vector.load %arg8[%c1_85, %c0_86, %c0_87] : memref<12x16x32xf32, #tpu.memory_space<vmem>>, vector<1x16x32xf32>
    %97 = vector.shape_cast %96 : vector<1x16x32xf32> to vector<16x32xf32>
    %cst_88 = arith.constant dense<0.000000e+00> : vector<32x32xf32>
    %98 = tpu.matmul %2, %97, %cst_88 {dimension_numbers = #tpu.dot_dimension_numbers<[1], [0], [0], [1], [0, 0, 1, 1], [], []>} : vector<32x16xf32>, vector<16x32xf32>, vector<32x32xf32> -> vector<32x32xf32>
    %c1_89 = arith.constant 1 : index
    %c0_90 = arith.constant 0 : index
    %c0_91 = arith.constant 0 : index
    %99 = vector.load %arg9[%c1_89, %c0_90, %c0_91] : memref<4x32x32xf32, #tpu.memory_space<vmem>>, vector<1x32x32xf32>
    %100 = vector.shape_cast %99 : vector<1x32x32xf32> to vector<32x32xf32>
    %101 = vector.shape_cast %98 : vector<32x32xf32> to vector<1x32x32xf32>
    tpu.vector_store %arg9[%c1_89, %c0_90, %c0_91], %101 {strides = array<i32>} : memref<4x32x32xf32, #tpu.memory_space<vmem>>, vector<1x32x32xf32>,
    %c2_92 = arith.constant 2 : index
    %c0_93 = arith.constant 0 : index
    %c0_94 = arith.constant 0 : index
    %102 = vector.load %arg8[%c2_92, %c0_93, %c0_94] : memref<12x16x32xf32, #tpu.memory_space<vmem>>, vector<1x16x32xf32>
    %103 = vector.shape_cast %102 : vector<1x16x32xf32> to vector<16x32xf32>
    %cst_95 = arith.constant dense<0.000000e+00> : vector<32x32xf32>
    %104 = tpu.matmul %2, %103, %cst_95 {dimension_numbers = #tpu.dot_dimension_numbers<[1], [0], [0], [1], [0, 0, 1, 1], [], []>} : vector<32x16xf32>, vector<16x32xf32>, vector<32x32xf32> -> vector<32x32xf32>
    %c2_96 = arith.constant 2 : index
    %c0_97 = arith.constant 0 : index
    %c0_98 = arith.constant 0 : index
    %105 = vector.load %arg9[%c2_96, %c0_97, %c0_98] : memref<4x32x32xf32, #tpu.memory_space<vmem>>, vector<1x32x32xf32>
    %106 = vector.shape_cast %105 : vector<1x32x32xf32> to vector<32x32xf32>
    %107 = vector.shape_cast %104 : vector<32x32xf32> to vector<1x32x32xf32>
    tpu.vector_store %arg9[%c2_96, %c0_97, %c0_98], %107 {strides = array<i32>} : memref<4x32x32xf32, #tpu.memory_space<vmem>>, vector<1x32x32xf32>,
    %c3_99 = arith.constant 3 : index
    %c0_100 = arith.constant 0 : index
    %c0_101 = arith.constant 0 : index
    %108 = vector.load %arg8[%c3_99, %c0_100, %c0_101] : memref<12x16x32xf32, #tpu.memory_space<vmem>>, vector<1x16x32xf32>
    %109 = vector.shape_cast %108 : vector<1x16x32xf32> to vector<16x32xf32>
    %cst_102 = arith.constant dense<0.000000e+00> : vector<32x32xf32>
    %110 = tpu.matmul %2, %109, %cst_102 {dimension_numbers = #tpu.dot_dimension_numbers<[1], [0], [0], [1], [0, 0, 1, 1], [], []>} : vector<32x16xf32>, vector<16x32xf32>, vector<32x32xf32> -> vector<32x32xf32>
    %c3_103 = arith.constant 3 : index
    %c0_104 = arith.constant 0 : index
    %c0_105 = arith.constant 0 : index
    %111 = vector.load %arg9[%c3_103, %c0_104, %c0_105] : memref<4x32x32xf32, #tpu.memory_space<vmem>>, vector<1x32x32xf32>
    %112 = vector.shape_cast %111 : vector<1x32x32xf32> to vector<32x32xf32>
    %113 = vector.shape_cast %110 : vector<32x32xf32> to vector<1x32x32xf32>
    tpu.vector_store %arg9[%c3_103, %c0_104, %c0_105], %113 {strides = array<i32>} : memref<4x32x32xf32, #tpu.memory_space<vmem>>, vector<1x32x32xf32>,
    %c4_106 = arith.constant 4 : index
    %c0_107 = arith.constant 0 : index
    %c0_108 = arith.constant 0 : index
    %114 = vector.load %arg8[%c4_106, %c0_107, %c0_108] : memref<12x16x32xf32, #tpu.memory_space<vmem>>, vector<1x16x32xf32>
    %115 = vector.shape_cast %114 : vector<1x16x32xf32> to vector<16x32xf32>
    %cst_109 = arith.constant dense<0.000000e+00> : vector<32x32xf32>
    %116 = tpu.matmul %2, %115, %cst_109 {dimension_numbers = #tpu.dot_dimension_numbers<[1], [0], [0], [1], [0, 0, 1, 1], [], []>} : vector<32x16xf32>, vector<16x32xf32>, vector<32x32xf32> -> vector<32x32xf32>
    %c0_110 = arith.constant 0 : index
    %c4_111 = arith.constant 4 : index
    %c0_112 = arith.constant 0 : index
    %c0_113 = arith.constant 0 : index
    %117 = vector.load %arg6[%c0_110, %c4_111, %c0_112, %c0_113] : memref<2x12x32x32xf32, #tpu.memory_space<vmem>>, vector<1x1x32x32xf32>
    %118 = vector.shape_cast %117 : vector<1x1x32x32xf32> to vector<32x32xf32>
    %119 = vector.shape_cast %116 : vector<32x32xf32> to vector<1x1x32x32xf32>
    tpu.vector_store %arg6[%c0_110, %c4_111, %c0_112, %c0_113], %119 {strides = array<i32>} : memref<2x12x32x32xf32, #tpu.memory_space<vmem>>, vector<1x1x32x32xf32>,
    %c5_114 = arith.constant 5 : index
    %c0_115 = arith.constant 0 : index
    %c0_116 = arith.constant 0 : index
    %120 = vector.load %arg8[%c5_114, %c0_115, %c0_116] : memref<12x16x32xf32, #tpu.memory_space<vmem>>, vector<1x16x32xf32>
    %121 = vector.shape_cast %120 : vector<1x16x32xf32> to vector<16x32xf32>
    %cst_117 = arith.constant dense<0.000000e+00> : vector<32x32xf32>
    %122 = tpu.matmul %2, %121, %cst_117 {dimension_numbers = #tpu.dot_dimension_numbers<[1], [0], [0], [1], [0, 0, 1, 1], [], []>} : vector<32x16xf32>, vector<16x32xf32>, vector<32x32xf32> -> vector<32x32xf32>
    %c0_118 = arith.constant 0 : index
    %c5_119 = arith.constant 5 : index
    %c0_120 = arith.constant 0 : index
    %c0_121 = arith.constant 0 : index
    %123 = vector.load %arg6[%c0_118, %c5_119, %c0_120, %c0_121] : memref<2x12x32x32xf32, #tpu.memory_space<vmem>>, vector<1x1x32x32xf32>
    %124 = vector.shape_cast %123 : vector<1x1x32x32xf32> to vector<32x32xf32>
    %125 = vector.shape_cast %122 : vector<32x32xf32> to vector<1x1x32x32xf32>
    tpu.vector_store %arg6[%c0_118, %c5_119, %c0_120, %c0_121], %125 {strides = array<i32>} : memref<2x12x32x32xf32, #tpu.memory_space<vmem>>, vector<1x1x32x32xf32>,
    %c6_122 = arith.constant 6 : index
    %c0_123 = arith.constant 0 : index
    %c0_124 = arith.constant 0 : index
    %126 = vector.load %arg8[%c6_122, %c0_123, %c0_124] : memref<12x16x32xf32, #tpu.memory_space<vmem>>, vector<1x16x32xf32>
    %127 = vector.shape_cast %126 : vector<1x16x32xf32> to vector<16x32xf32>
    %cst_125 = arith.constant dense<0.000000e+00> : vector<32x32xf32>
    %128 = tpu.matmul %2, %127, %cst_125 {dimension_numbers = #tpu.dot_dimension_numbers<[1], [0], [0], [1], [0, 0, 1, 1], [], []>} : vector<32x16xf32>, vector<16x32xf32>, vector<32x32xf32> -> vector<32x32xf32>
    %c0_126 = arith.constant 0 : index
    %c6_127 = arith.constant 6 : index
    %c0_128 = arith.constant 0 : index
    %c0_129 = arith.constant 0 : index
    %129 = vector.load %arg6[%c0_126, %c6_127, %c0_128, %c0_129] : memref<2x12x32x32xf32, #tpu.memory_space<vmem>>, vector<1x1x32x32xf32>
    %130 = vector.shape_cast %129 : vector<1x1x32x32xf32> to vector<32x32xf32>
    %131 = vector.shape_cast %128 : vector<32x32xf32> to vector<1x1x32x32xf32>
    tpu.vector_store %arg6[%c0_126, %c6_127, %c0_128, %c0_129], %131 {strides = array<i32>} : memref<2x12x32x32xf32, #tpu.memory_space<vmem>>, vector<1x1x32x32xf32>,
    %c7_130 = arith.constant 7 : index
    %c0_131 = arith.constant 0 : index
    %c0_132 = arith.constant 0 : index
    %132 = vector.load %arg8[%c7_130, %c0_131, %c0_132] : memref<12x16x32xf32, #tpu.memory_space<vmem>>, vector<1x16x32xf32>
    %133 = vector.shape_cast %132 : vector<1x16x32xf32> to vector<16x32xf32>
    %cst_133 = arith.constant dense<0.000000e+00> : vector<32x32xf32>
    %134 = tpu.matmul %2, %133, %cst_133 {dimension_numbers = #tpu.dot_dimension_numbers<[1], [0], [0], [1], [0, 0, 1, 1], [], []>} : vector<32x16xf32>, vector<16x32xf32>, vector<32x32xf32> -> vector<32x32xf32>
    %c0_134 = arith.constant 0 : index
    %c7_135 = arith.constant 7 : index
    %c0_136 = arith.constant 0 : index
    %c0_137 = arith.constant 0 : index
    %135 = vector.load %arg6[%c0_134, %c7_135, %c0_136, %c0_137] : memref<2x12x32x32xf32, #tpu.memory_space<vmem>>, vector<1x1x32x32xf32>
    %136 = vector.shape_cast %135 : vector<1x1x32x32xf32> to vector<32x32xf32>
    %137 = vector.shape_cast %134 : vector<32x32xf32> to vector<1x1x32x32xf32>
    tpu.vector_store %arg6[%c0_134, %c7_135, %c0_136, %c0_137], %137 {strides = array<i32>} : memref<2x12x32x32xf32, #tpu.memory_space<vmem>>, vector<1x1x32x32xf32>,
    %c8_138 = arith.constant 8 : index
    %c0_139 = arith.constant 0 : index
    %c0_140 = arith.constant 0 : index
    %138 = vector.load %arg8[%c8_138, %c0_139, %c0_140] : memref<12x16x32xf32, #tpu.memory_space<vmem>>, vector<1x16x32xf32>
    %139 = vector.shape_cast %138 : vector<1x16x32xf32> to vector<16x32xf32>
    %cst_141 = arith.constant dense<0.000000e+00> : vector<32x32xf32>
    %140 = tpu.matmul %2, %139, %cst_141 {dimension_numbers = #tpu.dot_dimension_numbers<[1], [0], [0], [1], [0, 0, 1, 1], [], []>} : vector<32x16xf32>, vector<16x32xf32>, vector<32x32xf32> -> vector<32x32xf32>
    %141 = math.exp %140 : vector<32x32xf32>
    %c0_142 = arith.constant 0 : index
    %c8_143 = arith.constant 8 : index
    %c0_144 = arith.constant 0 : index
    %c0_145 = arith.constant 0 : index
    %142 = vector.load %arg6[%c0_142, %c8_143, %c0_144, %c0_145] : memref<2x12x32x32xf32, #tpu.memory_space<vmem>>, vector<1x1x32x32xf32>
    %143 = vector.shape_cast %142 : vector<1x1x32x32xf32> to vector<32x32xf32>
    %144 = vector.shape_cast %141 : vector<32x32xf32> to vector<1x1x32x32xf32>
    tpu.vector_store %arg6[%c0_142, %c8_143, %c0_144, %c0_145], %144 {strides = array<i32>} : memref<2x12x32x32xf32, #tpu.memory_space<vmem>>, vector<1x1x32x32xf32>,
    %c9_146 = arith.constant 9 : index
    %c0_147 = arith.constant 0 : index
    %c0_148 = arith.constant 0 : index
    %145 = vector.load %arg8[%c9_146, %c0_147, %c0_148] : memref<12x16x32xf32, #tpu.memory_space<vmem>>, vector<1x16x32xf32>
    %146 = vector.shape_cast %145 : vector<1x16x32xf32> to vector<16x32xf32>
    %cst_149 = arith.constant dense<0.000000e+00> : vector<32x32xf32>
    %147 = tpu.matmul %2, %146, %cst_149 {dimension_numbers = #tpu.dot_dimension_numbers<[1], [0], [0], [1], [0, 0, 1, 1], [], []>} : vector<32x16xf32>, vector<16x32xf32>, vector<32x32xf32> -> vector<32x32xf32>
    %148 = math.exp %147 : vector<32x32xf32>
    %c0_150 = arith.constant 0 : index
    %c9_151 = arith.constant 9 : index
    %c0_152 = arith.constant 0 : index
    %c0_153 = arith.constant 0 : index
    %149 = vector.load %arg6[%c0_150, %c9_151, %c0_152, %c0_153] : memref<2x12x32x32xf32, #tpu.memory_space<vmem>>, vector<1x1x32x32xf32>
    %150 = vector.shape_cast %149 : vector<1x1x32x32xf32> to vector<32x32xf32>
    %151 = vector.shape_cast %148 : vector<32x32xf32> to vector<1x1x32x32xf32>
    tpu.vector_store %arg6[%c0_150, %c9_151, %c0_152, %c0_153], %151 {strides = array<i32>} : memref<2x12x32x32xf32, #tpu.memory_space<vmem>>, vector<1x1x32x32xf32>,
    %c10_154 = arith.constant 10 : index
    %c0_155 = arith.constant 0 : index
    %c0_156 = arith.constant 0 : index
    %152 = vector.load %arg8[%c10_154, %c0_155, %c0_156] : memref<12x16x32xf32, #tpu.memory_space<vmem>>, vector<1x16x32xf32>
    %153 = vector.shape_cast %152 : vector<1x16x32xf32> to vector<16x32xf32>
    %cst_157 = arith.constant dense<0.000000e+00> : vector<32x32xf32>
    %154 = tpu.matmul %2, %153, %cst_157 {dimension_numbers = #tpu.dot_dimension_numbers<[1], [0], [0], [1], [0, 0, 1, 1], [], []>} : vector<32x16xf32>, vector<16x32xf32>, vector<32x32xf32> -> vector<32x32xf32>
    %155 = math.exp %154 : vector<32x32xf32>
    %c0_158 = arith.constant 0 : index
    %c10_159 = arith.constant 10 : index
    %c0_160 = arith.constant 0 : index
    %c0_161 = arith.constant 0 : index
    %156 = vector.load %arg6[%c0_158, %c10_159, %c0_160, %c0_161] : memref<2x12x32x32xf32, #tpu.memory_space<vmem>>, vector<1x1x32x32xf32>
    %157 = vector.shape_cast %156 : vector<1x1x32x32xf32> to vector<32x32xf32>
    %158 = vector.shape_cast %155 : vector<32x32xf32> to vector<1x1x32x32xf32>
    tpu.vector_store %arg6[%c0_158, %c10_159, %c0_160, %c0_161], %158 {strides = array<i32>} : memref<2x12x32x32xf32, #tpu.memory_space<vmem>>, vector<1x1x32x32xf32>,
    %c11_162 = arith.constant 11 : index
    %c0_163 = arith.constant 0 : index
    %c0_164 = arith.constant 0 : index
    %159 = vector.load %arg8[%c11_162, %c0_163, %c0_164] : memref<12x16x32xf32, #tpu.memory_space<vmem>>, vector<1x16x32xf32>
    %160 = vector.shape_cast %159 : vector<1x16x32xf32> to vector<16x32xf32>
    %cst_165 = arith.constant dense<0.000000e+00> : vector<32x32xf32>
    %161 = tpu.matmul %2, %160, %cst_165 {dimension_numbers = #tpu.dot_dimension_numbers<[1], [0], [0], [1], [0, 0, 1, 1], [], []>} : vector<32x16xf32>, vector<16x32xf32>, vector<32x32xf32> -> vector<32x32xf32>
    %162 = math.exp %161 : vector<32x32xf32>
    %c0_166 = arith.constant 0 : index
    %c11_167 = arith.constant 11 : index
    %c0_168 = arith.constant 0 : index
    %c0_169 = arith.constant 0 : index
    %163 = vector.load %arg6[%c0_166, %c11_167, %c0_168, %c0_169] : memref<2x12x32x32xf32, #tpu.memory_space<vmem>>, vector<1x1x32x32xf32>
    %164 = vector.shape_cast %163 : vector<1x1x32x32xf32> to vector<32x32xf32>
    %165 = vector.shape_cast %162 : vector<32x32xf32> to vector<1x1x32x32xf32>
    tpu.vector_store %arg6[%c0_166, %c11_167, %c0_168, %c0_169], %165 {strides = array<i32>} : memref<2x12x32x32xf32, #tpu.memory_space<vmem>>, vector<1x1x32x32xf32>,
    %c0_170 = arith.constant 0 : index
    %c0_171 = arith.constant 0 : index
    %c0_172 = arith.constant 0 : index
    %166 = vector.load %arg9[%c0_170, %c0_171, %c0_172] : memref<4x32x32xf32, #tpu.memory_space<vmem>>, vector<1x32x32xf32>
    %167 = vector.shape_cast %166 : vector<1x32x32xf32> to vector<32x32xf32>
    %c1_173 = arith.constant 1 : index
    %c0_174 = arith.constant 0 : index
    %c0_175 = arith.constant 0 : index
    %168 = vector.load %arg9[%c1_173, %c0_174, %c0_175] : memref<4x32x32xf32, #tpu.memory_space<vmem>>, vector<1x32x32xf32>
    %169 = vector.shape_cast %168 : vector<1x32x32xf32> to vector<32x32xf32>
    %170 = arith.maximumf %167, %169 : vector<32x32xf32>
    %c2_176 = arith.constant 2 : index
    %c0_177 = arith.constant 0 : index
    %c0_178 = arith.constant 0 : index
    %171 = vector.load %arg9[%c2_176, %c0_177, %c0_178] : memref<4x32x32xf32, #tpu.memory_space<vmem>>, vector<1x32x32xf32>
    %172 = vector.shape_cast %171 : vector<1x32x32xf32> to vector<32x32xf32>
    %173 = arith.maximumf %170, %172 : vector<32x32xf32>
    %c3_179 = arith.constant 3 : index
    %c0_180 = arith.constant 0 : index
    %c0_181 = arith.constant 0 : index
    %174 = vector.load %arg9[%c3_179, %c0_180, %c0_181] : memref<4x32x32xf32, #tpu.memory_space<vmem>>, vector<1x32x32xf32>
    %175 = vector.shape_cast %174 : vector<1x32x32xf32> to vector<32x32xf32>
    %176 = arith.maximumf %173, %175 : vector<32x32xf32>
    %c0_182 = arith.constant 0 : index
    %c0_183 = arith.constant 0 : index
    %c0_184 = arith.constant 0 : index
    %177 = vector.load %arg9[%c0_182, %c0_183, %c0_184] : memref<4x32x32xf32, #tpu.memory_space<vmem>>, vector<1x32x32xf32>
    %178 = vector.shape_cast %177 : vector<1x32x32xf32> to vector<32x32xf32>
    %179 = arith.subf %178, %176 : vector<32x32xf32>
    %180 = math.exp %179 : vector<32x32xf32>
    %c1_185 = arith.constant 1 : index
    %c0_186 = arith.constant 0 : index
    %c0_187 = arith.constant 0 : index
    %181 = vector.load %arg9[%c1_185, %c0_186, %c0_187] : memref<4x32x32xf32, #tpu.memory_space<vmem>>, vector<1x32x32xf32>
    %182 = vector.shape_cast %181 : vector<1x32x32xf32> to vector<32x32xf32>
    %183 = arith.subf %182, %176 : vector<32x32xf32>
    %184 = math.exp %183 : vector<32x32xf32>
    %185 = arith.addf %180, %184 : vector<32x32xf32>
    %c2_188 = arith.constant 2 : index
    %c0_189 = arith.constant 0 : index
    %c0_190 = arith.constant 0 : index
    %186 = vector.load %arg9[%c2_188, %c0_189, %c0_190] : memref<4x32x32xf32, #tpu.memory_space<vmem>>, vector<1x32x32xf32>
    %187 = vector.shape_cast %186 : vector<1x32x32xf32> to vector<32x32xf32>
    %188 = arith.subf %187, %176 : vector<32x32xf32>
    %189 = math.exp %188 : vector<32x32xf32>
    %190 = arith.addf %185, %189 : vector<32x32xf32>
    %c3_191 = arith.constant 3 : index
    %c0_192 = arith.constant 0 : index
    %c0_193 = arith.constant 0 : index
    %191 = vector.load %arg9[%c3_191, %c0_192, %c0_193] : memref<4x32x32xf32, #tpu.memory_space<vmem>>, vector<1x32x32xf32>
    %192 = vector.shape_cast %191 : vector<1x32x32xf32> to vector<32x32xf32>
    %193 = arith.subf %192, %176 : vector<32x32xf32>
    %194 = math.exp %193 : vector<32x32xf32>
    %195 = arith.addf %190, %194 : vector<32x32xf32>
    %196 = tpu.reciprocal %195 : vector<32x32xf32> -> vector<32x32xf32>
    %197 = arith.mulf %180, %196 : vector<32x32xf32>
    %c0_194 = arith.constant 0 : index
    %c0_195 = arith.constant 0 : index
    %c0_196 = arith.constant 0 : index
    %c0_197 = arith.constant 0 : index
    %198 = vector.load %arg6[%c0_194, %c0_195, %c0_196, %c0_197] : memref<2x12x32x32xf32, #tpu.memory_space<vmem>>, vector<1x1x32x32xf32>
    %199 = vector.shape_cast %198 : vector<1x1x32x32xf32> to vector<32x32xf32>
    %200 = vector.shape_cast %197 : vector<32x32xf32> to vector<1x1x32x32xf32>
    tpu.vector_store %arg6[%c0_194, %c0_195, %c0_196, %c0_197], %200 {strides = array<i32>} : memref<2x12x32x32xf32, #tpu.memory_space<vmem>>, vector<1x1x32x32xf32>,
    %201 = arith.mulf %184, %196 : vector<32x32xf32>
    %c0_198 = arith.constant 0 : index
    %c1_199 = arith.constant 1 : index
    %c0_200 = arith.constant 0 : index
    %c0_201 = arith.constant 0 : index
    %202 = vector.load %arg6[%c0_198, %c1_199, %c0_200, %c0_201] : memref<2x12x32x32xf32, #tpu.memory_space<vmem>>, vector<1x1x32x32xf32>
    %203 = vector.shape_cast %202 : vector<1x1x32x32xf32> to vector<32x32xf32>
    %204 = vector.shape_cast %201 : vector<32x32xf32> to vector<1x1x32x32xf32>
    tpu.vector_store %arg6[%c0_198, %c1_199, %c0_200, %c0_201], %204 {strides = array<i32>} : memref<2x12x32x32xf32, #tpu.memory_space<vmem>>, vector<1x1x32x32xf32>,
    %205 = arith.mulf %189, %196 : vector<32x32xf32>
    %c0_202 = arith.constant 0 : index
    %c2_203 = arith.constant 2 : index
    %c0_204 = arith.constant 0 : index
    %c0_205 = arith.constant 0 : index
    %206 = vector.load %arg6[%c0_202, %c2_203, %c0_204, %c0_205] : memref<2x12x32x32xf32, #tpu.memory_space<vmem>>, vector<1x1x32x32xf32>
    %207 = vector.shape_cast %206 : vector<1x1x32x32xf32> to vector<32x32xf32>
    %208 = vector.shape_cast %205 : vector<32x32xf32> to vector<1x1x32x32xf32>
    tpu.vector_store %arg6[%c0_202, %c2_203, %c0_204, %c0_205], %208 {strides = array<i32>} : memref<2x12x32x32xf32, #tpu.memory_space<vmem>>, vector<1x1x32x32xf32>,
    %209 = arith.mulf %194, %196 : vector<32x32xf32>
    %c0_206 = arith.constant 0 : index
    %c3_207 = arith.constant 3 : index
    %c0_208 = arith.constant 0 : index
    %c0_209 = arith.constant 0 : index
    %210 = vector.load %arg6[%c0_206, %c3_207, %c0_208, %c0_209] : memref<2x12x32x32xf32, #tpu.memory_space<vmem>>, vector<1x1x32x32xf32>
    %211 = vector.shape_cast %210 : vector<1x1x32x32xf32> to vector<32x32xf32>
    %212 = vector.shape_cast %209 : vector<32x32xf32> to vector<1x1x32x32xf32>
    tpu.vector_store %arg6[%c0_206, %c3_207, %c0_208, %c0_209], %212 {strides = array<i32>} : memref<2x12x32x32xf32, #tpu.memory_space<vmem>>, vector<1x1x32x32xf32>,
    %c1_210 = arith.constant 1 : index
    %c0_211 = arith.constant 0 : index
    %c0_212 = arith.constant 0 : index
    %213 = vector.load %arg1[%c1_210, %c0_211, %c0_212] : memref<2x72x256xf32, #tpu.memory_space<vmem>>, vector<1x72x256xf32>
    %214 = vector.shape_cast %213 : vector<1x72x256xf32> to vector<72x256xf32>
    %cst_213 = arith.constant dense<0.000000e+00> : vector<12x256xf32>
    %215 = tpu.matmul %0, %214, %cst_213 {dimension_numbers = #tpu.dot_dimension_numbers<[1], [0], [0], [1], [0, 0, 1, 1], [], []>} : vector<12x72xf32>, vector<72x256xf32>, vector<12x256xf32> -> vector<12x256xf32>
    %216 = vector.broadcast %1 : vector<12x1xf32> to vector<12x256xf32>
    %217 = arith.addf %215, %216 : vector<12x256xf32>
    %c0_214 = arith.constant 0 : index
    %c0_215 = arith.constant 0 : index
    %218 = vector.load %arg7[%c0_214, %c0_215] : memref<12x256xf32, #tpu.memory_space<vmem>>, vector<12x256xf32>
    tpu.vector_store %arg7[%c0_214, %c0_215], %217 {strides = array<i32>} : memref<12x256xf32, #tpu.memory_space<vmem>>, vector<12x256xf32>,
    %c0_216 = arith.constant 0 : index
    %c0_217 = arith.constant 0 : index
    %219 = vector.load %arg7[%c0_216, %c0_217] : memref<12x256xf32, #tpu.memory_space<vmem>>, vector<12x16xf32>
    %cst_218 = arith.constant dense<0.000000e+00> : vector<12x32xf32>
    %220 = tpu.matmul %219, %3, %cst_218 {dimension_numbers = #tpu.dot_dimension_numbers<[1], [0], [0], [1], [0, 0, 1, 1], [], []>} : vector<12x16xf32>, vector<16x32xf32>, vector<12x32xf32> -> vector<12x32xf32>
    %c0_219 = arith.constant 0 : index
    %c0_220 = arith.constant 0 : index
    %c0_221 = arith.constant 0 : index
    %221 = vector.load %arg8[%c0_219, %c0_220, %c0_221] : memref<12x16x32xf32, #tpu.memory_space<vmem>>, vector<12x1x32xf32>
    %222 = vector.shape_cast %221 : vector<12x1x32xf32> to vector<12x32xf32>
    %223 = vector.shape_cast %220 : vector<12x32xf32> to vector<12x1x32xf32>
    tpu.vector_store %arg8[%c0_219, %c0_220, %c0_221], %223 {strides = array<i32>} : memref<12x16x32xf32, #tpu.memory_space<vmem>>, vector<12x1x32xf32>,
    %c0_222 = arith.constant 0 : index
    %c16_223 = arith.constant 16 : index
    %224 = vector.load %arg7[%c0_222, %c16_223] : memref<12x256xf32, #tpu.memory_space<vmem>>, vector<12x16xf32>
    %cst_224 = arith.constant dense<0.000000e+00> : vector<12x32xf32>
    %225 = tpu.matmul %224, %3, %cst_224 {dimension_numbers = #tpu.dot_dimension_numbers<[1], [0], [0], [1], [0, 0, 1, 1], [], []>} : vector<12x16xf32>, vector<16x32xf32>, vector<12x32xf32> -> vector<12x32xf32>
    %c0_225 = arith.constant 0 : index
    %c1_226 = arith.constant 1 : index
    %c0_227 = arith.constant 0 : index
    %226 = vector.load %arg8[%c0_225, %c1_226, %c0_227] : memref<12x16x32xf32, #tpu.memory_space<vmem>>, vector<12x1x32xf32>
    %227 = vector.shape_cast %226 : vector<12x1x32xf32> to vector<12x32xf32>
    %228 = vector.shape_cast %225 : vector<12x32xf32> to vector<12x1x32xf32>
    tpu.vector_store %arg8[%c0_225, %c1_226, %c0_227], %228 {strides = array<i32>} : memref<12x16x32xf32, #tpu.memory_space<vmem>>, vector<12x1x32xf32>,
    %c0_228 = arith.constant 0 : index
    %c32_229 = arith.constant 32 : index
    %229 = vector.load %arg7[%c0_228, %c32_229] : memref<12x256xf32, #tpu.memory_space<vmem>>, vector<12x16xf32>
    %cst_230 = arith.constant dense<0.000000e+00> : vector<12x32xf32>
    %230 = tpu.matmul %229, %3, %cst_230 {dimension_numbers = #tpu.dot_dimension_numbers<[1], [0], [0], [1], [0, 0, 1, 1], [], []>} : vector<12x16xf32>, vector<16x32xf32>, vector<12x32xf32> -> vector<12x32xf32>
    %c0_231 = arith.constant 0 : index
    %c2_232 = arith.constant 2 : index
    %c0_233 = arith.constant 0 : index
    %231 = vector.load %arg8[%c0_231, %c2_232, %c0_233] : memref<12x16x32xf32, #tpu.memory_space<vmem>>, vector<12x1x32xf32>
    %232 = vector.shape_cast %231 : vector<12x1x32xf32> to vector<12x32xf32>
    %233 = vector.shape_cast %230 : vector<12x32xf32> to vector<12x1x32xf32>
    tpu.vector_store %arg8[%c0_231, %c2_232, %c0_233], %233 {strides = array<i32>} : memref<12x16x32xf32, #tpu.memory_space<vmem>>, vector<12x1x32xf32>,
    %c0_234 = arith.constant 0 : index
    %c48_235 = arith.constant 48 : index
    %234 = vector.load %arg7[%c0_234, %c48_235] : memref<12x256xf32, #tpu.memory_space<vmem>>, vector<12x16xf32>
    %cst_236 = arith.constant dense<0.000000e+00> : vector<12x32xf32>
    %235 = tpu.matmul %234, %3, %cst_236 {dimension_numbers = #tpu.dot_dimension_numbers<[1], [0], [0], [1], [0, 0, 1, 1], [], []>} : vector<12x16xf32>, vector<16x32xf32>, vector<12x32xf32> -> vector<12x32xf32>
    %c0_237 = arith.constant 0 : index
    %c3_238 = arith.constant 3 : index
    %c0_239 = arith.constant 0 : index
    %236 = vector.load %arg8[%c0_237, %c3_238, %c0_239] : memref<12x16x32xf32, #tpu.memory_space<vmem>>, vector<12x1x32xf32>
    %237 = vector.shape_cast %236 : vector<12x1x32xf32> to vector<12x32xf32>
    %238 = vector.shape_cast %235 : vector<12x32xf32> to vector<12x1x32xf32>
    tpu.vector_store %arg8[%c0_237, %c3_238, %c0_239], %238 {strides = array<i32>} : memref<12x16x32xf32, #tpu.memory_space<vmem>>, vector<12x1x32xf32>,
    %c0_240 = arith.constant 0 : index
    %c64_241 = arith.constant 64 : index
    %239 = vector.load %arg7[%c0_240, %c64_241] : memref<12x256xf32, #tpu.memory_space<vmem>>, vector<12x16xf32>
    %cst_242 = arith.constant dense<0.000000e+00> : vector<12x32xf32>
    %240 = tpu.matmul %239, %3, %cst_242 {dimension_numbers = #tpu.dot_dimension_numbers<[1], [0], [0], [1], [0, 0, 1, 1], [], []>} : vector<12x16xf32>, vector<16x32xf32>, vector<12x32xf32> -> vector<12x32xf32>
    %c0_243 = arith.constant 0 : index
    %c4_244 = arith.constant 4 : index
    %c0_245 = arith.constant 0 : index
    %241 = vector.load %arg8[%c0_243, %c4_244, %c0_245] : memref<12x16x32xf32, #tpu.memory_space<vmem>>, vector<12x1x32xf32>
    %242 = vector.shape_cast %241 : vector<12x1x32xf32> to vector<12x32xf32>
    %243 = vector.shape_cast %240 : vector<12x32xf32> to vector<12x1x32xf32>
    tpu.vector_store %arg8[%c0_243, %c4_244, %c0_245], %243 {strides = array<i32>} : memref<12x16x32xf32, #tpu.memory_space<vmem>>, vector<12x1x32xf32>,
    %c0_246 = arith.constant 0 : index
    %c80_247 = arith.constant 80 : index
    %244 = vector.load %arg7[%c0_246, %c80_247] : memref<12x256xf32, #tpu.memory_space<vmem>>, vector<12x16xf32>
    %cst_248 = arith.constant dense<0.000000e+00> : vector<12x32xf32>
    %245 = tpu.matmul %244, %3, %cst_248 {dimension_numbers = #tpu.dot_dimension_numbers<[1], [0], [0], [1], [0, 0, 1, 1], [], []>} : vector<12x16xf32>, vector<16x32xf32>, vector<12x32xf32> -> vector<12x32xf32>
    %c0_249 = arith.constant 0 : index
    %c5_250 = arith.constant 5 : index
    %c0_251 = arith.constant 0 : index
    %246 = vector.load %arg8[%c0_249, %c5_250, %c0_251] : memref<12x16x32xf32, #tpu.memory_space<vmem>>, vector<12x1x32xf32>
    %247 = vector.shape_cast %246 : vector<12x1x32xf32> to vector<12x32xf32>
    %248 = vector.shape_cast %245 : vector<12x32xf32> to vector<12x1x32xf32>
    tpu.vector_store %arg8[%c0_249, %c5_250, %c0_251], %248 {strides = array<i32>} : memref<12x16x32xf32, #tpu.memory_space<vmem>>, vector<12x1x32xf32>,
    %c0_252 = arith.constant 0 : index
    %c96_253 = arith.constant 96 : index
    %249 = vector.load %arg7[%c0_252, %c96_253] : memref<12x256xf32, #tpu.memory_space<vmem>>, vector<12x16xf32>
    %cst_254 = arith.constant dense<0.000000e+00> : vector<12x32xf32>
    %250 = tpu.matmul %249, %3, %cst_254 {dimension_numbers = #tpu.dot_dimension_numbers<[1], [0], [0], [1], [0, 0, 1, 1], [], []>} : vector<12x16xf32>, vector<16x32xf32>, vector<12x32xf32> -> vector<12x32xf32>
    %c0_255 = arith.constant 0 : index
    %c6_256 = arith.constant 6 : index
    %c0_257 = arith.constant 0 : index
    %251 = vector.load %arg8[%c0_255, %c6_256, %c0_257] : memref<12x16x32xf32, #tpu.memory_space<vmem>>, vector<12x1x32xf32>
    %252 = vector.shape_cast %251 : vector<12x1x32xf32> to vector<12x32xf32>
    %253 = vector.shape_cast %250 : vector<12x32xf32> to vector<12x1x32xf32>
    tpu.vector_store %arg8[%c0_255, %c6_256, %c0_257], %253 {strides = array<i32>} : memref<12x16x32xf32, #tpu.memory_space<vmem>>, vector<12x1x32xf32>,
    %c0_258 = arith.constant 0 : index
    %c112_259 = arith.constant 112 : index
    %254 = vector.load %arg7[%c0_258, %c112_259] : memref<12x256xf32, #tpu.memory_space<vmem>>, vector<12x16xf32>
    %cst_260 = arith.constant dense<0.000000e+00> : vector<12x32xf32>
    %255 = tpu.matmul %254, %3, %cst_260 {dimension_numbers = #tpu.dot_dimension_numbers<[1], [0], [0], [1], [0, 0, 1, 1], [], []>} : vector<12x16xf32>, vector<16x32xf32>, vector<12x32xf32> -> vector<12x32xf32>
    %c0_261 = arith.constant 0 : index
    %c7_262 = arith.constant 7 : index
    %c0_263 = arith.constant 0 : index
    %256 = vector.load %arg8[%c0_261, %c7_262, %c0_263] : memref<12x16x32xf32, #tpu.memory_space<vmem>>, vector<12x1x32xf32>
    %257 = vector.shape_cast %256 : vector<12x1x32xf32> to vector<12x32xf32>
    %258 = vector.shape_cast %255 : vector<12x32xf32> to vector<12x1x32xf32>
    tpu.vector_store %arg8[%c0_261, %c7_262, %c0_263], %258 {strides = array<i32>} : memref<12x16x32xf32, #tpu.memory_space<vmem>>, vector<12x1x32xf32>,
    %c0_264 = arith.constant 0 : index
    %c128_265 = arith.constant 128 : index
    %259 = vector.load %arg7[%c0_264, %c128_265] : memref<12x256xf32, #tpu.memory_space<vmem>>, vector<12x16xf32>
    %cst_266 = arith.constant dense<0.000000e+00> : vector<12x32xf32>
    %260 = tpu.matmul %259, %3, %cst_266 {dimension_numbers = #tpu.dot_dimension_numbers<[1], [0], [0], [1], [0, 0, 1, 1], [], []>} : vector<12x16xf32>, vector<16x32xf32>, vector<12x32xf32> -> vector<12x32xf32>
    %c0_267 = arith.constant 0 : index
    %c8_268 = arith.constant 8 : index
    %c0_269 = arith.constant 0 : index
    %261 = vector.load %arg8[%c0_267, %c8_268, %c0_269] : memref<12x16x32xf32, #tpu.memory_space<vmem>>, vector<12x1x32xf32>
    %262 = vector.shape_cast %261 : vector<12x1x32xf32> to vector<12x32xf32>
    %263 = vector.shape_cast %260 : vector<12x32xf32> to vector<12x1x32xf32>
    tpu.vector_store %arg8[%c0_267, %c8_268, %c0_269], %263 {strides = array<i32>} : memref<12x16x32xf32, #tpu.memory_space<vmem>>, vector<12x1x32xf32>,
    %c0_270 = arith.constant 0 : index
    %c144_271 = arith.constant 144 : index
    %264 = vector.load %arg7[%c0_270, %c144_271] : memref<12x256xf32, #tpu.memory_space<vmem>>, vector<12x16xf32>
    %cst_272 = arith.constant dense<0.000000e+00> : vector<12x32xf32>
    %265 = tpu.matmul %264, %3, %cst_272 {dimension_numbers = #tpu.dot_dimension_numbers<[1], [0], [0], [1], [0, 0, 1, 1], [], []>} : vector<12x16xf32>, vector<16x32xf32>, vector<12x32xf32> -> vector<12x32xf32>
    %c0_273 = arith.constant 0 : index
    %c9_274 = arith.constant 9 : index
    %c0_275 = arith.constant 0 : index
    %266 = vector.load %arg8[%c0_273, %c9_274, %c0_275] : memref<12x16x32xf32, #tpu.memory_space<vmem>>, vector<12x1x32xf32>
    %267 = vector.shape_cast %266 : vector<12x1x32xf32> to vector<12x32xf32>
    %268 = vector.shape_cast %265 : vector<12x32xf32> to vector<12x1x32xf32>
    tpu.vector_store %arg8[%c0_273, %c9_274, %c0_275], %268 {strides = array<i32>} : memref<12x16x32xf32, #tpu.memory_space<vmem>>, vector<12x1x32xf32>,
    %c0_276 = arith.constant 0 : index
    %c160_277 = arith.constant 160 : index
    %269 = vector.load %arg7[%c0_276, %c160_277] : memref<12x256xf32, #tpu.memory_space<vmem>>, vector<12x16xf32>
    %cst_278 = arith.constant dense<0.000000e+00> : vector<12x32xf32>
    %270 = tpu.matmul %269, %3, %cst_278 {dimension_numbers = #tpu.dot_dimension_numbers<[1], [0], [0], [1], [0, 0, 1, 1], [], []>} : vector<12x16xf32>, vector<16x32xf32>, vector<12x32xf32> -> vector<12x32xf32>
    %c0_279 = arith.constant 0 : index
    %c10_280 = arith.constant 10 : index
    %c0_281 = arith.constant 0 : index
    %271 = vector.load %arg8[%c0_279, %c10_280, %c0_281] : memref<12x16x32xf32, #tpu.memory_space<vmem>>, vector<12x1x32xf32>
    %272 = vector.shape_cast %271 : vector<12x1x32xf32> to vector<12x32xf32>
    %273 = vector.shape_cast %270 : vector<12x32xf32> to vector<12x1x32xf32>
    tpu.vector_store %arg8[%c0_279, %c10_280, %c0_281], %273 {strides = array<i32>} : memref<12x16x32xf32, #tpu.memory_space<vmem>>, vector<12x1x32xf32>,
    %c0_282 = arith.constant 0 : index
    %c176_283 = arith.constant 176 : index
    %274 = vector.load %arg7[%c0_282, %c176_283] : memref<12x256xf32, #tpu.memory_space<vmem>>, vector<12x16xf32>
    %cst_284 = arith.constant dense<0.000000e+00> : vector<12x32xf32>
    %275 = tpu.matmul %274, %3, %cst_284 {dimension_numbers = #tpu.dot_dimension_numbers<[1], [0], [0], [1], [0, 0, 1, 1], [], []>} : vector<12x16xf32>, vector<16x32xf32>, vector<12x32xf32> -> vector<12x32xf32>
    %c0_285 = arith.constant 0 : index
    %c11_286 = arith.constant 11 : index
    %c0_287 = arith.constant 0 : index
    %276 = vector.load %arg8[%c0_285, %c11_286, %c0_287] : memref<12x16x32xf32, #tpu.memory_space<vmem>>, vector<12x1x32xf32>
    %277 = vector.shape_cast %276 : vector<12x1x32xf32> to vector<12x32xf32>
    %278 = vector.shape_cast %275 : vector<12x32xf32> to vector<12x1x32xf32>
    tpu.vector_store %arg8[%c0_285, %c11_286, %c0_287], %278 {strides = array<i32>} : memref<12x16x32xf32, #tpu.memory_space<vmem>>, vector<12x1x32xf32>,
    %c0_288 = arith.constant 0 : index
    %c192_289 = arith.constant 192 : index
    %279 = vector.load %arg7[%c0_288, %c192_289] : memref<12x256xf32, #tpu.memory_space<vmem>>, vector<12x16xf32>
    %cst_290 = arith.constant dense<0.000000e+00> : vector<12x32xf32>
    %280 = tpu.matmul %279, %3, %cst_290 {dimension_numbers = #tpu.dot_dimension_numbers<[1], [0], [0], [1], [0, 0, 1, 1], [], []>} : vector<12x16xf32>, vector<16x32xf32>, vector<12x32xf32> -> vector<12x32xf32>
    %c0_291 = arith.constant 0 : index
    %c12_292 = arith.constant 12 : index
    %c0_293 = arith.constant 0 : index
    %281 = vector.load %arg8[%c0_291, %c12_292, %c0_293] : memref<12x16x32xf32, #tpu.memory_space<vmem>>, vector<12x1x32xf32>
    %282 = vector.shape_cast %281 : vector<12x1x32xf32> to vector<12x32xf32>
    %283 = vector.shape_cast %280 : vector<12x32xf32> to vector<12x1x32xf32>
    tpu.vector_store %arg8[%c0_291, %c12_292, %c0_293], %283 {strides = array<i32>} : memref<12x16x32xf32, #tpu.memory_space<vmem>>, vector<12x1x32xf32>,
    %c0_294 = arith.constant 0 : index
    %c208_295 = arith.constant 208 : index
    %284 = vector.load %arg7[%c0_294, %c208_295] : memref<12x256xf32, #tpu.memory_space<vmem>>, vector<12x16xf32>
    %cst_296 = arith.constant dense<0.000000e+00> : vector<12x32xf32>
    %285 = tpu.matmul %284, %3, %cst_296 {dimension_numbers = #tpu.dot_dimension_numbers<[1], [0], [0], [1], [0, 0, 1, 1], [], []>} : vector<12x16xf32>, vector<16x32xf32>, vector<12x32xf32> -> vector<12x32xf32>
    %c0_297 = arith.constant 0 : index
    %c13_298 = arith.constant 13 : index
    %c0_299 = arith.constant 0 : index
    %286 = vector.load %arg8[%c0_297, %c13_298, %c0_299] : memref<12x16x32xf32, #tpu.memory_space<vmem>>, vector<12x1x32xf32>
    %287 = vector.shape_cast %286 : vector<12x1x32xf32> to vector<12x32xf32>
    %288 = vector.shape_cast %285 : vector<12x32xf32> to vector<12x1x32xf32>
    tpu.vector_store %arg8[%c0_297, %c13_298, %c0_299], %288 {strides = array<i32>} : memref<12x16x32xf32, #tpu.memory_space<vmem>>, vector<12x1x32xf32>,
    %c0_300 = arith.constant 0 : index
    %c224_301 = arith.constant 224 : index
    %289 = vector.load %arg7[%c0_300, %c224_301] : memref<12x256xf32, #tpu.memory_space<vmem>>, vector<12x16xf32>
    %cst_302 = arith.constant dense<0.000000e+00> : vector<12x32xf32>
    %290 = tpu.matmul %289, %3, %cst_302 {dimension_numbers = #tpu.dot_dimension_numbers<[1], [0], [0], [1], [0, 0, 1, 1], [], []>} : vector<12x16xf32>, vector<16x32xf32>, vector<12x32xf32> -> vector<12x32xf32>
    %c0_303 = arith.constant 0 : index
    %c14_304 = arith.constant 14 : index
    %c0_305 = arith.constant 0 : index
    %291 = vector.load %arg8[%c0_303, %c14_304, %c0_305] : memref<12x16x32xf32, #tpu.memory_space<vmem>>, vector<12x1x32xf32>
    %292 = vector.shape_cast %291 : vector<12x1x32xf32> to vector<12x32xf32>
    %293 = vector.shape_cast %290 : vector<12x32xf32> to vector<12x1x32xf32>
    tpu.vector_store %arg8[%c0_303, %c14_304, %c0_305], %293 {strides = array<i32>} : memref<12x16x32xf32, #tpu.memory_space<vmem>>, vector<12x1x32xf32>,
    %c0_306 = arith.constant 0 : index
    %c240_307 = arith.constant 240 : index
    %294 = vector.load %arg7[%c0_306, %c240_307] : memref<12x256xf32, #tpu.memory_space<vmem>>, vector<12x16xf32>
    %cst_308 = arith.constant dense<0.000000e+00> : vector<12x32xf32>
    %295 = tpu.matmul %294, %3, %cst_308 {dimension_numbers = #tpu.dot_dimension_numbers<[1], [0], [0], [1], [0, 0, 1, 1], [], []>} : vector<12x16xf32>, vector<16x32xf32>, vector<12x32xf32> -> vector<12x32xf32>
    %c0_309 = arith.constant 0 : index
    %c15_310 = arith.constant 15 : index
    %c0_311 = arith.constant 0 : index
    %296 = vector.load %arg8[%c0_309, %c15_310, %c0_311] : memref<12x16x32xf32, #tpu.memory_space<vmem>>, vector<12x1x32xf32>
    %297 = vector.shape_cast %296 : vector<12x1x32xf32> to vector<12x32xf32>
    %298 = vector.shape_cast %295 : vector<12x32xf32> to vector<12x1x32xf32>
    tpu.vector_store %arg8[%c0_309, %c15_310, %c0_311], %298 {strides = array<i32>} : memref<12x16x32xf32, #tpu.memory_space<vmem>>, vector<12x1x32xf32>,
    %c0_312 = arith.constant 0 : index
    %c0_313 = arith.constant 0 : index
    %c0_314 = arith.constant 0 : index
    %299 = vector.load %arg8[%c0_312, %c0_313, %c0_314] : memref<12x16x32xf32, #tpu.memory_space<vmem>>, vector<1x16x32xf32>
    %300 = vector.shape_cast %299 : vector<1x16x32xf32> to vector<16x32xf32>
    %cst_315 = arith.constant dense<0.000000e+00> : vector<32x32xf32>
    %301 = tpu.matmul %2, %300, %cst_315 {dimension_numbers = #tpu.dot_dimension_numbers<[1], [0], [0], [1], [0, 0, 1, 1], [], []>} : vector<32x16xf32>, vector<16x32xf32>, vector<32x32xf32> -> vector<32x32xf32>
    %c0_316 = arith.constant 0 : index
    %c0_317 = arith.constant 0 : index
    %c0_318 = arith.constant 0 : index
    %302 = vector.load %arg9[%c0_316, %c0_317, %c0_318] : memref<4x32x32xf32, #tpu.memory_space<vmem>>, vector<1x32x32xf32>
    %303 = vector.shape_cast %302 : vector<1x32x32xf32> to vector<32x32xf32>
    %304 = vector.shape_cast %301 : vector<32x32xf32> to vector<1x32x32xf32>
    tpu.vector_store %arg9[%c0_316, %c0_317, %c0_318], %304 {strides = array<i32>} : memref<4x32x32xf32, #tpu.memory_space<vmem>>, vector<1x32x32xf32>,
    %c1_319 = arith.constant 1 : index
    %c0_320 = arith.constant 0 : index
    %c0_321 = arith.constant 0 : index
    %305 = vector.load %arg8[%c1_319, %c0_320, %c0_321] : memref<12x16x32xf32, #tpu.memory_space<vmem>>, vector<1x16x32xf32>
    %306 = vector.shape_cast %305 : vector<1x16x32xf32> to vector<16x32xf32>
    %cst_322 = arith.constant dense<0.000000e+00> : vector<32x32xf32>
    %307 = tpu.matmul %2, %306, %cst_322 {dimension_numbers = #tpu.dot_dimension_numbers<[1], [0], [0], [1], [0, 0, 1, 1], [], []>} : vector<32x16xf32>, vector<16x32xf32>, vector<32x32xf32> -> vector<32x32xf32>
    %c1_323 = arith.constant 1 : index
    %c0_324 = arith.constant 0 : index
    %c0_325 = arith.constant 0 : index
    %308 = vector.load %arg9[%c1_323, %c0_324, %c0_325] : memref<4x32x32xf32, #tpu.memory_space<vmem>>, vector<1x32x32xf32>
    %309 = vector.shape_cast %308 : vector<1x32x32xf32> to vector<32x32xf32>
    %310 = vector.shape_cast %307 : vector<32x32xf32> to vector<1x32x32xf32>
    tpu.vector_store %arg9[%c1_323, %c0_324, %c0_325], %310 {strides = array<i32>} : memref<4x32x32xf32, #tpu.memory_space<vmem>>, vector<1x32x32xf32>,
    %c2_326 = arith.constant 2 : index
    %c0_327 = arith.constant 0 : index
    %c0_328 = arith.constant 0 : index
    %311 = vector.load %arg8[%c2_326, %c0_327, %c0_328] : memref<12x16x32xf32, #tpu.memory_space<vmem>>, vector<1x16x32xf32>
    %312 = vector.shape_cast %311 : vector<1x16x32xf32> to vector<16x32xf32>
    %cst_329 = arith.constant dense<0.000000e+00> : vector<32x32xf32>
    %313 = tpu.matmul %2, %312, %cst_329 {dimension_numbers = #tpu.dot_dimension_numbers<[1], [0], [0], [1], [0, 0, 1, 1], [], []>} : vector<32x16xf32>, vector<16x32xf32>, vector<32x32xf32> -> vector<32x32xf32>
    %c2_330 = arith.constant 2 : index
    %c0_331 = arith.constant 0 : index
    %c0_332 = arith.constant 0 : index
    %314 = vector.load %arg9[%c2_330, %c0_331, %c0_332] : memref<4x32x32xf32, #tpu.memory_space<vmem>>, vector<1x32x32xf32>
    %315 = vector.shape_cast %314 : vector<1x32x32xf32> to vector<32x32xf32>
    %316 = vector.shape_cast %313 : vector<32x32xf32> to vector<1x32x32xf32>
    tpu.vector_store %arg9[%c2_330, %c0_331, %c0_332], %316 {strides = array<i32>} : memref<4x32x32xf32, #tpu.memory_space<vmem>>, vector<1x32x32xf32>,
    %c3_333 = arith.constant 3 : index
    %c0_334 = arith.constant 0 : index
    %c0_335 = arith.constant 0 : index
    %317 = vector.load %arg8[%c3_333, %c0_334, %c0_335] : memref<12x16x32xf32, #tpu.memory_space<vmem>>, vector<1x16x32xf32>
    %318 = vector.shape_cast %317 : vector<1x16x32xf32> to vector<16x32xf32>
    %cst_336 = arith.constant dense<0.000000e+00> : vector<32x32xf32>
    %319 = tpu.matmul %2, %318, %cst_336 {dimension_numbers = #tpu.dot_dimension_numbers<[1], [0], [0], [1], [0, 0, 1, 1], [], []>} : vector<32x16xf32>, vector<16x32xf32>, vector<32x32xf32> -> vector<32x32xf32>
    %c3_337 = arith.constant 3 : index
    %c0_338 = arith.constant 0 : index
    %c0_339 = arith.constant 0 : index
    %320 = vector.load %arg9[%c3_337, %c0_338, %c0_339] : memref<4x32x32xf32, #tpu.memory_space<vmem>>, vector<1x32x32xf32>
    %321 = vector.shape_cast %320 : vector<1x32x32xf32> to vector<32x32xf32>
    %322 = vector.shape_cast %319 : vector<32x32xf32> to vector<1x32x32xf32>
    tpu.vector_store %arg9[%c3_337, %c0_338, %c0_339], %322 {strides = array<i32>} : memref<4x32x32xf32, #tpu.memory_space<vmem>>, vector<1x32x32xf32>,
    %c4_340 = arith.constant 4 : index
    %c0_341 = arith.constant 0 : index
    %c0_342 = arith.constant 0 : index
    %323 = vector.load %arg8[%c4_340, %c0_341, %c0_342] : memref<12x16x32xf32, #tpu.memory_space<vmem>>, vector<1x16x32xf32>
    %324 = vector.shape_cast %323 : vector<1x16x32xf32> to vector<16x32xf32>
    %cst_343 = arith.constant dense<0.000000e+00> : vector<32x32xf32>
    %325 = tpu.matmul %2, %324, %cst_343 {dimension_numbers = #tpu.dot_dimension_numbers<[1], [0], [0], [1], [0, 0, 1, 1], [], []>} : vector<32x16xf32>, vector<16x32xf32>, vector<32x32xf32> -> vector<32x32xf32>
    %c1_344 = arith.constant 1 : index
    %c4_345 = arith.constant 4 : index
    %c0_346 = arith.constant 0 : index
    %c0_347 = arith.constant 0 : index
    %326 = vector.load %arg6[%c1_344, %c4_345, %c0_346, %c0_347] : memref<2x12x32x32xf32, #tpu.memory_space<vmem>>, vector<1x1x32x32xf32>
    %327 = vector.shape_cast %326 : vector<1x1x32x32xf32> to vector<32x32xf32>
    %328 = vector.shape_cast %325 : vector<32x32xf32> to vector<1x1x32x32xf32>
    tpu.vector_store %arg6[%c1_344, %c4_345, %c0_346, %c0_347], %328 {strides = array<i32>} : memref<2x12x32x32xf32, #tpu.memory_space<vmem>>, vector<1x1x32x32xf32>,
    %c5_348 = arith.constant 5 : index
    %c0_349 = arith.constant 0 : index
    %c0_350 = arith.constant 0 : index
    %329 = vector.load %arg8[%c5_348, %c0_349, %c0_350] : memref<12x16x32xf32, #tpu.memory_space<vmem>>, vector<1x16x32xf32>
    %330 = vector.shape_cast %329 : vector<1x16x32xf32> to vector<16x32xf32>
    %cst_351 = arith.constant dense<0.000000e+00> : vector<32x32xf32>
    %331 = tpu.matmul %2, %330, %cst_351 {dimension_numbers = #tpu.dot_dimension_numbers<[1], [0], [0], [1], [0, 0, 1, 1], [], []>} : vector<32x16xf32>, vector<16x32xf32>, vector<32x32xf32> -> vector<32x32xf32>
    %c1_352 = arith.constant 1 : index
    %c5_353 = arith.constant 5 : index
    %c0_354 = arith.constant 0 : index
    %c0_355 = arith.constant 0 : index
    %332 = vector.load %arg6[%c1_352, %c5_353, %c0_354, %c0_355] : memref<2x12x32x32xf32, #tpu.memory_space<vmem>>, vector<1x1x32x32xf32>
    %333 = vector.shape_cast %332 : vector<1x1x32x32xf32> to vector<32x32xf32>
    %334 = vector.shape_cast %331 : vector<32x32xf32> to vector<1x1x32x32xf32>
    tpu.vector_store %arg6[%c1_352, %c5_353, %c0_354, %c0_355], %334 {strides = array<i32>} : memref<2x12x32x32xf32, #tpu.memory_space<vmem>>, vector<1x1x32x32xf32>,
    %c6_356 = arith.constant 6 : index
    %c0_357 = arith.constant 0 : index
    %c0_358 = arith.constant 0 : index
    %335 = vector.load %arg8[%c6_356, %c0_357, %c0_358] : memref<12x16x32xf32, #tpu.memory_space<vmem>>, vector<1x16x32xf32>
    %336 = vector.shape_cast %335 : vector<1x16x32xf32> to vector<16x32xf32>
    %cst_359 = arith.constant dense<0.000000e+00> : vector<32x32xf32>
    %337 = tpu.matmul %2, %336, %cst_359 {dimension_numbers = #tpu.dot_dimension_numbers<[1], [0], [0], [1], [0, 0, 1, 1], [], []>} : vector<32x16xf32>, vector<16x32xf32>, vector<32x32xf32> -> vector<32x32xf32>
    %c1_360 = arith.constant 1 : index
    %c6_361 = arith.constant 6 : index
    %c0_362 = arith.constant 0 : index
    %c0_363 = arith.constant 0 : index
    %338 = vector.load %arg6[%c1_360, %c6_361, %c0_362, %c0_363] : memref<2x12x32x32xf32, #tpu.memory_space<vmem>>, vector<1x1x32x32xf32>
    %339 = vector.shape_cast %338 : vector<1x1x32x32xf32> to vector<32x32xf32>
    %340 = vector.shape_cast %337 : vector<32x32xf32> to vector<1x1x32x32xf32>
    tpu.vector_store %arg6[%c1_360, %c6_361, %c0_362, %c0_363], %340 {strides = array<i32>} : memref<2x12x32x32xf32, #tpu.memory_space<vmem>>, vector<1x1x32x32xf32>,
    %c7_364 = arith.constant 7 : index
    %c0_365 = arith.constant 0 : index
    %c0_366 = arith.constant 0 : index
    %341 = vector.load %arg8[%c7_364, %c0_365, %c0_366] : memref<12x16x32xf32, #tpu.memory_space<vmem>>, vector<1x16x32xf32>
    %342 = vector.shape_cast %341 : vector<1x16x32xf32> to vector<16x32xf32>
    %cst_367 = arith.constant dense<0.000000e+00> : vector<32x32xf32>
    %343 = tpu.matmul %2, %342, %cst_367 {dimension_numbers = #tpu.dot_dimension_numbers<[1], [0], [0], [1], [0, 0, 1, 1], [], []>} : vector<32x16xf32>, vector<16x32xf32>, vector<32x32xf32> -> vector<32x32xf32>
    %c1_368 = arith.constant 1 : index
    %c7_369 = arith.constant 7 : index
    %c0_370 = arith.constant 0 : index
    %c0_371 = arith.constant 0 : index
    %344 = vector.load %arg6[%c1_368, %c7_369, %c0_370, %c0_371] : memref<2x12x32x32xf32, #tpu.memory_space<vmem>>, vector<1x1x32x32xf32>
    %345 = vector.shape_cast %344 : vector<1x1x32x32xf32> to vector<32x32xf32>
    %346 = vector.shape_cast %343 : vector<32x32xf32> to vector<1x1x32x32xf32>
    tpu.vector_store %arg6[%c1_368, %c7_369, %c0_370, %c0_371], %346 {strides = array<i32>} : memref<2x12x32x32xf32, #tpu.memory_space<vmem>>, vector<1x1x32x32xf32>,
    %c8_372 = arith.constant 8 : index
    %c0_373 = arith.constant 0 : index
    %c0_374 = arith.constant 0 : index
    %347 = vector.load %arg8[%c8_372, %c0_373, %c0_374] : memref<12x16x32xf32, #tpu.memory_space<vmem>>, vector<1x16x32xf32>
    %348 = vector.shape_cast %347 : vector<1x16x32xf32> to vector<16x32xf32>
    %cst_375 = arith.constant dense<0.000000e+00> : vector<32x32xf32>
    %349 = tpu.matmul %2, %348, %cst_375 {dimension_numbers = #tpu.dot_dimension_numbers<[1], [0], [0], [1], [0, 0, 1, 1], [], []>} : vector<32x16xf32>, vector<16x32xf32>, vector<32x32xf32> -> vector<32x32xf32>
    %350 = math.exp %349 : vector<32x32xf32>
    %c1_376 = arith.constant 1 : index
    %c8_377 = arith.constant 8 : index
    %c0_378 = arith.constant 0 : index
    %c0_379 = arith.constant 0 : index
    %351 = vector.load %arg6[%c1_376, %c8_377, %c0_378, %c0_379] : memref<2x12x32x32xf32, #tpu.memory_space<vmem>>, vector<1x1x32x32xf32>
    %352 = vector.shape_cast %351 : vector<1x1x32x32xf32> to vector<32x32xf32>
    %353 = vector.shape_cast %350 : vector<32x32xf32> to vector<1x1x32x32xf32>
    tpu.vector_store %arg6[%c1_376, %c8_377, %c0_378, %c0_379], %353 {strides = array<i32>} : memref<2x12x32x32xf32, #tpu.memory_space<vmem>>, vector<1x1x32x32xf32>,
    %c9_380 = arith.constant 9 : index
    %c0_381 = arith.constant 0 : index
    %c0_382 = arith.constant 0 : index
    %354 = vector.load %arg8[%c9_380, %c0_381, %c0_382] : memref<12x16x32xf32, #tpu.memory_space<vmem>>, vector<1x16x32xf32>
    %355 = vector.shape_cast %354 : vector<1x16x32xf32> to vector<16x32xf32>
    %cst_383 = arith.constant dense<0.000000e+00> : vector<32x32xf32>
    %356 = tpu.matmul %2, %355, %cst_383 {dimension_numbers = #tpu.dot_dimension_numbers<[1], [0], [0], [1], [0, 0, 1, 1], [], []>} : vector<32x16xf32>, vector<16x32xf32>, vector<32x32xf32> -> vector<32x32xf32>
    %357 = math.exp %356 : vector<32x32xf32>
    %c1_384 = arith.constant 1 : index
    %c9_385 = arith.constant 9 : index
    %c0_386 = arith.constant 0 : index
    %c0_387 = arith.constant 0 : index
    %358 = vector.load %arg6[%c1_384, %c9_385, %c0_386, %c0_387] : memref<2x12x32x32xf32, #tpu.memory_space<vmem>>, vector<1x1x32x32xf32>
    %359 = vector.shape_cast %358 : vector<1x1x32x32xf32> to vector<32x32xf32>
    %360 = vector.shape_cast %357 : vector<32x32xf32> to vector<1x1x32x32xf32>
    tpu.vector_store %arg6[%c1_384, %c9_385, %c0_386, %c0_387], %360 {strides = array<i32>} : memref<2x12x32x32xf32, #tpu.memory_space<vmem>>, vector<1x1x32x32xf32>,
    %c10_388 = arith.constant 10 : index
    %c0_389 = arith.constant 0 : index
    %c0_390 = arith.constant 0 : index
    %361 = vector.load %arg8[%c10_388, %c0_389, %c0_390] : memref<12x16x32xf32, #tpu.memory_space<vmem>>, vector<1x16x32xf32>
    %362 = vector.shape_cast %361 : vector<1x16x32xf32> to vector<16x32xf32>
    %cst_391 = arith.constant dense<0.000000e+00> : vector<32x32xf32>
    %363 = tpu.matmul %2, %362, %cst_391 {dimension_numbers = #tpu.dot_dimension_numbers<[1], [0], [0], [1], [0, 0, 1, 1], [], []>} : vector<32x16xf32>, vector<16x32xf32>, vector<32x32xf32> -> vector<32x32xf32>
    %364 = math.exp %363 : vector<32x32xf32>
    %c1_392 = arith.constant 1 : index
    %c10_393 = arith.constant 10 : index
    %c0_394 = arith.constant 0 : index
    %c0_395 = arith.constant 0 : index
    %365 = vector.load %arg6[%c1_392, %c10_393, %c0_394, %c0_395] : memref<2x12x32x32xf32, #tpu.memory_space<vmem>>, vector<1x1x32x32xf32>
    %366 = vector.shape_cast %365 : vector<1x1x32x32xf32> to vector<32x32xf32>
    %367 = vector.shape_cast %364 : vector<32x32xf32> to vector<1x1x32x32xf32>
    tpu.vector_store %arg6[%c1_392, %c10_393, %c0_394, %c0_395], %367 {strides = array<i32>} : memref<2x12x32x32xf32, #tpu.memory_space<vmem>>, vector<1x1x32x32xf32>,
    %c11_396 = arith.constant 11 : index
    %c0_397 = arith.constant 0 : index
    %c0_398 = arith.constant 0 : index
    %368 = vector.load %arg8[%c11_396, %c0_397, %c0_398] : memref<12x16x32xf32, #tpu.memory_space<vmem>>, vector<1x16x32xf32>
    %369 = vector.shape_cast %368 : vector<1x16x32xf32> to vector<16x32xf32>
    %cst_399 = arith.constant dense<0.000000e+00> : vector<32x32xf32>
    %370 = tpu.matmul %2, %369, %cst_399 {dimension_numbers = #tpu.dot_dimension_numbers<[1], [0], [0], [1], [0, 0, 1, 1], [], []>} : vector<32x16xf32>, vector<16x32xf32>, vector<32x32xf32> -> vector<32x32xf32>
    %371 = math.exp %370 : vector<32x32xf32>
    %c1_400 = arith.constant 1 : index
    %c11_401 = arith.constant 11 : index
    %c0_402 = arith.constant 0 : index
    %c0_403 = arith.constant 0 : index
    %372 = vector.load %arg6[%c1_400, %c11_401, %c0_402, %c0_403] : memref<2x12x32x32xf32, #tpu.memory_space<vmem>>, vector<1x1x32x32xf32>
    %373 = vector.shape_cast %372 : vector<1x1x32x32xf32> to vector<32x32xf32>
    %374 = vector.shape_cast %371 : vector<32x32xf32> to vector<1x1x32x32xf32>
    tpu.vector_store %arg6[%c1_400, %c11_401, %c0_402, %c0_403], %374 {strides = array<i32>} : memref<2x12x32x32xf32, #tpu.memory_space<vmem>>, vector<1x1x32x32xf32>,
    %c0_404 = arith.constant 0 : index
    %c0_405 = arith.constant 0 : index
    %c0_406 = arith.constant 0 : index
    %375 = vector.load %arg9[%c0_404, %c0_405, %c0_406] : memref<4x32x32xf32, #tpu.memory_space<vmem>>, vector<1x32x32xf32>
    %376 = vector.shape_cast %375 : vector<1x32x32xf32> to vector<32x32xf32>
    %c1_407 = arith.constant 1 : index
    %c0_408 = arith.constant 0 : index
    %c0_409 = arith.constant 0 : index
    %377 = vector.load %arg9[%c1_407, %c0_408, %c0_409] : memref<4x32x32xf32, #tpu.memory_space<vmem>>, vector<1x32x32xf32>
    %378 = vector.shape_cast %377 : vector<1x32x32xf32> to vector<32x32xf32>
    %379 = arith.maximumf %376, %378 : vector<32x32xf32>
    %c2_410 = arith.constant 2 : index
    %c0_411 = arith.constant 0 : index
    %c0_412 = arith.constant 0 : index
    %380 = vector.load %arg9[%c2_410, %c0_411, %c0_412] : memref<4x32x32xf32, #tpu.memory_space<vmem>>, vector<1x32x32xf32>
    %381 = vector.shape_cast %380 : vector<1x32x32xf32> to vector<32x32xf32>
    %382 = arith.maximumf %379, %381 : vector<32x32xf32>
    %c3_413 = arith.constant 3 : index
    %c0_414 = arith.constant 0 : index
    %c0_415 = arith.constant 0 : index
    %383 = vector.load %arg9[%c3_413, %c0_414, %c0_415] : memref<4x32x32xf32, #tpu.memory_space<vmem>>, vector<1x32x32xf32>
    %384 = vector.shape_cast %383 : vector<1x32x32xf32> to vector<32x32xf32>
    %385 = arith.maximumf %382, %384 : vector<32x32xf32>
    %c0_416 = arith.constant 0 : index
    %c0_417 = arith.constant 0 : index
    %c0_418 = arith.constant 0 : index
    %386 = vector.load %arg9[%c0_416, %c0_417, %c0_418] : memref<4x32x32xf32, #tpu.memory_space<vmem>>, vector<1x32x32xf32>
    %387 = vector.shape_cast %386 : vector<1x32x32xf32> to vector<32x32xf32>
    %388 = arith.subf %387, %385 : vector<32x32xf32>
    %389 = math.exp %388 : vector<32x32xf32>
    %c1_419 = arith.constant 1 : index
    %c0_420 = arith.constant 0 : index
    %c0_421 = arith.constant 0 : index
    %390 = vector.load %arg9[%c1_419, %c0_420, %c0_421] : memref<4x32x32xf32, #tpu.memory_space<vmem>>, vector<1x32x32xf32>
    %391 = vector.shape_cast %390 : vector<1x32x32xf32> to vector<32x32xf32>
    %392 = arith.subf %391, %385 : vector<32x32xf32>
    %393 = math.exp %392 : vector<32x32xf32>
    %394 = arith.addf %389, %393 : vector<32x32xf32>
    %c2_422 = arith.constant 2 : index
    %c0_423 = arith.constant 0 : index
    %c0_424 = arith.constant 0 : index
    %395 = vector.load %arg9[%c2_422, %c0_423, %c0_424] : memref<4x32x32xf32, #tpu.memory_space<vmem>>, vector<1x32x32xf32>
    %396 = vector.shape_cast %395 : vector<1x32x32xf32> to vector<32x32xf32>
    %397 = arith.subf %396, %385 : vector<32x32xf32>
    %398 = math.exp %397 : vector<32x32xf32>
    %399 = arith.addf %394, %398 : vector<32x32xf32>
    %c3_425 = arith.constant 3 : index
    %c0_426 = arith.constant 0 : index
    %c0_427 = arith.constant 0 : index
    %400 = vector.load %arg9[%c3_425, %c0_426, %c0_427] : memref<4x32x32xf32, #tpu.memory_space<vmem>>, vector<1x32x32xf32>
    %401 = vector.shape_cast %400 : vector<1x32x32xf32> to vector<32x32xf32>
    %402 = arith.subf %401, %385 : vector<32x32xf32>
    %403 = math.exp %402 : vector<32x32xf32>
    %404 = arith.addf %399, %403 : vector<32x32xf32>
    %405 = tpu.reciprocal %404 : vector<32x32xf32> -> vector<32x32xf32>
    %406 = arith.mulf %389, %405 : vector<32x32xf32>
    %c1_428 = arith.constant 1 : index
    %c0_429 = arith.constant 0 : index
    %c0_430 = arith.constant 0 : index
    %c0_431 = arith.constant 0 : index
    %407 = vector.load %arg6[%c1_428, %c0_429, %c0_430, %c0_431] : memref<2x12x32x32xf32, #tpu.memory_space<vmem>>, vector<1x1x32x32xf32>
    %408 = vector.shape_cast %407 : vector<1x1x32x32xf32> to vector<32x32xf32>
    %409 = vector.shape_cast %406 : vector<32x32xf32> to vector<1x1x32x32xf32>
    tpu.vector_store %arg6[%c1_428, %c0_429, %c0_430, %c0_431], %409 {strides = array<i32>} : memref<2x12x32x32xf32, #tpu.memory_space<vmem>>, vector<1x1x32x32xf32>,
    %410 = arith.mulf %393, %405 : vector<32x32xf32>
    %c1_432 = arith.constant 1 : index
    %c1_433 = arith.constant 1 : index
    %c0_434 = arith.constant 0 : index
    %c0_435 = arith.constant 0 : index
    %411 = vector.load %arg6[%c1_432, %c1_433, %c0_434, %c0_435] : memref<2x12x32x32xf32, #tpu.memory_space<vmem>>, vector<1x1x32x32xf32>
    %412 = vector.shape_cast %411 : vector<1x1x32x32xf32> to vector<32x32xf32>
    %413 = vector.shape_cast %410 : vector<32x32xf32> to vector<1x1x32x32xf32>
    tpu.vector_store %arg6[%c1_432, %c1_433, %c0_434, %c0_435], %413 {strides = array<i32>} : memref<2x12x32x32xf32, #tpu.memory_space<vmem>>, vector<1x1x32x32xf32>,
    %414 = arith.mulf %398, %405 : vector<32x32xf32>
    %c1_436 = arith.constant 1 : index
    %c2_437 = arith.constant 2 : index
    %c0_438 = arith.constant 0 : index
    %c0_439 = arith.constant 0 : index
    %415 = vector.load %arg6[%c1_436, %c2_437, %c0_438, %c0_439] : memref<2x12x32x32xf32, #tpu.memory_space<vmem>>, vector<1x1x32x32xf32>
    %416 = vector.shape_cast %415 : vector<1x1x32x32xf32> to vector<32x32xf32>
    %417 = vector.shape_cast %414 : vector<32x32xf32> to vector<1x1x32x32xf32>
    tpu.vector_store %arg6[%c1_436, %c2_437, %c0_438, %c0_439], %417 {strides = array<i32>} : memref<2x12x32x32xf32, #tpu.memory_space<vmem>>, vector<1x1x32x32xf32>,
    %418 = arith.mulf %403, %405 : vector<32x32xf32>
    %c1_440 = arith.constant 1 : index
    %c3_441 = arith.constant 3 : index
    %c0_442 = arith.constant 0 : index
    %c0_443 = arith.constant 0 : index
    %419 = vector.load %arg6[%c1_440, %c3_441, %c0_442, %c0_443] : memref<2x12x32x32xf32, #tpu.memory_space<vmem>>, vector<1x1x32x32xf32>
    %420 = vector.shape_cast %419 : vector<1x1x32x32xf32> to vector<32x32xf32>
    %421 = vector.shape_cast %418 : vector<32x32xf32> to vector<1x1x32x32xf32>
    tpu.vector_store %arg6[%c1_440, %c3_441, %c0_442, %c0_443], %421 {strides = array<i32>} : memref<2x12x32x32xf32, #tpu.memory_space<vmem>>, vector<1x1x32x32xf32>,
    return
  }
  func.func @transform_0(%arg0: i32) -> (i32, i32, i32) {
    %c0_i32 = arith.constant 0 : i32
    %c0_i32_0 = arith.constant 0 : i32
    %c0_i32_1 = arith.constant 0 : i32
    return %arg0, %c0_i32, %c0_i32_0 : i32, i32, i32
  }
  func.func @transform_1(%arg0: i32) -> (i32, i32) {
    %c0_i32 = arith.constant 0 : i32
    %c0_i32_0 = arith.constant 0 : i32
    %c0_i32_1 = arith.constant 0 : i32
    return %c0_i32, %c0_i32_0 : i32, i32
  }
  func.func @transform_2(%arg0: i32) -> (i32, i32) {
    %c0_i32 = arith.constant 0 : i32
    %c0_i32_0 = arith.constant 0 : i32
    %c0_i32_1 = arith.constant 0 : i32
    return %c0_i32, %c0_i32_0 : i32, i32
  }
  func.func @transform_3(%arg0: i32) -> (i32, i32) {
    %c0_i32 = arith.constant 0 : i32
    %c0_i32_0 = arith.constant 0 : i32
    %c0_i32_1 = arith.constant 0 : i32
    return %c0_i32, %c0_i32_0 : i32, i32
  }
  func.func @transform_4(%arg0: i32) -> (i32, i32) {
    %c0_i32 = arith.constant 0 : i32
    %c0_i32_0 = arith.constant 0 : i32
    %c0_i32_1 = arith.constant 0 : i32
    return %c0_i32, %c0_i32_0 : i32, i32
  }
  func.func @transform_5(%arg0: i32) -> (i32, i32, i32, i32) {
    %c0_i32 = arith.constant 0 : i32
    %c0_i32_0 = arith.constant 0 : i32
    %c0_i32_1 = arith.constant 0 : i32
    %c0_i32_2 = arith.constant 0 : i32
    return %arg0, %c0_i32, %c0_i32_0, %c0_i32_1 : i32, i32, i32, i32
  }
}

</mosaic_0001>

<llo_original>
// kernel: tpu_custom_call.1
$region0: #{tpu_custom_call.1}
  #allocation0 [shape = 'u32[]', space=smem, size = 0x4, offset = 0x4, fixed_abs, tag = 'smem constant byte address 0x4 - core index']
  #allocation1 [shape = 'u32[144,128]{1,0:T(1,128)}', space=vmem, size = 0x12000, scoped, tag = 'internal scratch']
  #allocation2 [shape = 'f32[12,256]{1,0:T(8,128)}', space=vmem, size = 0x4000, scoped, tag = 'scratch operand']
  #allocation3 [shape = 'f32[12,16,32]{2,1,0:T(8,128)}', space=vmem, size = 0x18000, scoped, tag = 'scratch operand']
  #allocation4 [shape = 'f32[4,32,32]{2,1,0:T(8,128)}', space=vmem, size = 0x10000, scoped, tag = 'scratch operand']
  %s0 = inlined_call_operand.hbm [shape: f32[4,72,256], index: 0, kind: input, shape index: {}]
  %s1 = inlined_call_operand.vmem [shape: f32[12,72], index: 1, kind: input, shape index: {}]
  %s2 = inlined_call_operand.vmem [shape: f32[12,1], index: 2, kind: input, shape index: {}]
  %s3 = inlined_call_operand.vmem [shape: f32[32,16], index: 3, kind: input, shape index: {}]
  %s4 = inlined_call_operand.vmem [shape: f32[16,32], index: 4, kind: input, shape index: {}]
  %s5 = inlined_call_operand.hbm [shape: f32[4,12,32,32], index: 5, kind: output, shape index: {}]
  %s6 = sld [smem:[#allocation0]]
  $region57: #{tpu_custom_call.1} parent=0
    _
  %s8 = ssub.s32 1, %s6
  %s9 = scalar_select 0, %s8, %s6
  $region1: #{tpu_custom_call.1} parent=0
    #allocation5 [shape = 'u8[294912]{0}', space=vmem, size = 0x48000, scoped, tag = 'input window, operand 0']
    #allocation6 [shape = 's32[2]{0}', space=sflag, size = 0x8, scoped, tag = 'scoped memory for tpu_custom_call.1']
    #allocation7 [shape = 's32[2]{0}', space=sflag, size = 0x8, scoped, tag = 'scoped memory for tpu_custom_call.1']
    #allocation8 [shape = 'u8[786432]{0}', space=vmem, size = 0xc0000, scoped, tag = 'output window, operand 0']
    %10 = vsyncpa [#allocation6], 0
    %s11 = scalar_lea.sflag [#allocation6], 1
    %12 = vsyncpa %s11, 0
    %13 = vsyncpa [#allocation7], 0
    %s14 = scalar_lea.sflag [#allocation7], 1
    %15 = vsyncpa %s14, 0
    loop: start=0, step=1, limit=4
    $region2: #{tpu_custom_call.1} parent=1 // loop_pre_header
      _
    $region3: #{tpu_custom_call.1} parent=1 // loop_header
      %s17 = sphi 0, %s21
      %p18 = scmp.ge.s32.totalorder %s17, 4
      %s27 = sphi 0, %s29
      %s30 = sphi 0, %s27
      %s31 = sphi 0, %s30
      %s47 = sphi 0, %s31
      %s51 = sphi 0, %s51
      %s53 = sphi 0, %s51
      %s54 = sphi 0, %s53
      %s68 = sphi 0, %s54
      %s72 = sphi 0, %s72
      %s74 = sphi 0, %s72
      %s75 = sphi 0, %s74
      %s89 = sphi 0, %s75
      %s93 = sphi 0, %s93
      %s95 = sphi 0, %s93
      %s96 = sphi 0, %s95
      %s110 = sphi 0, %s96
      %s114 = sphi 0, %s114
      %s116 = sphi 0, %s114
      %s117 = sphi 0, %s116
      %s131 = sphi 0, %s117
      %s137 = sphi 0, %s139
      %s140 = sphi 0, %s137
      %s141 = sphi 0, %s140
      %s157 = sphi 0, %s141
    $region4: #{tpu_custom_call.1} parent=1 // loop_header_branch
      %20 = sbr.rel (%p18) target = $region8
    $region5: #{tpu_custom_call.1} parent=1 // loop_body
      %s22 = ssub.s32 %s17, 1
      %s23 = ssub.s32 %s17, 2
      %s24 = sadd.s32 %s17, 1
      %s25 = ssub.s32 %s17, %s24
      %p26 = scmp.eq.s32.totalorder %s25, 0
      %s28 = sadd.s32 %s27, 1
      %s29 = scalar_select %p26, %s27, %s28
      %p32 = pneg %p26
      %p33 = scmp.eq.s32.totalorder %s17, 1
      %p34 = por %p32, %p33
      %p35 = scmp.ne.s32.totalorder %s27, %s30
      %p36 = scmp.eq.s32.totalorder %s17, 0
      %p37 = por %p35, %p36
      %p38 = scmp.ne.s32.totalorder %s27, %s30
      %p39 = scmp.eq.s32.totalorder %s22, 1
      %p40 = por %p38, %p39
      %p41 = scmp.ne.s32.totalorder %s30, %s31
      %p42 = scmp.eq.s32.totalorder %s22, 0
      %p43 = por %p41, %p42
      %p44 = scmp.ne.s32.totalorder %s30, %s31
      %p45 = scmp.eq.s32.totalorder %s23, 1
      %p46 = por %p44, %p45
      %p48 = scmp.ne.s32.totalorder %s31, %s47
      %p49 = scmp.eq.s32.totalorder %s23, 0
      %p50 = por %p48, %p49
      %s52 = sadd.s32 %s51, 1
      %p55 = scmp.eq.s32.totalorder %s17, 1
      %p56 = scmp.ne.s32.totalorder %s51, %s53
      %p57 = scmp.eq.s32.totalorder %s17, 0
      %p58 = por %p56, %p57
      %p59 = scmp.ne.s32.totalorder %s51, %s53
      %p60 = scmp.eq.s32.totalorder %s22, 1
      %p61 = por %p59, %p60
      %p62 = scmp.ne.s32.totalorder %s53, %s54
      %p63 = scmp.eq.s32.totalorder %s22, 0
      %p64 = por %p62, %p63
      %p65 = scmp.ne.s32.totalorder %s53, %s54
      %p66 = scmp.eq.s32.totalorder %s23, 1
      %p67 = por %p65, %p66
      %p69 = scmp.ne.s32.totalorder %s54, %s68
      %p70 = scmp.eq.s32.totalorder %s23, 0
      %p71 = por %p69, %p70
      %s73 = sadd.s32 %s72, 1
      %p76 = scmp.eq.s32.totalorder %s17, 1
      %p77 = scmp.ne.s32.totalorder %s72, %s74
      %p78 = scmp.eq.s32.totalorder %s17, 0
      %p79 = por %p77, %p78
      %p80 = scmp.ne.s32.totalorder %s72, %s74
      %p81 = scmp.eq.s32.totalorder %s22, 1
      %p82 = por %p80, %p81
      %p83 = scmp.ne.s32.totalorder %s74, %s75
      %p84 = scmp.eq.s32.totalorder %s22, 0
      %p85 = por %p83, %p84
      %p86 = scmp.ne.s32.totalorder %s74, %s75
      %p87 = scmp.eq.s32.totalorder %s23, 1
      %p88 = por %p86, %p87
      %p90 = scmp.ne.s32.totalorder %s75, %s89
      %p91 = scmp.eq.s32.totalorder %s23, 0
      %p92 = por %p90, %p91
      %s94 = sadd.s32 %s93, 1
      %p97 = scmp.eq.s32.totalorder %s17, 1
      %p98 = scmp.ne.s32.totalorder %s93, %s95
      %p99 = scmp.eq.s32.totalorder %s17, 0
      %p100 = por %p98, %p99
      %p101 = scmp.ne.s32.totalorder %s93, %s95
      %p102 = scmp.eq.s32.totalorder %s22, 1
      %p103 = por %p101, %p102
      %p104 = scmp.ne.s32.totalorder %s95, %s96
      %p105 = scmp.eq.s32.totalorder %s22, 0
      %p106 = por %p104, %p105
      %p107 = scmp.ne.s32.totalorder %s95, %s96
      %p108 = scmp.eq.s32.totalorder %s23, 1
      %p109 = por %p107, %p108
      %p111 = scmp.ne.s32.totalorder %s96, %s110
      %p112 = scmp.eq.s32.totalorder %s23, 0
      %p113 = por %p111, %p112
      %s115 = sadd.s32 %s114, 1
      %p118 = scmp.eq.s32.totalorder %s17, 1
      %p119 = scmp.ne.s32.totalorder %s114, %s116
      %p120 = scmp.eq.s32.totalorder %s17, 0
      %p121 = por %p119, %p120
      %p122 = scmp.ne.s32.totalorder %s114, %s116
      %p123 = scmp.eq.s32.totalorder %s22, 1
      %p124 = por %p122, %p123
      %p125 = scmp.ne.s32.totalorder %s116, %s117
      %p126 = scmp.eq.s32.totalorder %s22, 0
      %p127 = por %p125, %p126
      %p128 = scmp.ne.s32.totalorder %s116, %s117
      %p129 = scmp.eq.s32.totalorder %s23, 1
      %p130 = por %p128, %p129
      %p132 = scmp.ne.s32.totalorder %s117, %s131
      %p133 = scmp.eq.s32.totalorder %s23, 0
      %p134 = por %p132, %p133
      %s135 = ssub.s32 %s17, %s24
      %p136 = scmp.eq.s32.totalorder %s135, 0
      %s138 = sadd.s32 %s137, 1
      %s139 = scalar_select %p136, %s137, %s138
      %p142 = pneg %p136
      %p143 = scmp.eq.s32.totalorder %s17, 1
      %p144 = por %p142, %p143
      %p145 = scmp.ne.s32.totalorder %s137, %s140
      %p146 = scmp.eq.s32.totalorder %s17, 0
      %p147 = por %p145, %p146
      %p148 = scmp.ne.s32.totalorder %s137, %s140
      %p149 = scmp.eq.s32.totalorder %s22, 1
      %p150 = por %p148, %p149
      %p151 = scmp.ne.s32.totalorder %s140, %s141
      %p152 = scmp.eq.s32.totalorder %s22, 0
      %p153 = por %p151, %p152
      %p154 = scmp.ne.s32.totalorder %s140, %s141
      %p155 = scmp.eq.s32.totalorder %s23, 1
      %p156 = por %p154, %p155
      %p158 = scmp.ne.s32.totalorder %s141, %s157
      %p159 = scmp.eq.s32.totalorder %s23, 0
      %p160 = por %p158, %p159
      %p161 = scmp.le.s32.totalorder 1, %s17
      %p162 = scmp.lt.s32.totalorder %s17, 3
      %p163 = pnand %p161, %p162
      %p164 = pneg %p163
      // Predicated region
      $region9: #{tpu_custom_call.1} parent=5 // pred_check
        _
      $region10: #{tpu_custom_call.1} parent=5 // pred_check_branch
        %166 = sbr.rel (%p163) target = $region12
      $region11: #{tpu_custom_call.1} parent=5 // pred_region
        %s167 = ssub.s32 %s17, 1
        // Predicated region
        $region13: #{tpu_custom_call.1} parent=11 // pred_check
          %p168 = pneg %p64
        $region14: #{tpu_custom_call.1} parent=11 // pred_check_branch
          %170 = sbr.rel (%p168) target = $region16
        $region15: #{tpu_custom_call.1} parent=11 // pred_region
          _
        $region16: #{tpu_custom_call.1} parent=11 // pred_fallthru
          _
        // Predicated region
        $region17: #{tpu_custom_call.1} parent=11 // pred_check
          %p171 = pneg %p85
        $region18: #{tpu_custom_call.1} parent=11 // pred_check_branch
          %173 = sbr.rel (%p171) target = $region20
        $region19: #{tpu_custom_call.1} parent=11 // pred_region
          _
        $region20: #{tpu_custom_call.1} parent=11 // pred_fallthru
          _
        // Predicated region
        $region21: #{tpu_custom_call.1} parent=11 // pred_check
          %p174 = pneg %p106
        $region22: #{tpu_custom_call.1} parent=11 // pred_check_branch
          %176 = sbr.rel (%p174) target = $region24
        $region23: #{tpu_custom_call.1} parent=11 // pred_region
          _
        $region24: #{tpu_custom_call.1} parent=11 // pred_fallthru
          _
        // Predicated region
        $region25: #{tpu_custom_call.1} parent=11 // pred_check
          %p177 = pneg %p127
        $region26: #{tpu_custom_call.1} parent=11 // pred_check_branch
          %179 = sbr.rel (%p177) target = $region28
        $region27: #{tpu_custom_call.1} parent=11 // pred_region
          _
        $region28: #{tpu_custom_call.1} parent=11 // pred_fallthru
          _
      $region12: #{tpu_custom_call.1} parent=5 // pred_fallthru
        _
      %p180 = scmp.lt.s32.totalorder %s17, 2
      // Predicated region
      $region29: #{tpu_custom_call.1} parent=5 // pred_check
        %p181 = pneg %p180
      $region30: #{tpu_custom_call.1} parent=5 // pred_check_branch
        %183 = sbr.rel (%p181) target = $region32
      $region31: #{tpu_custom_call.1} parent=5 // pred_region
        // Predicated region
        $region33: #{tpu_custom_call.1} parent=31 // pred_check
          %p184 = pneg %p37
        $region34: #{tpu_custom_call.1} parent=31 // pred_check_branch
          %186 = sbr.rel (%p184) target = $region36
        $region35: #{tpu_custom_call.1} parent=31 // pred_region
          %s187 = sand.u32 %s27, 1
          %s188 = scalar_lea.sflag [#allocation6], %s187
          %s189 = sand.u32 %s27, 1
          %s190 = smul.addr %s189, 288
          %s191 = scalar_lea.vmem [#allocation5], %s190
          %s192 = smul.u32 2, %s17
          %s194 = ssub.s32 4608, 4608
          %195 = vsyncadd %s188, %s194
          %s196 = smul.addr %s192, 18
          %s197 = smul.addr %s196, 128
          %s198 = scalar_lea.hbm %s0, %s197
          %s199 = sshll.u32 %s191, 4
          %s200 = int_to_ptr.vmem [resolvable:$true] %s199
          %205 = dma.hbm_to_vmem [thread:$0]  %s198, 4608, %s200, %s188, 256, 256, 16
        $region36: #{tpu_custom_call.1} parent=31 // pred_fallthru
          _
      $region32: #{tpu_custom_call.1} parent=5 // pred_fallthru
        _
      %p206 = scmp.le.s32.totalorder 1, %s17
      %p207 = scmp.lt.s32.totalorder %s17, 3
      %p208 = pnand %p206, %p207
      %p209 = pneg %p208
      // Predicated region
      $region37: #{tpu_custom_call.1} parent=5 // pred_check
        _
      $region38: #{tpu_custom_call.1} parent=5 // pred_check_branch
        %211 = sbr.rel (%p208) target = $region40
      $region39: #{tpu_custom_call.1} parent=5 // pred_region
        %s212 = ssub.s32 %s17, 1
        %s213 = sand.u32 %s30, 1
        %s214 = scalar_lea.sflag [#allocation6], %s213
        %s215 = sand.u32 %s30, 1
        %s216 = smul.addr %s215, 288
        %s217 = scalar_lea.vmem [#allocation5], %s216
        // Predicated region
        $region41: #{tpu_custom_call.1} parent=39 // pred_check
          %p218 = pneg %p43
        $region42: #{tpu_custom_call.1} parent=39 // pred_check_branch
          %220 = sbr.rel (%p218) target = $region44
        $region43: #{tpu_custom_call.1} parent=39 // pred_region
          %221 = dma.done %s214, 4608
        $region44: #{tpu_custom_call.1} parent=39 // pred_fallthru
          _
        %s222 = sand.u32 %s30, 1
        %s223 = scalar_lea.sflag [#allocation6], %s222
        %s224 = sand.u32 %s30, 1
        %s225 = smul.addr %s224, 288
        %s226 = scalar_lea.vmem [#allocation5], %s225
        %p227 = pneg %p43
        %p228 = pneg %p40
        %p229 = pneg %p64
        %p230 = pneg %p61
        %p231 = pneg %p85
        %p232 = pneg %p82
        %p233 = pneg %p106
        %p234 = pneg %p103
        %p235 = pneg %p127
        %p236 = pneg %p124
        %p237 = pneg %p153
        %p238 = pneg %p150
        %s239 = sand.u32 %s140, 1
        %s240 = scalar_lea.sflag [#allocation7], %s239
        %s241 = sand.u32 %s140, 1
        %s242 = smul.addr %s241, 768
        %s243 = scalar_lea.vmem [#allocation8], %s242
        %s244 = smul.u32 2, %s22
        %s245 = smul.u32 2, %s22
        %v246 = vld [vmem:[%s1] sm:$0xff]
        %v247 = vld [vmem:[%s1 + $0x8] sm:$0xf]
        %v248 = vld [vmem:[%s2] sm:$0xff]
        %v249 = vld [vmem:[%s2 + $0x8] sm:$0xf]
        %v250 = vld [vmem:[%s3] sm:$0xff]
        %v251 = vld [vmem:[%s3 + $0x8] sm:$0xff]
        %v252 = vld [vmem:[%s3 + $0x10] sm:$0xff]
        %v253 = vld [vmem:[%s3 + $0x18] sm:$0xff]
        %v254 = vld [vmem:[%s4] sm:$0xff]
        %v255 = vld [vmem:[%s4 + $0x8] sm:$0xff]
        %v256 = vld [vmem:[%s217] sm:$0xff]
        %v257 = vld [vmem:[%s217 + $0x8] sm:$0xff]
        %v258 = vld [vmem:[%s217 + $0x10] sm:$0xff]
        %v259 = vld [vmem:[%s217 + $0x18] sm:$0xff]
        %v260 = vld [vmem:[%s217 + $0x20] sm:$0xff]
        %v261 = vld [vmem:[%s217 + $0x28] sm:$0xff]
        %v262 = vld [vmem:[%s217 + $0x30] sm:$0xff]
        %v263 = vld [vmem:[%s217 + $0x38] sm:$0xff]
        %v264 = vld [vmem:[%s217 + $0x40] sm:$0xff]
        %v265 = vld [vmem:[%s217 + $0x48] sm:$0xff]
        %v266 = vld [vmem:[%s217 + $0x50] sm:$0xff]
        %v267 = vld [vmem:[%s217 + $0x58] sm:$0xff]
        %v268 = vld [vmem:[%s217 + $0x60] sm:$0xff]
        %v269 = vld [vmem:[%s217 + $0x68] sm:$0xff]
        %v270 = vld [vmem:[%s217 + $0x70] sm:$0xff]
        %v271 = vld [vmem:[%s217 + $0x78] sm:$0xff]
        %v272 = vld [vmem:[%s217 + $0x80] sm:$0xff]
        %v273 = vld [vmem:[%s217 + $0x88] sm:$0xff]
        %275 = vset.pattern.permute.xlu0 0
        %276 = vperm.xlu0 %275, %v248
        %v277 = vpop.permute.xlu0 %276
        %280 = vset.pattern.permute.xlu0 0
        %281 = vperm.xlu0 %280, %v249
        %v282 = vpop.permute.xlu0 %281
        %vm284 = vcmask 588800
        %v286 = vsel %vm284, %v246, 0
        %v289 = vsel %vm284, %v247, 0
        %291 = vmatprep.subr.mxu0 0.0
        %292 = vmatpush1.msra.mxu0 0.0
        %293 = vmatprep.subr.mxu0 0.0
        %294 = vmatpush1.msra.mxu0 0.0
        %295 = vmatprep.subr.mxu0 0.0
        %296 = vmatpush1.msra.mxu0 0.0
        %297 = vmatprep.subr.mxu0 0.0
        %298 = vmatpush1.msra.mxu0 0.0
        %299 = vmatprep.subr.mxu0 0.0
        %300 = vmatpush1.msra.mxu0 0.0
        %301 = vmatprep.subr.mxu0 0.0
        %302 = vmatpush1.msra.mxu0 0.0
        %303 = vmatprep.subr.mxu0 0.0
        %304 = vmatpush1.msra.mxu0 0.0
        %305 = vmatprep.subr.mxu0 %v273
        %306 = vmatpush1.msra.mxu0 %v272
        %307 = vmatprep.subr.mxu0 %v271
        %308 = vmatpush1.msra.mxu0 %v270
        %309 = vmatprep.subr.mxu0 %v269
        %310 = vmatpush1.msra.mxu0 %v268
        %311 = vmatprep.subr.mxu0 %v267
        %312 = vmatpush1.msra.mxu0 %v266
        %313 = vmatprep.subr.mxu0 %v265
        %314 = vmatpush1.msra.mxu0 %v264
        %315 = vmatprep.subr.mxu0 %v263
        %316 = vmatpush1.msra.mxu0 %v262
        %317 = vmatprep.subr.mxu0 %v261
        %318 = vmatpush1.msra.mxu0 %v260
        %319 = vmatprep.subr.mxu0 %v259
        %320 = vmatpush1.msra.mxu0 %v258
        %321 = vmatprep.subr.mxu0 %v257
        %322 = vmatpush1.msra.mxu0 %v256
        %323 = vmatprep.subr.mxu0 0.0
        %324 = vmatpush2.msra.mxu0 0.0
        %325 = vmatprep.subr.mxu0 0.0
        %326 = vmatpush2.msra.mxu0 0.0
        %327 = vmatprep.subr.mxu0 0.0
        %328 = vmatpush2.msra.mxu0 0.0
        %329 = vmatprep.subr.mxu0 0.0
        %330 = vmatpush2.msra.mxu0 0.0
        %331 = vmatprep.subr.mxu0 0.0
        %332 = vmatpush2.msra.mxu0 0.0
        %333 = vmatprep.subr.mxu0 0.0
        %334 = vmatpush2.msra.mxu0 0.0
        %335 = vmatprep.subr.mxu0 0.0
        %336 = vmatpush2.msra.mxu0 0.0
        %337 = vmatprep.subr.mxu0 0.0
        %338 = vmatpush2.msra.mxu0 0.0
        %339 = vmatprep.subr.mxu0 0.0
        %340 = vmatpush2.msra.mxu0 0.0
        %341 = vmatprep.subr.mxu0 0.0
        %342 = vmatpush2.msra.mxu0 0.0
        %343 = vmatprep.subr.mxu0 0.0
        %344 = vmatpush2.msra.mxu0 0.0
        %345 = vmatprep.subr.mxu0 0.0
        %346 = vmatpush2.msra.mxu0 0.0
        %347 = vmatprep.subr.mxu0 0.0
        %348 = vmatpush2.msra.mxu0 0.0
        %349 = vmatprep.subr.mxu0 0.0
        %350 = vmatpush2.msra.mxu0 0.0
        %351 = vmatprep.subr.mxu0 0.0
        %352 = vmatpush2.msra.mxu0 0.0
        %353 = vmatprep.subr.mxu0 0.0
        %354 = vmatpush2.msra.mxu0 0.0
        %355 = vmatprep.mubr.f32.mxu0 0.0
        %356 = vmatmul.mubr.f32.gmra.mxu0 %v286
        %v357 = vpop.f32.mrf.mxu0
        %v358 = vadd.f32 %v277, %v357
        %v359 = vpop.f32.mrf.mxu0
        %v360 = vadd.f32 %v277, %v359
        %361 = vmatprep.mubr.f32.mxu0 0.0
        %362 = vmatmul.mubr.f32.gmra.mxu0 %v289
        %v363 = vpop.f32.mrf.mxu0
        %v364 = vadd.f32 %v282, %v363
        %v365 = vpop.f32.mrf.mxu0
        %v366 = vadd.f32 %v282, %v365
        %367 = vdwg.mxu0
        %368 = vst [vmem:[#allocation2] sm:$0xff] %v358
        %369 = vst [vmem:[#allocation2 + $0x8] sm:$0xff] %v360
        %370 = vst [vmem:[#allocation2 + $0x10] sm:$0xf] %v364
        %371 = vst [vmem:[#allocation2 + $0x18] sm:$0xf] %v366
        %v372 = vld [vmem:[#allocation2] sm:$0xff]
        %v373 = vld [vmem:[#allocation2 + $0x10] sm:$0xf]
        %vm374 = vcmask 130048
        %v376 = vsel %vm374, %v372, 0
        %v379 = vsel %vm374, %v373, 0
        %381 = vmatprep.subr.mxu0 0.0
        %382 = vmatpush1.msra.mxu0 0.0
        %383 = vmatprep.subr.mxu0 0.0
        %384 = vmatpush1.msra.mxu0 0.0
        %385 = vmatprep.subr.mxu0 0.0
        %386 = vmatpush1.msra.mxu0 0.0
        %387 = vmatprep.subr.mxu0 0.0
        %388 = vmatpush1.msra.mxu0 0.0
        %389 = vmatprep.subr.mxu0 0.0
        %390 = vmatpush1.msra.mxu0 0.0
        %391 = vmatprep.subr.mxu0 0.0
        %392 = vmatpush1.msra.mxu0 0.0
        %393 = vmatprep.subr.mxu0 0.0
        %394 = vmatpush1.msra.mxu0 0.0
        %395 = vmatprep.subr.mxu0 0.0
        %396 = vmatpush1.msra.mxu0 0.0
        %397 = vmatprep.subr.mxu0 0.0
        %398 = vmatpush1.msra.mxu0 0.0
        %399 = vmatprep.subr.mxu0 0.0
        %400 = vmatpush1.msra.mxu0 0.0
        %401 = vmatprep.subr.mxu0 0.0
        %402 = vmatpush1.msra.mxu0 0.0
        %403 = vmatprep.subr.mxu0 0.0
        %404 = vmatpush1.msra.mxu0 0.0
        %405 = vmatprep.subr.mxu0 0.0
        %406 = vmatpush1.msra.mxu0 0.0
        %407 = vmatprep.subr.mxu0 0.0
        %408 = vmatpush1.msra.mxu0 0.0
        %409 = vmatprep.subr.mxu0 0.0
        %410 = vmatpush1.msra.mxu0 %v255
        %411 = vmatprep.subr.mxu0 0.0
        %412 = vmatpush1.msra.mxu0 %v254
        %413 = vmatprep.subr.mxu0 0.0
        %414 = vmatpush2.msra.mxu0 0.0
        %415 = vmatprep.subr.mxu0 0.0
        %416 = vmatpush2.msra.mxu0 0.0
        %417 = vmatprep.subr.mxu0 0.0
        %418 = vmatpush2.msra.mxu0 0.0
        %419 = vmatprep.subr.mxu0 0.0
        %420 = vmatpush2.msra.mxu0 0.0
        %421 = vmatprep.subr.mxu0 0.0
        %422 = vmatpush2.msra.mxu0 0.0
        %423 = vmatprep.subr.mxu0 0.0
        %424 = vmatpush2.msra.mxu0 0.0
        %425 = vmatprep.subr.mxu0 0.0
        %426 = vmatpush2.msra.mxu0 0.0
        %427 = vmatprep.subr.mxu0 0.0
        %428 = vmatpush2.msra.mxu0 0.0
        %429 = vmatprep.subr.mxu0 0.0
        %430 = vmatpush2.msra.mxu0 0.0
        %431 = vmatprep.subr.mxu0 0.0
        %432 = vmatpush2.msra.mxu0 0.0
        %433 = vmatprep.subr.mxu0 0.0
        %434 = vmatpush2.msra.mxu0 0.0
        %435 = vmatprep.subr.mxu0 0.0
        %436 = vmatpush2.msra.mxu0 0.0
        %437 = vmatprep.subr.mxu0 0.0
        %438 = vmatpush2.msra.mxu0 0.0
        %439 = vmatprep.subr.mxu0 0.0
        %440 = vmatpush2.msra.mxu0 0.0
        %441 = vmatprep.subr.mxu0 0.0
        %442 = vmatpush2.msra.mxu0 0.0
        %443 = vmatprep.subr.mxu0 0.0
        %444 = vmatpush2.msra.mxu0 0.0
        %445 = vmatprep.mubr.f32.mxu0 0.0
        %446 = vmatmul.mubr.f32.gmra.mxu0 %v376
        %v447 = vpop.f32.mrf.mxu0
        %v448 = vadd.f32 0.0, %v447
        %v449 = vpop.f32.mrf.mxu0
        %450 = vmatprep.mubr.f32.mxu0 0.0
        %451 = vmatmul.mubr.f32.gmra.mxu0 %v379
        %v452 = vpop.f32.mrf.mxu0
        %v453 = vadd.f32 0.0, %v452
        %v454 = vpop.f32.mrf.mxu0
        %455 = vdwg.mxu0
        %v458 = vcombine.high %v448, %v448
        %v460 = vunpack.c.l.s4 1966171168
        %v461 = vunpack.c.0.s8 %v460
        %v462 = vlaneseq
        %v463 = vshrl.u32 %v462, 7
        %v464 = vsub.s32 %v461, %v463
        %v465 = vrot.slane %v448, %v464
        %v467 = vunpack.c.l.s4 1966171168
        %v468 = vunpack.c.0.s8 %v467
        %v469 = vlaneseq
        %v470 = vshrl.u32 %v469, 7
        %v471 = vsub.s32 %v468, %v470
        %v472 = vrot.slane %v458, %v471
        %v473 = vcombine.high %v465, %v465
        %v474 = vcombine.high %v472, %v472
        %v476 = vunpack.c.l.s4 1966171168
        %v477 = vunpack.c.0.s8 %v476
        %v478 = vlaneseq
        %v479 = vshrl.u32 %v478, 7
        %v480 = vsub.s32 %v477, %v479
        %v481 = vrot.slane %v465, %v480
        %v483 = vunpack.c.l.s4 1966171168
        %v484 = vunpack.c.0.s8 %v483
        %v485 = vlaneseq
        %v486 = vshrl.u32 %v485, 7
        %v487 = vsub.s32 %v484, %v486
        %v488 = vrot.slane %v472, %v487
        %v490 = vunpack.c.l.s4 1966171168
        %v491 = vunpack.c.0.s8 %v490
        %v492 = vlaneseq
        %v493 = vshrl.u32 %v492, 7
        %v494 = vsub.s32 %v491, %v493
        %v495 = vrot.slane %v473, %v494
        %v497 = vunpack.c.l.s4 1966171168
        %v498 = vunpack.c.0.s8 %v497
        %v499 = vlaneseq
        %v500 = vshrl.u32 %v499, 7
        %v501 = vsub.s32 %v498, %v500
        %v502 = vrot.slane %v474, %v501
        %v503 = vcombine.high %v481, %v481
        %v504 = vcombine.high %v488, %v488
        %v505 = vcombine.high %v495, %v495
        %v506 = vcombine.high %v502, %v502
        %v508 = vunpack.c.l.s4 1966171168
        %v509 = vunpack.c.0.s8 %v508
        %v510 = vlaneseq
        %v511 = vshrl.u32 %v510, 7
        %v512 = vsub.s32 %v509, %v511
        %v513 = vrot.slane %v453, %v512
        %v514 = vcombine.high %v513, %v513
        %v516 = vunpack.c.l.s4 1966171168
        %v517 = vunpack.c.0.s8 %v516
        %v518 = vlaneseq
        %v519 = vshrl.u32 %v518, 7
        %v520 = vsub.s32 %v517, %v519
        %v521 = vrot.slane %v513, %v520
        %v523 = vunpack.c.l.s4 1966171168
        %v524 = vunpack.c.0.s8 %v523
        %v525 = vlaneseq
        %v526 = vshrl.u32 %v525, 7
        %v527 = vsub.s32 %v524, %v526
        %v528 = vrot.slane %v514, %v527
        %v529 = vcombine.high %v521, %v521
        %v530 = vcombine.high %v528, %v528
        %vm543 = vcmask 253952
        %544 = vst.msk [vmem:[#allocation3] sm:$0x1] %vm543, %v481
        %545 = vst.msk [vmem:[#allocation3 + $0x10] sm:$0x1] %vm543, %v495
        %546 = vst.msk [vmem:[#allocation3 + $0x20] sm:$0x1] %vm543, %v503
        %547 = vst.msk [vmem:[#allocation3 + $0x30] sm:$0x1] %vm543, %v505
        %548 = vst.msk [vmem:[#allocation3 + $0x40] sm:$0x1] %vm543, %v488
        %549 = vst.msk [vmem:[#allocation3 + $0x50] sm:$0x1] %vm543, %v502
        %550 = vst.msk [vmem:[#allocation3 + $0x60] sm:$0x1] %vm543, %v504
        %551 = vst.msk [vmem:[#allocation3 + $0x70] sm:$0x1] %vm543, %v506
        %552 = vst.msk [vmem:[#allocation3 + $0x80] sm:$0x1] %vm543, %v521
        %553 = vst.msk [vmem:[#allocation3 + $0x90] sm:$0x1] %vm543, %v528
        %554 = vst.msk [vmem:[#allocation3 + $0xa0] sm:$0x1] %vm543, %v529
        %555 = vst.msk [vmem:[#allocation3 + $0xb0] sm:$0x1] %vm543, %v530
        %v556 = vld [vmem:[#allocation2] sm:$0xff]
        %v557 = vld [vmem:[#allocation2 + $0x10] sm:$0xf]
        %560 = vrot.lane.b32.xlu0 %v556, 112
        %v561 = vpop.permute.xlu0 %560
        %562 = vrot.lane.b32.xlu0 %v557, 112
        %v563 = vpop.permute.xlu0 %562
        %v564 = vsel %vm374, %v561, 0
        %v566 = vsel %vm374, %v563, 0
        %568 = vmatprep.subr.mxu0 0.0
        %569 = vmatpush1.msra.mxu0 0.0
        %570 = vmatprep.subr.mxu0 0.0
        %571 = vmatpush1.msra.mxu0 0.0
        %572 = vmatprep.subr.mxu0 0.0
        %573 = vmatpush1.msra.mxu0 0.0
        %574 = vmatprep.subr.mxu0 0.0
        %575 = vmatpush1.msra.mxu0 0.0
        %576 = vmatprep.subr.mxu0 0.0
        %577 = vmatpush1.msra.mxu0 0.0
        %578 = vmatprep.subr.mxu0 0.0
        %579 = vmatpush1.msra.mxu0 0.0
        %580 = vmatprep.subr.mxu0 0.0
        %581 = vmatpush1.msra.mxu0 0.0
        %582 = vmatprep.subr.mxu0 0.0
        %583 = vmatpush1.msra.mxu0 0.0
        %584 = vmatprep.subr.mxu0 0.0
        %585 = vmatpush1.msra.mxu0 0.0
        %586 = vmatprep.subr.mxu0 0.0
        %587 = vmatpush1.msra.mxu0 0.0
        %588 = vmatprep.subr.mxu0 0.0
        %589 = vmatpush1.msra.mxu0 0.0
        %590 = vmatprep.subr.mxu0 0.0
        %591 = vmatpush1.msra.mxu0 0.0
        %592 = vmatprep.subr.mxu0 0.0
        %593 = vmatpush1.msra.mxu0 0.0
        %594 = vmatprep.subr.mxu0 0.0
        %595 = vmatpush1.msra.mxu0 0.0
        %596 = vmatprep.subr.mxu0 0.0
        %597 = vmatpush1.msra.mxu0 %v255
        %598 = vmatprep.subr.mxu0 0.0
        %599 = vmatpush1.msra.mxu0 %v254
        %600 = vmatprep.subr.mxu0 0.0
        %601 = vmatpush2.msra.mxu0 0.0
        %602 = vmatprep.subr.mxu0 0.0
        %603 = vmatpush2.msra.mxu0 0.0
        %604 = vmatprep.subr.mxu0 0.0
        %605 = vmatpush2.msra.mxu0 0.0
        %606 = vmatprep.subr.mxu0 0.0
        %607 = vmatpush2.msra.mxu0 0.0
        %608 = vmatprep.subr.mxu0 0.0
        %609 = vmatpush2.msra.mxu0 0.0
        %610 = vmatprep.subr.mxu0 0.0
        %611 = vmatpush2.msra.mxu0 0.0
        %612 = vmatprep.subr.mxu0 0.0
        %613 = vmatpush2.msra.mxu0 0.0
        %614 = vmatprep.subr.mxu0 0.0
        %615 = vmatpush2.msra.mxu0 0.0
        %616 = vmatprep.subr.mxu0 0.0
        %617 = vmatpush2.msra.mxu0 0.0
        %618 = vmatprep.subr.mxu0 0.0
        %619 = vmatpush2.msra.mxu0 0.0
        %620 = vmatprep.subr.mxu0 0.0
        %621 = vmatpush2.msra.mxu0 0.0
        %622 = vmatprep.subr.mxu0 0.0
        %623 = vmatpush2.msra.mxu0 0.0
        %624 = vmatprep.subr.mxu0 0.0
        %625 = vmatpush2.msra.mxu0 0.0
        %626 = vmatprep.subr.mxu0 0.0
        %627 = vmatpush2.msra.mxu0 0.0
        %628 = vmatprep.subr.mxu0 0.0
        %629 = vmatpush2.msra.mxu0 0.0
        %630 = vmatprep.subr.mxu0 0.0
        %631 = vmatpush2.msra.mxu0 0.0
        %632 = vmatprep.mubr.f32.mxu0 0.0
        %633 = vmatmul.mubr.f32.gmra.mxu0 %v564
        %v634 = vpop.f32.mrf.mxu0
        %v635 = vadd.f32 0.0, %v634
        %v636 = vpop.f32.mrf.mxu0
        %637 = vmatprep.mubr.f32.mxu0 0.0
        %638 = vmatmul.mubr.f32.gmra.mxu0 %v566
        %v639 = vpop.f32.mrf.mxu0
        %v640 = vadd.f32 0.0, %v639
        %v641 = vpop.f32.mrf.mxu0
        %642 = vdwg.mxu0
        %v645 = vcombine.high %v635, %v635
        %v647 = vunpack.c.l.s4 1966171168
        %v648 = vunpack.c.0.s8 %v647
        %v649 = vlaneseq
        %v650 = vshrl.u32 %v649, 7
        %v651 = vsub.s32 %v648, %v650
        %v652 = vrot.slane %v635, %v651
        %v654 = vunpack.c.l.s4 1966171168
        %v655 = vunpack.c.0.s8 %v654
        %v656 = vlaneseq
        %v657 = vshrl.u32 %v656, 7
        %v658 = vsub.s32 %v655, %v657
        %v659 = vrot.slane %v645, %v658
        %v660 = vcombine.high %v652, %v652
        %v661 = vcombine.high %v659, %v659
        %v663 = vunpack.c.l.s4 1966171168
        %v664 = vunpack.c.0.s8 %v663
        %v665 = vlaneseq
        %v666 = vshrl.u32 %v665, 7
        %v667 = vsub.s32 %v664, %v666
        %v668 = vrot.slane %v652, %v667
        %v670 = vunpack.c.l.s4 1966171168
        %v671 = vunpack.c.0.s8 %v670
        %v672 = vlaneseq
        %v673 = vshrl.u32 %v672, 7
        %v674 = vsub.s32 %v671, %v673
        %v675 = vrot.slane %v659, %v674
        %v677 = vunpack.c.l.s4 1966171168
        %v678 = vunpack.c.0.s8 %v677
        %v679 = vlaneseq
        %v680 = vshrl.u32 %v679, 7
        %v681 = vsub.s32 %v678, %v680
        %v682 = vrot.slane %v660, %v681
        %v684 = vunpack.c.l.s4 1966171168
        %v685 = vunpack.c.0.s8 %v684
        %v686 = vlaneseq
        %v687 = vshrl.u32 %v686, 7
        %v688 = vsub.s32 %v685, %v687
        %v689 = vrot.slane %v661, %v688
        %v690 = vcombine.high %v668, %v668
        %v691 = vcombine.high %v675, %v675
        %v692 = vcombine.high %v682, %v682
        %v693 = vcombine.high %v689, %v689
        %v695 = vunpack.c.l.s4 1966171168
        %v696 = vunpack.c.0.s8 %v695
        %v697 = vlaneseq
        %v698 = vshrl.u32 %v697, 7
        %v699 = vsub.s32 %v696, %v698
        %v700 = vrot.slane %v640, %v699
        %v701 = vcombine.high %v700, %v700
        %v703 = vunpack.c.l.s4 1966171168
        %v704 = vunpack.c.0.s8 %v703
        %v705 = vlaneseq
        %v706 = vshrl.u32 %v705, 7
        %v707 = vsub.s32 %v704, %v706
        %v708 = vrot.slane %v700, %v707
        %v710 = vunpack.c.l.s4 1966171168
        %v711 = vunpack.c.0.s8 %v710
        %v712 = vlaneseq
        %v713 = vshrl.u32 %v712, 7
        %v714 = vsub.s32 %v711, %v713
        %v715 = vrot.slane %v701, %v714
        %v716 = vcombine.high %v708, %v708
        %v717 = vcombine.high %v715, %v715
        %730 = vst.msk [vmem:[#allocation3 + $0x1] sm:$0x1] %vm543, %v668
        %731 = vst.msk [vmem:[#allocation3 + $0x11] sm:$0x1] %vm543, %v682
        %732 = vst.msk [vmem:[#allocation3 + $0x21] sm:$0x1] %vm543, %v690
        %733 = vst.msk [vmem:[#allocation3 + $0x31] sm:$0x1] %vm543, %v692
        %734 = vst.msk [vmem:[#allocation3 + $0x41] sm:$0x1] %vm543, %v675
        %735 = vst.msk [vmem:[#allocation3 + $0x51] sm:$0x1] %vm543, %v689
        %736 = vst.msk [vmem:[#allocation3 + $0x61] sm:$0x1] %vm543, %v691
        %737 = vst.msk [vmem:[#allocation3 + $0x71] sm:$0x1] %vm543, %v693
        %738 = vst.msk [vmem:[#allocation3 + $0x81] sm:$0x1] %vm543, %v708
        %739 = vst.msk [vmem:[#allocation3 + $0x91] sm:$0x1] %vm543, %v715
        %740 = vst.msk [vmem:[#allocation3 + $0xa1] sm:$0x1] %vm543, %v716
        %741 = vst.msk [vmem:[#allocation3 + $0xb1] sm:$0x1] %vm543, %v717
        %v742 = vld [vmem:[#allocation2] sm:$0xff]
        %v743 = vld [vmem:[#allocation2 + $0x10] sm:$0xf]
        %746 = vrot.lane.b32.xlu0 %v742, 96
        %v747 = vpop.permute.xlu0 %746
        %748 = vrot.lane.b32.xlu0 %v743, 96
        %v749 = vpop.permute.xlu0 %748
        %v750 = vsel %vm374, %v747, 0
        %v752 = vsel %vm374, %v749, 0
        %754 = vmatprep.subr.mxu0 0.0
        %755 = vmatpush1.msra.mxu0 0.0
        %756 = vmatprep.subr.mxu0 0.0
        %757 = vmatpush1.msra.mxu0 0.0
        %758 = vmatprep.subr.mxu0 0.0
        %759 = vmatpush1.msra.mxu0 0.0
        %760 = vmatprep.subr.mxu0 0.0
        %761 = vmatpush1.msra.mxu0 0.0
        %762 = vmatprep.subr.mxu0 0.0
        %763 = vmatpush1.msra.mxu0 0.0
        %764 = vmatprep.subr.mxu0 0.0
        %765 = vmatpush1.msra.mxu0 0.0
        %766 = vmatprep.subr.mxu0 0.0
        %767 = vmatpush1.msra.mxu0 0.0
        %768 = vmatprep.subr.mxu0 0.0
        %769 = vmatpush1.msra.mxu0 0.0
        %770 = vmatprep.subr.mxu0 0.0
        %771 = vmatpush1.msra.mxu0 0.0
        %772 = vmatprep.subr.mxu0 0.0
        %773 = vmatpush1.msra.mxu0 0.0
        %774 = vmatprep.subr.mxu0 0.0
        %775 = vmatpush1.msra.mxu0 0.0
        %776 = vmatprep.subr.mxu0 0.0
        %777 = vmatpush1.msra.mxu0 0.0
        %778 = vmatprep.subr.mxu0 0.0
        %779 = vmatpush1.msra.mxu0 0.0
        %780 = vmatprep.subr.mxu0 0.0
        %781 = vmatpush1.msra.mxu0 0.0
        %782 = vmatprep.subr.mxu0 0.0
        %783 = vmatpush1.msra.mxu0 %v255
        %784 = vmatprep.subr.mxu0 0.0
        %785 = vmatpush1.msra.mxu0 %v254
        %786 = vmatprep.subr.mxu0 0.0
        %787 = vmatpush2.msra.mxu0 0.0
        %788 = vmatprep.subr.mxu0 0.0
        %789 = vmatpush2.msra.mxu0 0.0
        %790 = vmatprep.subr.mxu0 0.0
        %791 = vmatpush2.msra.mxu0 0.0
        %792 = vmatprep.subr.mxu0 0.0
        %793 = vmatpush2.msra.mxu0 0.0
        %794 = vmatprep.subr.mxu0 0.0
        %795 = vmatpush2.msra.mxu0 0.0
        %796 = vmatprep.subr.mxu0 0.0
        %797 = vmatpush2.msra.mxu0 0.0
        %798 = vmatprep.subr.mxu0 0.0
        %799 = vmatpush2.msra.mxu0 0.0
        %800 = vmatprep.subr.mxu0 0.0
        %801 = vmatpush2.msra.mxu0 0.0
        %802 = vmatprep.subr.mxu0 0.0
        %803 = vmatpush2.msra.mxu0 0.0
        %804 = vmatprep.subr.mxu0 0.0
        %805 = vmatpush2.msra.mxu0 0.0
        %806 = vmatprep.subr.mxu0 0.0
        %807 = vmatpush2.msra.mxu0 0.0
        %808 = vmatprep.subr.mxu0 0.0
        %809 = vmatpush2.msra.mxu0 0.0
        %810 = vmatprep.subr.mxu0 0.0
        %811 = vmatpush2.msra.mxu0 0.0
        %812 = vmatprep.subr.mxu0 0.0
        %813 = vmatpush2.msra.mxu0 0.0
        %814 = vmatprep.subr.mxu0 0.0
        %815 = vmatpush2.msra.mxu0 0.0
        %816 = vmatprep.subr.mxu0 0.0
        %817 = vmatpush2.msra.mxu0 0.0
        %818 = vmatprep.mubr.f32.mxu0 0.0
        %819 = vmatmul.mubr.f32.gmra.mxu0 %v750
        %v820 = vpop.f32.mrf.mxu0
        %v821 = vadd.f32 0.0, %v820
        %v822 = vpop.f32.mrf.mxu0
        %823 = vmatprep.mubr.f32.mxu0 0.0
        %824 = vmatmul.mubr.f32.gmra.mxu0 %v752
        %v825 = vpop.f32.mrf.mxu0
        %v826 = vadd.f32 0.0, %v825
        %v827 = vpop.f32.mrf.mxu0
        %828 = vdwg.mxu0
        %v831 = vcombine.high %v821, %v821
        %v833 = vunpack.c.l.s4 1966171168
        %v834 = vunpack.c.0.s8 %v833
        %v835 = vlaneseq
        %v836 = vshrl.u32 %v835, 7
        %v837 = vsub.s32 %v834, %v836
        %v838 = vrot.slane %v821, %v837
        %v840 = vunpack.c.l.s4 1966171168
        %v841 = vunpack.c.0.s8 %v840
        %v842 = vlaneseq
        %v843 = vshrl.u32 %v842, 7
        %v844 = vsub.s32 %v841, %v843
        %v845 = vrot.slane %v831, %v844
        %v846 = vcombine.high %v838, %v838
        %v847 = vcombine.high %v845, %v845
        %v849 = vunpack.c.l.s4 1966171168
        %v850 = vunpack.c.0.s8 %v849
        %v851 = vlaneseq
        %v852 = vshrl.u32 %v851, 7
        %v853 = vsub.s32 %v850, %v852
        %v854 = vrot.slane %v838, %v853
        %v856 = vunpack.c.l.s4 1966171168
        %v857 = vunpack.c.0.s8 %v856
        %v858 = vlaneseq
        %v859 = vshrl.u32 %v858, 7
        %v860 = vsub.s32 %v857, %v859
        %v861 = vrot.slane %v845, %v860
        %v863 = vunpack.c.l.s4 1966171168
        %v864 = vunpack.c.0.s8 %v863
        %v865 = vlaneseq
        %v866 = vshrl.u32 %v865, 7
        %v867 = vsub.s32 %v864, %v866
        %v868 = vrot.slane %v846, %v867
        %v870 = vunpack.c.l.s4 1966171168
        %v871 = vunpack.c.0.s8 %v870
        %v872 = vlaneseq
        %v873 = vshrl.u32 %v872, 7
        %v874 = vsub.s32 %v871, %v873
        %v875 = vrot.slane %v847, %v874
        %v876 = vcombine.high %v854, %v854
        %v877 = vcombine.high %v861, %v861
        %v878 = vcombine.high %v868, %v868
        %v879 = vcombine.high %v875, %v875
        %v881 = vunpack.c.l.s4 1966171168
        %v882 = vunpack.c.0.s8 %v881
        %v883 = vlaneseq
        %v884 = vshrl.u32 %v883, 7
        %v885 = vsub.s32 %v882, %v884
        %v886 = vrot.slane %v826, %v885
        %v887 = vcombine.high %v886, %v886
        %v889 = vunpack.c.l.s4 1966171168
        %v890 = vunpack.c.0.s8 %v889
        %v891 = vlaneseq
        %v892 = vshrl.u32 %v891, 7
        %v893 = vsub.s32 %v890, %v892
        %v894 = vrot.slane %v886, %v893
        %v896 = vunpack.c.l.s4 1966171168
        %v897 = vunpack.c.0.s8 %v896
        %v898 = vlaneseq
        %v899 = vshrl.u32 %v898, 7
        %v900 = vsub.s32 %v897, %v899
        %v901 = vrot.slane %v887, %v900
        %v902 = vcombine.high %v894, %v894
        %v903 = vcombine.high %v901, %v901
        %916 = vst.msk [vmem:[#allocation3 + $0x2] sm:$0x1] %vm543, %v854
        %917 = vst.msk [vmem:[#allocation3 + $0x12] sm:$0x1] %vm543, %v868
        %918 = vst.msk [vmem:[#allocation3 + $0x22] sm:$0x1] %vm543, %v876
        %919 = vst.msk [vmem:[#allocation3 + $0x32] sm:$0x1] %vm543, %v878
        %920 = vst.msk [vmem:[#allocation3 + $0x42] sm:$0x1] %vm543, %v861
        %921 = vst.msk [vmem:[#allocation3 + $0x52] sm:$0x1] %vm543, %v875
        %922 = vst.msk [vmem:[#allocation3 + $0x62] sm:$0x1] %vm543, %v877
        %923 = vst.msk [vmem:[#allocation3 + $0x72] sm:$0x1] %vm543, %v879
        %924 = vst.msk [vmem:[#allocation3 + $0x82] sm:$0x1] %vm543, %v894
        %925 = vst.msk [vmem:[#allocation3 + $0x92] sm:$0x1] %vm543, %v901
        %926 = vst.msk [vmem:[#allocation3 + $0xa2] sm:$0x1] %vm543, %v902
        %927 = vst.msk [vmem:[#allocation3 + $0xb2] sm:$0x1] %vm543, %v903
        %v928 = vld [vmem:[#allocation2] sm:$0xff]
        %v929 = vld [vmem:[#allocation2 + $0x10] sm:$0xf]
        %932 = vrot.lane.b32.xlu0 %v928, 80
        %v933 = vpop.permute.xlu0 %932
        %934 = vrot.lane.b32.xlu0 %v929, 80
        %v935 = vpop.permute.xlu0 %934
        %v936 = vsel %vm374, %v933, 0
        %v938 = vsel %vm374, %v935, 0
        %940 = vmatprep.subr.mxu0 0.0
        %941 = vmatpush1.msra.mxu0 0.0
        %942 = vmatprep.subr.mxu0 0.0
        %943 = vmatpush1.msra.mxu0 0.0
        %944 = vmatprep.subr.mxu0 0.0
        %945 = vmatpush1.msra.mxu0 0.0
        %946 = vmatprep.subr.mxu0 0.0
        %947 = vmatpush1.msra.mxu0 0.0
        %948 = vmatprep.subr.mxu0 0.0
        %949 = vmatpush1.msra.mxu0 0.0
        %950 = vmatprep.subr.mxu0 0.0
        %951 = vmatpush1.msra.mxu0 0.0
        %952 = vmatprep.subr.mxu0 0.0
        %953 = vmatpush1.msra.mxu0 0.0
        %954 = vmatprep.subr.mxu0 0.0
        %955 = vmatpush1.msra.mxu0 0.0
        %956 = vmatprep.subr.mxu0 0.0
        %957 = vmatpush1.msra.mxu0 0.0
        %958 = vmatprep.subr.mxu0 0.0
        %959 = vmatpush1.msra.mxu0 0.0
        %960 = vmatprep.subr.mxu0 0.0
        %961 = vmatpush1.msra.mxu0 0.0
        %962 = vmatprep.subr.mxu0 0.0
        %963 = vmatpush1.msra.mxu0 0.0
        %964 = vmatprep.subr.mxu0 0.0
        %965 = vmatpush1.msra.mxu0 0.0
        %966 = vmatprep.subr.mxu0 0.0
        %967 = vmatpush1.msra.mxu0 0.0
        %968 = vmatprep.subr.mxu0 0.0
        %969 = vmatpush1.msra.mxu0 %v255
        %970 = vmatprep.subr.mxu0 0.0
        %971 = vmatpush1.msra.mxu0 %v254
        %972 = vmatprep.subr.mxu0 0.0
        %973 = vmatpush2.msra.mxu0 0.0
        %974 = vmatprep.subr.mxu0 0.0
        %975 = vmatpush2.msra.mxu0 0.0
        %976 = vmatprep.subr.mxu0 0.0
        %977 = vmatpush2.msra.mxu0 0.0
        %978 = vmatprep.subr.mxu0 0.0
        %979 = vmatpush2.msra.mxu0 0.0
        %980 = vmatprep.subr.mxu0 0.0
        %981 = vmatpush2.msra.mxu0 0.0
        %982 = vmatprep.subr.mxu0 0.0
        %983 = vmatpush2.msra.mxu0 0.0
        %984 = vmatprep.subr.mxu0 0.0
        %985 = vmatpush2.msra.mxu0 0.0
        %986 = vmatprep.subr.mxu0 0.0
        %987 = vmatpush2.msra.mxu0 0.0
        %988 = vmatprep.subr.mxu0 0.0
        %989 = vmatpush2.msra.mxu0 0.0
        %990 = vmatprep.subr.mxu0 0.0
        %991 = vmatpush2.msra.mxu0 0.0
        %992 = vmatprep.subr.mxu0 0.0
        %993 = vmatpush2.msra.mxu0 0.0
        %994 = vmatprep.subr.mxu0 0.0
        %995 = vmatpush2.msra.mxu0 0.0
        %996 = vmatprep.subr.mxu0 0.0
        %997 = vmatpush2.msra.mxu0 0.0
        %998 = vmatprep.subr.mxu0 0.0
        %999 = vmatpush2.msra.mxu0 0.0
        %1000 = vmatprep.subr.mxu0 0.0
        %1001 = vmatpush2.msra.mxu0 0.0
        %1002 = vmatprep.subr.mxu0 0.0
        %1003 = vmatpush2.msra.mxu0 0.0
        %1004 = vmatprep.mubr.f32.mxu0 0.0
        %1005 = vmatmul.mubr.f32.gmra.mxu0 %v936
        %v1006 = vpop.f32.mrf.mxu0
        %v1007 = vadd.f32 0.0, %v1006
        %v1008 = vpop.f32.mrf.mxu0
        %1009 = vmatprep.mubr.f32.mxu0 0.0
        %1010 = vmatmul.mubr.f32.gmra.mxu0 %v938
        %v1011 = vpop.f32.mrf.mxu0
        %v1012 = vadd.f32 0.0, %v1011
        %v1013 = vpop.f32.mrf.mxu0
        %1014 = vdwg.mxu0
        %v1017 = vcombine.high %v1007, %v1007
        %v1019 = vunpack.c.l.s4 1966171168
        %v1020 = vunpack.c.0.s8 %v1019
        %v1021 = vlaneseq
        %v1022 = vshrl.u32 %v1021, 7
        %v1023 = vsub.s32 %v1020, %v1022
        %v1024 = vrot.slane %v1007, %v1023
        %v1026 = vunpack.c.l.s4 1966171168
        %v1027 = vunpack.c.0.s8 %v1026
        %v1028 = vlaneseq
        %v1029 = vshrl.u32 %v1028, 7
        %v1030 = vsub.s32 %v1027, %v1029
        %v1031 = vrot.slane %v1017, %v1030
        %v1032 = vcombine.high %v1024, %v1024
        %v1033 = vcombine.high %v1031, %v1031
        %v1035 = vunpack.c.l.s4 1966171168
        %v1036 = vunpack.c.0.s8 %v1035
        %v1037 = vlaneseq
        %v1038 = vshrl.u32 %v1037, 7
        %v1039 = vsub.s32 %v1036, %v1038
        %v1040 = vrot.slane %v1024, %v1039
        %v1042 = vunpack.c.l.s4 1966171168
        %v1043 = vunpack.c.0.s8 %v1042
        %v1044 = vlaneseq
        %v1045 = vshrl.u32 %v1044, 7
        %v1046 = vsub.s32 %v1043, %v1045
        %v1047 = vrot.slane %v1031, %v1046
        %v1049 = vunpack.c.l.s4 1966171168
        %v1050 = vunpack.c.0.s8 %v1049
        %v1051 = vlaneseq
        %v1052 = vshrl.u32 %v1051, 7
        %v1053 = vsub.s32 %v1050, %v1052
        %v1054 = vrot.slane %v1032, %v1053
        %v1056 = vunpack.c.l.s4 1966171168
        %v1057 = vunpack.c.0.s8 %v1056
        %v1058 = vlaneseq
        %v1059 = vshrl.u32 %v1058, 7
        %v1060 = vsub.s32 %v1057, %v1059
        %v1061 = vrot.slane %v1033, %v1060
        %v1062 = vcombine.high %v1040, %v1040
        %v1063 = vcombine.high %v1047, %v1047
        %v1064 = vcombine.high %v1054, %v1054
        %v1065 = vcombine.high %v1061, %v1061
        %v1067 = vunpack.c.l.s4 1966171168
        %v1068 = vunpack.c.0.s8 %v1067
        %v1069 = vlaneseq
        %v1070 = vshrl.u32 %v1069, 7
        %v1071 = vsub.s32 %v1068, %v1070
        %v1072 = vrot.slane %v1012, %v1071
        %v1073 = vcombine.high %v1072, %v1072
        %v1075 = vunpack.c.l.s4 1966171168
        %v1076 = vunpack.c.0.s8 %v1075
        %v1077 = vlaneseq
        %v1078 = vshrl.u32 %v1077, 7
        %v1079 = vsub.s32 %v1076, %v1078
        %v1080 = vrot.slane %v1072, %v1079
        %v1082 = vunpack.c.l.s4 1966171168
        %v1083 = vunpack.c.0.s8 %v1082
        %v1084 = vlaneseq
        %v1085 = vshrl.u32 %v1084, 7
        %v1086 = vsub.s32 %v1083, %v1085
        %v1087 = vrot.slane %v1073, %v1086
        %v1088 = vcombine.high %v1080, %v1080
        %v1089 = vcombine.high %v1087, %v1087
        %1102 = vst.msk [vmem:[#allocation3 + $0x3] sm:$0x1] %vm543, %v1040
        %1103 = vst.msk [vmem:[#allocation3 + $0x13] sm:$0x1] %vm543, %v1054
        %1104 = vst.msk [vmem:[#allocation3 + $0x23] sm:$0x1] %vm543, %v1062
        %1105 = vst.msk [vmem:[#allocation3 + $0x33] sm:$0x1] %vm543, %v1064
        %1106 = vst.msk [vmem:[#allocation3 + $0x43] sm:$0x1] %vm543, %v1047
        %1107 = vst.msk [vmem:[#allocation3 + $0x53] sm:$0x1] %vm543, %v1061
        %1108 = vst.msk [vmem:[#allocation3 + $0x63] sm:$0x1] %vm543, %v1063
        %1109 = vst.msk [vmem:[#allocation3 + $0x73] sm:$0x1] %vm543, %v1065
        %1110 = vst.msk [vmem:[#allocation3 + $0x83] sm:$0x1] %vm543, %v1080
        %1111 = vst.msk [vmem:[#allocation3 + $0x93] sm:$0x1] %vm543, %v1087
        %1112 = vst.msk [vmem:[#allocation3 + $0xa3] sm:$0x1] %vm543, %v1088
        %1113 = vst.msk [vmem:[#allocation3 + $0xb3] sm:$0x1] %vm543, %v1089
        %v1114 = vld [vmem:[#allocation2] sm:$0xff]
        %v1115 = vld [vmem:[#allocation2 + $0x10] sm:$0xf]
        %1118 = vrot.lane.b32.xlu0 %v1114, 64
        %v1119 = vpop.permute.xlu0 %1118
        %1120 = vrot.lane.b32.xlu0 %v1115, 64
        %v1121 = vpop.permute.xlu0 %1120
        %v1122 = vsel %vm374, %v1119, 0
        %v1124 = vsel %vm374, %v1121, 0
        %1126 = vmatprep.subr.mxu0 0.0
        %1127 = vmatpush1.msra.mxu0 0.0
        %1128 = vmatprep.subr.mxu0 0.0
        %1129 = vmatpush1.msra.mxu0 0.0
        %1130 = vmatprep.subr.mxu0 0.0
        %1131 = vmatpush1.msra.mxu0 0.0
        %1132 = vmatprep.subr.mxu0 0.0
        %1133 = vmatpush1.msra.mxu0 0.0
        %1134 = vmatprep.subr.mxu0 0.0
        %1135 = vmatpush1.msra.mxu0 0.0
        %1136 = vmatprep.subr.mxu0 0.0
        %1137 = vmatpush1.msra.mxu0 0.0
        %1138 = vmatprep.subr.mxu0 0.0
        %1139 = vmatpush1.msra.mxu0 0.0
        %1140 = vmatprep.subr.mxu0 0.0
        %1141 = vmatpush1.msra.mxu0 0.0
        %1142 = vmatprep.subr.mxu0 0.0
        %1143 = vmatpush1.msra.mxu0 0.0
        %1144 = vmatprep.subr.mxu0 0.0
        %1145 = vmatpush1.msra.mxu0 0.0
        %1146 = vmatprep.subr.mxu0 0.0
        %1147 = vmatpush1.msra.mxu0 0.0
        %1148 = vmatprep.subr.mxu0 0.0
        %1149 = vmatpush1.msra.mxu0 0.0
        %1150 = vmatprep.subr.mxu0 0.0
        %1151 = vmatpush1.msra.mxu0 0.0
        %1152 = vmatprep.subr.mxu0 0.0
        %1153 = vmatpush1.msra.mxu0 0.0
        %1154 = vmatprep.subr.mxu0 0.0
        %1155 = vmatpush1.msra.mxu0 %v255
        %1156 = vmatprep.subr.mxu0 0.0
        %1157 = vmatpush1.msra.mxu0 %v254
        %1158 = vmatprep.subr.mxu0 0.0
        %1159 = vmatpush2.msra.mxu0 0.0
        %1160 = vmatprep.subr.mxu0 0.0
        %1161 = vmatpush2.msra.mxu0 0.0
        %1162 = vmatprep.subr.mxu0 0.0
        %1163 = vmatpush2.msra.mxu0 0.0
        %1164 = vmatprep.subr.mxu0 0.0
        %1165 = vmatpush2.msra.mxu0 0.0
        %1166 = vmatprep.subr.mxu0 0.0
        %1167 = vmatpush2.msra.mxu0 0.0
        %1168 = vmatprep.subr.mxu0 0.0
        %1169 = vmatpush2.msra.mxu0 0.0
        %1170 = vmatprep.subr.mxu0 0.0
        %1171 = vmatpush2.msra.mxu0 0.0
        %1172 = vmatprep.subr.mxu0 0.0
        %1173 = vmatpush2.msra.mxu0 0.0
        %1174 = vmatprep.subr.mxu0 0.0
        %1175 = vmatpush2.msra.mxu0 0.0
        %1176 = vmatprep.subr.mxu0 0.0
        %1177 = vmatpush2.msra.mxu0 0.0
        %1178 = vmatprep.subr.mxu0 0.0
        %1179 = vmatpush2.msra.mxu0 0.0
        %1180 = vmatprep.subr.mxu0 0.0
        %1181 = vmatpush2.msra.mxu0 0.0
        %1182 = vmatprep.subr.mxu0 0.0
        %1183 = vmatpush2.msra.mxu0 0.0
        %1184 = vmatprep.subr.mxu0 0.0
        %1185 = vmatpush2.msra.mxu0 0.0
        %1186 = vmatprep.subr.mxu0 0.0
        %1187 = vmatpush2.msra.mxu0 0.0
        %1188 = vmatprep.subr.mxu0 0.0
        %1189 = vmatpush2.msra.mxu0 0.0
        %1190 = vmatprep.mubr.f32.mxu0 0.0
        %1191 = vmatmul.mubr.f32.gmra.mxu0 %v1122
        %v1192 = vpop.f32.mrf.mxu0
        %v1193 = vadd.f32 0.0, %v1192
        %v1194 = vpop.f32.mrf.mxu0
        %1195 = vmatprep.mubr.f32.mxu0 0.0
        %1196 = vmatmul.mubr.f32.gmra.mxu0 %v1124
        %v1197 = vpop.f32.mrf.mxu0
        %v1198 = vadd.f32 0.0, %v1197
        %v1199 = vpop.f32.mrf.mxu0
        %1200 = vdwg.mxu0
        %v1203 = vcombine.high %v1193, %v1193
        %v1205 = vunpack.c.l.s4 1966171168
        %v1206 = vunpack.c.0.s8 %v1205
        %v1207 = vlaneseq
        %v1208 = vshrl.u32 %v1207, 7
        %v1209 = vsub.s32 %v1206, %v1208
        %v1210 = vrot.slane %v1193, %v1209
        %v1212 = vunpack.c.l.s4 1966171168
        %v1213 = vunpack.c.0.s8 %v1212
        %v1214 = vlaneseq
        %v1215 = vshrl.u32 %v1214, 7
        %v1216 = vsub.s32 %v1213, %v1215
        %v1217 = vrot.slane %v1203, %v1216
        %v1218 = vcombine.high %v1210, %v1210
        %v1219 = vcombine.high %v1217, %v1217
        %v1221 = vunpack.c.l.s4 1966171168
        %v1222 = vunpack.c.0.s8 %v1221
        %v1223 = vlaneseq
        %v1224 = vshrl.u32 %v1223, 7
        %v1225 = vsub.s32 %v1222, %v1224
        %v1226 = vrot.slane %v1210, %v1225
        %v1228 = vunpack.c.l.s4 1966171168
        %v1229 = vunpack.c.0.s8 %v1228
        %v1230 = vlaneseq
        %v1231 = vshrl.u32 %v1230, 7
        %v1232 = vsub.s32 %v1229, %v1231
        %v1233 = vrot.slane %v1217, %v1232
        %v1235 = vunpack.c.l.s4 1966171168
        %v1236 = vunpack.c.0.s8 %v1235
        %v1237 = vlaneseq
        %v1238 = vshrl.u32 %v1237, 7
        %v1239 = vsub.s32 %v1236, %v1238
        %v1240 = vrot.slane %v1218, %v1239
        %v1242 = vunpack.c.l.s4 1966171168
        %v1243 = vunpack.c.0.s8 %v1242
        %v1244 = vlaneseq
        %v1245 = vshrl.u32 %v1244, 7
        %v1246 = vsub.s32 %v1243, %v1245
        %v1247 = vrot.slane %v1219, %v1246
        %v1248 = vcombine.high %v1226, %v1226
        %v1249 = vcombine.high %v1233, %v1233
        %v1250 = vcombine.high %v1240, %v1240
        %v1251 = vcombine.high %v1247, %v1247
        %v1253 = vunpack.c.l.s4 1966171168
        %v1254 = vunpack.c.0.s8 %v1253
        %v1255 = vlaneseq
        %v1256 = vshrl.u32 %v1255, 7
        %v1257 = vsub.s32 %v1254, %v1256
        %v1258 = vrot.slane %v1198, %v1257
        %v1259 = vcombine.high %v1258, %v1258
        %v1261 = vunpack.c.l.s4 1966171168
        %v1262 = vunpack.c.0.s8 %v1261
        %v1263 = vlaneseq
        %v1264 = vshrl.u32 %v1263, 7
        %v1265 = vsub.s32 %v1262, %v1264
        %v1266 = vrot.slane %v1258, %v1265
        %v1268 = vunpack.c.l.s4 1966171168
        %v1269 = vunpack.c.0.s8 %v1268
        %v1270 = vlaneseq
        %v1271 = vshrl.u32 %v1270, 7
        %v1272 = vsub.s32 %v1269, %v1271
        %v1273 = vrot.slane %v1259, %v1272
        %v1274 = vcombine.high %v1266, %v1266
        %v1275 = vcombine.high %v1273, %v1273
        %1288 = vst.msk [vmem:[#allocation3 + $0x4] sm:$0x1] %vm543, %v1226
        %1289 = vst.msk [vmem:[#allocation3 + $0x14] sm:$0x1] %vm543, %v1240
        %1290 = vst.msk [vmem:[#allocation3 + $0x24] sm:$0x1] %vm543, %v1248
        %1291 = vst.msk [vmem:[#allocation3 + $0x34] sm:$0x1] %vm543, %v1250
        %1292 = vst.msk [vmem:[#allocation3 + $0x44] sm:$0x1] %vm543, %v1233
        %1293 = vst.msk [vmem:[#allocation3 + $0x54] sm:$0x1] %vm543, %v1247
        %1294 = vst.msk [vmem:[#allocation3 + $0x64] sm:$0x1] %vm543, %v1249
        %1295 = vst.msk [vmem:[#allocation3 + $0x74] sm:$0x1] %vm543, %v1251
        %1296 = vst.msk [vmem:[#allocation3 + $0x84] sm:$0x1] %vm543, %v1266
        %1297 = vst.msk [vmem:[#allocation3 + $0x94] sm:$0x1] %vm543, %v1273
        %1298 = vst.msk [vmem:[#allocation3 + $0xa4] sm:$0x1] %vm543, %v1274
        %1299 = vst.msk [vmem:[#allocation3 + $0xb4] sm:$0x1] %vm543, %v1275
        %v1300 = vld [vmem:[#allocation2] sm:$0xff]
        %v1301 = vld [vmem:[#allocation2 + $0x10] sm:$0xf]
        %1304 = vrot.lane.b32.xlu0 %v1300, 48
        %v1305 = vpop.permute.xlu0 %1304
        %1306 = vrot.lane.b32.xlu0 %v1301, 48
        %v1307 = vpop.permute.xlu0 %1306
        %v1308 = vsel %vm374, %v1305, 0
        %v1310 = vsel %vm374, %v1307, 0
        %1312 = vmatprep.subr.mxu0 0.0
        %1313 = vmatpush1.msra.mxu0 0.0
        %1314 = vmatprep.subr.mxu0 0.0
        %1315 = vmatpush1.msra.mxu0 0.0
        %1316 = vmatprep.subr.mxu0 0.0
        %1317 = vmatpush1.msra.mxu0 0.0
        %1318 = vmatprep.subr.mxu0 0.0
        %1319 = vmatpush1.msra.mxu0 0.0
        %1320 = vmatprep.subr.mxu0 0.0
        %1321 = vmatpush1.msra.mxu0 0.0
        %1322 = vmatprep.subr.mxu0 0.0
        %1323 = vmatpush1.msra.mxu0 0.0
        %1324 = vmatprep.subr.mxu0 0.0
        %1325 = vmatpush1.msra.mxu0 0.0
        %1326 = vmatprep.subr.mxu0 0.0
        %1327 = vmatpush1.msra.mxu0 0.0
        %1328 = vmatprep.subr.mxu0 0.0
        %1329 = vmatpush1.msra.mxu0 0.0
        %1330 = vmatprep.subr.mxu0 0.0
        %1331 = vmatpush1.msra.mxu0 0.0
        %1332 = vmatprep.subr.mxu0 0.0
        %1333 = vmatpush1.msra.mxu0 0.0
        %1334 = vmatprep.subr.mxu0 0.0
        %1335 = vmatpush1.msra.mxu0 0.0
        %1336 = vmatprep.subr.mxu0 0.0
        %1337 = vmatpush1.msra.mxu0 0.0
        %1338 = vmatprep.subr.mxu0 0.0
        %1339 = vmatpush1.msra.mxu0 0.0
        %1340 = vmatprep.subr.mxu0 0.0
        %1341 = vmatpush1.msra.mxu0 %v255
        %1342 = vmatprep.subr.mxu0 0.0
        %1343 = vmatpush1.msra.mxu0 %v254
        %1344 = vmatprep.subr.mxu0 0.0
        %1345 = vmatpush2.msra.mxu0 0.0
        %1346 = vmatprep.subr.mxu0 0.0
        %1347 = vmatpush2.msra.mxu0 0.0
        %1348 = vmatprep.subr.mxu0 0.0
        %1349 = vmatpush2.msra.mxu0 0.0
        %1350 = vmatprep.subr.mxu0 0.0
        %1351 = vmatpush2.msra.mxu0 0.0
        %1352 = vmatprep.subr.mxu0 0.0
        %1353 = vmatpush2.msra.mxu0 0.0
        %1354 = vmatprep.subr.mxu0 0.0
        %1355 = vmatpush2.msra.mxu0 0.0
        %1356 = vmatprep.subr.mxu0 0.0
        %1357 = vmatpush2.msra.mxu0 0.0
        %1358 = vmatprep.subr.mxu0 0.0
        %1359 = vmatpush2.msra.mxu0 0.0
        %1360 = vmatprep.subr.mxu0 0.0
        %1361 = vmatpush2.msra.mxu0 0.0
        %1362 = vmatprep.subr.mxu0 0.0
        %1363 = vmatpush2.msra.mxu0 0.0
        %1364 = vmatprep.subr.mxu0 0.0
        %1365 = vmatpush2.msra.mxu0 0.0
        %1366 = vmatprep.subr.mxu0 0.0
        %1367 = vmatpush2.msra.mxu0 0.0
        %1368 = vmatprep.subr.mxu0 0.0
        %1369 = vmatpush2.msra.mxu0 0.0
        %1370 = vmatprep.subr.mxu0 0.0
        %1371 = vmatpush2.msra.mxu0 0.0
        %1372 = vmatprep.subr.mxu0 0.0
        %1373 = vmatpush2.msra.mxu0 0.0
        %1374 = vmatprep.subr.mxu0 0.0
        %1375 = vmatpush2.msra.mxu0 0.0
        %1376 = vmatprep.mubr.f32.mxu0 0.0
        %1377 = vmatmul.mubr.f32.gmra.mxu0 %v1308
        %v1378 = vpop.f32.mrf.mxu0
        %v1379 = vadd.f32 0.0, %v1378
        %v1380 = vpop.f32.mrf.mxu0
        %1381 = vmatprep.mubr.f32.mxu0 0.0
        %1382 = vmatmul.mubr.f32.gmra.mxu0 %v1310
        %v1383 = vpop.f32.mrf.mxu0
        %v1384 = vadd.f32 0.0, %v1383
        %v1385 = vpop.f32.mrf.mxu0
        %1386 = vdwg.mxu0
        %v1389 = vcombine.high %v1379, %v1379
        %v1391 = vunpack.c.l.s4 1966171168
        %v1392 = vunpack.c.0.s8 %v1391
        %v1393 = vlaneseq
        %v1394 = vshrl.u32 %v1393, 7
        %v1395 = vsub.s32 %v1392, %v1394
        %v1396 = vrot.slane %v1379, %v1395
        %v1398 = vunpack.c.l.s4 1966171168
        %v1399 = vunpack.c.0.s8 %v1398
        %v1400 = vlaneseq
        %v1401 = vshrl.u32 %v1400, 7
        %v1402 = vsub.s32 %v1399, %v1401
        %v1403 = vrot.slane %v1389, %v1402
        %v1404 = vcombine.high %v1396, %v1396
        %v1405 = vcombine.high %v1403, %v1403
        %v1407 = vunpack.c.l.s4 1966171168
        %v1408 = vunpack.c.0.s8 %v1407
        %v1409 = vlaneseq
        %v1410 = vshrl.u32 %v1409, 7
        %v1411 = vsub.s32 %v1408, %v1410
        %v1412 = vrot.slane %v1396, %v1411
        %v1414 = vunpack.c.l.s4 1966171168
        %v1415 = vunpack.c.0.s8 %v1414
        %v1416 = vlaneseq
        %v1417 = vshrl.u32 %v1416, 7
        %v1418 = vsub.s32 %v1415, %v1417
        %v1419 = vrot.slane %v1403, %v1418
        %v1421 = vunpack.c.l.s4 1966171168
        %v1422 = vunpack.c.0.s8 %v1421
        %v1423 = vlaneseq
        %v1424 = vshrl.u32 %v1423, 7
        %v1425 = vsub.s32 %v1422, %v1424
        %v1426 = vrot.slane %v1404, %v1425
        %v1428 = vunpack.c.l.s4 1966171168
        %v1429 = vunpack.c.0.s8 %v1428
        %v1430 = vlaneseq
        %v1431 = vshrl.u32 %v1430, 7
        %v1432 = vsub.s32 %v1429, %v1431
        %v1433 = vrot.slane %v1405, %v1432
        %v1434 = vcombine.high %v1412, %v1412
        %v1435 = vcombine.high %v1419, %v1419
        %v1436 = vcombine.high %v1426, %v1426
        %v1437 = vcombine.high %v1433, %v1433
        %v1439 = vunpack.c.l.s4 1966171168
        %v1440 = vunpack.c.0.s8 %v1439
        %v1441 = vlaneseq
        %v1442 = vshrl.u32 %v1441, 7
        %v1443 = vsub.s32 %v1440, %v1442
        %v1444 = vrot.slane %v1384, %v1443
        %v1445 = vcombine.high %v1444, %v1444
        %v1447 = vunpack.c.l.s4 1966171168
        %v1448 = vunpack.c.0.s8 %v1447
        %v1449 = vlaneseq
        %v1450 = vshrl.u32 %v1449, 7
        %v1451 = vsub.s32 %v1448, %v1450
        %v1452 = vrot.slane %v1444, %v1451
        %v1454 = vunpack.c.l.s4 1966171168
        %v1455 = vunpack.c.0.s8 %v1454
        %v1456 = vlaneseq
        %v1457 = vshrl.u32 %v1456, 7
        %v1458 = vsub.s32 %v1455, %v1457
        %v1459 = vrot.slane %v1445, %v1458
        %v1460 = vcombine.high %v1452, %v1452
        %v1461 = vcombine.high %v1459, %v1459
        %1474 = vst.msk [vmem:[#allocation3 + $0x5] sm:$0x1] %vm543, %v1412
        %1475 = vst.msk [vmem:[#allocation3 + $0x15] sm:$0x1] %vm543, %v1426
        %1476 = vst.msk [vmem:[#allocation3 + $0x25] sm:$0x1] %vm543, %v1434
        %1477 = vst.msk [vmem:[#allocation3 + $0x35] sm:$0x1] %vm543, %v1436
        %1478 = vst.msk [vmem:[#allocation3 + $0x45] sm:$0x1] %vm543, %v1419
        %1479 = vst.msk [vmem:[#allocation3 + $0x55] sm:$0x1] %vm543, %v1433
        %1480 = vst.msk [vmem:[#allocation3 + $0x65] sm:$0x1] %vm543, %v1435
        %1481 = vst.msk [vmem:[#allocation3 + $0x75] sm:$0x1] %vm543, %v1437
        %1482 = vst.msk [vmem:[#allocation3 + $0x85] sm:$0x1] %vm543, %v1452
        %1483 = vst.msk [vmem:[#allocation3 + $0x95] sm:$0x1] %vm543, %v1459
        %1484 = vst.msk [vmem:[#allocation3 + $0xa5] sm:$0x1] %vm543, %v1460
        %1485 = vst.msk [vmem:[#allocation3 + $0xb5] sm:$0x1] %vm543, %v1461
        %v1486 = vld [vmem:[#allocation2] sm:$0xff]
        %v1487 = vld [vmem:[#allocation2 + $0x10] sm:$0xf]
        %1490 = vrot.lane.b32.xlu0 %v1486, 32
        %v1491 = vpop.permute.xlu0 %1490
        %1492 = vrot.lane.b32.xlu0 %v1487, 32
        %v1493 = vpop.permute.xlu0 %1492
        %v1494 = vsel %vm374, %v1491, 0
        %v1496 = vsel %vm374, %v1493, 0
        %1498 = vmatprep.subr.mxu0 0.0
        %1499 = vmatpush1.msra.mxu0 0.0
        %1500 = vmatprep.subr.mxu0 0.0
        %1501 = vmatpush1.msra.mxu0 0.0
        %1502 = vmatprep.subr.mxu0 0.0
        %1503 = vmatpush1.msra.mxu0 0.0
        %1504 = vmatprep.subr.mxu0 0.0
        %1505 = vmatpush1.msra.mxu0 0.0
        %1506 = vmatprep.subr.mxu0 0.0
        %1507 = vmatpush1.msra.mxu0 0.0
        %1508 = vmatprep.subr.mxu0 0.0
        %1509 = vmatpush1.msra.mxu0 0.0
        %1510 = vmatprep.subr.mxu0 0.0
        %1511 = vmatpush1.msra.mxu0 0.0
        %1512 = vmatprep.subr.mxu0 0.0
        %1513 = vmatpush1.msra.mxu0 0.0
        %1514 = vmatprep.subr.mxu0 0.0
        %1515 = vmatpush1.msra.mxu0 0.0
        %1516 = vmatprep.subr.mxu0 0.0
        %1517 = vmatpush1.msra.mxu0 0.0
        %1518 = vmatprep.subr.mxu0 0.0
        %1519 = vmatpush1.msra.mxu0 0.0
        %1520 = vmatprep.subr.mxu0 0.0
        %1521 = vmatpush1.msra.mxu0 0.0
        %1522 = vmatprep.subr.mxu0 0.0
        %1523 = vmatpush1.msra.mxu0 0.0
        %1524 = vmatprep.subr.mxu0 0.0
        %1525 = vmatpush1.msra.mxu0 0.0
        %1526 = vmatprep.subr.mxu0 0.0
        %1527 = vmatpush1.msra.mxu0 %v255
        %1528 = vmatprep.subr.mxu0 0.0
        %1529 = vmatpush1.msra.mxu0 %v254
        %1530 = vmatprep.subr.mxu0 0.0
        %1531 = vmatpush2.msra.mxu0 0.0
        %1532 = vmatprep.subr.mxu0 0.0
        %1533 = vmatpush2.msra.mxu0 0.0
        %1534 = vmatprep.subr.mxu0 0.0
        %1535 = vmatpush2.msra.mxu0 0.0
        %1536 = vmatprep.subr.mxu0 0.0
        %1537 = vmatpush2.msra.mxu0 0.0
        %1538 = vmatprep.subr.mxu0 0.0
        %1539 = vmatpush2.msra.mxu0 0.0
        %1540 = vmatprep.subr.mxu0 0.0
        %1541 = vmatpush2.msra.mxu0 0.0
        %1542 = vmatprep.subr.mxu0 0.0
        %1543 = vmatpush2.msra.mxu0 0.0
        %1544 = vmatprep.subr.mxu0 0.0
        %1545 = vmatpush2.msra.mxu0 0.0
        %1546 = vmatprep.subr.mxu0 0.0
        %1547 = vmatpush2.msra.mxu0 0.0
        %1548 = vmatprep.subr.mxu0 0.0
        %1549 = vmatpush2.msra.mxu0 0.0
        %1550 = vmatprep.subr.mxu0 0.0
        %1551 = vmatpush2.msra.mxu0 0.0
        %1552 = vmatprep.subr.mxu0 0.0
        %1553 = vmatpush2.msra.mxu0 0.0
        %1554 = vmatprep.subr.mxu0 0.0
        %1555 = vmatpush2.msra.mxu0 0.0
        %1556 = vmatprep.subr.mxu0 0.0
        %1557 = vmatpush2.msra.mxu0 0.0
        %1558 = vmatprep.subr.mxu0 0.0
        %1559 = vmatpush2.msra.mxu0 0.0
        %1560 = vmatprep.subr.mxu0 0.0
        %1561 = vmatpush2.msra.mxu0 0.0
        %1562 = vmatprep.mubr.f32.mxu0 0.0
        %1563 = vmatmul.mubr.f32.gmra.mxu0 %v1494
        %v1564 = vpop.f32.mrf.mxu0
        %v1565 = vadd.f32 0.0, %v1564
        %v1566 = vpop.f32.mrf.mxu0
        %1567 = vmatprep.mubr.f32.mxu0 0.0
        %1568 = vmatmul.mubr.f32.gmra.mxu0 %v1496
        %v1569 = vpop.f32.mrf.mxu0
        %v1570 = vadd.f32 0.0, %v1569
        %v1571 = vpop.f32.mrf.mxu0
        %1572 = vdwg.mxu0
        %v1575 = vcombine.high %v1565, %v1565
        %v1577 = vunpack.c.l.s4 1966171168
        %v1578 = vunpack.c.0.s8 %v1577
        %v1579 = vlaneseq
        %v1580 = vshrl.u32 %v1579, 7
        %v1581 = vsub.s32 %v1578, %v1580
        %v1582 = vrot.slane %v1565, %v1581
        %v1584 = vunpack.c.l.s4 1966171168
        %v1585 = vunpack.c.0.s8 %v1584
        %v1586 = vlaneseq
        %v1587 = vshrl.u32 %v1586, 7
        %v1588 = vsub.s32 %v1585, %v1587
        %v1589 = vrot.slane %v1575, %v1588
        %v1590 = vcombine.high %v1582, %v1582
        %v1591 = vcombine.high %v1589, %v1589
        %v1593 = vunpack.c.l.s4 1966171168
        %v1594 = vunpack.c.0.s8 %v1593
        %v1595 = vlaneseq
        %v1596 = vshrl.u32 %v1595, 7
        %v1597 = vsub.s32 %v1594, %v1596
        %v1598 = vrot.slane %v1582, %v1597
        %v1600 = vunpack.c.l.s4 1966171168
        %v1601 = vunpack.c.0.s8 %v1600
        %v1602 = vlaneseq
        %v1603 = vshrl.u32 %v1602, 7
        %v1604 = vsub.s32 %v1601, %v1603
        %v1605 = vrot.slane %v1589, %v1604
        %v1607 = vunpack.c.l.s4 1966171168
        %v1608 = vunpack.c.0.s8 %v1607
        %v1609 = vlaneseq
        %v1610 = vshrl.u32 %v1609, 7
        %v1611 = vsub.s32 %v1608, %v1610
        %v1612 = vrot.slane %v1590, %v1611
        %v1614 = vunpack.c.l.s4 1966171168
        %v1615 = vunpack.c.0.s8 %v1614
        %v1616 = vlaneseq
        %v1617 = vshrl.u32 %v1616, 7
        %v1618 = vsub.s32 %v1615, %v1617
        %v1619 = vrot.slane %v1591, %v1618
        %v1620 = vcombine.high %v1598, %v1598
        %v1621 = vcombine.high %v1605, %v1605
        %v1622 = vcombine.high %v1612, %v1612
        %v1623 = vcombine.high %v1619, %v1619
        %v1625 = vunpack.c.l.s4 1966171168
        %v1626 = vunpack.c.0.s8 %v1625
        %v1627 = vlaneseq
        %v1628 = vshrl.u32 %v1627, 7
        %v1629 = vsub.s32 %v1626, %v1628
        %v1630 = vrot.slane %v1570, %v1629
        %v1631 = vcombine.high %v1630, %v1630
        %v1633 = vunpack.c.l.s4 1966171168
        %v1634 = vunpack.c.0.s8 %v1633
        %v1635 = vlaneseq
        %v1636 = vshrl.u32 %v1635, 7
        %v1637 = vsub.s32 %v1634, %v1636
        %v1638 = vrot.slane %v1630, %v1637
        %v1640 = vunpack.c.l.s4 1966171168
        %v1641 = vunpack.c.0.s8 %v1640
        %v1642 = vlaneseq
        %v1643 = vshrl.u32 %v1642, 7
        %v1644 = vsub.s32 %v1641, %v1643
        %v1645 = vrot.slane %v1631, %v1644
        %v1646 = vcombine.high %v1638, %v1638
        %v1647 = vcombine.high %v1645, %v1645
        %1660 = vst.msk [vmem:[#allocation3 + $0x6] sm:$0x1] %vm543, %v1598
        %1661 = vst.msk [vmem:[#allocation3 + $0x16] sm:$0x1] %vm543, %v1612
        %1662 = vst.msk [vmem:[#allocation3 + $0x26] sm:$0x1] %vm543, %v1620
        %1663 = vst.msk [vmem:[#allocation3 + $0x36] sm:$0x1] %vm543, %v1622
        %1664 = vst.msk [vmem:[#allocation3 + $0x46] sm:$0x1] %vm543, %v1605
        %1665 = vst.msk [vmem:[#allocation3 + $0x56] sm:$0x1] %vm543, %v1619
        %1666 = vst.msk [vmem:[#allocation3 + $0x66] sm:$0x1] %vm543, %v1621
        %1667 = vst.msk [vmem:[#allocation3 + $0x76] sm:$0x1] %vm543, %v1623
        %1668 = vst.msk [vmem:[#allocation3 + $0x86] sm:$0x1] %vm543, %v1638
        %1669 = vst.msk [vmem:[#allocation3 + $0x96] sm:$0x1] %vm543, %v1645
        %1670 = vst.msk [vmem:[#allocation3 + $0xa6] sm:$0x1] %vm543, %v1646
        %1671 = vst.msk [vmem:[#allocation3 + $0xb6] sm:$0x1] %vm543, %v1647
        %v1672 = vld [vmem:[#allocation2] sm:$0xff]
        %v1673 = vld [vmem:[#allocation2 + $0x10] sm:$0xf]
        %1676 = vrot.lane.b32.xlu0 %v1672, 16
        %v1677 = vpop.permute.xlu0 %1676
        %1678 = vrot.lane.b32.xlu0 %v1673, 16
        %v1679 = vpop.permute.xlu0 %1678
        %v1680 = vsel %vm374, %v1677, 0
        %v1682 = vsel %vm374, %v1679, 0
        %1684 = vmatprep.subr.mxu0 0.0
        %1685 = vmatpush1.msra.mxu0 0.0
        %1686 = vmatprep.subr.mxu0 0.0
        %1687 = vmatpush1.msra.mxu0 0.0
        %1688 = vmatprep.subr.mxu0 0.0
        %1689 = vmatpush1.msra.mxu0 0.0
        %1690 = vmatprep.subr.mxu0 0.0
        %1691 = vmatpush1.msra.mxu0 0.0
        %1692 = vmatprep.subr.mxu0 0.0
        %1693 = vmatpush1.msra.mxu0 0.0
        %1694 = vmatprep.subr.mxu0 0.0
        %1695 = vmatpush1.msra.mxu0 0.0
        %1696 = vmatprep.subr.mxu0 0.0
        %1697 = vmatpush1.msra.mxu0 0.0
        %1698 = vmatprep.subr.mxu0 0.0
        %1699 = vmatpush1.msra.mxu0 0.0
        %1700 = vmatprep.subr.mxu0 0.0
        %1701 = vmatpush1.msra.mxu0 0.0
        %1702 = vmatprep.subr.mxu0 0.0
        %1703 = vmatpush1.msra.mxu0 0.0
        %1704 = vmatprep.subr.mxu0 0.0
        %1705 = vmatpush1.msra.mxu0 0.0
        %1706 = vmatprep.subr.mxu0 0.0
        %1707 = vmatpush1.msra.mxu0 0.0
        %1708 = vmatprep.subr.mxu0 0.0
        %1709 = vmatpush1.msra.mxu0 0.0
        %1710 = vmatprep.subr.mxu0 0.0
        %1711 = vmatpush1.msra.mxu0 0.0
        %1712 = vmatprep.subr.mxu0 0.0
        %1713 = vmatpush1.msra.mxu0 %v255
        %1714 = vmatprep.subr.mxu0 0.0
        %1715 = vmatpush1.msra.mxu0 %v254
        %1716 = vmatprep.subr.mxu0 0.0
        %1717 = vmatpush2.msra.mxu0 0.0
        %1718 = vmatprep.subr.mxu0 0.0
        %1719 = vmatpush2.msra.mxu0 0.0
        %1720 = vmatprep.subr.mxu0 0.0
        %1721 = vmatpush2.msra.mxu0 0.0
        %1722 = vmatprep.subr.mxu0 0.0
        %1723 = vmatpush2.msra.mxu0 0.0
        %1724 = vmatprep.subr.mxu0 0.0
        %1725 = vmatpush2.msra.mxu0 0.0
        %1726 = vmatprep.subr.mxu0 0.0
        %1727 = vmatpush2.msra.mxu0 0.0
        %1728 = vmatprep.subr.mxu0 0.0
        %1729 = vmatpush2.msra.mxu0 0.0
        %1730 = vmatprep.subr.mxu0 0.0
        %1731 = vmatpush2.msra.mxu0 0.0
        %1732 = vmatprep.subr.mxu0 0.0
        %1733 = vmatpush2.msra.mxu0 0.0
        %1734 = vmatprep.subr.mxu0 0.0
        %1735 = vmatpush2.msra.mxu0 0.0
        %1736 = vmatprep.subr.mxu0 0.0
        %1737 = vmatpush2.msra.mxu0 0.0
        %1738 = vmatprep.subr.mxu0 0.0
        %1739 = vmatpush2.msra.mxu0 0.0
        %1740 = vmatprep.subr.mxu0 0.0
        %1741 = vmatpush2.msra.mxu0 0.0
        %1742 = vmatprep.subr.mxu0 0.0
        %1743 = vmatpush2.msra.mxu0 0.0
        %1744 = vmatprep.subr.mxu0 0.0
        %1745 = vmatpush2.msra.mxu0 0.0
        %1746 = vmatprep.subr.mxu0 0.0
        %1747 = vmatpush2.msra.mxu0 0.0
        %1748 = vmatprep.mubr.f32.mxu0 0.0
        %1749 = vmatmul.mubr.f32.gmra.mxu0 %v1680
        %v1750 = vpop.f32.mrf.mxu0
        %v1751 = vadd.f32 0.0, %v1750
        %v1752 = vpop.f32.mrf.mxu0
        %1753 = vmatprep.mubr.f32.mxu0 0.0
        %1754 = vmatmul.mubr.f32.gmra.mxu0 %v1682
        %v1755 = vpop.f32.mrf.mxu0
        %v1756 = vadd.f32 0.0, %v1755
        %v1757 = vpop.f32.mrf.mxu0
        %1758 = vdwg.mxu0
        %v1761 = vcombine.high %v1751, %v1751
        %v1763 = vunpack.c.l.s4 1966171168
        %v1764 = vunpack.c.0.s8 %v1763
        %v1765 = vlaneseq
        %v1766 = vshrl.u32 %v1765, 7
        %v1767 = vsub.s32 %v1764, %v1766
        %v1768 = vrot.slane %v1751, %v1767
        %v1770 = vunpack.c.l.s4 1966171168
        %v1771 = vunpack.c.0.s8 %v1770
        %v1772 = vlaneseq
        %v1773 = vshrl.u32 %v1772, 7
        %v1774 = vsub.s32 %v1771, %v1773
        %v1775 = vrot.slane %v1761, %v1774
        %v1776 = vcombine.high %v1768, %v1768
        %v1777 = vcombine.high %v1775, %v1775
        %v1779 = vunpack.c.l.s4 1966171168
        %v1780 = vunpack.c.0.s8 %v1779
        %v1781 = vlaneseq
        %v1782 = vshrl.u32 %v1781, 7
        %v1783 = vsub.s32 %v1780, %v1782
        %v1784 = vrot.slane %v1768, %v1783
        %v1786 = vunpack.c.l.s4 1966171168
        %v1787 = vunpack.c.0.s8 %v1786
        %v1788 = vlaneseq
        %v1789 = vshrl.u32 %v1788, 7
        %v1790 = vsub.s32 %v1787, %v1789
        %v1791 = vrot.slane %v1775, %v1790
        %v1793 = vunpack.c.l.s4 1966171168
        %v1794 = vunpack.c.0.s8 %v1793
        %v1795 = vlaneseq
        %v1796 = vshrl.u32 %v1795, 7
        %v1797 = vsub.s32 %v1794, %v1796
        %v1798 = vrot.slane %v1776, %v1797
        %v1800 = vunpack.c.l.s4 1966171168
        %v1801 = vunpack.c.0.s8 %v1800
        %v1802 = vlaneseq
        %v1803 = vshrl.u32 %v1802, 7
        %v1804 = vsub.s32 %v1801, %v1803
        %v1805 = vrot.slane %v1777, %v1804
        %v1806 = vcombine.high %v1784, %v1784
        %v1807 = vcombine.high %v1791, %v1791
        %v1808 = vcombine.high %v1798, %v1798
        %v1809 = vcombine.high %v1805, %v1805
        %v1811 = vunpack.c.l.s4 1966171168
        %v1812 = vunpack.c.0.s8 %v1811
        %v1813 = vlaneseq
        %v1814 = vshrl.u32 %v1813, 7
        %v1815 = vsub.s32 %v1812, %v1814
        %v1816 = vrot.slane %v1756, %v1815
        %v1817 = vcombine.high %v1816, %v1816
        %v1819 = vunpack.c.l.s4 1966171168
        %v1820 = vunpack.c.0.s8 %v1819
        %v1821 = vlaneseq
        %v1822 = vshrl.u32 %v1821, 7
        %v1823 = vsub.s32 %v1820, %v1822
        %v1824 = vrot.slane %v1816, %v1823
        %v1826 = vunpack.c.l.s4 1966171168
        %v1827 = vunpack.c.0.s8 %v1826
        %v1828 = vlaneseq
        %v1829 = vshrl.u32 %v1828, 7
        %v1830 = vsub.s32 %v1827, %v1829
        %v1831 = vrot.slane %v1817, %v1830
        %v1832 = vcombine.high %v1824, %v1824
        %v1833 = vcombine.high %v1831, %v1831
        %1846 = vst.msk [vmem:[#allocation3 + $0x7] sm:$0x1] %vm543, %v1784
        %1847 = vst.msk [vmem:[#allocation3 + $0x17] sm:$0x1] %vm543, %v1798
        %1848 = vst.msk [vmem:[#allocation3 + $0x27] sm:$0x1] %vm543, %v1806
        %1849 = vst.msk [vmem:[#allocation3 + $0x37] sm:$0x1] %vm543, %v1808
        %1850 = vst.msk [vmem:[#allocation3 + $0x47] sm:$0x1] %vm543, %v1791
        %1851 = vst.msk [vmem:[#allocation3 + $0x57] sm:$0x1] %vm543, %v1805
        %1852 = vst.msk [vmem:[#allocation3 + $0x67] sm:$0x1] %vm543, %v1807
        %1853 = vst.msk [vmem:[#allocation3 + $0x77] sm:$0x1] %vm543, %v1809
        %1854 = vst.msk [vmem:[#allocation3 + $0x87] sm:$0x1] %vm543, %v1824
        %1855 = vst.msk [vmem:[#allocation3 + $0x97] sm:$0x1] %vm543, %v1831
        %1856 = vst.msk [vmem:[#allocation3 + $0xa7] sm:$0x1] %vm543, %v1832
        %1857 = vst.msk [vmem:[#allocation3 + $0xb7] sm:$0x1] %vm543, %v1833
        %v1858 = vld [vmem:[#allocation2 + $0x8] sm:$0xff]
        %v1859 = vld [vmem:[#allocation2 + $0x18] sm:$0xf]
        %v1861 = vsel %vm374, %v1858, 0
        %v1864 = vsel %vm374, %v1859, 0
        %1866 = vmatprep.subr.mxu0 0.0
        %1867 = vmatpush1.msra.mxu0 0.0
        %1868 = vmatprep.subr.mxu0 0.0
        %1869 = vmatpush1.msra.mxu0 0.0
        %1870 = vmatprep.subr.mxu0 0.0
        %1871 = vmatpush1.msra.mxu0 0.0
        %1872 = vmatprep.subr.mxu0 0.0
        %1873 = vmatpush1.msra.mxu0 0.0
        %1874 = vmatprep.subr.mxu0 0.0
        %1875 = vmatpush1.msra.mxu0 0.0
        %1876 = vmatprep.subr.mxu0 0.0
        %1877 = vmatpush1.msra.mxu0 0.0
        %1878 = vmatprep.subr.mxu0 0.0
        %1879 = vmatpush1.msra.mxu0 0.0
        %1880 = vmatprep.subr.mxu0 0.0
        %1881 = vmatpush1.msra.mxu0 0.0
        %1882 = vmatprep.subr.mxu0 0.0
        %1883 = vmatpush1.msra.mxu0 0.0
        %1884 = vmatprep.subr.mxu0 0.0
        %1885 = vmatpush1.msra.mxu0 0.0
        %1886 = vmatprep.subr.mxu0 0.0
        %1887 = vmatpush1.msra.mxu0 0.0
        %1888 = vmatprep.subr.mxu0 0.0
        %1889 = vmatpush1.msra.mxu0 0.0
        %1890 = vmatprep.subr.mxu0 0.0
        %1891 = vmatpush1.msra.mxu0 0.0
        %1892 = vmatprep.subr.mxu0 0.0
        %1893 = vmatpush1.msra.mxu0 0.0
        %1894 = vmatprep.subr.mxu0 0.0
        %1895 = vmatpush1.msra.mxu0 %v255
        %1896 = vmatprep.subr.mxu0 0.0
        %1897 = vmatpush1.msra.mxu0 %v254
        %1898 = vmatprep.subr.mxu0 0.0
        %1899 = vmatpush2.msra.mxu0 0.0
        %1900 = vmatprep.subr.mxu0 0.0
        %1901 = vmatpush2.msra.mxu0 0.0
        %1902 = vmatprep.subr.mxu0 0.0
        %1903 = vmatpush2.msra.mxu0 0.0
        %1904 = vmatprep.subr.mxu0 0.0
        %1905 = vmatpush2.msra.mxu0 0.0
        %1906 = vmatprep.subr.mxu0 0.0
        %1907 = vmatpush2.msra.mxu0 0.0
        %1908 = vmatprep.subr.mxu0 0.0
        %1909 = vmatpush2.msra.mxu0 0.0
        %1910 = vmatprep.subr.mxu0 0.0
        %1911 = vmatpush2.msra.mxu0 0.0
        %1912 = vmatprep.subr.mxu0 0.0
        %1913 = vmatpush2.msra.mxu0 0.0
        %1914 = vmatprep.subr.mxu0 0.0
        %1915 = vmatpush2.msra.mxu0 0.0
        %1916 = vmatprep.subr.mxu0 0.0
        %1917 = vmatpush2.msra.mxu0 0.0
        %1918 = vmatprep.subr.mxu0 0.0
        %1919 = vmatpush2.msra.mxu0 0.0
        %1920 = vmatprep.subr.mxu0 0.0
        %1921 = vmatpush2.msra.mxu0 0.0
        %1922 = vmatprep.subr.mxu0 0.0
        %1923 = vmatpush2.msra.mxu0 0.0
        %1924 = vmatprep.subr.mxu0 0.0
        %1925 = vmatpush2.msra.mxu0 0.0
        %1926 = vmatprep.subr.mxu0 0.0
        %1927 = vmatpush2.msra.mxu0 0.0
        %1928 = vmatprep.subr.mxu0 0.0
        %1929 = vmatpush2.msra.mxu0 0.0
        %1930 = vmatprep.mubr.f32.mxu0 0.0
        %1931 = vmatmul.mubr.f32.gmra.mxu0 %v1861
        %v1932 = vpop.f32.mrf.mxu0
        %v1933 = vadd.f32 0.0, %v1932
        %v1934 = vpop.f32.mrf.mxu0
        %1935 = vmatprep.mubr.f32.mxu0 0.0
        %1936 = vmatmul.mubr.f32.gmra.mxu0 %v1864
        %v1937 = vpop.f32.mrf.mxu0
        %v1938 = vadd.f32 0.0, %v1937
        %v1939 = vpop.f32.mrf.mxu0
        %1940 = vdwg.mxu0
        %v1943 = vcombine.high %v1933, %v1933
        %v1945 = vunpack.c.l.s4 1966171168
        %v1946 = vunpack.c.0.s8 %v1945
        %v1947 = vlaneseq
        %v1948 = vshrl.u32 %v1947, 7
        %v1949 = vsub.s32 %v1946, %v1948
        %v1950 = vrot.slane %v1933, %v1949
        %v1952 = vunpack.c.l.s4 1966171168
        %v1953 = vunpack.c.0.s8 %v1952
        %v1954 = vlaneseq
        %v1955 = vshrl.u32 %v1954, 7
        %v1956 = vsub.s32 %v1953, %v1955
        %v1957 = vrot.slane %v1943, %v1956
        %v1958 = vcombine.high %v1950, %v1950
        %v1959 = vcombine.high %v1957, %v1957
        %v1961 = vunpack.c.l.s4 1966171168
        %v1962 = vunpack.c.0.s8 %v1961
        %v1963 = vlaneseq
        %v1964 = vshrl.u32 %v1963, 7
        %v1965 = vsub.s32 %v1962, %v1964
        %v1966 = vrot.slane %v1950, %v1965
        %v1968 = vunpack.c.l.s4 1966171168
        %v1969 = vunpack.c.0.s8 %v1968
        %v1970 = vlaneseq
        %v1971 = vshrl.u32 %v1970, 7
        %v1972 = vsub.s32 %v1969, %v1971
        %v1973 = vrot.slane %v1957, %v1972
        %v1975 = vunpack.c.l.s4 1966171168
        %v1976 = vunpack.c.0.s8 %v1975
        %v1977 = vlaneseq
        %v1978 = vshrl.u32 %v1977, 7
        %v1979 = vsub.s32 %v1976, %v1978
        %v1980 = vrot.slane %v1958, %v1979
        %v1982 = vunpack.c.l.s4 1966171168
        %v1983 = vunpack.c.0.s8 %v1982
        %v1984 = vlaneseq
        %v1985 = vshrl.u32 %v1984, 7
        %v1986 = vsub.s32 %v1983, %v1985
        %v1987 = vrot.slane %v1959, %v1986
        %v1988 = vcombine.high %v1966, %v1966
        %v1989 = vcombine.high %v1973, %v1973
        %v1990 = vcombine.high %v1980, %v1980
        %v1991 = vcombine.high %v1987, %v1987
        %v1993 = vunpack.c.l.s4 1966171168
        %v1994 = vunpack.c.0.s8 %v1993
        %v1995 = vlaneseq
        %v1996 = vshrl.u32 %v1995, 7
        %v1997 = vsub.s32 %v1994, %v1996
        %v1998 = vrot.slane %v1938, %v1997
        %v1999 = vcombine.high %v1998, %v1998
        %v2001 = vunpack.c.l.s4 1966171168
        %v2002 = vunpack.c.0.s8 %v2001
        %v2003 = vlaneseq
        %v2004 = vshrl.u32 %v2003, 7
        %v2005 = vsub.s32 %v2002, %v2004
        %v2006 = vrot.slane %v1998, %v2005
        %v2008 = vunpack.c.l.s4 1966171168
        %v2009 = vunpack.c.0.s8 %v2008
        %v2010 = vlaneseq
        %v2011 = vshrl.u32 %v2010, 7
        %v2012 = vsub.s32 %v2009, %v2011
        %v2013 = vrot.slane %v1999, %v2012
        %v2014 = vcombine.high %v2006, %v2006
        %v2015 = vcombine.high %v2013, %v2013
        %2028 = vst.msk [vmem:[#allocation3 + $0x8] sm:$0x1] %vm543, %v1966
        %2029 = vst.msk [vmem:[#allocation3 + $0x18] sm:$0x1] %vm543, %v1980
        %2030 = vst.msk [vmem:[#allocation3 + $0x28] sm:$0x1] %vm543, %v1988
        %2031 = vst.msk [vmem:[#allocation3 + $0x38] sm:$0x1] %vm543, %v1990
        %2032 = vst.msk [vmem:[#allocation3 + $0x48] sm:$0x1] %vm543, %v1973
        %2033 = vst.msk [vmem:[#allocation3 + $0x58] sm:$0x1] %vm543, %v1987
        %2034 = vst.msk [vmem:[#allocation3 + $0x68] sm:$0x1] %vm543, %v1989
        %2035 = vst.msk [vmem:[#allocation3 + $0x78] sm:$0x1] %vm543, %v1991
        %2036 = vst.msk [vmem:[#allocation3 + $0x88] sm:$0x1] %vm543, %v2006
        %2037 = vst.msk [vmem:[#allocation3 + $0x98] sm:$0x1] %vm543, %v2013
        %2038 = vst.msk [vmem:[#allocation3 + $0xa8] sm:$0x1] %vm543, %v2014
        %2039 = vst.msk [vmem:[#allocation3 + $0xb8] sm:$0x1] %vm543, %v2015
        %v2040 = vld [vmem:[#allocation2 + $0x8] sm:$0xff]
        %v2041 = vld [vmem:[#allocation2 + $0x18] sm:$0xf]
        %2044 = vrot.lane.b32.xlu0 %v2040, 112
        %v2045 = vpop.permute.xlu0 %2044
        %2046 = vrot.lane.b32.xlu0 %v2041, 112
        %v2047 = vpop.permute.xlu0 %2046
        %v2048 = vsel %vm374, %v2045, 0
        %v2050 = vsel %vm374, %v2047, 0
        %2052 = vmatprep.subr.mxu0 0.0
        %2053 = vmatpush1.msra.mxu0 0.0
        %2054 = vmatprep.subr.mxu0 0.0
        %2055 = vmatpush1.msra.mxu0 0.0
        %2056 = vmatprep.subr.mxu0 0.0
        %2057 = vmatpush1.msra.mxu0 0.0
        %2058 = vmatprep.subr.mxu0 0.0
        %2059 = vmatpush1.msra.mxu0 0.0
        %2060 = vmatprep.subr.mxu0 0.0
        %2061 = vmatpush1.msra.mxu0 0.0
        %2062 = vmatprep.subr.mxu0 0.0
        %2063 = vmatpush1.msra.mxu0 0.0
        %2064 = vmatprep.subr.mxu0 0.0
        %2065 = vmatpush1.msra.mxu0 0.0
        %2066 = vmatprep.subr.mxu0 0.0
        %2067 = vmatpush1.msra.mxu0 0.0
        %2068 = vmatprep.subr.mxu0 0.0
        %2069 = vmatpush1.msra.mxu0 0.0
        %2070 = vmatprep.subr.mxu0 0.0
        %2071 = vmatpush1.msra.mxu0 0.0
        %2072 = vmatprep.subr.mxu0 0.0
        %2073 = vmatpush1.msra.mxu0 0.0
        %2074 = vmatprep.subr.mxu0 0.0
        %2075 = vmatpush1.msra.mxu0 0.0
        %2076 = vmatprep.subr.mxu0 0.0
        %2077 = vmatpush1.msra.mxu0 0.0
        %2078 = vmatprep.subr.mxu0 0.0
        %2079 = vmatpush1.msra.mxu0 0.0
        %2080 = vmatprep.subr.mxu0 0.0
        %2081 = vmatpush1.msra.mxu0 %v255
        %2082 = vmatprep.subr.mxu0 0.0
        %2083 = vmatpush1.msra.mxu0 %v254
        %2084 = vmatprep.subr.mxu0 0.0
        %2085 = vmatpush2.msra.mxu0 0.0
        %2086 = vmatprep.subr.mxu0 0.0
        %2087 = vmatpush2.msra.mxu0 0.0
        %2088 = vmatprep.subr.mxu0 0.0
        %2089 = vmatpush2.msra.mxu0 0.0
        %2090 = vmatprep.subr.mxu0 0.0
        %2091 = vmatpush2.msra.mxu0 0.0
        %2092 = vmatprep.subr.mxu0 0.0
        %2093 = vmatpush2.msra.mxu0 0.0
        %2094 = vmatprep.subr.mxu0 0.0
        %2095 = vmatpush2.msra.mxu0 0.0
        %2096 = vmatprep.subr.mxu0 0.0
        %2097 = vmatpush2.msra.mxu0 0.0
        %2098 = vmatprep.subr.mxu0 0.0
        %2099 = vmatpush2.msra.mxu0 0.0
        %2100 = vmatprep.subr.mxu0 0.0
        %2101 = vmatpush2.msra.mxu0 0.0
        %2102 = vmatprep.subr.mxu0 0.0
        %2103 = vmatpush2.msra.mxu0 0.0
        %2104 = vmatprep.subr.mxu0 0.0
        %2105 = vmatpush2.msra.mxu0 0.0
        %2106 = vmatprep.subr.mxu0 0.0
        %2107 = vmatpush2.msra.mxu0 0.0
        %2108 = vmatprep.subr.mxu0 0.0
        %2109 = vmatpush2.msra.mxu0 0.0
        %2110 = vmatprep.subr.mxu0 0.0
        %2111 = vmatpush2.msra.mxu0 0.0
        %2112 = vmatprep.subr.mxu0 0.0
        %2113 = vmatpush2.msra.mxu0 0.0
        %2114 = vmatprep.subr.mxu0 0.0
        %2115 = vmatpush2.msra.mxu0 0.0
        %2116 = vmatprep.mubr.f32.mxu0 0.0
        %2117 = vmatmul.mubr.f32.gmra.mxu0 %v2048
        %v2118 = vpop.f32.mrf.mxu0
        %v2119 = vadd.f32 0.0, %v2118
        %v2120 = vpop.f32.mrf.mxu0
        %2121 = vmatprep.mubr.f32.mxu0 0.0
        %2122 = vmatmul.mubr.f32.gmra.mxu0 %v2050
        %v2123 = vpop.f32.mrf.mxu0
        %v2124 = vadd.f32 0.0, %v2123
        %v2125 = vpop.f32.mrf.mxu0
        %2126 = vdwg.mxu0
        %v2129 = vcombine.high %v2119, %v2119
        %v2131 = vunpack.c.l.s4 1966171168
        %v2132 = vunpack.c.0.s8 %v2131
        %v2133 = vlaneseq
        %v2134 = vshrl.u32 %v2133, 7
        %v2135 = vsub.s32 %v2132, %v2134
        %v2136 = vrot.slane %v2119, %v2135
        %v2138 = vunpack.c.l.s4 1966171168
        %v2139 = vunpack.c.0.s8 %v2138
        %v2140 = vlaneseq
        %v2141 = vshrl.u32 %v2140, 7
        %v2142 = vsub.s32 %v2139, %v2141
        %v2143 = vrot.slane %v2129, %v2142
        %v2144 = vcombine.high %v2136, %v2136
        %v2145 = vcombine.high %v2143, %v2143
        %v2147 = vunpack.c.l.s4 1966171168
        %v2148 = vunpack.c.0.s8 %v2147
        %v2149 = vlaneseq
        %v2150 = vshrl.u32 %v2149, 7
        %v2151 = vsub.s32 %v2148, %v2150
        %v2152 = vrot.slane %v2136, %v2151
        %v2154 = vunpack.c.l.s4 1966171168
        %v2155 = vunpack.c.0.s8 %v2154
        %v2156 = vlaneseq
        %v2157 = vshrl.u32 %v2156, 7
        %v2158 = vsub.s32 %v2155, %v2157
        %v2159 = vrot.slane %v2143, %v2158
        %v2161 = vunpack.c.l.s4 1966171168
        %v2162 = vunpack.c.0.s8 %v2161
        %v2163 = vlaneseq
        %v2164 = vshrl.u32 %v2163, 7
        %v2165 = vsub.s32 %v2162, %v2164
        %v2166 = vrot.slane %v2144, %v2165
        %v2168 = vunpack.c.l.s4 1966171168
        %v2169 = vunpack.c.0.s8 %v2168
        %v2170 = vlaneseq
        %v2171 = vshrl.u32 %v2170, 7
        %v2172 = vsub.s32 %v2169, %v2171
        %v2173 = vrot.slane %v2145, %v2172
        %v2174 = vcombine.high %v2152, %v2152
        %v2175 = vcombine.high %v2159, %v2159
        %v2176 = vcombine.high %v2166, %v2166
        %v2177 = vcombine.high %v2173, %v2173
        %v2179 = vunpack.c.l.s4 1966171168
        %v2180 = vunpack.c.0.s8 %v2179
        %v2181 = vlaneseq
        %v2182 = vshrl.u32 %v2181, 7
        %v2183 = vsub.s32 %v2180, %v2182
        %v2184 = vrot.slane %v2124, %v2183
        %v2185 = vcombine.high %v2184, %v2184
        %v2187 = vunpack.c.l.s4 1966171168
        %v2188 = vunpack.c.0.s8 %v2187
        %v2189 = vlaneseq
        %v2190 = vshrl.u32 %v2189, 7
        %v2191 = vsub.s32 %v2188, %v2190
        %v2192 = vrot.slane %v2184, %v2191
        %v2194 = vunpack.c.l.s4 1966171168
        %v2195 = vunpack.c.0.s8 %v2194
        %v2196 = vlaneseq
        %v2197 = vshrl.u32 %v2196, 7
        %v2198 = vsub.s32 %v2195, %v2197
        %v2199 = vrot.slane %v2185, %v2198
        %v2200 = vcombine.high %v2192, %v2192
        %v2201 = vcombine.high %v2199, %v2199
        %2214 = vst.msk [vmem:[#allocation3 + $0x9] sm:$0x1] %vm543, %v2152
        %2215 = vst.msk [vmem:[#allocation3 + $0x19] sm:$0x1] %vm543, %v2166
        %2216 = vst.msk [vmem:[#allocation3 + $0x29] sm:$0x1] %vm543, %v2174
        %2217 = vst.msk [vmem:[#allocation3 + $0x39] sm:$0x1] %vm543, %v2176
        %2218 = vst.msk [vmem:[#allocation3 + $0x49] sm:$0x1] %vm543, %v2159
        %2219 = vst.msk [vmem:[#allocation3 + $0x59] sm:$0x1] %vm543, %v2173
        %2220 = vst.msk [vmem:[#allocation3 + $0x69] sm:$0x1] %vm543, %v2175
        %2221 = vst.msk [vmem:[#allocation3 + $0x79] sm:$0x1] %vm543, %v2177
        %2222 = vst.msk [vmem:[#allocation3 + $0x89] sm:$0x1] %vm543, %v2192
        %2223 = vst.msk [vmem:[#allocation3 + $0x99] sm:$0x1] %vm543, %v2199
        %2224 = vst.msk [vmem:[#allocation3 + $0xa9] sm:$0x1] %vm543, %v2200
        %2225 = vst.msk [vmem:[#allocation3 + $0xb9] sm:$0x1] %vm543, %v2201
        %v2226 = vld [vmem:[#allocation2 + $0x8] sm:$0xff]
        %v2227 = vld [vmem:[#allocation2 + $0x18] sm:$0xf]
        %2230 = vrot.lane.b32.xlu0 %v2226, 96
        %v2231 = vpop.permute.xlu0 %2230
        %2232 = vrot.lane.b32.xlu0 %v2227, 96
        %v2233 = vpop.permute.xlu0 %2232
        %v2234 = vsel %vm374, %v2231, 0
        %v2236 = vsel %vm374, %v2233, 0
        %2238 = vmatprep.subr.mxu0 0.0
        %2239 = vmatpush1.msra.mxu0 0.0
        %2240 = vmatprep.subr.mxu0 0.0
        %2241 = vmatpush1.msra.mxu0 0.0
        %2242 = vmatprep.subr.mxu0 0.0
        %2243 = vmatpush1.msra.mxu0 0.0
        %2244 = vmatprep.subr.mxu0 0.0
        %2245 = vmatpush1.msra.mxu0 0.0
        %2246 = vmatprep.subr.mxu0 0.0
        %2247 = vmatpush1.msra.mxu0 0.0
        %2248 = vmatprep.subr.mxu0 0.0
        %2249 = vmatpush1.msra.mxu0 0.0
        %2250 = vmatprep.subr.mxu0 0.0
        %2251 = vmatpush1.msra.mxu0 0.0
        %2252 = vmatprep.subr.mxu0 0.0
        %2253 = vmatpush1.msra.mxu0 0.0
        %2254 = vmatprep.subr.mxu0 0.0
        %2255 = vmatpush1.msra.mxu0 0.0
        %2256 = vmatprep.subr.mxu0 0.0
        %2257 = vmatpush1.msra.mxu0 0.0
        %2258 = vmatprep.subr.mxu0 0.0
        %2259 = vmatpush1.msra.mxu0 0.0
        %2260 = vmatprep.subr.mxu0 0.0
        %2261 = vmatpush1.msra.mxu0 0.0
        %2262 = vmatprep.subr.mxu0 0.0
        %2263 = vmatpush1.msra.mxu0 0.0
        %2264 = vmatprep.subr.mxu0 0.0
        %2265 = vmatpush1.msra.mxu0 0.0
        %2266 = vmatprep.subr.mxu0 0.0
        %2267 = vmatpush1.msra.mxu0 %v255
        %2268 = vmatprep.subr.mxu0 0.0
        %2269 = vmatpush1.msra.mxu0 %v254
        %2270 = vmatprep.subr.mxu0 0.0
        %2271 = vmatpush2.msra.mxu0 0.0
        %2272 = vmatprep.subr.mxu0 0.0
        %2273 = vmatpush2.msra.mxu0 0.0
        %2274 = vmatprep.subr.mxu0 0.0
        %2275 = vmatpush2.msra.mxu0 0.0
        %2276 = vmatprep.subr.mxu0 0.0
        %2277 = vmatpush2.msra.mxu0 0.0
        %2278 = vmatprep.subr.mxu0 0.0
        %2279 = vmatpush2.msra.mxu0 0.0
        %2280 = vmatprep.subr.mxu0 0.0
        %2281 = vmatpush2.msra.mxu0 0.0
        %2282 = vmatprep.subr.mxu0 0.0
        %2283 = vmatpush2.msra.mxu0 0.0
        %2284 = vmatprep.subr.mxu0 0.0
        %2285 = vmatpush2.msra.mxu0 0.0
        %2286 = vmatprep.subr.mxu0 0.0
        %2287 = vmatpush2.msra.mxu0 0.0
        %2288 = vmatprep.subr.mxu0 0.0
        %2289 = vmatpush2.msra.mxu0 0.0
        %2290 = vmatprep.subr.mxu0 0.0
        %2291 = vmatpush2.msra.mxu0 0.0
        %2292 = vmatprep.subr.mxu0 0.0
        %2293 = vmatpush2.msra.mxu0 0.0
        %2294 = vmatprep.subr.mxu0 0.0
        %2295 = vmatpush2.msra.mxu0 0.0
        %2296 = vmatprep.subr.mxu0 0.0
        %2297 = vmatpush2.msra.mxu0 0.0
        %2298 = vmatprep.subr.mxu0 0.0
        %2299 = vmatpush2.msra.mxu0 0.0
        %2300 = vmatprep.subr.mxu0 0.0
        %2301 = vmatpush2.msra.mxu0 0.0
        %2302 = vmatprep.mubr.f32.mxu0 0.0
        %2303 = vmatmul.mubr.f32.gmra.mxu0 %v2234
        %v2304 = vpop.f32.mrf.mxu0
        %v2305 = vadd.f32 0.0, %v2304
        %v2306 = vpop.f32.mrf.mxu0
        %2307 = vmatprep.mubr.f32.mxu0 0.0
        %2308 = vmatmul.mubr.f32.gmra.mxu0 %v2236
        %v2309 = vpop.f32.mrf.mxu0
        %v2310 = vadd.f32 0.0, %v2309
        %v2311 = vpop.f32.mrf.mxu0
        %2312 = vdwg.mxu0
        %v2315 = vcombine.high %v2305, %v2305
        %v2317 = vunpack.c.l.s4 1966171168
        %v2318 = vunpack.c.0.s8 %v2317
        %v2319 = vlaneseq
        %v2320 = vshrl.u32 %v2319, 7
        %v2321 = vsub.s32 %v2318, %v2320
        %v2322 = vrot.slane %v2305, %v2321
        %v2324 = vunpack.c.l.s4 1966171168
        %v2325 = vunpack.c.0.s8 %v2324
        %v2326 = vlaneseq
        %v2327 = vshrl.u32 %v2326, 7
        %v2328 = vsub.s32 %v2325, %v2327
        %v2329 = vrot.slane %v2315, %v2328
        %v2330 = vcombine.high %v2322, %v2322
        %v2331 = vcombine.high %v2329, %v2329
        %v2333 = vunpack.c.l.s4 1966171168
        %v2334 = vunpack.c.0.s8 %v2333
        %v2335 = vlaneseq
        %v2336 = vshrl.u32 %v2335, 7
        %v2337 = vsub.s32 %v2334, %v2336
        %v2338 = vrot.slane %v2322, %v2337
        %v2340 = vunpack.c.l.s4 1966171168
        %v2341 = vunpack.c.0.s8 %v2340
        %v2342 = vlaneseq
        %v2343 = vshrl.u32 %v2342, 7
        %v2344 = vsub.s32 %v2341, %v2343
        %v2345 = vrot.slane %v2329, %v2344
        %v2347 = vunpack.c.l.s4 1966171168
        %v2348 = vunpack.c.0.s8 %v2347
        %v2349 = vlaneseq
        %v2350 = vshrl.u32 %v2349, 7
        %v2351 = vsub.s32 %v2348, %v2350
        %v2352 = vrot.slane %v2330, %v2351
        %v2354 = vunpack.c.l.s4 1966171168
        %v2355 = vunpack.c.0.s8 %v2354
        %v2356 = vlaneseq
        %v2357 = vshrl.u32 %v2356, 7
        %v2358 = vsub.s32 %v2355, %v2357
        %v2359 = vrot.slane %v2331, %v2358
        %v2360 = vcombine.high %v2338, %v2338
        %v2361 = vcombine.high %v2345, %v2345
        %v2362 = vcombine.high %v2352, %v2352
        %v2363 = vcombine.high %v2359, %v2359
        %v2365 = vunpack.c.l.s4 1966171168
        %v2366 = vunpack.c.0.s8 %v2365
        %v2367 = vlaneseq
        %v2368 = vshrl.u32 %v2367, 7
        %v2369 = vsub.s32 %v2366, %v2368
        %v2370 = vrot.slane %v2310, %v2369
        %v2371 = vcombine.high %v2370, %v2370
        %v2373 = vunpack.c.l.s4 1966171168
        %v2374 = vunpack.c.0.s8 %v2373
        %v2375 = vlaneseq
        %v2376 = vshrl.u32 %v2375, 7
        %v2377 = vsub.s32 %v2374, %v2376
        %v2378 = vrot.slane %v2370, %v2377
        %v2380 = vunpack.c.l.s4 1966171168
        %v2381 = vunpack.c.0.s8 %v2380
        %v2382 = vlaneseq
        %v2383 = vshrl.u32 %v2382, 7
        %v2384 = vsub.s32 %v2381, %v2383
        %v2385 = vrot.slane %v2371, %v2384
        %v2386 = vcombine.high %v2378, %v2378
        %v2387 = vcombine.high %v2385, %v2385
        %2400 = vst.msk [vmem:[#allocation3 + $0xa] sm:$0x1] %vm543, %v2338
        %2401 = vst.msk [vmem:[#allocation3 + $0x1a] sm:$0x1] %vm543, %v2352
        %2402 = vst.msk [vmem:[#allocation3 + $0x2a] sm:$0x1] %vm543, %v2360
        %2403 = vst.msk [vmem:[#allocation3 + $0x3a] sm:$0x1] %vm543, %v2362
        %2404 = vst.msk [vmem:[#allocation3 + $0x4a] sm:$0x1] %vm543, %v2345
        %2405 = vst.msk [vmem:[#allocation3 + $0x5a] sm:$0x1] %vm543, %v2359
        %2406 = vst.msk [vmem:[#allocation3 + $0x6a] sm:$0x1] %vm543, %v2361
        %2407 = vst.msk [vmem:[#allocation3 + $0x7a] sm:$0x1] %vm543, %v2363
        %2408 = vst.msk [vmem:[#allocation3 + $0x8a] sm:$0x1] %vm543, %v2378
        %2409 = vst.msk [vmem:[#allocation3 + $0x9a] sm:$0x1] %vm543, %v2385
        %2410 = vst.msk [vmem:[#allocation3 + $0xaa] sm:$0x1] %vm543, %v2386
        %2411 = vst.msk [vmem:[#allocation3 + $0xba] sm:$0x1] %vm543, %v2387
        %v2412 = vld [vmem:[#allocation2 + $0x8] sm:$0xff]
        %v2413 = vld [vmem:[#allocation2 + $0x18] sm:$0xf]
        %2416 = vrot.lane.b32.xlu0 %v2412, 80
        %v2417 = vpop.permute.xlu0 %2416
        %2418 = vrot.lane.b32.xlu0 %v2413, 80
        %v2419 = vpop.permute.xlu0 %2418
        %v2420 = vsel %vm374, %v2417, 0
        %v2422 = vsel %vm374, %v2419, 0
        %2424 = vmatprep.subr.mxu0 0.0
        %2425 = vmatpush1.msra.mxu0 0.0
        %2426 = vmatprep.subr.mxu0 0.0
        %2427 = vmatpush1.msra.mxu0 0.0
        %2428 = vmatprep.subr.mxu0 0.0
        %2429 = vmatpush1.msra.mxu0 0.0
        %2430 = vmatprep.subr.mxu0 0.0
        %2431 = vmatpush1.msra.mxu0 0.0
        %2432 = vmatprep.subr.mxu0 0.0
        %2433 = vmatpush1.msra.mxu0 0.0
        %2434 = vmatprep.subr.mxu0 0.0
        %2435 = vmatpush1.msra.mxu0 0.0
        %2436 = vmatprep.subr.mxu0 0.0
        %2437 = vmatpush1.msra.mxu0 0.0
        %2438 = vmatprep.subr.mxu0 0.0
        %2439 = vmatpush1.msra.mxu0 0.0
        %2440 = vmatprep.subr.mxu0 0.0
        %2441 = vmatpush1.msra.mxu0 0.0
        %2442 = vmatprep.subr.mxu0 0.0
        %2443 = vmatpush1.msra.mxu0 0.0
        %2444 = vmatprep.subr.mxu0 0.0
        %2445 = vmatpush1.msra.mxu0 0.0
        %2446 = vmatprep.subr.mxu0 0.0
        %2447 = vmatpush1.msra.mxu0 0.0
        %2448 = vmatprep.subr.mxu0 0.0
        %2449 = vmatpush1.msra.mxu0 0.0
        %2450 = vmatprep.subr.mxu0 0.0
        %2451 = vmatpush1.msra.mxu0 0.0
        %2452 = vmatprep.subr.mxu0 0.0
        %2453 = vmatpush1.msra.mxu0 %v255
        %2454 = vmatprep.subr.mxu0 0.0
        %2455 = vmatpush1.msra.mxu0 %v254
        %2456 = vmatprep.subr.mxu0 0.0
        %2457 = vmatpush2.msra.mxu0 0.0
        %2458 = vmatprep.subr.mxu0 0.0
        %2459 = vmatpush2.msra.mxu0 0.0
        %2460 = vmatprep.subr.mxu0 0.0
        %2461 = vmatpush2.msra.mxu0 0.0
        %2462 = vmatprep.subr.mxu0 0.0
        %2463 = vmatpush2.msra.mxu0 0.0
        %2464 = vmatprep.subr.mxu0 0.0
        %2465 = vmatpush2.msra.mxu0 0.0
        %2466 = vmatprep.subr.mxu0 0.0
        %2467 = vmatpush2.msra.mxu0 0.0
        %2468 = vmatprep.subr.mxu0 0.0
        %2469 = vmatpush2.msra.mxu0 0.0
        %2470 = vmatprep.subr.mxu0 0.0
        %2471 = vmatpush2.msra.mxu0 0.0
        %2472 = vmatprep.subr.mxu0 0.0
        %2473 = vmatpush2.msra.mxu0 0.0
        %2474 = vmatprep.subr.mxu0 0.0
        %2475 = vmatpush2.msra.mxu0 0.0
        %2476 = vmatprep.subr.mxu0 0.0
        %2477 = vmatpush2.msra.mxu0 0.0
        %2478 = vmatprep.subr.mxu0 0.0
        %2479 = vmatpush2.msra.mxu0 0.0
        %2480 = vmatprep.subr.mxu0 0.0
        %2481 = vmatpush2.msra.mxu0 0.0
        %2482 = vmatprep.subr.mxu0 0.0
        %2483 = vmatpush2.msra.mxu0 0.0
        %2484 = vmatprep.subr.mxu0 0.0
        %2485 = vmatpush2.msra.mxu0 0.0
        %2486 = vmatprep.subr.mxu0 0.0
        %2487 = vmatpush2.msra.mxu0 0.0
        %2488 = vmatprep.mubr.f32.mxu0 0.0
        %2489 = vmatmul.mubr.f32.gmra.mxu0 %v2420
        %v2490 = vpop.f32.mrf.mxu0
        %v2491 = vadd.f32 0.0, %v2490
        %v2492 = vpop.f32.mrf.mxu0
        %2493 = vmatprep.mubr.f32.mxu0 0.0
        %2494 = vmatmul.mubr.f32.gmra.mxu0 %v2422
        %v2495 = vpop.f32.mrf.mxu0
        %v2496 = vadd.f32 0.0, %v2495
        %v2497 = vpop.f32.mrf.mxu0
        %2498 = vdwg.mxu0
        %v2501 = vcombine.high %v2491, %v2491
        %v2503 = vunpack.c.l.s4 1966171168
        %v2504 = vunpack.c.0.s8 %v2503
        %v2505 = vlaneseq
        %v2506 = vshrl.u32 %v2505, 7
        %v2507 = vsub.s32 %v2504, %v2506
        %v2508 = vrot.slane %v2491, %v2507
        %v2510 = vunpack.c.l.s4 1966171168
        %v2511 = vunpack.c.0.s8 %v2510
        %v2512 = vlaneseq
        %v2513 = vshrl.u32 %v2512, 7
        %v2514 = vsub.s32 %v2511, %v2513
        %v2515 = vrot.slane %v2501, %v2514
        %v2516 = vcombine.high %v2508, %v2508
        %v2517 = vcombine.high %v2515, %v2515
        %v2519 = vunpack.c.l.s4 1966171168
        %v2520 = vunpack.c.0.s8 %v2519
        %v2521 = vlaneseq
        %v2522 = vshrl.u32 %v2521, 7
        %v2523 = vsub.s32 %v2520, %v2522
        %v2524 = vrot.slane %v2508, %v2523
        %v2526 = vunpack.c.l.s4 1966171168
        %v2527 = vunpack.c.0.s8 %v2526
        %v2528 = vlaneseq
        %v2529 = vshrl.u32 %v2528, 7
        %v2530 = vsub.s32 %v2527, %v2529
        %v2531 = vrot.slane %v2515, %v2530
        %v2533 = vunpack.c.l.s4 1966171168
        %v2534 = vunpack.c.0.s8 %v2533
        %v2535 = vlaneseq
        %v2536 = vshrl.u32 %v2535, 7
        %v2537 = vsub.s32 %v2534, %v2536
        %v2538 = vrot.slane %v2516, %v2537
        %v2540 = vunpack.c.l.s4 1966171168
        %v2541 = vunpack.c.0.s8 %v2540
        %v2542 = vlaneseq
        %v2543 = vshrl.u32 %v2542, 7
        %v2544 = vsub.s32 %v2541, %v2543
        %v2545 = vrot.slane %v2517, %v2544
        %v2546 = vcombine.high %v2524, %v2524
        %v2547 = vcombine.high %v2531, %v2531
        %v2548 = vcombine.high %v2538, %v2538
        %v2549 = vcombine.high %v2545, %v2545
        %v2551 = vunpack.c.l.s4 1966171168
        %v2552 = vunpack.c.0.s8 %v2551
        %v2553 = vlaneseq
        %v2554 = vshrl.u32 %v2553, 7
        %v2555 = vsub.s32 %v2552, %v2554
        %v2556 = vrot.slane %v2496, %v2555
        %v2557 = vcombine.high %v2556, %v2556
        %v2559 = vunpack.c.l.s4 1966171168
        %v2560 = vunpack.c.0.s8 %v2559
        %v2561 = vlaneseq
        %v2562 = vshrl.u32 %v2561, 7
        %v2563 = vsub.s32 %v2560, %v2562
        %v2564 = vrot.slane %v2556, %v2563
        %v2566 = vunpack.c.l.s4 1966171168
        %v2567 = vunpack.c.0.s8 %v2566
        %v2568 = vlaneseq
        %v2569 = vshrl.u32 %v2568, 7
        %v2570 = vsub.s32 %v2567, %v2569
        %v2571 = vrot.slane %v2557, %v2570
        %v2572 = vcombine.high %v2564, %v2564
        %v2573 = vcombine.high %v2571, %v2571
        %2586 = vst.msk [vmem:[#allocation3 + $0xb] sm:$0x1] %vm543, %v2524
        %2587 = vst.msk [vmem:[#allocation3 + $0x1b] sm:$0x1] %vm543, %v2538
        %2588 = vst.msk [vmem:[#allocation3 + $0x2b] sm:$0x1] %vm543, %v2546
        %2589 = vst.msk [vmem:[#allocation3 + $0x3b] sm:$0x1] %vm543, %v2548
        %2590 = vst.msk [vmem:[#allocation3 + $0x4b] sm:$0x1] %vm543, %v2531
        %2591 = vst.msk [vmem:[#allocation3 + $0x5b] sm:$0x1] %vm543, %v2545
        %2592 = vst.msk [vmem:[#allocation3 + $0x6b] sm:$0x1] %vm543, %v2547
        %2593 = vst.msk [vmem:[#allocation3 + $0x7b] sm:$0x1] %vm543, %v2549
        %2594 = vst.msk [vmem:[#allocation3 + $0x8b] sm:$0x1] %vm543, %v2564
        %2595 = vst.msk [vmem:[#allocation3 + $0x9b] sm:$0x1] %vm543, %v2571
        %2596 = vst.msk [vmem:[#allocation3 + $0xab] sm:$0x1] %vm543, %v2572
        %2597 = vst.msk [vmem:[#allocation3 + $0xbb] sm:$0x1] %vm543, %v2573
        %v2598 = vld [vmem:[#allocation2 + $0x8] sm:$0xff]
        %v2599 = vld [vmem:[#allocation2 + $0x18] sm:$0xf]
        %2602 = vrot.lane.b32.xlu0 %v2598, 64
        %v2603 = vpop.permute.xlu0 %2602
        %2604 = vrot.lane.b32.xlu0 %v2599, 64
        %v2605 = vpop.permute.xlu0 %2604
        %v2606 = vsel %vm374, %v2603, 0
        %v2608 = vsel %vm374, %v2605, 0
        %2610 = vmatprep.subr.mxu0 0.0
        %2611 = vmatpush1.msra.mxu0 0.0
        %2612 = vmatprep.subr.mxu0 0.0
        %2613 = vmatpush1.msra.mxu0 0.0
        %2614 = vmatprep.subr.mxu0 0.0
        %2615 = vmatpush1.msra.mxu0 0.0
        %2616 = vmatprep.subr.mxu0 0.0
        %2617 = vmatpush1.msra.mxu0 0.0
        %2618 = vmatprep.subr.mxu0 0.0
        %2619 = vmatpush1.msra.mxu0 0.0
        %2620 = vmatprep.subr.mxu0 0.0
        %2621 = vmatpush1.msra.mxu0 0.0
        %2622 = vmatprep.subr.mxu0 0.0
        %2623 = vmatpush1.msra.mxu0 0.0
        %2624 = vmatprep.subr.mxu0 0.0
        %2625 = vmatpush1.msra.mxu0 0.0
        %2626 = vmatprep.subr.mxu0 0.0
        %2627 = vmatpush1.msra.mxu0 0.0
        %2628 = vmatprep.subr.mxu0 0.0
        %2629 = vmatpush1.msra.mxu0 0.0
        %2630 = vmatprep.subr.mxu0 0.0
        %2631 = vmatpush1.msra.mxu0 0.0
        %2632 = vmatprep.subr.mxu0 0.0
        %2633 = vmatpush1.msra.mxu0 0.0
        %2634 = vmatprep.subr.mxu0 0.0
        %2635 = vmatpush1.msra.mxu0 0.0
        %2636 = vmatprep.subr.mxu0 0.0
        %2637 = vmatpush1.msra.mxu0 0.0
        %2638 = vmatprep.subr.mxu0 0.0
        %2639 = vmatpush1.msra.mxu0 %v255
        %2640 = vmatprep.subr.mxu0 0.0
        %2641 = vmatpush1.msra.mxu0 %v254
        %2642 = vmatprep.subr.mxu0 0.0
        %2643 = vmatpush2.msra.mxu0 0.0
        %2644 = vmatprep.subr.mxu0 0.0
        %2645 = vmatpush2.msra.mxu0 0.0
        %2646 = vmatprep.subr.mxu0 0.0
        %2647 = vmatpush2.msra.mxu0 0.0
        %2648 = vmatprep.subr.mxu0 0.0
        %2649 = vmatpush2.msra.mxu0 0.0
        %2650 = vmatprep.subr.mxu0 0.0
        %2651 = vmatpush2.msra.mxu0 0.0
        %2652 = vmatprep.subr.mxu0 0.0
        %2653 = vmatpush2.msra.mxu0 0.0
        %2654 = vmatprep.subr.mxu0 0.0
        %2655 = vmatpush2.msra.mxu0 0.0
        %2656 = vmatprep.subr.mxu0 0.0
        %2657 = vmatpush2.msra.mxu0 0.0
        %2658 = vmatprep.subr.mxu0 0.0
        %2659 = vmatpush2.msra.mxu0 0.0
        %2660 = vmatprep.subr.mxu0 0.0
        %2661 = vmatpush2.msra.mxu0 0.0
        %2662 = vmatprep.subr.mxu0 0.0
        %2663 = vmatpush2.msra.mxu0 0.0
        %2664 = vmatprep.subr.mxu0 0.0
        %2665 = vmatpush2.msra.mxu0 0.0
        %2666 = vmatprep.subr.mxu0 0.0
        %2667 = vmatpush2.msra.mxu0 0.0
        %2668 = vmatprep.subr.mxu0 0.0
        %2669 = vmatpush2.msra.mxu0 0.0
        %2670 = vmatprep.subr.mxu0 0.0
        %2671 = vmatpush2.msra.mxu0 0.0
        %2672 = vmatprep.subr.mxu0 0.0
        %2673 = vmatpush2.msra.mxu0 0.0
        %2674 = vmatprep.mubr.f32.mxu0 0.0
        %2675 = vmatmul.mubr.f32.gmra.mxu0 %v2606
        %v2676 = vpop.f32.mrf.mxu0
        %v2677 = vadd.f32 0.0, %v2676
        %v2678 = vpop.f32.mrf.mxu0
        %2679 = vmatprep.mubr.f32.mxu0 0.0
        %2680 = vmatmul.mubr.f32.gmra.mxu0 %v2608
        %v2681 = vpop.f32.mrf.mxu0
        %v2682 = vadd.f32 0.0, %v2681
        %v2683 = vpop.f32.mrf.mxu0
        %2684 = vdwg.mxu0
        %v2687 = vcombine.high %v2677, %v2677
        %v2689 = vunpack.c.l.s4 1966171168
        %v2690 = vunpack.c.0.s8 %v2689
        %v2691 = vlaneseq
        %v2692 = vshrl.u32 %v2691, 7
        %v2693 = vsub.s32 %v2690, %v2692
        %v2694 = vrot.slane %v2677, %v2693
        %v2696 = vunpack.c.l.s4 1966171168
        %v2697 = vunpack.c.0.s8 %v2696
        %v2698 = vlaneseq
        %v2699 = vshrl.u32 %v2698, 7
        %v2700 = vsub.s32 %v2697, %v2699
        %v2701 = vrot.slane %v2687, %v2700
        %v2702 = vcombine.high %v2694, %v2694
        %v2703 = vcombine.high %v2701, %v2701
        %v2705 = vunpack.c.l.s4 1966171168
        %v2706 = vunpack.c.0.s8 %v2705
        %v2707 = vlaneseq
        %v2708 = vshrl.u32 %v2707, 7
        %v2709 = vsub.s32 %v2706, %v2708
        %v2710 = vrot.slane %v2694, %v2709
        %v2712 = vunpack.c.l.s4 1966171168
        %v2713 = vunpack.c.0.s8 %v2712
        %v2714 = vlaneseq
        %v2715 = vshrl.u32 %v2714, 7
        %v2716 = vsub.s32 %v2713, %v2715
        %v2717 = vrot.slane %v2701, %v2716
        %v2719 = vunpack.c.l.s4 1966171168
        %v2720 = vunpack.c.0.s8 %v2719
        %v2721 = vlaneseq
        %v2722 = vshrl.u32 %v2721, 7
        %v2723 = vsub.s32 %v2720, %v2722
        %v2724 = vrot.slane %v2702, %v2723
        %v2726 = vunpack.c.l.s4 1966171168
        %v2727 = vunpack.c.0.s8 %v2726
        %v2728 = vlaneseq
        %v2729 = vshrl.u32 %v2728, 7
        %v2730 = vsub.s32 %v2727, %v2729
        %v2731 = vrot.slane %v2703, %v2730
        %v2732 = vcombine.high %v2710, %v2710
        %v2733 = vcombine.high %v2717, %v2717
        %v2734 = vcombine.high %v2724, %v2724
        %v2735 = vcombine.high %v2731, %v2731
        %v2737 = vunpack.c.l.s4 1966171168
        %v2738 = vunpack.c.0.s8 %v2737
        %v2739 = vlaneseq
        %v2740 = vshrl.u32 %v2739, 7
        %v2741 = vsub.s32 %v2738, %v2740
        %v2742 = vrot.slane %v2682, %v2741
        %v2743 = vcombine.high %v2742, %v2742
        %v2745 = vunpack.c.l.s4 1966171168
        %v2746 = vunpack.c.0.s8 %v2745
        %v2747 = vlaneseq
        %v2748 = vshrl.u32 %v2747, 7
        %v2749 = vsub.s32 %v2746, %v2748
        %v2750 = vrot.slane %v2742, %v2749
        %v2752 = vunpack.c.l.s4 1966171168
        %v2753 = vunpack.c.0.s8 %v2752
        %v2754 = vlaneseq
        %v2755 = vshrl.u32 %v2754, 7
        %v2756 = vsub.s32 %v2753, %v2755
        %v2757 = vrot.slane %v2743, %v2756
        %v2758 = vcombine.high %v2750, %v2750
        %v2759 = vcombine.high %v2757, %v2757
        %2772 = vst.msk [vmem:[#allocation3 + $0xc] sm:$0x1] %vm543, %v2710
        %2773 = vst.msk [vmem:[#allocation3 + $0x1c] sm:$0x1] %vm543, %v2724
        %2774 = vst.msk [vmem:[#allocation3 + $0x2c] sm:$0x1] %vm543, %v2732
        %2775 = vst.msk [vmem:[#allocation3 + $0x3c] sm:$0x1] %vm543, %v2734
        %2776 = vst.msk [vmem:[#allocation3 + $0x4c] sm:$0x1] %vm543, %v2717
        %2777 = vst.msk [vmem:[#allocation3 + $0x5c] sm:$0x1] %vm543, %v2731
        %2778 = vst.msk [vmem:[#allocation3 + $0x6c] sm:$0x1] %vm543, %v2733
        %2779 = vst.msk [vmem:[#allocation3 + $0x7c] sm:$0x1] %vm543, %v2735
        %2780 = vst.msk [vmem:[#allocation3 + $0x8c] sm:$0x1] %vm543, %v2750
        %2781 = vst.msk [vmem:[#allocation3 + $0x9c] sm:$0x1] %vm543, %v2757
        %2782 = vst.msk [vmem:[#allocation3 + $0xac] sm:$0x1] %vm543, %v2758
        %2783 = vst.msk [vmem:[#allocation3 + $0xbc] sm:$0x1] %vm543, %v2759
        %v2784 = vld [vmem:[#allocation2 + $0x8] sm:$0xff]
        %v2785 = vld [vmem:[#allocation2 + $0x18] sm:$0xf]
        %2788 = vrot.lane.b32.xlu0 %v2784, 48
        %v2789 = vpop.permute.xlu0 %2788
        %2790 = vrot.lane.b32.xlu0 %v2785, 48
        %v2791 = vpop.permute.xlu0 %2790
        %v2792 = vsel %vm374, %v2789, 0
        %v2794 = vsel %vm374, %v2791, 0
        %2796 = vmatprep.subr.mxu0 0.0
        %2797 = vmatpush1.msra.mxu0 0.0
        %2798 = vmatprep.subr.mxu0 0.0
        %2799 = vmatpush1.msra.mxu0 0.0
        %2800 = vmatprep.subr.mxu0 0.0
        %2801 = vmatpush1.msra.mxu0 0.0
        %2802 = vmatprep.subr.mxu0 0.0
        %2803 = vmatpush1.msra.mxu0 0.0
        %2804 = vmatprep.subr.mxu0 0.0
        %2805 = vmatpush1.msra.mxu0 0.0
        %2806 = vmatprep.subr.mxu0 0.0
        %2807 = vmatpush1.msra.mxu0 0.0
        %2808 = vmatprep.subr.mxu0 0.0
        %2809 = vmatpush1.msra.mxu0 0.0
        %2810 = vmatprep.subr.mxu0 0.0
        %2811 = vmatpush1.msra.mxu0 0.0
        %2812 = vmatprep.subr.mxu0 0.0
        %2813 = vmatpush1.msra.mxu0 0.0
        %2814 = vmatprep.subr.mxu0 0.0
        %2815 = vmatpush1.msra.mxu0 0.0
        %2816 = vmatprep.subr.mxu0 0.0
        %2817 = vmatpush1.msra.mxu0 0.0
        %2818 = vmatprep.subr.mxu0 0.0
        %2819 = vmatpush1.msra.mxu0 0.0
        %2820 = vmatprep.subr.mxu0 0.0
        %2821 = vmatpush1.msra.mxu0 0.0
        %2822 = vmatprep.subr.mxu0 0.0
        %2823 = vmatpush1.msra.mxu0 0.0
        %2824 = vmatprep.subr.mxu0 0.0
        %2825 = vmatpush1.msra.mxu0 %v255
        %2826 = vmatprep.subr.mxu0 0.0
        %2827 = vmatpush1.msra.mxu0 %v254
        %2828 = vmatprep.subr.mxu0 0.0
        %2829 = vmatpush2.msra.mxu0 0.0
        %2830 = vmatprep.subr.mxu0 0.0
        %2831 = vmatpush2.msra.mxu0 0.0
        %2832 = vmatprep.subr.mxu0 0.0
        %2833 = vmatpush2.msra.mxu0 0.0
        %2834 = vmatprep.subr.mxu0 0.0
        %2835 = vmatpush2.msra.mxu0 0.0
        %2836 = vmatprep.subr.mxu0 0.0
        %2837 = vmatpush2.msra.mxu0 0.0
        %2838 = vmatprep.subr.mxu0 0.0
        %2839 = vmatpush2.msra.mxu0 0.0
        %2840 = vmatprep.subr.mxu0 0.0
        %2841 = vmatpush2.msra.mxu0 0.0
        %2842 = vmatprep.subr.mxu0 0.0
        %2843 = vmatpush2.msra.mxu0 0.0
        %2844 = vmatprep.subr.mxu0 0.0
        %2845 = vmatpush2.msra.mxu0 0.0
        %2846 = vmatprep.subr.mxu0 0.0
        %2847 = vmatpush2.msra.mxu0 0.0
        %2848 = vmatprep.subr.mxu0 0.0
        %2849 = vmatpush2.msra.mxu0 0.0
        %2850 = vmatprep.subr.mxu0 0.0
        %2851 = vmatpush2.msra.mxu0 0.0
        %2852 = vmatprep.subr.mxu0 0.0
        %2853 = vmatpush2.msra.mxu0 0.0
        %2854 = vmatprep.subr.mxu0 0.0
        %2855 = vmatpush2.msra.mxu0 0.0
        %2856 = vmatprep.subr.mxu0 0.0
        %2857 = vmatpush2.msra.mxu0 0.0
        %2858 = vmatprep.subr.mxu0 0.0
        %2859 = vmatpush2.msra.mxu0 0.0
        %2860 = vmatprep.mubr.f32.mxu0 0.0
        %2861 = vmatmul.mubr.f32.gmra.mxu0 %v2792
        %v2862 = vpop.f32.mrf.mxu0
        %v2863 = vadd.f32 0.0, %v2862
        %v2864 = vpop.f32.mrf.mxu0
        %2865 = vmatprep.mubr.f32.mxu0 0.0
        %2866 = vmatmul.mubr.f32.gmra.mxu0 %v2794
        %v2867 = vpop.f32.mrf.mxu0
        %v2868 = vadd.f32 0.0, %v2867
        %v2869 = vpop.f32.mrf.mxu0
        %2870 = vdwg.mxu0
        %v2873 = vcombine.high %v2863, %v2863
        %v2875 = vunpack.c.l.s4 1966171168
        %v2876 = vunpack.c.0.s8 %v2875
        %v2877 = vlaneseq
        %v2878 = vshrl.u32 %v2877, 7
        %v2879 = vsub.s32 %v2876, %v2878
        %v2880 = vrot.slane %v2863, %v2879
        %v2882 = vunpack.c.l.s4 1966171168
        %v2883 = vunpack.c.0.s8 %v2882
        %v2884 = vlaneseq
        %v2885 = vshrl.u32 %v2884, 7
        %v2886 = vsub.s32 %v2883, %v2885
        %v2887 = vrot.slane %v2873, %v2886
        %v2888 = vcombine.high %v2880, %v2880
        %v2889 = vcombine.high %v2887, %v2887
        %v2891 = vunpack.c.l.s4 1966171168
        %v2892 = vunpack.c.0.s8 %v2891
        %v2893 = vlaneseq
        %v2894 = vshrl.u32 %v2893, 7
        %v2895 = vsub.s32 %v2892, %v2894
        %v2896 = vrot.slane %v2880, %v2895
        %v2898 = vunpack.c.l.s4 1966171168
        %v2899 = vunpack.c.0.s8 %v2898
        %v2900 = vlaneseq
        %v2901 = vshrl.u32 %v2900, 7
        %v2902 = vsub.s32 %v2899, %v2901
        %v2903 = vrot.slane %v2887, %v2902
        %v2905 = vunpack.c.l.s4 1966171168
        %v2906 = vunpack.c.0.s8 %v2905
        %v2907 = vlaneseq
        %v2908 = vshrl.u32 %v2907, 7
        %v2909 = vsub.s32 %v2906, %v2908
        %v2910 = vrot.slane %v2888, %v2909
        %v2912 = vunpack.c.l.s4 1966171168
        %v2913 = vunpack.c.0.s8 %v2912
        %v2914 = vlaneseq
        %v2915 = vshrl.u32 %v2914, 7
        %v2916 = vsub.s32 %v2913, %v2915
        %v2917 = vrot.slane %v2889, %v2916
        %v2918 = vcombine.high %v2896, %v2896
        %v2919 = vcombine.high %v2903, %v2903
        %v2920 = vcombine.high %v2910, %v2910
        %v2921 = vcombine.high %v2917, %v2917
        %v2923 = vunpack.c.l.s4 1966171168
        %v2924 = vunpack.c.0.s8 %v2923
        %v2925 = vlaneseq
        %v2926 = vshrl.u32 %v2925, 7
        %v2927 = vsub.s32 %v2924, %v2926
        %v2928 = vrot.slane %v2868, %v2927
        %v2929 = vcombine.high %v2928, %v2928
        %v2931 = vunpack.c.l.s4 1966171168
        %v2932 = vunpack.c.0.s8 %v2931
        %v2933 = vlaneseq
        %v2934 = vshrl.u32 %v2933, 7
        %v2935 = vsub.s32 %v2932, %v2934
        %v2936 = vrot.slane %v2928, %v2935
        %v2938 = vunpack.c.l.s4 1966171168
        %v2939 = vunpack.c.0.s8 %v2938
        %v2940 = vlaneseq
        %v2941 = vshrl.u32 %v2940, 7
        %v2942 = vsub.s32 %v2939, %v2941
        %v2943 = vrot.slane %v2929, %v2942
        %v2944 = vcombine.high %v2936, %v2936
        %v2945 = vcombine.high %v2943, %v2943
        %2958 = vst.msk [vmem:[#allocation3 + $0xd] sm:$0x1] %vm543, %v2896
        %2959 = vst.msk [vmem:[#allocation3 + $0x1d] sm:$0x1] %vm543, %v2910
        %2960 = vst.msk [vmem:[#allocation3 + $0x2d] sm:$0x1] %vm543, %v2918
        %2961 = vst.msk [vmem:[#allocation3 + $0x3d] sm:$0x1] %vm543, %v2920
        %2962 = vst.msk [vmem:[#allocation3 + $0x4d] sm:$0x1] %vm543, %v2903
        %2963 = vst.msk [vmem:[#allocation3 + $0x5d] sm:$0x1] %vm543, %v2917
        %2964 = vst.msk [vmem:[#allocation3 + $0x6d] sm:$0x1] %vm543, %v2919
        %2965 = vst.msk [vmem:[#allocation3 + $0x7d] sm:$0x1] %vm543, %v2921
        %2966 = vst.msk [vmem:[#allocation3 + $0x8d] sm:$0x1] %vm543, %v2936
        %2967 = vst.msk [vmem:[#allocation3 + $0x9d] sm:$0x1] %vm543, %v2943
        %2968 = vst.msk [vmem:[#allocation3 + $0xad] sm:$0x1] %vm543, %v2944
        %2969 = vst.msk [vmem:[#allocation3 + $0xbd] sm:$0x1] %vm543, %v2945
        %v2970 = vld [vmem:[#allocation2 + $0x8] sm:$0xff]
        %v2971 = vld [vmem:[#allocation2 + $0x18] sm:$0xf]
        %2974 = vrot.lane.b32.xlu0 %v2970, 32
        %v2975 = vpop.permute.xlu0 %2974
        %2976 = vrot.lane.b32.xlu0 %v2971, 32
        %v2977 = vpop.permute.xlu0 %2976
        %v2978 = vsel %vm374, %v2975, 0
        %v2980 = vsel %vm374, %v2977, 0
        %2982 = vmatprep.subr.mxu0 0.0
        %2983 = vmatpush1.msra.mxu0 0.0
        %2984 = vmatprep.subr.mxu0 0.0
        %2985 = vmatpush1.msra.mxu0 0.0
        %2986 = vmatprep.subr.mxu0 0.0
        %2987 = vmatpush1.msra.mxu0 0.0
        %2988 = vmatprep.subr.mxu0 0.0
        %2989 = vmatpush1.msra.mxu0 0.0
        %2990 = vmatprep.subr.mxu0 0.0
        %2991 = vmatpush1.msra.mxu0 0.0
        %2992 = vmatprep.subr.mxu0 0.0
        %2993 = vmatpush1.msra.mxu0 0.0
        %2994 = vmatprep.subr.mxu0 0.0
        %2995 = vmatpush1.msra.mxu0 0.0
        %2996 = vmatprep.subr.mxu0 0.0
        %2997 = vmatpush1.msra.mxu0 0.0
        %2998 = vmatprep.subr.mxu0 0.0
        %2999 = vmatpush1.msra.mxu0 0.0
        %3000 = vmatprep.subr.mxu0 0.0
        %3001 = vmatpush1.msra.mxu0 0.0
        %3002 = vmatprep.subr.mxu0 0.0
        %3003 = vmatpush1.msra.mxu0 0.0
        %3004 = vmatprep.subr.mxu0 0.0
        %3005 = vmatpush1.msra.mxu0 0.0
        %3006 = vmatprep.subr.mxu0 0.0
        %3007 = vmatpush1.msra.mxu0 0.0
        %3008 = vmatprep.subr.mxu0 0.0
        %3009 = vmatpush1.msra.mxu0 0.0
        %3010 = vmatprep.subr.mxu0 0.0
        %3011 = vmatpush1.msra.mxu0 %v255
        %3012 = vmatprep.subr.mxu0 0.0
        %3013 = vmatpush1.msra.mxu0 %v254
        %3014 = vmatprep.subr.mxu0 0.0
        %3015 = vmatpush2.msra.mxu0 0.0
        %3016 = vmatprep.subr.mxu0 0.0
        %3017 = vmatpush2.msra.mxu0 0.0
        %3018 = vmatprep.subr.mxu0 0.0
        %3019 = vmatpush2.msra.mxu0 0.0
        %3020 = vmatprep.subr.mxu0 0.0
        %3021 = vmatpush2.msra.mxu0 0.0
        %3022 = vmatprep.subr.mxu0 0.0
        %3023 = vmatpush2.msra.mxu0 0.0
        %3024 = vmatprep.subr.mxu0 0.0
        %3025 = vmatpush2.msra.mxu0 0.0
        %3026 = vmatprep.subr.mxu0 0.0
        %3027 = vmatpush2.msra.mxu0 0.0
        %3028 = vmatprep.subr.mxu0 0.0
        %3029 = vmatpush2.msra.mxu0 0.0
        %3030 = vmatprep.subr.mxu0 0.0
        %3031 = vmatpush2.msra.mxu0 0.0
        %3032 = vmatprep.subr.mxu0 0.0
        %3033 = vmatpush2.msra.mxu0 0.0
        %3034 = vmatprep.subr.mxu0 0.0
        %3035 = vmatpush2.msra.mxu0 0.0
        %3036 = vmatprep.subr.mxu0 0.0
        %3037 = vmatpush2.msra.mxu0 0.0
        %3038 = vmatprep.subr.mxu0 0.0
        %3039 = vmatpush2.msra.mxu0 0.0
        %3040 = vmatprep.subr.mxu0 0.0
        %3041 = vmatpush2.msra.mxu0 0.0
        %3042 = vmatprep.subr.mxu0 0.0
        %3043 = vmatpush2.msra.mxu0 0.0
        %3044 = vmatprep.subr.mxu0 0.0
        %3045 = vmatpush2.msra.mxu0 0.0
        %3046 = vmatprep.mubr.f32.mxu0 0.0
        %3047 = vmatmul.mubr.f32.gmra.mxu0 %v2978
        %v3048 = vpop.f32.mrf.mxu0
        %v3049 = vadd.f32 0.0, %v3048
        %v3050 = vpop.f32.mrf.mxu0
        %3051 = vmatprep.mubr.f32.mxu0 0.0
        %3052 = vmatmul.mubr.f32.gmra.mxu0 %v2980
        %v3053 = vpop.f32.mrf.mxu0
        %v3054 = vadd.f32 0.0, %v3053
        %v3055 = vpop.f32.mrf.mxu0
        %3056 = vdwg.mxu0
        %v3059 = vcombine.high %v3049, %v3049
        %v3061 = vunpack.c.l.s4 1966171168
        %v3062 = vunpack.c.0.s8 %v3061
        %v3063 = vlaneseq
        %v3064 = vshrl.u32 %v3063, 7
        %v3065 = vsub.s32 %v3062, %v3064
        %v3066 = vrot.slane %v3049, %v3065
        %v3068 = vunpack.c.l.s4 1966171168
        %v3069 = vunpack.c.0.s8 %v3068
        %v3070 = vlaneseq
        %v3071 = vshrl.u32 %v3070, 7
        %v3072 = vsub.s32 %v3069, %v3071
        %v3073 = vrot.slane %v3059, %v3072
        %v3074 = vcombine.high %v3066, %v3066
        %v3075 = vcombine.high %v3073, %v3073
        %v3077 = vunpack.c.l.s4 1966171168
        %v3078 = vunpack.c.0.s8 %v3077
        %v3079 = vlaneseq
        %v3080 = vshrl.u32 %v3079, 7
        %v3081 = vsub.s32 %v3078, %v3080
        %v3082 = vrot.slane %v3066, %v3081
        %v3084 = vunpack.c.l.s4 1966171168
        %v3085 = vunpack.c.0.s8 %v3084
        %v3086 = vlaneseq
        %v3087 = vshrl.u32 %v3086, 7
        %v3088 = vsub.s32 %v3085, %v3087
        %v3089 = vrot.slane %v3073, %v3088
        %v3091 = vunpack.c.l.s4 1966171168
        %v3092 = vunpack.c.0.s8 %v3091
        %v3093 = vlaneseq
        %v3094 = vshrl.u32 %v3093, 7
        %v3095 = vsub.s32 %v3092, %v3094
        %v3096 = vrot.slane %v3074, %v3095
        %v3098 = vunpack.c.l.s4 1966171168
        %v3099 = vunpack.c.0.s8 %v3098
        %v3100 = vlaneseq
        %v3101 = vshrl.u32 %v3100, 7
        %v3102 = vsub.s32 %v3099, %v3101
        %v3103 = vrot.slane %v3075, %v3102
        %v3104 = vcombine.high %v3082, %v3082
        %v3105 = vcombine.high %v3089, %v3089
        %v3106 = vcombine.high %v3096, %v3096
        %v3107 = vcombine.high %v3103, %v3103
        %v3109 = vunpack.c.l.s4 1966171168
        %v3110 = vunpack.c.0.s8 %v3109
        %v3111 = vlaneseq
        %v3112 = vshrl.u32 %v3111, 7
        %v3113 = vsub.s32 %v3110, %v3112
        %v3114 = vrot.slane %v3054, %v3113
        %v3115 = vcombine.high %v3114, %v3114
        %v3117 = vunpack.c.l.s4 1966171168
        %v3118 = vunpack.c.0.s8 %v3117
        %v3119 = vlaneseq
        %v3120 = vshrl.u32 %v3119, 7
        %v3121 = vsub.s32 %v3118, %v3120
        %v3122 = vrot.slane %v3114, %v3121
        %v3124 = vunpack.c.l.s4 1966171168
        %v3125 = vunpack.c.0.s8 %v3124
        %v3126 = vlaneseq
        %v3127 = vshrl.u32 %v3126, 7
        %v3128 = vsub.s32 %v3125, %v3127
        %v3129 = vrot.slane %v3115, %v3128
        %v3130 = vcombine.high %v3122, %v3122
        %v3131 = vcombine.high %v3129, %v3129
        %3144 = vst.msk [vmem:[#allocation3 + $0xe] sm:$0x1] %vm543, %v3082
        %3145 = vst.msk [vmem:[#allocation3 + $0x1e] sm:$0x1] %vm543, %v3096
        %3146 = vst.msk [vmem:[#allocation3 + $0x2e] sm:$0x1] %vm543, %v3104
        %3147 = vst.msk [vmem:[#allocation3 + $0x3e] sm:$0x1] %vm543, %v3106
        %3148 = vst.msk [vmem:[#allocation3 + $0x4e] sm:$0x1] %vm543, %v3089
        %3149 = vst.msk [vmem:[#allocation3 + $0x5e] sm:$0x1] %vm543, %v3103
        %3150 = vst.msk [vmem:[#allocation3 + $0x6e] sm:$0x1] %vm543, %v3105
        %3151 = vst.msk [vmem:[#allocation3 + $0x7e] sm:$0x1] %vm543, %v3107
        %3152 = vst.msk [vmem:[#allocation3 + $0x8e] sm:$0x1] %vm543, %v3122
        %3153 = vst.msk [vmem:[#allocation3 + $0x9e] sm:$0x1] %vm543, %v3129
        %3154 = vst.msk [vmem:[#allocation3 + $0xae] sm:$0x1] %vm543, %v3130
        %3155 = vst.msk [vmem:[#allocation3 + $0xbe] sm:$0x1] %vm543, %v3131
        %v3156 = vld [vmem:[#allocation2 + $0x8] sm:$0xff]
        %v3157 = vld [vmem:[#allocation2 + $0x18] sm:$0xf]
        %3160 = vrot.lane.b32.xlu0 %v3156, 16
        %v3161 = vpop.permute.xlu0 %3160
        %3162 = vrot.lane.b32.xlu0 %v3157, 16
        %v3163 = vpop.permute.xlu0 %3162
        %v3164 = vsel %vm374, %v3161, 0
        %v3166 = vsel %vm374, %v3163, 0
        %3168 = vmatprep.subr.mxu0 0.0
        %3169 = vmatpush1.msra.mxu0 0.0
        %3170 = vmatprep.subr.mxu0 0.0
        %3171 = vmatpush1.msra.mxu0 0.0
        %3172 = vmatprep.subr.mxu0 0.0
        %3173 = vmatpush1.msra.mxu0 0.0
        %3174 = vmatprep.subr.mxu0 0.0
        %3175 = vmatpush1.msra.mxu0 0.0
        %3176 = vmatprep.subr.mxu0 0.0
        %3177 = vmatpush1.msra.mxu0 0.0
        %3178 = vmatprep.subr.mxu0 0.0
        %3179 = vmatpush1.msra.mxu0 0.0
        %3180 = vmatprep.subr.mxu0 0.0
        %3181 = vmatpush1.msra.mxu0 0.0
        %3182 = vmatprep.subr.mxu0 0.0
        %3183 = vmatpush1.msra.mxu0 0.0
        %3184 = vmatprep.subr.mxu0 0.0
        %3185 = vmatpush1.msra.mxu0 0.0
        %3186 = vmatprep.subr.mxu0 0.0
        %3187 = vmatpush1.msra.mxu0 0.0
        %3188 = vmatprep.subr.mxu0 0.0
        %3189 = vmatpush1.msra.mxu0 0.0
        %3190 = vmatprep.subr.mxu0 0.0
        %3191 = vmatpush1.msra.mxu0 0.0
        %3192 = vmatprep.subr.mxu0 0.0
        %3193 = vmatpush1.msra.mxu0 0.0
        %3194 = vmatprep.subr.mxu0 0.0
        %3195 = vmatpush1.msra.mxu0 0.0
        %3196 = vmatprep.subr.mxu0 0.0
        %3197 = vmatpush1.msra.mxu0 %v255
        %3198 = vmatprep.subr.mxu0 0.0
        %3199 = vmatpush1.msra.mxu0 %v254
        %3200 = vmatprep.subr.mxu0 0.0
        %3201 = vmatpush2.msra.mxu0 0.0
        %3202 = vmatprep.subr.mxu0 0.0
        %3203 = vmatpush2.msra.mxu0 0.0
        %3204 = vmatprep.subr.mxu0 0.0
        %3205 = vmatpush2.msra.mxu0 0.0
        %3206 = vmatprep.subr.mxu0 0.0
        %3207 = vmatpush2.msra.mxu0 0.0
        %3208 = vmatprep.subr.mxu0 0.0
        %3209 = vmatpush2.msra.mxu0 0.0
        %3210 = vmatprep.subr.mxu0 0.0
        %3211 = vmatpush2.msra.mxu0 0.0
        %3212 = vmatprep.subr.mxu0 0.0
        %3213 = vmatpush2.msra.mxu0 0.0
        %3214 = vmatprep.subr.mxu0 0.0
        %3215 = vmatpush2.msra.mxu0 0.0
        %3216 = vmatprep.subr.mxu0 0.0
        %3217 = vmatpush2.msra.mxu0 0.0
        %3218 = vmatprep.subr.mxu0 0.0
        %3219 = vmatpush2.msra.mxu0 0.0
        %3220 = vmatprep.subr.mxu0 0.0
        %3221 = vmatpush2.msra.mxu0 0.0
        %3222 = vmatprep.subr.mxu0 0.0
        %3223 = vmatpush2.msra.mxu0 0.0
        %3224 = vmatprep.subr.mxu0 0.0
        %3225 = vmatpush2.msra.mxu0 0.0
        %3226 = vmatprep.subr.mxu0 0.0
        %3227 = vmatpush2.msra.mxu0 0.0
        %3228 = vmatprep.subr.mxu0 0.0
        %3229 = vmatpush2.msra.mxu0 0.0
        %3230 = vmatprep.subr.mxu0 0.0
        %3231 = vmatpush2.msra.mxu0 0.0
        %3232 = vmatprep.mubr.f32.mxu0 0.0
        %3233 = vmatmul.mubr.f32.gmra.mxu0 %v3164
        %v3234 = vpop.f32.mrf.mxu0
        %v3235 = vadd.f32 0.0, %v3234
        %v3236 = vpop.f32.mrf.mxu0
        %3237 = vmatprep.mubr.f32.mxu0 0.0
        %3238 = vmatmul.mubr.f32.gmra.mxu0 %v3166
        %v3239 = vpop.f32.mrf.mxu0
        %v3240 = vadd.f32 0.0, %v3239
        %v3241 = vpop.f32.mrf.mxu0
        %3242 = vdwg.mxu0
        %v3245 = vcombine.high %v3235, %v3235
        %v3247 = vunpack.c.l.s4 1966171168
        %v3248 = vunpack.c.0.s8 %v3247
        %v3249 = vlaneseq
        %v3250 = vshrl.u32 %v3249, 7
        %v3251 = vsub.s32 %v3248, %v3250
        %v3252 = vrot.slane %v3235, %v3251
        %v3254 = vunpack.c.l.s4 1966171168
        %v3255 = vunpack.c.0.s8 %v3254
        %v3256 = vlaneseq
        %v3257 = vshrl.u32 %v3256, 7
        %v3258 = vsub.s32 %v3255, %v3257
        %v3259 = vrot.slane %v3245, %v3258
        %v3260 = vcombine.high %v3252, %v3252
        %v3261 = vcombine.high %v3259, %v3259
        %v3263 = vunpack.c.l.s4 1966171168
        %v3264 = vunpack.c.0.s8 %v3263
        %v3265 = vlaneseq
        %v3266 = vshrl.u32 %v3265, 7
        %v3267 = vsub.s32 %v3264, %v3266
        %v3268 = vrot.slane %v3252, %v3267
        %v3270 = vunpack.c.l.s4 1966171168
        %v3271 = vunpack.c.0.s8 %v3270
        %v3272 = vlaneseq
        %v3273 = vshrl.u32 %v3272, 7
        %v3274 = vsub.s32 %v3271, %v3273
        %v3275 = vrot.slane %v3259, %v3274
        %v3277 = vunpack.c.l.s4 1966171168
        %v3278 = vunpack.c.0.s8 %v3277
        %v3279 = vlaneseq
        %v3280 = vshrl.u32 %v3279, 7
        %v3281 = vsub.s32 %v3278, %v3280
        %v3282 = vrot.slane %v3260, %v3281
        %v3284 = vunpack.c.l.s4 1966171168
        %v3285 = vunpack.c.0.s8 %v3284
        %v3286 = vlaneseq
        %v3287 = vshrl.u32 %v3286, 7
        %v3288 = vsub.s32 %v3285, %v3287
        %v3289 = vrot.slane %v3261, %v3288
        %v3290 = vcombine.high %v3268, %v3268
        %v3291 = vcombine.high %v3275, %v3275
        %v3292 = vcombine.high %v3282, %v3282
        %v3293 = vcombine.high %v3289, %v3289
        %v3295 = vunpack.c.l.s4 1966171168
        %v3296 = vunpack.c.0.s8 %v3295
        %v3297 = vlaneseq
        %v3298 = vshrl.u32 %v3297, 7
        %v3299 = vsub.s32 %v3296, %v3298
        %v3300 = vrot.slane %v3240, %v3299
        %v3301 = vcombine.high %v3300, %v3300
        %v3303 = vunpack.c.l.s4 1966171168
        %v3304 = vunpack.c.0.s8 %v3303
        %v3305 = vlaneseq
        %v3306 = vshrl.u32 %v3305, 7
        %v3307 = vsub.s32 %v3304, %v3306
        %v3308 = vrot.slane %v3300, %v3307
        %v3310 = vunpack.c.l.s4 1966171168
        %v3311 = vunpack.c.0.s8 %v3310
        %v3312 = vlaneseq
        %v3313 = vshrl.u32 %v3312, 7
        %v3314 = vsub.s32 %v3311, %v3313
        %v3315 = vrot.slane %v3301, %v3314
        %v3316 = vcombine.high %v3308, %v3308
        %v3317 = vcombine.high %v3315, %v3315
        %3330 = vst.msk [vmem:[#allocation3 + $0xf] sm:$0x1] %vm543, %v3268
        %3331 = vst.msk [vmem:[#allocation3 + $0x1f] sm:$0x1] %vm543, %v3282
        %3332 = vst.msk [vmem:[#allocation3 + $0x2f] sm:$0x1] %vm543, %v3290
        %3333 = vst.msk [vmem:[#allocation3 + $0x3f] sm:$0x1] %vm543, %v3292
        %3334 = vst.msk [vmem:[#allocation3 + $0x4f] sm:$0x1] %vm543, %v3275
        %3335 = vst.msk [vmem:[#allocation3 + $0x5f] sm:$0x1] %vm543, %v3289
        %3336 = vst.msk [vmem:[#allocation3 + $0x6f] sm:$0x1] %vm543, %v3291
        %3337 = vst.msk [vmem:[#allocation3 + $0x7f] sm:$0x1] %vm543, %v3293
        %3338 = vst.msk [vmem:[#allocation3 + $0x8f] sm:$0x1] %vm543, %v3308
        %3339 = vst.msk [vmem:[#allocation3 + $0x9f] sm:$0x1] %vm543, %v3315
        %3340 = vst.msk [vmem:[#allocation3 + $0xaf] sm:$0x1] %vm543, %v3316
        %3341 = vst.msk [vmem:[#allocation3 + $0xbf] sm:$0x1] %vm543, %v3317
        %v3342 = vld [vmem:[#allocation3] sm:$0xff]
        %v3343 = vld [vmem:[#allocation3 + $0x8] sm:$0xff]
        %v3345 = vsel %vm374, %v250, 0
        %v3348 = vsel %vm374, %v251, 0
        %v3351 = vsel %vm374, %v252, 0
        %v3354 = vsel %vm374, %v253, 0
        %3356 = vmatprep.subr.mxu0 0.0
        %3357 = vmatpush1.msra.mxu0 0.0
        %3358 = vmatprep.subr.mxu0 0.0
        %3359 = vmatpush1.msra.mxu0 0.0
        %3360 = vmatprep.subr.mxu0 0.0
        %3361 = vmatpush1.msra.mxu0 0.0
        %3362 = vmatprep.subr.mxu0 0.0
        %3363 = vmatpush1.msra.mxu0 0.0
        %3364 = vmatprep.subr.mxu0 0.0
        %3365 = vmatpush1.msra.mxu0 0.0
        %3366 = vmatprep.subr.mxu0 0.0
        %3367 = vmatpush1.msra.mxu0 0.0
        %3368 = vmatprep.subr.mxu0 0.0
        %3369 = vmatpush1.msra.mxu0 0.0
        %3370 = vmatprep.subr.mxu0 0.0
        %3371 = vmatpush1.msra.mxu0 0.0
        %3372 = vmatprep.subr.mxu0 0.0
        %3373 = vmatpush1.msra.mxu0 0.0
        %3374 = vmatprep.subr.mxu0 0.0
        %3375 = vmatpush1.msra.mxu0 0.0
        %3376 = vmatprep.subr.mxu0 0.0
        %3377 = vmatpush1.msra.mxu0 0.0
        %3378 = vmatprep.subr.mxu0 0.0
        %3379 = vmatpush1.msra.mxu0 0.0
        %3380 = vmatprep.subr.mxu0 0.0
        %3381 = vmatpush1.msra.mxu0 0.0
        %3382 = vmatprep.subr.mxu0 0.0
        %3383 = vmatpush1.msra.mxu0 0.0
        %3384 = vmatprep.subr.mxu0 0.0
        %3385 = vmatpush1.msra.mxu0 %v3343
        %3386 = vmatprep.subr.mxu0 0.0
        %3387 = vmatpush1.msra.mxu0 %v3342
        %3388 = vmatprep.subr.mxu0 0.0
        %3389 = vmatpush2.msra.mxu0 0.0
        %3390 = vmatprep.subr.mxu0 0.0
        %3391 = vmatpush2.msra.mxu0 0.0
        %3392 = vmatprep.subr.mxu0 0.0
        %3393 = vmatpush2.msra.mxu0 0.0
        %3394 = vmatprep.subr.mxu0 0.0
        %3395 = vmatpush2.msra.mxu0 0.0
        %3396 = vmatprep.subr.mxu0 0.0
        %3397 = vmatpush2.msra.mxu0 0.0
        %3398 = vmatprep.subr.mxu0 0.0
        %3399 = vmatpush2.msra.mxu0 0.0
        %3400 = vmatprep.subr.mxu0 0.0
        %3401 = vmatpush2.msra.mxu0 0.0
        %3402 = vmatprep.subr.mxu0 0.0
        %3403 = vmatpush2.msra.mxu0 0.0
        %3404 = vmatprep.subr.mxu0 0.0
        %3405 = vmatpush2.msra.mxu0 0.0
        %3406 = vmatprep.subr.mxu0 0.0
        %3407 = vmatpush2.msra.mxu0 0.0
        %3408 = vmatprep.subr.mxu0 0.0
        %3409 = vmatpush2.msra.mxu0 0.0
        %3410 = vmatprep.subr.mxu0 0.0
        %3411 = vmatpush2.msra.mxu0 0.0
        %3412 = vmatprep.subr.mxu0 0.0
        %3413 = vmatpush2.msra.mxu0 0.0
        %3414 = vmatprep.subr.mxu0 0.0
        %3415 = vmatpush2.msra.mxu0 0.0
        %3416 = vmatprep.subr.mxu0 0.0
        %3417 = vmatpush2.msra.mxu0 0.0
        %3418 = vmatprep.subr.mxu0 0.0
        %3419 = vmatpush2.msra.mxu0 0.0
        %3420 = vmatprep.mubr.f32.mxu0 0.0
        %3421 = vmatmul.mubr.f32.gmra.mxu0 %v3345
        %v3422 = vpop.f32.mrf.mxu0
        %v3423 = vadd.f32 0.0, %v3422
        %v3424 = vpop.f32.mrf.mxu0
        %3425 = vmatprep.mubr.f32.mxu0 0.0
        %3426 = vmatmul.mubr.f32.gmra.mxu0 %v3348
        %v3427 = vpop.f32.mrf.mxu0
        %v3428 = vadd.f32 0.0, %v3427
        %v3429 = vpop.f32.mrf.mxu0
        %3430 = vmatprep.mubr.f32.mxu0 0.0
        %3431 = vmatmul.mubr.f32.gmra.mxu0 %v3351
        %v3432 = vpop.f32.mrf.mxu0
        %v3433 = vadd.f32 0.0, %v3432
        %v3434 = vpop.f32.mrf.mxu0
        %3435 = vmatprep.mubr.f32.mxu0 0.0
        %3436 = vmatmul.mubr.f32.gmra.mxu0 %v3354
        %v3437 = vpop.f32.mrf.mxu0
        %v3438 = vadd.f32 0.0, %v3437
        %v3439 = vpop.f32.mrf.mxu0
        %3440 = vdwg.mxu0
        %vm3441 = vcmask 261120
        %3442 = vst.msk [vmem:[#allocation4] sm:$0xff] %vm3441, %v3423
        %3443 = vst.msk [vmem:[#allocation4 + $0x8] sm:$0xff] %vm3441, %v3428
        %3444 = vst.msk [vmem:[#allocation4 + $0x10] sm:$0xff] %vm3441, %v3433
        %3445 = vst.msk [vmem:[#allocation4 + $0x18] sm:$0xff] %vm3441, %v3438
        %s3446 = scalar_lea.vmem [#allocation3], 16
        %v3447 = vld [vmem:[%s3446] sm:$0xff]
        %v3448 = vld [vmem:[%s3446 + $0x8] sm:$0xff]
        %3449 = vmatprep.subr.mxu0 0.0
        %3450 = vmatpush1.msra.mxu0 0.0
        %3451 = vmatprep.subr.mxu0 0.0
        %3452 = vmatpush1.msra.mxu0 0.0
        %3453 = vmatprep.subr.mxu0 0.0
        %3454 = vmatpush1.msra.mxu0 0.0
        %3455 = vmatprep.subr.mxu0 0.0
        %3456 = vmatpush1.msra.mxu0 0.0
        %3457 = vmatprep.subr.mxu0 0.0
        %3458 = vmatpush1.msra.mxu0 0.0
        %3459 = vmatprep.subr.mxu0 0.0
        %3460 = vmatpush1.msra.mxu0 0.0
        %3461 = vmatprep.subr.mxu0 0.0
        %3462 = vmatpush1.msra.mxu0 0.0
        %3463 = vmatprep.subr.mxu0 0.0
        %3464 = vmatpush1.msra.mxu0 0.0
        %3465 = vmatprep.subr.mxu0 0.0
        %3466 = vmatpush1.msra.mxu0 0.0
        %3467 = vmatprep.subr.mxu0 0.0
        %3468 = vmatpush1.msra.mxu0 0.0
        %3469 = vmatprep.subr.mxu0 0.0
        %3470 = vmatpush1.msra.mxu0 0.0
        %3471 = vmatprep.subr.mxu0 0.0
        %3472 = vmatpush1.msra.mxu0 0.0
        %3473 = vmatprep.subr.mxu0 0.0
        %3474 = vmatpush1.msra.mxu0 0.0
        %3475 = vmatprep.subr.mxu0 0.0
        %3476 = vmatpush1.msra.mxu0 0.0
        %3477 = vmatprep.subr.mxu0 0.0
        %3478 = vmatpush1.msra.mxu0 %v3448
        %3479 = vmatprep.subr.mxu0 0.0
        %3480 = vmatpush1.msra.mxu0 %v3447
        %3481 = vmatprep.subr.mxu0 0.0
        %3482 = vmatpush2.msra.mxu0 0.0
        %3483 = vmatprep.subr.mxu0 0.0
        %3484 = vmatpush2.msra.mxu0 0.0
        %3485 = vmatprep.subr.mxu0 0.0
        %3486 = vmatpush2.msra.mxu0 0.0
        %3487 = vmatprep.subr.mxu0 0.0
        %3488 = vmatpush2.msra.mxu0 0.0
        %3489 = vmatprep.subr.mxu0 0.0
        %3490 = vmatpush2.msra.mxu0 0.0
        %3491 = vmatprep.subr.mxu0 0.0
        %3492 = vmatpush2.msra.mxu0 0.0
        %3493 = vmatprep.subr.mxu0 0.0
        %3494 = vmatpush2.msra.mxu0 0.0
        %3495 = vmatprep.subr.mxu0 0.0
        %3496 = vmatpush2.msra.mxu0 0.0
        %3497 = vmatprep.subr.mxu0 0.0
        %3498 = vmatpush2.msra.mxu0 0.0
        %3499 = vmatprep.subr.mxu0 0.0
        %3500 = vmatpush2.msra.mxu0 0.0
        %3501 = vmatprep.subr.mxu0 0.0
        %3502 = vmatpush2.msra.mxu0 0.0
        %3503 = vmatprep.subr.mxu0 0.0
        %3504 = vmatpush2.msra.mxu0 0.0
        %3505 = vmatprep.subr.mxu0 0.0
        %3506 = vmatpush2.msra.mxu0 0.0
        %3507 = vmatprep.subr.mxu0 0.0
        %3508 = vmatpush2.msra.mxu0 0.0
        %3509 = vmatprep.subr.mxu0 0.0
        %3510 = vmatpush2.msra.mxu0 0.0
        %3511 = vmatprep.subr.mxu0 0.0
        %3512 = vmatpush2.msra.mxu0 0.0
        %3513 = vmatprep.mubr.f32.mxu0 0.0
        %3514 = vmatmul.mubr.f32.gmra.mxu0 %v3345
        %v3515 = vpop.f32.mrf.mxu0
        %v3516 = vadd.f32 0.0, %v3515
        %v3517 = vpop.f32.mrf.mxu0
        %3518 = vmatprep.mubr.f32.mxu0 0.0
        %3519 = vmatmul.mubr.f32.gmra.mxu0 %v3348
        %v3520 = vpop.f32.mrf.mxu0
        %v3521 = vadd.f32 0.0, %v3520
        %v3522 = vpop.f32.mrf.mxu0
        %3523 = vmatprep.mubr.f32.mxu0 0.0
        %3524 = vmatmul.mubr.f32.gmra.mxu0 %v3351
        %v3525 = vpop.f32.mrf.mxu0
        %v3526 = vadd.f32 0.0, %v3525
        %v3527 = vpop.f32.mrf.mxu0
        %3528 = vmatprep.mubr.f32.mxu0 0.0
        %3529 = vmatmul.mubr.f32.gmra.mxu0 %v3354
        %v3530 = vpop.f32.mrf.mxu0
        %v3531 = vadd.f32 0.0, %v3530
        %v3532 = vpop.f32.mrf.mxu0
        %3533 = vdwg.mxu0
        %s3534 = scalar_lea.vmem [#allocation4], 32
        %3535 = vst.msk [vmem:[%s3534] sm:$0xff] %vm3441, %v3516
        %3536 = vst.msk [vmem:[%s3534 + $0x8] sm:$0xff] %vm3441, %v3521
        %3537 = vst.msk [vmem:[%s3534 + $0x10] sm:$0xff] %vm3441, %v3526
        %3538 = vst.msk [vmem:[%s3534 + $0x18] sm:$0xff] %vm3441, %v3531
        %s3539 = scalar_lea.vmem [#allocation3], 32
        %v3540 = vld [vmem:[%s3539] sm:$0xff]
        %v3541 = vld [vmem:[%s3539 + $0x8] sm:$0xff]
        %3542 = vmatprep.subr.mxu0 0.0
        %3543 = vmatpush1.msra.mxu0 0.0
        %3544 = vmatprep.subr.mxu0 0.0
        %3545 = vmatpush1.msra.mxu0 0.0
        %3546 = vmatprep.subr.mxu0 0.0
        %3547 = vmatpush1.msra.mxu0 0.0
        %3548 = vmatprep.subr.mxu0 0.0
        %3549 = vmatpush1.msra.mxu0 0.0
        %3550 = vmatprep.subr.mxu0 0.0
        %3551 = vmatpush1.msra.mxu0 0.0
        %3552 = vmatprep.subr.mxu0 0.0
        %3553 = vmatpush1.msra.mxu0 0.0
        %3554 = vmatprep.subr.mxu0 0.0
        %3555 = vmatpush1.msra.mxu0 0.0
        %3556 = vmatprep.subr.mxu0 0.0
        %3557 = vmatpush1.msra.mxu0 0.0
        %3558 = vmatprep.subr.mxu0 0.0
        %3559 = vmatpush1.msra.mxu0 0.0
        %3560 = vmatprep.subr.mxu0 0.0
        %3561 = vmatpush1.msra.mxu0 0.0
        %3562 = vmatprep.subr.mxu0 0.0
        %3563 = vmatpush1.msra.mxu0 0.0
        %3564 = vmatprep.subr.mxu0 0.0
        %3565 = vmatpush1.msra.mxu0 0.0
        %3566 = vmatprep.subr.mxu0 0.0
        %3567 = vmatpush1.msra.mxu0 0.0
        %3568 = vmatprep.subr.mxu0 0.0
        %3569 = vmatpush1.msra.mxu0 0.0
        %3570 = vmatprep.subr.mxu0 0.0
        %3571 = vmatpush1.msra.mxu0 %v3541
        %3572 = vmatprep.subr.mxu0 0.0
        %3573 = vmatpush1.msra.mxu0 %v3540
        %3574 = vmatprep.subr.mxu0 0.0
        %3575 = vmatpush2.msra.mxu0 0.0
        %3576 = vmatprep.subr.mxu0 0.0
        %3577 = vmatpush2.msra.mxu0 0.0
        %3578 = vmatprep.subr.mxu0 0.0
        %3579 = vmatpush2.msra.mxu0 0.0
        %3580 = vmatprep.subr.mxu0 0.0
        %3581 = vmatpush2.msra.mxu0 0.0
        %3582 = vmatprep.subr.mxu0 0.0
        %3583 = vmatpush2.msra.mxu0 0.0
        %3584 = vmatprep.subr.mxu0 0.0
        %3585 = vmatpush2.msra.mxu0 0.0
        %3586 = vmatprep.subr.mxu0 0.0
        %3587 = vmatpush2.msra.mxu0 0.0
        %3588 = vmatprep.subr.mxu0 0.0
        %3589 = vmatpush2.msra.mxu0 0.0
        %3590 = vmatprep.subr.mxu0 0.0
        %3591 = vmatpush2.msra.mxu0 0.0
        %3592 = vmatprep.subr.mxu0 0.0
        %3593 = vmatpush2.msra.mxu0 0.0
        %3594 = vmatprep.subr.mxu0 0.0
        %3595 = vmatpush2.msra.mxu0 0.0
        %3596 = vmatprep.subr.mxu0 0.0
        %3597 = vmatpush2.msra.mxu0 0.0
        %3598 = vmatprep.subr.mxu0 0.0
        %3599 = vmatpush2.msra.mxu0 0.0
        %3600 = vmatprep.subr.mxu0 0.0
        %3601 = vmatpush2.msra.mxu0 0.0
        %3602 = vmatprep.subr.mxu0 0.0
        %3603 = vmatpush2.msra.mxu0 0.0
        %3604 = vmatprep.subr.mxu0 0.0
        %3605 = vmatpush2.msra.mxu0 0.0
        %3606 = vmatprep.mubr.f32.mxu0 0.0
        %3607 = vmatmul.mubr.f32.gmra.mxu0 %v3345
        %v3608 = vpop.f32.mrf.mxu0
        %v3609 = vadd.f32 0.0, %v3608
        %v3610 = vpop.f32.mrf.mxu0
        %3611 = vmatprep.mubr.f32.mxu0 0.0
        %3612 = vmatmul.mubr.f32.gmra.mxu0 %v3348
        %v3613 = vpop.f32.mrf.mxu0
        %v3614 = vadd.f32 0.0, %v3613
        %v3615 = vpop.f32.mrf.mxu0
        %3616 = vmatprep.mubr.f32.mxu0 0.0
        %3617 = vmatmul.mubr.f32.gmra.mxu0 %v3351
        %v3618 = vpop.f32.mrf.mxu0
        %v3619 = vadd.f32 0.0, %v3618
        %v3620 = vpop.f32.mrf.mxu0
        %3621 = vmatprep.mubr.f32.mxu0 0.0
        %3622 = vmatmul.mubr.f32.gmra.mxu0 %v3354
        %v3623 = vpop.f32.mrf.mxu0
        %v3624 = vadd.f32 0.0, %v3623
        %v3625 = vpop.f32.mrf.mxu0
        %3626 = vdwg.mxu0
        %s3627 = scalar_lea.vmem [#allocation4], 64
        %3628 = vst.msk [vmem:[%s3627] sm:$0xff] %vm3441, %v3609
        %3629 = vst.msk [vmem:[%s3627 + $0x8] sm:$0xff] %vm3441, %v3614
        %3630 = vst.msk [vmem:[%s3627 + $0x10] sm:$0xff] %vm3441, %v3619
        %3631 = vst.msk [vmem:[%s3627 + $0x18] sm:$0xff] %vm3441, %v3624
        %s3632 = scalar_lea.vmem [#allocation3], 48
        %v3633 = vld [vmem:[%s3632] sm:$0xff]
        %v3634 = vld [vmem:[%s3632 + $0x8] sm:$0xff]
        %3635 = vmatprep.subr.mxu0 0.0
        %3636 = vmatpush1.msra.mxu0 0.0
        %3637 = vmatprep.subr.mxu0 0.0
        %3638 = vmatpush1.msra.mxu0 0.0
        %3639 = vmatprep.subr.mxu0 0.0
        %3640 = vmatpush1.msra.mxu0 0.0
        %3641 = vmatprep.subr.mxu0 0.0
        %3642 = vmatpush1.msra.mxu0 0.0
        %3643 = vmatprep.subr.mxu0 0.0
        %3644 = vmatpush1.msra.mxu0 0.0
        %3645 = vmatprep.subr.mxu0 0.0
        %3646 = vmatpush1.msra.mxu0 0.0
        %3647 = vmatprep.subr.mxu0 0.0
        %3648 = vmatpush1.msra.mxu0 0.0
        %3649 = vmatprep.subr.mxu0 0.0
        %3650 = vmatpush1.msra.mxu0 0.0
        %3651 = vmatprep.subr.mxu0 0.0
        %3652 = vmatpush1.msra.mxu0 0.0
        %3653 = vmatprep.subr.mxu0 0.0
        %3654 = vmatpush1.msra.mxu0 0.0
        %3655 = vmatprep.subr.mxu0 0.0
        %3656 = vmatpush1.msra.mxu0 0.0
        %3657 = vmatprep.subr.mxu0 0.0
        %3658 = vmatpush1.msra.mxu0 0.0
        %3659 = vmatprep.subr.mxu0 0.0
        %3660 = vmatpush1.msra.mxu0 0.0
        %3661 = vmatprep.subr.mxu0 0.0
        %3662 = vmatpush1.msra.mxu0 0.0
        %3663 = vmatprep.subr.mxu0 0.0
        %3664 = vmatpush1.msra.mxu0 %v3634
        %3665 = vmatprep.subr.mxu0 0.0
        %3666 = vmatpush1.msra.mxu0 %v3633
        %3667 = vmatprep.subr.mxu0 0.0
        %3668 = vmatpush2.msra.mxu0 0.0
        %3669 = vmatprep.subr.mxu0 0.0
        %3670 = vmatpush2.msra.mxu0 0.0
        %3671 = vmatprep.subr.mxu0 0.0
        %3672 = vmatpush2.msra.mxu0 0.0
        %3673 = vmatprep.subr.mxu0 0.0
        %3674 = vmatpush2.msra.mxu0 0.0
        %3675 = vmatprep.subr.mxu0 0.0
        %3676 = vmatpush2.msra.mxu0 0.0
        %3677 = vmatprep.subr.mxu0 0.0
        %3678 = vmatpush2.msra.mxu0 0.0
        %3679 = vmatprep.subr.mxu0 0.0
        %3680 = vmatpush2.msra.mxu0 0.0
        %3681 = vmatprep.subr.mxu0 0.0
        %3682 = vmatpush2.msra.mxu0 0.0
        %3683 = vmatprep.subr.mxu0 0.0
        %3684 = vmatpush2.msra.mxu0 0.0
        %3685 = vmatprep.subr.mxu0 0.0
        %3686 = vmatpush2.msra.mxu0 0.0
        %3687 = vmatprep.subr.mxu0 0.0
        %3688 = vmatpush2.msra.mxu0 0.0
        %3689 = vmatprep.subr.mxu0 0.0
        %3690 = vmatpush2.msra.mxu0 0.0
        %3691 = vmatprep.subr.mxu0 0.0
        %3692 = vmatpush2.msra.mxu0 0.0
        %3693 = vmatprep.subr.mxu0 0.0
        %3694 = vmatpush2.msra.mxu0 0.0
        %3695 = vmatprep.subr.mxu0 0.0
        %3696 = vmatpush2.msra.mxu0 0.0
        %3697 = vmatprep.subr.mxu0 0.0
        %3698 = vmatpush2.msra.mxu0 0.0
        %3699 = vmatprep.mubr.f32.mxu0 0.0
        %3700 = vmatmul.mubr.f32.gmra.mxu0 %v3345
        %v3701 = vpop.f32.mrf.mxu0
        %v3702 = vadd.f32 0.0, %v3701
        %v3703 = vpop.f32.mrf.mxu0
        %3704 = vmatprep.mubr.f32.mxu0 0.0
        %3705 = vmatmul.mubr.f32.gmra.mxu0 %v3348
        %v3706 = vpop.f32.mrf.mxu0
        %v3707 = vadd.f32 0.0, %v3706
        %v3708 = vpop.f32.mrf.mxu0
        %3709 = vmatprep.mubr.f32.mxu0 0.0
        %3710 = vmatmul.mubr.f32.gmra.mxu0 %v3351
        %v3711 = vpop.f32.mrf.mxu0
        %v3712 = vadd.f32 0.0, %v3711
        %v3713 = vpop.f32.mrf.mxu0
        %3714 = vmatprep.mubr.f32.mxu0 0.0
        %3715 = vmatmul.mubr.f32.gmra.mxu0 %v3354
        %v3716 = vpop.f32.mrf.mxu0
        %v3717 = vadd.f32 0.0, %v3716
        %v3718 = vpop.f32.mrf.mxu0
        %3719 = vdwg.mxu0
        %s3720 = scalar_lea.vmem [#allocation4], 96
        %3721 = vst.msk [vmem:[%s3720] sm:$0xff] %vm3441, %v3702
        %3722 = vst.msk [vmem:[%s3720 + $0x8] sm:$0xff] %vm3441, %v3707
        %3723 = vst.msk [vmem:[%s3720 + $0x10] sm:$0xff] %vm3441, %v3712
        %3724 = vst.msk [vmem:[%s3720 + $0x18] sm:$0xff] %vm3441, %v3717
        %s3725 = scalar_lea.vmem [#allocation3], 64
        %v3726 = vld [vmem:[%s3725] sm:$0xff]
        %v3727 = vld [vmem:[%s3725 + $0x8] sm:$0xff]
        %3728 = vmatprep.subr.mxu0 0.0
        %3729 = vmatpush1.msra.mxu0 0.0
        %3730 = vmatprep.subr.mxu0 0.0
        %3731 = vmatpush1.msra.mxu0 0.0
        %3732 = vmatprep.subr.mxu0 0.0
        %3733 = vmatpush1.msra.mxu0 0.0
        %3734 = vmatprep.subr.mxu0 0.0
        %3735 = vmatpush1.msra.mxu0 0.0
        %3736 = vmatprep.subr.mxu0 0.0
        %3737 = vmatpush1.msra.mxu0 0.0
        %3738 = vmatprep.subr.mxu0 0.0
        %3739 = vmatpush1.msra.mxu0 0.0
        %3740 = vmatprep.subr.mxu0 0.0
        %3741 = vmatpush1.msra.mxu0 0.0
        %3742 = vmatprep.subr.mxu0 0.0
        %3743 = vmatpush1.msra.mxu0 0.0
        %3744 = vmatprep.subr.mxu0 0.0
        %3745 = vmatpush1.msra.mxu0 0.0
        %3746 = vmatprep.subr.mxu0 0.0
        %3747 = vmatpush1.msra.mxu0 0.0
        %3748 = vmatprep.subr.mxu0 0.0
        %3749 = vmatpush1.msra.mxu0 0.0
        %3750 = vmatprep.subr.mxu0 0.0
        %3751 = vmatpush1.msra.mxu0 0.0
        %3752 = vmatprep.subr.mxu0 0.0
        %3753 = vmatpush1.msra.mxu0 0.0
        %3754 = vmatprep.subr.mxu0 0.0
        %3755 = vmatpush1.msra.mxu0 0.0
        %3756 = vmatprep.subr.mxu0 0.0
        %3757 = vmatpush1.msra.mxu0 %v3727
        %3758 = vmatprep.subr.mxu0 0.0
        %3759 = vmatpush1.msra.mxu0 %v3726
        %3760 = vmatprep.subr.mxu0 0.0
        %3761 = vmatpush2.msra.mxu0 0.0
        %3762 = vmatprep.subr.mxu0 0.0
        %3763 = vmatpush2.msra.mxu0 0.0
        %3764 = vmatprep.subr.mxu0 0.0
        %3765 = vmatpush2.msra.mxu0 0.0
        %3766 = vmatprep.subr.mxu0 0.0
        %3767 = vmatpush2.msra.mxu0 0.0
        %3768 = vmatprep.subr.mxu0 0.0
        %3769 = vmatpush2.msra.mxu0 0.0
        %3770 = vmatprep.subr.mxu0 0.0
        %3771 = vmatpush2.msra.mxu0 0.0
        %3772 = vmatprep.subr.mxu0 0.0
        %3773 = vmatpush2.msra.mxu0 0.0
        %3774 = vmatprep.subr.mxu0 0.0
        %3775 = vmatpush2.msra.mxu0 0.0
        %3776 = vmatprep.subr.mxu0 0.0
        %3777 = vmatpush2.msra.mxu0 0.0
        %3778 = vmatprep.subr.mxu0 0.0
        %3779 = vmatpush2.msra.mxu0 0.0
        %3780 = vmatprep.subr.mxu0 0.0
        %3781 = vmatpush2.msra.mxu0 0.0
        %3782 = vmatprep.subr.mxu0 0.0
        %3783 = vmatpush2.msra.mxu0 0.0
        %3784 = vmatprep.subr.mxu0 0.0
        %3785 = vmatpush2.msra.mxu0 0.0
        %3786 = vmatprep.subr.mxu0 0.0
        %3787 = vmatpush2.msra.mxu0 0.0
        %3788 = vmatprep.subr.mxu0 0.0
        %3789 = vmatpush2.msra.mxu0 0.0
        %3790 = vmatprep.subr.mxu0 0.0
        %3791 = vmatpush2.msra.mxu0 0.0
        %3792 = vmatprep.mubr.f32.mxu0 0.0
        %3793 = vmatmul.mubr.f32.gmra.mxu0 %v3345
        %v3794 = vpop.f32.mrf.mxu0
        %v3795 = vadd.f32 0.0, %v3794
        %v3796 = vpop.f32.mrf.mxu0
        %3797 = vmatprep.mubr.f32.mxu0 0.0
        %3798 = vmatmul.mubr.f32.gmra.mxu0 %v3348
        %v3799 = vpop.f32.mrf.mxu0
        %v3800 = vadd.f32 0.0, %v3799
        %v3801 = vpop.f32.mrf.mxu0
        %3802 = vmatprep.mubr.f32.mxu0 0.0
        %3803 = vmatmul.mubr.f32.gmra.mxu0 %v3351
        %v3804 = vpop.f32.mrf.mxu0
        %v3805 = vadd.f32 0.0, %v3804
        %v3806 = vpop.f32.mrf.mxu0
        %3807 = vmatprep.mubr.f32.mxu0 0.0
        %3808 = vmatmul.mubr.f32.gmra.mxu0 %v3354
        %v3809 = vpop.f32.mrf.mxu0
        %v3810 = vadd.f32 0.0, %v3809
        %v3811 = vpop.f32.mrf.mxu0
        %3812 = vdwg.mxu0
        %s3813 = scalar_lea.vmem %s243, 128 [#allocation8]
        %3814 = vst.msk [vmem:[%s3813] sm:$0xff] %vm3441, %v3795
        %3815 = vst.msk [vmem:[%s3813 + $0x8] sm:$0xff] %vm3441, %v3800
        %3816 = vst.msk [vmem:[%s3813 + $0x10] sm:$0xff] %vm3441, %v3805
        %3817 = vst.msk [vmem:[%s3813 + $0x18] sm:$0xff] %vm3441, %v3810
        %s3818 = scalar_lea.vmem [#allocation3], 80
        %v3819 = vld [vmem:[%s3818] sm:$0xff]
        %v3820 = vld [vmem:[%s3818 + $0x8] sm:$0xff]
        %3821 = vmatprep.subr.mxu0 0.0
        %3822 = vmatpush1.msra.mxu0 0.0
        %3823 = vmatprep.subr.mxu0 0.0
        %3824 = vmatpush1.msra.mxu0 0.0
        %3825 = vmatprep.subr.mxu0 0.0
        %3826 = vmatpush1.msra.mxu0 0.0
        %3827 = vmatprep.subr.mxu0 0.0
        %3828 = vmatpush1.msra.mxu0 0.0
        %3829 = vmatprep.subr.mxu0 0.0
        %3830 = vmatpush1.msra.mxu0 0.0
        %3831 = vmatprep.subr.mxu0 0.0
        %3832 = vmatpush1.msra.mxu0 0.0
        %3833 = vmatprep.subr.mxu0 0.0
        %3834 = vmatpush1.msra.mxu0 0.0
        %3835 = vmatprep.subr.mxu0 0.0
        %3836 = vmatpush1.msra.mxu0 0.0
        %3837 = vmatprep.subr.mxu0 0.0
        %3838 = vmatpush1.msra.mxu0 0.0
        %3839 = vmatprep.subr.mxu0 0.0
        %3840 = vmatpush1.msra.mxu0 0.0
        %3841 = vmatprep.subr.mxu0 0.0
        %3842 = vmatpush1.msra.mxu0 0.0
        %3843 = vmatprep.subr.mxu0 0.0
        %3844 = vmatpush1.msra.mxu0 0.0
        %3845 = vmatprep.subr.mxu0 0.0
        %3846 = vmatpush1.msra.mxu0 0.0
        %3847 = vmatprep.subr.mxu0 0.0
        %3848 = vmatpush1.msra.mxu0 0.0
        %3849 = vmatprep.subr.mxu0 0.0
        %3850 = vmatpush1.msra.mxu0 %v3820
        %3851 = vmatprep.subr.mxu0 0.0
        %3852 = vmatpush1.msra.mxu0 %v3819
        %3853 = vmatprep.subr.mxu0 0.0
        %3854 = vmatpush2.msra.mxu0 0.0
        %3855 = vmatprep.subr.mxu0 0.0
        %3856 = vmatpush2.msra.mxu0 0.0
        %3857 = vmatprep.subr.mxu0 0.0
        %3858 = vmatpush2.msra.mxu0 0.0
        %3859 = vmatprep.subr.mxu0 0.0
        %3860 = vmatpush2.msra.mxu0 0.0
        %3861 = vmatprep.subr.mxu0 0.0
        %3862 = vmatpush2.msra.mxu0 0.0
        %3863 = vmatprep.subr.mxu0 0.0
        %3864 = vmatpush2.msra.mxu0 0.0
        %3865 = vmatprep.subr.mxu0 0.0
        %3866 = vmatpush2.msra.mxu0 0.0
        %3867 = vmatprep.subr.mxu0 0.0
        %3868 = vmatpush2.msra.mxu0 0.0
        %3869 = vmatprep.subr.mxu0 0.0
        %3870 = vmatpush2.msra.mxu0 0.0
        %3871 = vmatprep.subr.mxu0 0.0
        %3872 = vmatpush2.msra.mxu0 0.0
        %3873 = vmatprep.subr.mxu0 0.0
        %3874 = vmatpush2.msra.mxu0 0.0
        %3875 = vmatprep.subr.mxu0 0.0
        %3876 = vmatpush2.msra.mxu0 0.0
        %3877 = vmatprep.subr.mxu0 0.0
        %3878 = vmatpush2.msra.mxu0 0.0
        %3879 = vmatprep.subr.mxu0 0.0
        %3880 = vmatpush2.msra.mxu0 0.0
        %3881 = vmatprep.subr.mxu0 0.0
        %3882 = vmatpush2.msra.mxu0 0.0
        %3883 = vmatprep.subr.mxu0 0.0
        %3884 = vmatpush2.msra.mxu0 0.0
        %3885 = vmatprep.mubr.f32.mxu0 0.0
        %3886 = vmatmul.mubr.f32.gmra.mxu0 %v3345
        %v3887 = vpop.f32.mrf.mxu0
        %v3888 = vadd.f32 0.0, %v3887
        %v3889 = vpop.f32.mrf.mxu0
        %3890 = vmatprep.mubr.f32.mxu0 0.0
        %3891 = vmatmul.mubr.f32.gmra.mxu0 %v3348
        %v3892 = vpop.f32.mrf.mxu0
        %v3893 = vadd.f32 0.0, %v3892
        %v3894 = vpop.f32.mrf.mxu0
        %3895 = vmatprep.mubr.f32.mxu0 0.0
        %3896 = vmatmul.mubr.f32.gmra.mxu0 %v3351
        %v3897 = vpop.f32.mrf.mxu0
        %v3898 = vadd.f32 0.0, %v3897
        %v3899 = vpop.f32.mrf.mxu0
        %3900 = vmatprep.mubr.f32.mxu0 0.0
        %3901 = vmatmul.mubr.f32.gmra.mxu0 %v3354
        %v3902 = vpop.f32.mrf.mxu0
        %v3903 = vadd.f32 0.0, %v3902
        %v3904 = vpop.f32.mrf.mxu0
        %3905 = vdwg.mxu0
        %s3906 = scalar_lea.vmem %s243, 160 [#allocation8]
        %3907 = vst.msk [vmem:[%s3906] sm:$0xff] %vm3441, %v3888
        %3908 = vst.msk [vmem:[%s3906 + $0x8] sm:$0xff] %vm3441, %v3893
        %3909 = vst.msk [vmem:[%s3906 + $0x10] sm:$0xff] %vm3441, %v3898
        %3910 = vst.msk [vmem:[%s3906 + $0x18] sm:$0xff] %vm3441, %v3903
        %s3911 = scalar_lea.vmem [#allocation3], 96
        %v3912 = vld [vmem:[%s3911] sm:$0xff]
        %v3913 = vld [vmem:[%s3911 + $0x8] sm:$0xff]
        %3914 = vmatprep.subr.mxu0 0.0
        %3915 = vmatpush1.msra.mxu0 0.0
        %3916 = vmatprep.subr.mxu0 0.0
        %3917 = vmatpush1.msra.mxu0 0.0
        %3918 = vmatprep.subr.mxu0 0.0
        %3919 = vmatpush1.msra.mxu0 0.0
        %3920 = vmatprep.subr.mxu0 0.0
        %3921 = vmatpush1.msra.mxu0 0.0
        %3922 = vmatprep.subr.mxu0 0.0
        %3923 = vmatpush1.msra.mxu0 0.0
        %3924 = vmatprep.subr.mxu0 0.0
        %3925 = vmatpush1.msra.mxu0 0.0
        %3926 = vmatprep.subr.mxu0 0.0
        %3927 = vmatpush1.msra.mxu0 0.0
        %3928 = vmatprep.subr.mxu0 0.0
        %3929 = vmatpush1.msra.mxu0 0.0
        %3930 = vmatprep.subr.mxu0 0.0
        %3931 = vmatpush1.msra.mxu0 0.0
        %3932 = vmatprep.subr.mxu0 0.0
        %3933 = vmatpush1.msra.mxu0 0.0
        %3934 = vmatprep.subr.mxu0 0.0
        %3935 = vmatpush1.msra.mxu0 0.0
        %3936 = vmatprep.subr.mxu0 0.0
        %3937 = vmatpush1.msra.mxu0 0.0
        %3938 = vmatprep.subr.mxu0 0.0
        %3939 = vmatpush1.msra.mxu0 0.0
        %3940 = vmatprep.subr.mxu0 0.0
        %3941 = vmatpush1.msra.mxu0 0.0
        %3942 = vmatprep.subr.mxu0 0.0
        %3943 = vmatpush1.msra.mxu0 %v3913
        %3944 = vmatprep.subr.mxu0 0.0
        %3945 = vmatpush1.msra.mxu0 %v3912
        %3946 = vmatprep.subr.mxu0 0.0
        %3947 = vmatpush2.msra.mxu0 0.0
        %3948 = vmatprep.subr.mxu0 0.0
        %3949 = vmatpush2.msra.mxu0 0.0
        %3950 = vmatprep.subr.mxu0 0.0
        %3951 = vmatpush2.msra.mxu0 0.0
        %3952 = vmatprep.subr.mxu0 0.0
        %3953 = vmatpush2.msra.mxu0 0.0
        %3954 = vmatprep.subr.mxu0 0.0
        %3955 = vmatpush2.msra.mxu0 0.0
        %3956 = vmatprep.subr.mxu0 0.0
        %3957 = vmatpush2.msra.mxu0 0.0
        %3958 = vmatprep.subr.mxu0 0.0
        %3959 = vmatpush2.msra.mxu0 0.0
        %3960 = vmatprep.subr.mxu0 0.0
        %3961 = vmatpush2.msra.mxu0 0.0
        %3962 = vmatprep.subr.mxu0 0.0
        %3963 = vmatpush2.msra.mxu0 0.0
        %3964 = vmatprep.subr.mxu0 0.0
        %3965 = vmatpush2.msra.mxu0 0.0
        %3966 = vmatprep.subr.mxu0 0.0
        %3967 = vmatpush2.msra.mxu0 0.0
        %3968 = vmatprep.subr.mxu0 0.0
        %3969 = vmatpush2.msra.mxu0 0.0
        %3970 = vmatprep.subr.mxu0 0.0
        %3971 = vmatpush2.msra.mxu0 0.0
        %3972 = vmatprep.subr.mxu0 0.0
        %3973 = vmatpush2.msra.mxu0 0.0
        %3974 = vmatprep.subr.mxu0 0.0
        %3975 = vmatpush2.msra.mxu0 0.0
        %3976 = vmatprep.subr.mxu0 0.0
        %3977 = vmatpush2.msra.mxu0 0.0
        %3978 = vmatprep.mubr.f32.mxu0 0.0
        %3979 = vmatmul.mubr.f32.gmra.mxu0 %v3345
        %v3980 = vpop.f32.mrf.mxu0
        %v3981 = vadd.f32 0.0, %v3980
        %v3982 = vpop.f32.mrf.mxu0
        %3983 = vmatprep.mubr.f32.mxu0 0.0
        %3984 = vmatmul.mubr.f32.gmra.mxu0 %v3348
        %v3985 = vpop.f32.mrf.mxu0
        %v3986 = vadd.f32 0.0, %v3985
        %v3987 = vpop.f32.mrf.mxu0
        %3988 = vmatprep.mubr.f32.mxu0 0.0
        %3989 = vmatmul.mubr.f32.gmra.mxu0 %v3351
        %v3990 = vpop.f32.mrf.mxu0
        %v3991 = vadd.f32 0.0, %v3990
        %v3992 = vpop.f32.mrf.mxu0
        %3993 = vmatprep.mubr.f32.mxu0 0.0
        %3994 = vmatmul.mubr.f32.gmra.mxu0 %v3354
        %v3995 = vpop.f32.mrf.mxu0
        %v3996 = vadd.f32 0.0, %v3995
        %v3997 = vpop.f32.mrf.mxu0
        %3998 = vdwg.mxu0
        %s3999 = scalar_lea.vmem %s243, 192 [#allocation8]
        %4000 = vst.msk [vmem:[%s3999] sm:$0xff] %vm3441, %v3981
        %4001 = vst.msk [vmem:[%s3999 + $0x8] sm:$0xff] %vm3441, %v3986
        %4002 = vst.msk [vmem:[%s3999 + $0x10] sm:$0xff] %vm3441, %v3991
        %4003 = vst.msk [vmem:[%s3999 + $0x18] sm:$0xff] %vm3441, %v3996
        %s4004 = scalar_lea.vmem [#allocation3], 112
        %v4005 = vld [vmem:[%s4004] sm:$0xff]
        %v4006 = vld [vmem:[%s4004 + $0x8] sm:$0xff]
        %4007 = vmatprep.subr.mxu0 0.0
        %4008 = vmatpush1.msra.mxu0 0.0
        %4009 = vmatprep.subr.mxu0 0.0
        %4010 = vmatpush1.msra.mxu0 0.0
        %4011 = vmatprep.subr.mxu0 0.0
        %4012 = vmatpush1.msra.mxu0 0.0
        %4013 = vmatprep.subr.mxu0 0.0
        %4014 = vmatpush1.msra.mxu0 0.0
        %4015 = vmatprep.subr.mxu0 0.0
        %4016 = vmatpush1.msra.mxu0 0.0
        %4017 = vmatprep.subr.mxu0 0.0
        %4018 = vmatpush1.msra.mxu0 0.0
        %4019 = vmatprep.subr.mxu0 0.0
        %4020 = vmatpush1.msra.mxu0 0.0
        %4021 = vmatprep.subr.mxu0 0.0
        %4022 = vmatpush1.msra.mxu0 0.0
        %4023 = vmatprep.subr.mxu0 0.0
        %4024 = vmatpush1.msra.mxu0 0.0
        %4025 = vmatprep.subr.mxu0 0.0
        %4026 = vmatpush1.msra.mxu0 0.0
        %4027 = vmatprep.subr.mxu0 0.0
        %4028 = vmatpush1.msra.mxu0 0.0
        %4029 = vmatprep.subr.mxu0 0.0
        %4030 = vmatpush1.msra.mxu0 0.0
        %4031 = vmatprep.subr.mxu0 0.0
        %4032 = vmatpush1.msra.mxu0 0.0
        %4033 = vmatprep.subr.mxu0 0.0
        %4034 = vmatpush1.msra.mxu0 0.0
        %4035 = vmatprep.subr.mxu0 0.0
        %4036 = vmatpush1.msra.mxu0 %v4006
        %4037 = vmatprep.subr.mxu0 0.0
        %4038 = vmatpush1.msra.mxu0 %v4005
        %4039 = vmatprep.subr.mxu0 0.0
        %4040 = vmatpush2.msra.mxu0 0.0
        %4041 = vmatprep.subr.mxu0 0.0
        %4042 = vmatpush2.msra.mxu0 0.0
        %4043 = vmatprep.subr.mxu0 0.0
        %4044 = vmatpush2.msra.mxu0 0.0
        %4045 = vmatprep.subr.mxu0 0.0
        %4046 = vmatpush2.msra.mxu0 0.0
        %4047 = vmatprep.subr.mxu0 0.0
        %4048 = vmatpush2.msra.mxu0 0.0
        %4049 = vmatprep.subr.mxu0 0.0
        %4050 = vmatpush2.msra.mxu0 0.0
        %4051 = vmatprep.subr.mxu0 0.0
        %4052 = vmatpush2.msra.mxu0 0.0
        %4053 = vmatprep.subr.mxu0 0.0
        %4054 = vmatpush2.msra.mxu0 0.0
        %4055 = vmatprep.subr.mxu0 0.0
        %4056 = vmatpush2.msra.mxu0 0.0
        %4057 = vmatprep.subr.mxu0 0.0
        %4058 = vmatpush2.msra.mxu0 0.0
        %4059 = vmatprep.subr.mxu0 0.0
        %4060 = vmatpush2.msra.mxu0 0.0
        %4061 = vmatprep.subr.mxu0 0.0
        %4062 = vmatpush2.msra.mxu0 0.0
        %4063 = vmatprep.subr.mxu0 0.0
        %4064 = vmatpush2.msra.mxu0 0.0
        %4065 = vmatprep.subr.mxu0 0.0
        %4066 = vmatpush2.msra.mxu0 0.0
        %4067 = vmatprep.subr.mxu0 0.0
        %4068 = vmatpush2.msra.mxu0 0.0
        %4069 = vmatprep.subr.mxu0 0.0
        %4070 = vmatpush2.msra.mxu0 0.0
        %4071 = vmatprep.mubr.f32.mxu0 0.0
        %4072 = vmatmul.mubr.f32.gmra.mxu0 %v3345
        %v4073 = vpop.f32.mrf.mxu0
        %v4074 = vadd.f32 0.0, %v4073
        %v4075 = vpop.f32.mrf.mxu0
        %4076 = vmatprep.mubr.f32.mxu0 0.0
        %4077 = vmatmul.mubr.f32.gmra.mxu0 %v3348
        %v4078 = vpop.f32.mrf.mxu0
        %v4079 = vadd.f32 0.0, %v4078
        %v4080 = vpop.f32.mrf.mxu0
        %4081 = vmatprep.mubr.f32.mxu0 0.0
        %4082 = vmatmul.mubr.f32.gmra.mxu0 %v3351
        %v4083 = vpop.f32.mrf.mxu0
        %v4084 = vadd.f32 0.0, %v4083
        %v4085 = vpop.f32.mrf.mxu0
        %4086 = vmatprep.mubr.f32.mxu0 0.0
        %4087 = vmatmul.mubr.f32.gmra.mxu0 %v3354
        %v4088 = vpop.f32.mrf.mxu0
        %v4089 = vadd.f32 0.0, %v4088
        %v4090 = vpop.f32.mrf.mxu0
        %4091 = vdwg.mxu0
        %s4092 = scalar_lea.vmem %s243, 224 [#allocation8]
        %4093 = vst.msk [vmem:[%s4092] sm:$0xff] %vm3441, %v4074
        %4094 = vst.msk [vmem:[%s4092 + $0x8] sm:$0xff] %vm3441, %v4079
        %4095 = vst.msk [vmem:[%s4092 + $0x10] sm:$0xff] %vm3441, %v4084
        %4096 = vst.msk [vmem:[%s4092 + $0x18] sm:$0xff] %vm3441, %v4089
        %s4097 = scalar_lea.vmem [#allocation3], 128
        %v4098 = vld [vmem:[%s4097] sm:$0xff]
        %v4099 = vld [vmem:[%s4097 + $0x8] sm:$0xff]
        %4100 = vmatprep.subr.mxu0 0.0
        %4101 = vmatpush1.msra.mxu0 0.0
        %4102 = vmatprep.subr.mxu0 0.0
        %4103 = vmatpush1.msra.mxu0 0.0
        %4104 = vmatprep.subr.mxu0 0.0
        %4105 = vmatpush1.msra.mxu0 0.0
        %4106 = vmatprep.subr.mxu0 0.0
        %4107 = vmatpush1.msra.mxu0 0.0
        %4108 = vmatprep.subr.mxu0 0.0
        %4109 = vmatpush1.msra.mxu0 0.0
        %4110 = vmatprep.subr.mxu0 0.0
        %4111 = vmatpush1.msra.mxu0 0.0
        %4112 = vmatprep.subr.mxu0 0.0
        %4113 = vmatpush1.msra.mxu0 0.0
        %4114 = vmatprep.subr.mxu0 0.0
        %4115 = vmatpush1.msra.mxu0 0.0
        %4116 = vmatprep.subr.mxu0 0.0
        %4117 = vmatpush1.msra.mxu0 0.0
        %4118 = vmatprep.subr.mxu0 0.0
        %4119 = vmatpush1.msra.mxu0 0.0
        %4120 = vmatprep.subr.mxu0 0.0
        %4121 = vmatpush1.msra.mxu0 0.0
        %4122 = vmatprep.subr.mxu0 0.0
        %4123 = vmatpush1.msra.mxu0 0.0
        %4124 = vmatprep.subr.mxu0 0.0
        %4125 = vmatpush1.msra.mxu0 0.0
        %4126 = vmatprep.subr.mxu0 0.0
        %4127 = vmatpush1.msra.mxu0 0.0
        %4128 = vmatprep.subr.mxu0 0.0
        %4129 = vmatpush1.msra.mxu0 %v4099
        %4130 = vmatprep.subr.mxu0 0.0
        %4131 = vmatpush1.msra.mxu0 %v4098
        %4132 = vmatprep.subr.mxu0 0.0
        %4133 = vmatpush2.msra.mxu0 0.0
        %4134 = vmatprep.subr.mxu0 0.0
        %4135 = vmatpush2.msra.mxu0 0.0
        %4136 = vmatprep.subr.mxu0 0.0
        %4137 = vmatpush2.msra.mxu0 0.0
        %4138 = vmatprep.subr.mxu0 0.0
        %4139 = vmatpush2.msra.mxu0 0.0
        %4140 = vmatprep.subr.mxu0 0.0
        %4141 = vmatpush2.msra.mxu0 0.0
        %4142 = vmatprep.subr.mxu0 0.0
        %4143 = vmatpush2.msra.mxu0 0.0
        %4144 = vmatprep.subr.mxu0 0.0
        %4145 = vmatpush2.msra.mxu0 0.0
        %4146 = vmatprep.subr.mxu0 0.0
        %4147 = vmatpush2.msra.mxu0 0.0
        %4148 = vmatprep.subr.mxu0 0.0
        %4149 = vmatpush2.msra.mxu0 0.0
        %4150 = vmatprep.subr.mxu0 0.0
        %4151 = vmatpush2.msra.mxu0 0.0
        %4152 = vmatprep.subr.mxu0 0.0
        %4153 = vmatpush2.msra.mxu0 0.0
        %4154 = vmatprep.subr.mxu0 0.0
        %4155 = vmatpush2.msra.mxu0 0.0
        %4156 = vmatprep.subr.mxu0 0.0
        %4157 = vmatpush2.msra.mxu0 0.0
        %4158 = vmatprep.subr.mxu0 0.0
        %4159 = vmatpush2.msra.mxu0 0.0
        %4160 = vmatprep.subr.mxu0 0.0
        %4161 = vmatpush2.msra.mxu0 0.0
        %4162 = vmatprep.subr.mxu0 0.0
        %4163 = vmatpush2.msra.mxu0 0.0
        %4164 = vmatprep.mubr.f32.mxu0 0.0
        %4165 = vmatmul.mubr.f32.gmra.mxu0 %v3345
        %v4166 = vpop.f32.mrf.mxu0
        %v4167 = vadd.f32 0.0, %v4166
        %v4168 = vpop.f32.mrf.mxu0
        %4169 = vmatprep.mubr.f32.mxu0 0.0
        %4170 = vmatmul.mubr.f32.gmra.mxu0 %v3348
        %v4171 = vpop.f32.mrf.mxu0
        %v4172 = vadd.f32 0.0, %v4171
        %v4173 = vpop.f32.mrf.mxu0
        %4174 = vmatprep.mubr.f32.mxu0 0.0
        %4175 = vmatmul.mubr.f32.gmra.mxu0 %v3351
        %v4176 = vpop.f32.mrf.mxu0
        %v4177 = vadd.f32 0.0, %v4176
        %v4178 = vpop.f32.mrf.mxu0
        %4179 = vmatprep.mubr.f32.mxu0 0.0
        %4180 = vmatmul.mubr.f32.gmra.mxu0 %v3354
        %v4181 = vpop.f32.mrf.mxu0
        %v4182 = vadd.f32 0.0, %v4181
        %v4183 = vpop.f32.mrf.mxu0
        %4184 = vdwg.mxu0
        %v4185 = vmul.f32 %v4167, 1.442695
        %v4186 = vpow.pop %v4185
        %v4187 = vmul.f32 %v4172, 1.442695
        %v4188 = vpow.pop %v4187
        %v4189 = vmul.f32 %v4177, 1.442695
        %v4190 = vpow.pop %v4189
        %v4191 = vmul.f32 %v4182, 1.442695
        %v4192 = vpow.pop %v4191
        %s4193 = scalar_lea.vmem %s243, 256 [#allocation8]
        %4194 = vst.msk [vmem:[%s4193] sm:$0xff] %vm3441, %v4186
        %4195 = vst.msk [vmem:[%s4193 + $0x8] sm:$0xff] %vm3441, %v4188
        %4196 = vst.msk [vmem:[%s4193 + $0x10] sm:$0xff] %vm3441, %v4190
        %4197 = vst.msk [vmem:[%s4193 + $0x18] sm:$0xff] %vm3441, %v4192
        %s4198 = scalar_lea.vmem [#allocation3], 144
        %v4199 = vld [vmem:[%s4198] sm:$0xff]
        %v4200 = vld [vmem:[%s4198 + $0x8] sm:$0xff]
        %4201 = vmatprep.subr.mxu0 0.0
        %4202 = vmatpush1.msra.mxu0 0.0
        %4203 = vmatprep.subr.mxu0 0.0
        %4204 = vmatpush1.msra.mxu0 0.0
        %4205 = vmatprep.subr.mxu0 0.0
        %4206 = vmatpush1.msra.mxu0 0.0
        %4207 = vmatprep.subr.mxu0 0.0
        %4208 = vmatpush1.msra.mxu0 0.0
        %4209 = vmatprep.subr.mxu0 0.0
        %4210 = vmatpush1.msra.mxu0 0.0
        %4211 = vmatprep.subr.mxu0 0.0
        %4212 = vmatpush1.msra.mxu0 0.0
        %4213 = vmatprep.subr.mxu0 0.0
        %4214 = vmatpush1.msra.mxu0 0.0
        %4215 = vmatprep.subr.mxu0 0.0
        %4216 = vmatpush1.msra.mxu0 0.0
        %4217 = vmatprep.subr.mxu0 0.0
        %4218 = vmatpush1.msra.mxu0 0.0
        %4219 = vmatprep.subr.mxu0 0.0
        %4220 = vmatpush1.msra.mxu0 0.0
        %4221 = vmatprep.subr.mxu0 0.0
        %4222 = vmatpush1.msra.mxu0 0.0
        %4223 = vmatprep.subr.mxu0 0.0
        %4224 = vmatpush1.msra.mxu0 0.0
        %4225 = vmatprep.subr.mxu0 0.0
        %4226 = vmatpush1.msra.mxu0 0.0
        %4227 = vmatprep.subr.mxu0 0.0
        %4228 = vmatpush1.msra.mxu0 0.0
        %4229 = vmatprep.subr.mxu0 0.0
        %4230 = vmatpush1.msra.mxu0 %v4200
        %4231 = vmatprep.subr.mxu0 0.0
        %4232 = vmatpush1.msra.mxu0 %v4199
        %4233 = vmatprep.subr.mxu0 0.0
        %4234 = vmatpush2.msra.mxu0 0.0
        %4235 = vmatprep.subr.mxu0 0.0
        %4236 = vmatpush2.msra.mxu0 0.0
        %4237 = vmatprep.subr.mxu0 0.0
        %4238 = vmatpush2.msra.mxu0 0.0
        %4239 = vmatprep.subr.mxu0 0.0
        %4240 = vmatpush2.msra.mxu0 0.0
        %4241 = vmatprep.subr.mxu0 0.0
        %4242 = vmatpush2.msra.mxu0 0.0
        %4243 = vmatprep.subr.mxu0 0.0
        %4244 = vmatpush2.msra.mxu0 0.0
        %4245 = vmatprep.subr.mxu0 0.0
        %4246 = vmatpush2.msra.mxu0 0.0
        %4247 = vmatprep.subr.mxu0 0.0
        %4248 = vmatpush2.msra.mxu0 0.0
        %4249 = vmatprep.subr.mxu0 0.0
        %4250 = vmatpush2.msra.mxu0 0.0
        %4251 = vmatprep.subr.mxu0 0.0
        %4252 = vmatpush2.msra.mxu0 0.0
        %4253 = vmatprep.subr.mxu0 0.0
        %4254 = vmatpush2.msra.mxu0 0.0
        %4255 = vmatprep.subr.mxu0 0.0
        %4256 = vmatpush2.msra.mxu0 0.0
        %4257 = vmatprep.subr.mxu0 0.0
        %4258 = vmatpush2.msra.mxu0 0.0
        %4259 = vmatprep.subr.mxu0 0.0
        %4260 = vmatpush2.msra.mxu0 0.0
        %4261 = vmatprep.subr.mxu0 0.0
        %4262 = vmatpush2.msra.mxu0 0.0
        %4263 = vmatprep.subr.mxu0 0.0
        %4264 = vmatpush2.msra.mxu0 0.0
        %4265 = vmatprep.mubr.f32.mxu0 0.0
        %4266 = vmatmul.mubr.f32.gmra.mxu0 %v3345
        %v4267 = vpop.f32.mrf.mxu0
        %v4268 = vadd.f32 0.0, %v4267
        %v4269 = vpop.f32.mrf.mxu0
        %4270 = vmatprep.mubr.f32.mxu0 0.0
        %4271 = vmatmul.mubr.f32.gmra.mxu0 %v3348
        %v4272 = vpop.f32.mrf.mxu0
        %v4273 = vadd.f32 0.0, %v4272
        %v4274 = vpop.f32.mrf.mxu0
        %4275 = vmatprep.mubr.f32.mxu0 0.0
        %4276 = vmatmul.mubr.f32.gmra.mxu0 %v3351
        %v4277 = vpop.f32.mrf.mxu0
        %v4278 = vadd.f32 0.0, %v4277
        %v4279 = vpop.f32.mrf.mxu0
        %4280 = vmatprep.mubr.f32.mxu0 0.0
        %4281 = vmatmul.mubr.f32.gmra.mxu0 %v3354
        %v4282 = vpop.f32.mrf.mxu0
        %v4283 = vadd.f32 0.0, %v4282
        %v4284 = vpop.f32.mrf.mxu0
        %4285 = vdwg.mxu0
        %v4286 = vmul.f32 %v4268, 1.442695
        %v4287 = vpow.pop %v4286
        %v4288 = vmul.f32 %v4273, 1.442695
        %v4289 = vpow.pop %v4288
        %v4290 = vmul.f32 %v4278, 1.442695
        %v4291 = vpow.pop %v4290
        %v4292 = vmul.f32 %v4283, 1.442695
        %v4293 = vpow.pop %v4292
        %s4294 = scalar_lea.vmem %s243, 288 [#allocation8]
        %4295 = vst.msk [vmem:[%s4294] sm:$0xff] %vm3441, %v4287
        %4296 = vst.msk [vmem:[%s4294 + $0x8] sm:$0xff] %vm3441, %v4289
        %4297 = vst.msk [vmem:[%s4294 + $0x10] sm:$0xff] %vm3441, %v4291
        %4298 = vst.msk [vmem:[%s4294 + $0x18] sm:$0xff] %vm3441, %v4293
        %s4299 = scalar_lea.vmem [#allocation3], 160
        %v4300 = vld [vmem:[%s4299] sm:$0xff]
        %v4301 = vld [vmem:[%s4299 + $0x8] sm:$0xff]
        %4302 = vmatprep.subr.mxu0 0.0
        %4303 = vmatpush1.msra.mxu0 0.0
        %4304 = vmatprep.subr.mxu0 0.0
        %4305 = vmatpush1.msra.mxu0 0.0
        %4306 = vmatprep.subr.mxu0 0.0
        %4307 = vmatpush1.msra.mxu0 0.0
        %4308 = vmatprep.subr.mxu0 0.0
        %4309 = vmatpush1.msra.mxu0 0.0
        %4310 = vmatprep.subr.mxu0 0.0
        %4311 = vmatpush1.msra.mxu0 0.0
        %4312 = vmatprep.subr.mxu0 0.0
        %4313 = vmatpush1.msra.mxu0 0.0
        %4314 = vmatprep.subr.mxu0 0.0
        %4315 = vmatpush1.msra.mxu0 0.0
        %4316 = vmatprep.subr.mxu0 0.0
        %4317 = vmatpush1.msra.mxu0 0.0
        %4318 = vmatprep.subr.mxu0 0.0
        %4319 = vmatpush1.msra.mxu0 0.0
        %4320 = vmatprep.subr.mxu0 0.0
        %4321 = vmatpush1.msra.mxu0 0.0
        %4322 = vmatprep.subr.mxu0 0.0
        %4323 = vmatpush1.msra.mxu0 0.0
        %4324 = vmatprep.subr.mxu0 0.0
        %4325 = vmatpush1.msra.mxu0 0.0
        %4326 = vmatprep.subr.mxu0 0.0
        %4327 = vmatpush1.msra.mxu0 0.0
        %4328 = vmatprep.subr.mxu0 0.0
        %4329 = vmatpush1.msra.mxu0 0.0
        %4330 = vmatprep.subr.mxu0 0.0
        %4331 = vmatpush1.msra.mxu0 %v4301
        %4332 = vmatprep.subr.mxu0 0.0
        %4333 = vmatpush1.msra.mxu0 %v4300
        %4334 = vmatprep.subr.mxu0 0.0
        %4335 = vmatpush2.msra.mxu0 0.0
        %4336 = vmatprep.subr.mxu0 0.0
        %4337 = vmatpush2.msra.mxu0 0.0
        %4338 = vmatprep.subr.mxu0 0.0
        %4339 = vmatpush2.msra.mxu0 0.0
        %4340 = vmatprep.subr.mxu0 0.0
        %4341 = vmatpush2.msra.mxu0 0.0
        %4342 = vmatprep.subr.mxu0 0.0
        %4343 = vmatpush2.msra.mxu0 0.0
        %4344 = vmatprep.subr.mxu0 0.0
        %4345 = vmatpush2.msra.mxu0 0.0
        %4346 = vmatprep.subr.mxu0 0.0
        %4347 = vmatpush2.msra.mxu0 0.0
        %4348 = vmatprep.subr.mxu0 0.0
        %4349 = vmatpush2.msra.mxu0 0.0
        %4350 = vmatprep.subr.mxu0 0.0
        %4351 = vmatpush2.msra.mxu0 0.0
        %4352 = vmatprep.subr.mxu0 0.0
        %4353 = vmatpush2.msra.mxu0 0.0
        %4354 = vmatprep.subr.mxu0 0.0
        %4355 = vmatpush2.msra.mxu0 0.0
        %4356 = vmatprep.subr.mxu0 0.0
        %4357 = vmatpush2.msra.mxu0 0.0
        %4358 = vmatprep.subr.mxu0 0.0
        %4359 = vmatpush2.msra.mxu0 0.0
        %4360 = vmatprep.subr.mxu0 0.0
        %4361 = vmatpush2.msra.mxu0 0.0
        %4362 = vmatprep.subr.mxu0 0.0
        %4363 = vmatpush2.msra.mxu0 0.0
        %4364 = vmatprep.subr.mxu0 0.0
        %4365 = vmatpush2.msra.mxu0 0.0
        %4366 = vmatprep.mubr.f32.mxu0 0.0
        %4367 = vmatmul.mubr.f32.gmra.mxu0 %v3345
        %v4368 = vpop.f32.mrf.mxu0
        %v4369 = vadd.f32 0.0, %v4368
        %v4370 = vpop.f32.mrf.mxu0
        %4371 = vmatprep.mubr.f32.mxu0 0.0
        %4372 = vmatmul.mubr.f32.gmra.mxu0 %v3348
        %v4373 = vpop.f32.mrf.mxu0
        %v4374 = vadd.f32 0.0, %v4373
        %v4375 = vpop.f32.mrf.mxu0
        %4376 = vmatprep.mubr.f32.mxu0 0.0
        %4377 = vmatmul.mubr.f32.gmra.mxu0 %v3351
        %v4378 = vpop.f32.mrf.mxu0
        %v4379 = vadd.f32 0.0, %v4378
        %v4380 = vpop.f32.mrf.mxu0
        %4381 = vmatprep.mubr.f32.mxu0 0.0
        %4382 = vmatmul.mubr.f32.gmra.mxu0 %v3354
        %v4383 = vpop.f32.mrf.mxu0
        %v4384 = vadd.f32 0.0, %v4383
        %v4385 = vpop.f32.mrf.mxu0
        %4386 = vdwg.mxu0
        %v4387 = vmul.f32 %v4369, 1.442695
        %v4388 = vpow.pop %v4387
        %v4389 = vmul.f32 %v4374, 1.442695
        %v4390 = vpow.pop %v4389
        %v4391 = vmul.f32 %v4379, 1.442695
        %v4392 = vpow.pop %v4391
        %v4393 = vmul.f32 %v4384, 1.442695
        %v4394 = vpow.pop %v4393
        %s4395 = scalar_lea.vmem %s243, 320 [#allocation8]
        %4396 = vst.msk [vmem:[%s4395] sm:$0xff] %vm3441, %v4388
        %4397 = vst.msk [vmem:[%s4395 + $0x8] sm:$0xff] %vm3441, %v4390
        %4398 = vst.msk [vmem:[%s4395 + $0x10] sm:$0xff] %vm3441, %v4392
        %4399 = vst.msk [vmem:[%s4395 + $0x18] sm:$0xff] %vm3441, %v4394
        %s4400 = scalar_lea.vmem [#allocation3], 176
        %v4401 = vld [vmem:[%s4400] sm:$0xff]
        %v4402 = vld [vmem:[%s4400 + $0x8] sm:$0xff]
        %4403 = vmatprep.subr.mxu0 0.0
        %4404 = vmatpush1.msra.mxu0 0.0
        %4405 = vmatprep.subr.mxu0 0.0
        %4406 = vmatpush1.msra.mxu0 0.0
        %4407 = vmatprep.subr.mxu0 0.0
        %4408 = vmatpush1.msra.mxu0 0.0
        %4409 = vmatprep.subr.mxu0 0.0
        %4410 = vmatpush1.msra.mxu0 0.0
        %4411 = vmatprep.subr.mxu0 0.0
        %4412 = vmatpush1.msra.mxu0 0.0
        %4413 = vmatprep.subr.mxu0 0.0
        %4414 = vmatpush1.msra.mxu0 0.0
        %4415 = vmatprep.subr.mxu0 0.0
        %4416 = vmatpush1.msra.mxu0 0.0
        %4417 = vmatprep.subr.mxu0 0.0
        %4418 = vmatpush1.msra.mxu0 0.0
        %4419 = vmatprep.subr.mxu0 0.0
        %4420 = vmatpush1.msra.mxu0 0.0
        %4421 = vmatprep.subr.mxu0 0.0
        %4422 = vmatpush1.msra.mxu0 0.0
        %4423 = vmatprep.subr.mxu0 0.0
        %4424 = vmatpush1.msra.mxu0 0.0
        %4425 = vmatprep.subr.mxu0 0.0
        %4426 = vmatpush1.msra.mxu0 0.0
        %4427 = vmatprep.subr.mxu0 0.0
        %4428 = vmatpush1.msra.mxu0 0.0
        %4429 = vmatprep.subr.mxu0 0.0
        %4430 = vmatpush1.msra.mxu0 0.0
        %4431 = vmatprep.subr.mxu0 0.0
        %4432 = vmatpush1.msra.mxu0 %v4402
        %4433 = vmatprep.subr.mxu0 0.0
        %4434 = vmatpush1.msra.mxu0 %v4401
        %4435 = vmatprep.subr.mxu0 0.0
        %4436 = vmatpush2.msra.mxu0 0.0
        %4437 = vmatprep.subr.mxu0 0.0
        %4438 = vmatpush2.msra.mxu0 0.0
        %4439 = vmatprep.subr.mxu0 0.0
        %4440 = vmatpush2.msra.mxu0 0.0
        %4441 = vmatprep.subr.mxu0 0.0
        %4442 = vmatpush2.msra.mxu0 0.0
        %4443 = vmatprep.subr.mxu0 0.0
        %4444 = vmatpush2.msra.mxu0 0.0
        %4445 = vmatprep.subr.mxu0 0.0
        %4446 = vmatpush2.msra.mxu0 0.0
        %4447 = vmatprep.subr.mxu0 0.0
        %4448 = vmatpush2.msra.mxu0 0.0
        %4449 = vmatprep.subr.mxu0 0.0
        %4450 = vmatpush2.msra.mxu0 0.0
        %4451 = vmatprep.subr.mxu0 0.0
        %4452 = vmatpush2.msra.mxu0 0.0
        %4453 = vmatprep.subr.mxu0 0.0
        %4454 = vmatpush2.msra.mxu0 0.0
        %4455 = vmatprep.subr.mxu0 0.0
        %4456 = vmatpush2.msra.mxu0 0.0
        %4457 = vmatprep.subr.mxu0 0.0
        %4458 = vmatpush2.msra.mxu0 0.0
        %4459 = vmatprep.subr.mxu0 0.0
        %4460 = vmatpush2.msra.mxu0 0.0
        %4461 = vmatprep.subr.mxu0 0.0
        %4462 = vmatpush2.msra.mxu0 0.0
        %4463 = vmatprep.subr.mxu0 0.0
        %4464 = vmatpush2.msra.mxu0 0.0
        %4465 = vmatprep.subr.mxu0 0.0
        %4466 = vmatpush2.msra.mxu0 0.0
        %4467 = vmatprep.mubr.f32.mxu0 0.0
        %4468 = vmatmul.mubr.f32.gmra.mxu0 %v3345
        %v4469 = vpop.f32.mrf.mxu0
        %v4470 = vadd.f32 0.0, %v4469
        %v4471 = vpop.f32.mrf.mxu0
        %4472 = vmatprep.mubr.f32.mxu0 0.0
        %4473 = vmatmul.mubr.f32.gmra.mxu0 %v3348
        %v4474 = vpop.f32.mrf.mxu0
        %v4475 = vadd.f32 0.0, %v4474
        %v4476 = vpop.f32.mrf.mxu0
        %4477 = vmatprep.mubr.f32.mxu0 0.0
        %4478 = vmatmul.mubr.f32.gmra.mxu0 %v3351
        %v4479 = vpop.f32.mrf.mxu0
        %v4480 = vadd.f32 0.0, %v4479
        %v4481 = vpop.f32.mrf.mxu0
        %4482 = vmatprep.mubr.f32.mxu0 0.0
        %4483 = vmatmul.mubr.f32.gmra.mxu0 %v3354
        %v4484 = vpop.f32.mrf.mxu0
        %v4485 = vadd.f32 0.0, %v4484
        %v4486 = vpop.f32.mrf.mxu0
        %4487 = vdwg.mxu0
        %v4488 = vmul.f32 %v4470, 1.442695
        %v4489 = vpow.pop %v4488
        %v4490 = vmul.f32 %v4475, 1.442695
        %v4491 = vpow.pop %v4490
        %v4492 = vmul.f32 %v4480, 1.442695
        %v4493 = vpow.pop %v4492
        %v4494 = vmul.f32 %v4485, 1.442695
        %v4495 = vpow.pop %v4494
        %s4496 = scalar_lea.vmem %s243, 352 [#allocation8]
        %4497 = vst.msk [vmem:[%s4496] sm:$0xff] %vm3441, %v4489
        %4498 = vst.msk [vmem:[%s4496 + $0x8] sm:$0xff] %vm3441, %v4491
        %4499 = vst.msk [vmem:[%s4496 + $0x10] sm:$0xff] %vm3441, %v4493
        %4500 = vst.msk [vmem:[%s4496 + $0x18] sm:$0xff] %vm3441, %v4495
        %v4501 = vld [vmem:[#allocation4] sm:$0xff]
        %v4502 = vld [vmem:[#allocation4 + $0x8] sm:$0xff]
        %v4503 = vld [vmem:[#allocation4 + $0x10] sm:$0xff]
        %v4504 = vld [vmem:[#allocation4 + $0x18] sm:$0xff]
        %v4505 = vld [vmem:[%s3534] sm:$0xff]
        %v4506 = vld [vmem:[%s3534 + $0x8] sm:$0xff]
        %v4507 = vld [vmem:[%s3534 + $0x10] sm:$0xff]
        %v4508 = vld [vmem:[%s3534 + $0x18] sm:$0xff]
        %v4509 = vmax.f32 %v4501, %v4505
        %v4510 = vmax.f32 %v4502, %v4506
        %v4511 = vmax.f32 %v4503, %v4507
        %v4512 = vmax.f32 %v4504, %v4508
        %v4513 = vld [vmem:[%s3627] sm:$0xff]
        %v4514 = vld [vmem:[%s3627 + $0x8] sm:$0xff]
        %v4515 = vld [vmem:[%s3627 + $0x10] sm:$0xff]
        %v4516 = vld [vmem:[%s3627 + $0x18] sm:$0xff]
        %v4517 = vmax.f32 %v4509, %v4513
        %v4518 = vmax.f32 %v4510, %v4514
        %v4519 = vmax.f32 %v4511, %v4515
        %v4520 = vmax.f32 %v4512, %v4516
        %v4521 = vld [vmem:[%s3720] sm:$0xff]
        %v4522 = vld [vmem:[%s3720 + $0x8] sm:$0xff]
        %v4523 = vld [vmem:[%s3720 + $0x10] sm:$0xff]
        %v4524 = vld [vmem:[%s3720 + $0x18] sm:$0xff]
        %v4525 = vmax.f32 %v4517, %v4521
        %v4526 = vmax.f32 %v4518, %v4522
        %v4527 = vmax.f32 %v4519, %v4523
        %v4528 = vmax.f32 %v4520, %v4524
        %v4529 = vsub.f32 %v4501, %v4525
        %v4530 = vsub.f32 %v4502, %v4526
        %v4531 = vsub.f32 %v4503, %v4527
        %v4532 = vsub.f32 %v4504, %v4528
        %v4533 = vmul.f32 %v4529, 1.442695
        %v4534 = vpow.pop %v4533
        %v4535 = vmul.f32 %v4530, 1.442695
        %v4536 = vpow.pop %v4535
        %v4537 = vmul.f32 %v4531, 1.442695
        %v4538 = vpow.pop %v4537
        %v4539 = vmul.f32 %v4532, 1.442695
        %v4540 = vpow.pop %v4539
        %v4541 = vsub.f32 %v4505, %v4525
        %v4542 = vsub.f32 %v4506, %v4526
        %v4543 = vsub.f32 %v4507, %v4527
        %v4544 = vsub.f32 %v4508, %v4528
        %v4545 = vmul.f32 %v4541, 1.442695
        %v4546 = vpow.pop %v4545
        %v4547 = vmul.f32 %v4542, 1.442695
        %v4548 = vpow.pop %v4547
        %v4549 = vmul.f32 %v4543, 1.442695
        %v4550 = vpow.pop %v4549
        %v4551 = vmul.f32 %v4544, 1.442695
        %v4552 = vpow.pop %v4551
        %v4553 = vadd.f32 %v4534, %v4546
        %v4554 = vadd.f32 %v4536, %v4548
        %v4555 = vadd.f32 %v4538, %v4550
        %v4556 = vadd.f32 %v4540, %v4552
        %v4557 = vsub.f32 %v4513, %v4525
        %v4558 = vsub.f32 %v4514, %v4526
        %v4559 = vsub.f32 %v4515, %v4527
        %v4560 = vsub.f32 %v4516, %v4528
        %v4561 = vmul.f32 %v4557, 1.442695
        %v4562 = vpow.pop %v4561
        %v4563 = vmul.f32 %v4558, 1.442695
        %v4564 = vpow.pop %v4563
        %v4565 = vmul.f32 %v4559, 1.442695
        %v4566 = vpow.pop %v4565
        %v4567 = vmul.f32 %v4560, 1.442695
        %v4568 = vpow.pop %v4567
        %v4569 = vadd.f32 %v4553, %v4562
        %v4570 = vadd.f32 %v4554, %v4564
        %v4571 = vadd.f32 %v4555, %v4566
        %v4572 = vadd.f32 %v4556, %v4568
        %v4573 = vsub.f32 %v4521, %v4525
        %v4574 = vsub.f32 %v4522, %v4526
        %v4575 = vsub.f32 %v4523, %v4527
        %v4576 = vsub.f32 %v4524, %v4528
        %v4577 = vmul.f32 %v4573, 1.442695
        %v4578 = vpow.pop %v4577
        %v4579 = vmul.f32 %v4574, 1.442695
        %v4580 = vpow.pop %v4579
        %v4581 = vmul.f32 %v4575, 1.442695
        %v4582 = vpow.pop %v4581
        %v4583 = vmul.f32 %v4576, 1.442695
        %v4584 = vpow.pop %v4583
        %v4585 = vadd.f32 %v4569, %v4578
        %v4586 = vadd.f32 %v4570, %v4580
        %v4587 = vadd.f32 %v4571, %v4582
        %v4588 = vadd.f32 %v4572, %v4584
        %v4589 = vrcp.pop %v4585
        %v4590 = vrcp.pop %v4586
        %v4591 = vrcp.pop %v4587
        %v4592 = vrcp.pop %v4588
        %v4593 = vmul.f32 %v4534, %v4589
        %v4594 = vmul.f32 %v4536, %v4590
        %v4595 = vmul.f32 %v4538, %v4591
        %v4596 = vmul.f32 %v4540, %v4592
        %4597 = vst.msk [vmem:[%s243] sm:$0xff] %vm3441, %v4593
        %4598 = vst.msk [vmem:[%s243 + $0x8] sm:$0xff] %vm3441, %v4594
        %4599 = vst.msk [vmem:[%s243 + $0x10] sm:$0xff] %vm3441, %v4595
        %4600 = vst.msk [vmem:[%s243 + $0x18] sm:$0xff] %vm3441, %v4596
        %v4601 = vmul.f32 %v4546, %v4589
        %v4602 = vmul.f32 %v4548, %v4590
        %v4603 = vmul.f32 %v4550, %v4591
        %v4604 = vmul.f32 %v4552, %v4592
        %s4605 = scalar_lea.vmem %s243, 32 [#allocation8]
        %4606 = vst.msk [vmem:[%s4605] sm:$0xff] %vm3441, %v4601
        %4607 = vst.msk [vmem:[%s4605 + $0x8] sm:$0xff] %vm3441, %v4602
        %4608 = vst.msk [vmem:[%s4605 + $0x10] sm:$0xff] %vm3441, %v4603
        %4609 = vst.msk [vmem:[%s4605 + $0x18] sm:$0xff] %vm3441, %v4604
        %v4610 = vmul.f32 %v4562, %v4589
        %v4611 = vmul.f32 %v4564, %v4590
        %v4612 = vmul.f32 %v4566, %v4591
        %v4613 = vmul.f32 %v4568, %v4592
        %s4614 = scalar_lea.vmem %s243, 64 [#allocation8]
        %4615 = vst.msk [vmem:[%s4614] sm:$0xff] %vm3441, %v4610
        %4616 = vst.msk [vmem:[%s4614 + $0x8] sm:$0xff] %vm3441, %v4611
        %4617 = vst.msk [vmem:[%s4614 + $0x10] sm:$0xff] %vm3441, %v4612
        %4618 = vst.msk [vmem:[%s4614 + $0x18] sm:$0xff] %vm3441, %v4613
        %v4619 = vmul.f32 %v4578, %v4589
        %v4620 = vmul.f32 %v4580, %v4590
        %v4621 = vmul.f32 %v4582, %v4591
        %v4622 = vmul.f32 %v4584, %v4592
        %s4623 = scalar_lea.vmem %s243, 96 [#allocation8]
        %4624 = vst.msk [vmem:[%s4623] sm:$0xff] %vm3441, %v4619
        %4625 = vst.msk [vmem:[%s4623 + $0x8] sm:$0xff] %vm3441, %v4620
        %4626 = vst.msk [vmem:[%s4623 + $0x10] sm:$0xff] %vm3441, %v4621
        %4627 = vst.msk [vmem:[%s4623 + $0x18] sm:$0xff] %vm3441, %v4622
        %s4628 = scalar_lea.vmem %s217, 144 [#allocation5]
        %v4629 = vld [vmem:[%s4628] sm:$0xff]
        %v4630 = vld [vmem:[%s4628 + $0x8] sm:$0xff]
        %v4631 = vld [vmem:[%s4628 + $0x10] sm:$0xff]
        %v4632 = vld [vmem:[%s4628 + $0x18] sm:$0xff]
        %v4633 = vld [vmem:[%s4628 + $0x20] sm:$0xff]
        %v4634 = vld [vmem:[%s4628 + $0x28] sm:$0xff]
        %v4635 = vld [vmem:[%s4628 + $0x30] sm:$0xff]
        %v4636 = vld [vmem:[%s4628 + $0x38] sm:$0xff]
        %v4637 = vld [vmem:[%s4628 + $0x40] sm:$0xff]
        %v4638 = vld [vmem:[%s4628 + $0x48] sm:$0xff]
        %v4639 = vld [vmem:[%s4628 + $0x50] sm:$0xff]
        %v4640 = vld [vmem:[%s4628 + $0x58] sm:$0xff]
        %v4641 = vld [vmem:[%s4628 + $0x60] sm:$0xff]
        %v4642 = vld [vmem:[%s4628 + $0x68] sm:$0xff]
        %v4643 = vld [vmem:[%s4628 + $0x70] sm:$0xff]
        %v4644 = vld [vmem:[%s4628 + $0x78] sm:$0xff]
        %v4645 = vld [vmem:[%s4628 + $0x80] sm:$0xff]
        %v4646 = vld [vmem:[%s4628 + $0x88] sm:$0xff]
        %4647 = vmatprep.subr.mxu0 0.0
        %4648 = vmatpush1.msra.mxu0 0.0
        %4649 = vmatprep.subr.mxu0 0.0
        %4650 = vmatpush1.msra.mxu0 0.0
        %4651 = vmatprep.subr.mxu0 0.0
        %4652 = vmatpush1.msra.mxu0 0.0
        %4653 = vmatprep.subr.mxu0 0.0
        %4654 = vmatpush1.msra.mxu0 0.0
        %4655 = vmatprep.subr.mxu0 0.0
        %4656 = vmatpush1.msra.mxu0 0.0
        %4657 = vmatprep.subr.mxu0 0.0
        %4658 = vmatpush1.msra.mxu0 0.0
        %4659 = vmatprep.subr.mxu0 0.0
        %4660 = vmatpush1.msra.mxu0 0.0
        %4661 = vmatprep.subr.mxu0 %v4646
        %4662 = vmatpush1.msra.mxu0 %v4645
        %4663 = vmatprep.subr.mxu0 %v4644
        %4664 = vmatpush1.msra.mxu0 %v4643
        %4665 = vmatprep.subr.mxu0 %v4642
        %4666 = vmatpush1.msra.mxu0 %v4641
        %4667 = vmatprep.subr.mxu0 %v4640
        %4668 = vmatpush1.msra.mxu0 %v4639
        %4669 = vmatprep.subr.mxu0 %v4638
        %4670 = vmatpush1.msra.mxu0 %v4637
        %4671 = vmatprep.subr.mxu0 %v4636
        %4672 = vmatpush1.msra.mxu0 %v4635
        %4673 = vmatprep.subr.mxu0 %v4634
        %4674 = vmatpush1.msra.mxu0 %v4633
        %4675 = vmatprep.subr.mxu0 %v4632
        %4676 = vmatpush1.msra.mxu0 %v4631
        %4677 = vmatprep.subr.mxu0 %v4630
        %4678 = vmatpush1.msra.mxu0 %v4629
        %4679 = vmatprep.subr.mxu0 0.0
        %4680 = vmatpush2.msra.mxu0 0.0
        %4681 = vmatprep.subr.mxu0 0.0
        %4682 = vmatpush2.msra.mxu0 0.0
        %4683 = vmatprep.subr.mxu0 0.0
        %4684 = vmatpush2.msra.mxu0 0.0
        %4685 = vmatprep.subr.mxu0 0.0
        %4686 = vmatpush2.msra.mxu0 0.0
        %4687 = vmatprep.subr.mxu0 0.0
        %4688 = vmatpush2.msra.mxu0 0.0
        %4689 = vmatprep.subr.mxu0 0.0
        %4690 = vmatpush2.msra.mxu0 0.0
        %4691 = vmatprep.subr.mxu0 0.0
        %4692 = vmatpush2.msra.mxu0 0.0
        %4693 = vmatprep.subr.mxu0 0.0
        %4694 = vmatpush2.msra.mxu0 0.0
        %4695 = vmatprep.subr.mxu0 0.0
        %4696 = vmatpush2.msra.mxu0 0.0
        %4697 = vmatprep.subr.mxu0 0.0
        %4698 = vmatpush2.msra.mxu0 0.0
        %4699 = vmatprep.subr.mxu0 0.0
        %4700 = vmatpush2.msra.mxu0 0.0
        %4701 = vmatprep.subr.mxu0 0.0
        %4702 = vmatpush2.msra.mxu0 0.0
        %4703 = vmatprep.subr.mxu0 0.0
        %4704 = vmatpush2.msra.mxu0 0.0
        %4705 = vmatprep.subr.mxu0 0.0
        %4706 = vmatpush2.msra.mxu0 0.0
        %4707 = vmatprep.subr.mxu0 0.0
        %4708 = vmatpush2.msra.mxu0 0.0
        %4709 = vmatprep.subr.mxu0 0.0
        %4710 = vmatpush2.msra.mxu0 0.0
        %4711 = vmatprep.mubr.f32.mxu0 0.0
        %4712 = vmatmul.mubr.f32.gmra.mxu0 %v286
        %v4713 = vpop.f32.mrf.mxu0
        %v4714 = vadd.f32 %v277, %v4713
        %v4715 = vpop.f32.mrf.mxu0
        %v4716 = vadd.f32 %v277, %v4715
        %4717 = vmatprep.mubr.f32.mxu0 0.0
        %4718 = vmatmul.mubr.f32.gmra.mxu0 %v289
        %v4719 = vpop.f32.mrf.mxu0
        %v4720 = vadd.f32 %v282, %v4719
        %v4721 = vpop.f32.mrf.mxu0
        %v4722 = vadd.f32 %v282, %v4721
        %4723 = vdwg.mxu0
        %4724 = vst [vmem:[#allocation2] sm:$0xff] %v4714
        %4725 = vst [vmem:[#allocation2 + $0x8] sm:$0xff] %v4716
        %4726 = vst [vmem:[#allocation2 + $0x10] sm:$0xf] %v4720
        %4727 = vst [vmem:[#allocation2 + $0x18] sm:$0xf] %v4722
        %v4728 = vld [vmem:[#allocation2] sm:$0xff]
        %v4729 = vld [vmem:[#allocation2 + $0x10] sm:$0xf]
        %v4731 = vsel %vm374, %v4728, 0
        %v4734 = vsel %vm374, %v4729, 0
        %4736 = vmatprep.subr.mxu0 0.0
        %4737 = vmatpush1.msra.mxu0 0.0
        %4738 = vmatprep.subr.mxu0 0.0
        %4739 = vmatpush1.msra.mxu0 0.0
        %4740 = vmatprep.subr.mxu0 0.0
        %4741 = vmatpush1.msra.mxu0 0.0
        %4742 = vmatprep.subr.mxu0 0.0
        %4743 = vmatpush1.msra.mxu0 0.0
        %4744 = vmatprep.subr.mxu0 0.0
        %4745 = vmatpush1.msra.mxu0 0.0
        %4746 = vmatprep.subr.mxu0 0.0
        %4747 = vmatpush1.msra.mxu0 0.0
        %4748 = vmatprep.subr.mxu0 0.0
        %4749 = vmatpush1.msra.mxu0 0.0
        %4750 = vmatprep.subr.mxu0 0.0
        %4751 = vmatpush1.msra.mxu0 0.0
        %4752 = vmatprep.subr.mxu0 0.0
        %4753 = vmatpush1.msra.mxu0 0.0
        %4754 = vmatprep.subr.mxu0 0.0
        %4755 = vmatpush1.msra.mxu0 0.0
        %4756 = vmatprep.subr.mxu0 0.0
        %4757 = vmatpush1.msra.mxu0 0.0
        %4758 = vmatprep.subr.mxu0 0.0
        %4759 = vmatpush1.msra.mxu0 0.0
        %4760 = vmatprep.subr.mxu0 0.0
        %4761 = vmatpush1.msra.mxu0 0.0
        %4762 = vmatprep.subr.mxu0 0.0
        %4763 = vmatpush1.msra.mxu0 0.0
        %4764 = vmatprep.subr.mxu0 0.0
        %4765 = vmatpush1.msra.mxu0 %v255
        %4766 = vmatprep.subr.mxu0 0.0
        %4767 = vmatpush1.msra.mxu0 %v254
        %4768 = vmatprep.subr.mxu0 0.0
        %4769 = vmatpush2.msra.mxu0 0.0
        %4770 = vmatprep.subr.mxu0 0.0
        %4771 = vmatpush2.msra.mxu0 0.0
        %4772 = vmatprep.subr.mxu0 0.0
        %4773 = vmatpush2.msra.mxu0 0.0
        %4774 = vmatprep.subr.mxu0 0.0
        %4775 = vmatpush2.msra.mxu0 0.0
        %4776 = vmatprep.subr.mxu0 0.0
        %4777 = vmatpush2.msra.mxu0 0.0
        %4778 = vmatprep.subr.mxu0 0.0
        %4779 = vmatpush2.msra.mxu0 0.0
        %4780 = vmatprep.subr.mxu0 0.0
        %4781 = vmatpush2.msra.mxu0 0.0
        %4782 = vmatprep.subr.mxu0 0.0
        %4783 = vmatpush2.msra.mxu0 0.0
        %4784 = vmatprep.subr.mxu0 0.0
        %4785 = vmatpush2.msra.mxu0 0.0
        %4786 = vmatprep.subr.mxu0 0.0
        %4787 = vmatpush2.msra.mxu0 0.0
        %4788 = vmatprep.subr.mxu0 0.0
        %4789 = vmatpush2.msra.mxu0 0.0
        %4790 = vmatprep.subr.mxu0 0.0
        %4791 = vmatpush2.msra.mxu0 0.0
        %4792 = vmatprep.subr.mxu0 0.0
        %4793 = vmatpush2.msra.mxu0 0.0
        %4794 = vmatprep.subr.mxu0 0.0
        %4795 = vmatpush2.msra.mxu0 0.0
        %4796 = vmatprep.subr.mxu0 0.0
        %4797 = vmatpush2.msra.mxu0 0.0
        %4798 = vmatprep.subr.mxu0 0.0
        %4799 = vmatpush2.msra.mxu0 0.0
        %4800 = vmatprep.mubr.f32.mxu0 0.0
        %4801 = vmatmul.mubr.f32.gmra.mxu0 %v4731
        %v4802 = vpop.f32.mrf.mxu0
        %v4803 = vadd.f32 0.0, %v4802
        %v4804 = vpop.f32.mrf.mxu0
        %4805 = vmatprep.mubr.f32.mxu0 0.0
        %4806 = vmatmul.mubr.f32.gmra.mxu0 %v4734
        %v4807 = vpop.f32.mrf.mxu0
        %v4808 = vadd.f32 0.0, %v4807
        %v4809 = vpop.f32.mrf.mxu0
        %4810 = vdwg.mxu0
        %v4813 = vcombine.high %v4803, %v4803
        %v4815 = vunpack.c.l.s4 1966171168
        %v4816 = vunpack.c.0.s8 %v4815
        %v4817 = vlaneseq
        %v4818 = vshrl.u32 %v4817, 7
        %v4819 = vsub.s32 %v4816, %v4818
        %v4820 = vrot.slane %v4803, %v4819
        %v4822 = vunpack.c.l.s4 1966171168
        %v4823 = vunpack.c.0.s8 %v4822
        %v4824 = vlaneseq
        %v4825 = vshrl.u32 %v4824, 7
        %v4826 = vsub.s32 %v4823, %v4825
        %v4827 = vrot.slane %v4813, %v4826
        %v4828 = vcombine.high %v4820, %v4820
        %v4829 = vcombine.high %v4827, %v4827
        %v4831 = vunpack.c.l.s4 1966171168
        %v4832 = vunpack.c.0.s8 %v4831
        %v4833 = vlaneseq
        %v4834 = vshrl.u32 %v4833, 7
        %v4835 = vsub.s32 %v4832, %v4834
        %v4836 = vrot.slane %v4820, %v4835
        %v4838 = vunpack.c.l.s4 1966171168
        %v4839 = vunpack.c.0.s8 %v4838
        %v4840 = vlaneseq
        %v4841 = vshrl.u32 %v4840, 7
        %v4842 = vsub.s32 %v4839, %v4841
        %v4843 = vrot.slane %v4827, %v4842
        %v4845 = vunpack.c.l.s4 1966171168
        %v4846 = vunpack.c.0.s8 %v4845
        %v4847 = vlaneseq
        %v4848 = vshrl.u32 %v4847, 7
        %v4849 = vsub.s32 %v4846, %v4848
        %v4850 = vrot.slane %v4828, %v4849
        %v4852 = vunpack.c.l.s4 1966171168
        %v4853 = vunpack.c.0.s8 %v4852
        %v4854 = vlaneseq
        %v4855 = vshrl.u32 %v4854, 7
        %v4856 = vsub.s32 %v4853, %v4855
        %v4857 = vrot.slane %v4829, %v4856
        %v4858 = vcombine.high %v4836, %v4836
        %v4859 = vcombine.high %v4843, %v4843
        %v4860 = vcombine.high %v4850, %v4850
        %v4861 = vcombine.high %v4857, %v4857
        %v4863 = vunpack.c.l.s4 1966171168
        %v4864 = vunpack.c.0.s8 %v4863
        %v4865 = vlaneseq
        %v4866 = vshrl.u32 %v4865, 7
        %v4867 = vsub.s32 %v4864, %v4866
        %v4868 = vrot.slane %v4808, %v4867
        %v4869 = vcombine.high %v4868, %v4868
        %v4871 = vunpack.c.l.s4 1966171168
        %v4872 = vunpack.c.0.s8 %v4871
        %v4873 = vlaneseq
        %v4874 = vshrl.u32 %v4873, 7
        %v4875 = vsub.s32 %v4872, %v4874
        %v4876 = vrot.slane %v4868, %v4875
        %v4878 = vunpack.c.l.s4 1966171168
        %v4879 = vunpack.c.0.s8 %v4878
        %v4880 = vlaneseq
        %v4881 = vshrl.u32 %v4880, 7
        %v4882 = vsub.s32 %v4879, %v4881
        %v4883 = vrot.slane %v4869, %v4882
        %v4884 = vcombine.high %v4876, %v4876
        %v4885 = vcombine.high %v4883, %v4883
        %4898 = vst.msk [vmem:[#allocation3] sm:$0x1] %vm543, %v4836
        %4899 = vst.msk [vmem:[#allocation3 + $0x10] sm:$0x1] %vm543, %v4850
        %4900 = vst.msk [vmem:[#allocation3 + $0x20] sm:$0x1] %vm543, %v4858
        %4901 = vst.msk [vmem:[#allocation3 + $0x30] sm:$0x1] %vm543, %v4860
        %4902 = vst.msk [vmem:[#allocation3 + $0x40] sm:$0x1] %vm543, %v4843
        %4903 = vst.msk [vmem:[#allocation3 + $0x50] sm:$0x1] %vm543, %v4857
        %4904 = vst.msk [vmem:[#allocation3 + $0x60] sm:$0x1] %vm543, %v4859
        %4905 = vst.msk [vmem:[#allocation3 + $0x70] sm:$0x1] %vm543, %v4861
        %4906 = vst.msk [vmem:[#allocation3 + $0x80] sm:$0x1] %vm543, %v4876
        %4907 = vst.msk [vmem:[#allocation3 + $0x90] sm:$0x1] %vm543, %v4883
        %4908 = vst.msk [vmem:[#allocation3 + $0xa0] sm:$0x1] %vm543, %v4884
        %4909 = vst.msk [vmem:[#allocation3 + $0xb0] sm:$0x1] %vm543, %v4885
        %v4910 = vld [vmem:[#allocation2] sm:$0xff]
        %v4911 = vld [vmem:[#allocation2 + $0x10] sm:$0xf]
        %4914 = vrot.lane.b32.xlu0 %v4910, 112
        %v4915 = vpop.permute.xlu0 %4914
        %4916 = vrot.lane.b32.xlu0 %v4911, 112
        %v4917 = vpop.permute.xlu0 %4916
        %v4918 = vsel %vm374, %v4915, 0
        %v4920 = vsel %vm374, %v4917, 0
        %4922 = vmatprep.subr.mxu0 0.0
        %4923 = vmatpush1.msra.mxu0 0.0
        %4924 = vmatprep.subr.mxu0 0.0
        %4925 = vmatpush1.msra.mxu0 0.0
        %4926 = vmatprep.subr.mxu0 0.0
        %4927 = vmatpush1.msra.mxu0 0.0
        %4928 = vmatprep.subr.mxu0 0.0
        %4929 = vmatpush1.msra.mxu0 0.0
        %4930 = vmatprep.subr.mxu0 0.0
        %4931 = vmatpush1.msra.mxu0 0.0
        %4932 = vmatprep.subr.mxu0 0.0
        %4933 = vmatpush1.msra.mxu0 0.0
        %4934 = vmatprep.subr.mxu0 0.0
        %4935 = vmatpush1.msra.mxu0 0.0
        %4936 = vmatprep.subr.mxu0 0.0
        %4937 = vmatpush1.msra.mxu0 0.0
        %4938 = vmatprep.subr.mxu0 0.0
        %4939 = vmatpush1.msra.mxu0 0.0
        %4940 = vmatprep.subr.mxu0 0.0
        %4941 = vmatpush1.msra.mxu0 0.0
        %4942 = vmatprep.subr.mxu0 0.0
        %4943 = vmatpush1.msra.mxu0 0.0
        %4944 = vmatprep.subr.mxu0 0.0
        %4945 = vmatpush1.msra.mxu0 0.0
        %4946 = vmatprep.subr.mxu0 0.0
        %4947 = vmatpush1.msra.mxu0 0.0
        %4948 = vmatprep.subr.mxu0 0.0
        %4949 = vmatpush1.msra.mxu0 0.0
        %4950 = vmatprep.subr.mxu0 0.0
        %4951 = vmatpush1.msra.mxu0 %v255
        %4952 = vmatprep.subr.mxu0 0.0
        %4953 = vmatpush1.msra.mxu0 %v254
        %4954 = vmatprep.subr.mxu0 0.0
        %4955 = vmatpush2.msra.mxu0 0.0
        %4956 = vmatprep.subr.mxu0 0.0
        %4957 = vmatpush2.msra.mxu0 0.0
        %4958 = vmatprep.subr.mxu0 0.0
        %4959 = vmatpush2.msra.mxu0 0.0
        %4960 = vmatprep.subr.mxu0 0.0
        %4961 = vmatpush2.msra.mxu0 0.0
        %4962 = vmatprep.subr.mxu0 0.0
        %4963 = vmatpush2.msra.mxu0 0.0
        %4964 = vmatprep.subr.mxu0 0.0
        %4965 = vmatpush2.msra.mxu0 0.0
        %4966 = vmatprep.subr.mxu0 0.0
        %4967 = vmatpush2.msra.mxu0 0.0
        %4968 = vmatprep.subr.mxu0 0.0
        %4969 = vmatpush2.msra.mxu0 0.0
        %4970 = vmatprep.subr.mxu0 0.0
        %4971 = vmatpush2.msra.mxu0 0.0
        %4972 = vmatprep.subr.mxu0 0.0
        %4973 = vmatpush2.msra.mxu0 0.0
        %4974 = vmatprep.subr.mxu0 0.0
        %4975 = vmatpush2.msra.mxu0 0.0
        %4976 = vmatprep.subr.mxu0 0.0
        %4977 = vmatpush2.msra.mxu0 0.0
        %4978 = vmatprep.subr.mxu0 0.0
        %4979 = vmatpush2.msra.mxu0 0.0
        %4980 = vmatprep.subr.mxu0 0.0
        %4981 = vmatpush2.msra.mxu0 0.0
        %4982 = vmatprep.subr.mxu0 0.0
        %4983 = vmatpush2.msra.mxu0 0.0
        %4984 = vmatprep.subr.mxu0 0.0
        %4985 = vmatpush2.msra.mxu0 0.0
        %4986 = vmatprep.mubr.f32.mxu0 0.0
        %4987 = vmatmul.mubr.f32.gmra.mxu0 %v4918
        %v4988 = vpop.f32.mrf.mxu0
        %v4989 = vadd.f32 0.0, %v4988
        %v4990 = vpop.f32.mrf.mxu0
        %4991 = vmatprep.mubr.f32.mxu0 0.0
        %4992 = vmatmul.mubr.f32.gmra.mxu0 %v4920
        %v4993 = vpop.f32.mrf.mxu0
        %v4994 = vadd.f32 0.0, %v4993
        %v4995 = vpop.f32.mrf.mxu0
        %4996 = vdwg.mxu0
        %v4999 = vcombine.high %v4989, %v4989
        %v5001 = vunpack.c.l.s4 1966171168
        %v5002 = vunpack.c.0.s8 %v5001
        %v5003 = vlaneseq
        %v5004 = vshrl.u32 %v5003, 7
        %v5005 = vsub.s32 %v5002, %v5004
        %v5006 = vrot.slane %v4989, %v5005
        %v5008 = vunpack.c.l.s4 1966171168
        %v5009 = vunpack.c.0.s8 %v5008
        %v5010 = vlaneseq
        %v5011 = vshrl.u32 %v5010, 7
        %v5012 = vsub.s32 %v5009, %v5011
        %v5013 = vrot.slane %v4999, %v5012
        %v5014 = vcombine.high %v5006, %v5006
        %v5015 = vcombine.high %v5013, %v5013
        %v5017 = vunpack.c.l.s4 1966171168
        %v5018 = vunpack.c.0.s8 %v5017
        %v5019 = vlaneseq
        %v5020 = vshrl.u32 %v5019, 7
        %v5021 = vsub.s32 %v5018, %v5020
        %v5022 = vrot.slane %v5006, %v5021
        %v5024 = vunpack.c.l.s4 1966171168
        %v5025 = vunpack.c.0.s8 %v5024
        %v5026 = vlaneseq
        %v5027 = vshrl.u32 %v5026, 7
        %v5028 = vsub.s32 %v5025, %v5027
        %v5029 = vrot.slane %v5013, %v5028
        %v5031 = vunpack.c.l.s4 1966171168
        %v5032 = vunpack.c.0.s8 %v5031
        %v5033 = vlaneseq
        %v5034 = vshrl.u32 %v5033, 7
        %v5035 = vsub.s32 %v5032, %v5034
        %v5036 = vrot.slane %v5014, %v5035
        %v5038 = vunpack.c.l.s4 1966171168
        %v5039 = vunpack.c.0.s8 %v5038
        %v5040 = vlaneseq
        %v5041 = vshrl.u32 %v5040, 7
        %v5042 = vsub.s32 %v5039, %v5041
        %v5043 = vrot.slane %v5015, %v5042
        %v5044 = vcombine.high %v5022, %v5022
        %v5045 = vcombine.high %v5029, %v5029
        %v5046 = vcombine.high %v5036, %v5036
        %v5047 = vcombine.high %v5043, %v5043
        %v5049 = vunpack.c.l.s4 1966171168
        %v5050 = vunpack.c.0.s8 %v5049
        %v5051 = vlaneseq
        %v5052 = vshrl.u32 %v5051, 7
        %v5053 = vsub.s32 %v5050, %v5052
        %v5054 = vrot.slane %v4994, %v5053
        %v5055 = vcombine.high %v5054, %v5054
        %v5057 = vunpack.c.l.s4 1966171168
        %v5058 = vunpack.c.0.s8 %v5057
        %v5059 = vlaneseq
        %v5060 = vshrl.u32 %v5059, 7
        %v5061 = vsub.s32 %v5058, %v5060
        %v5062 = vrot.slane %v5054, %v5061
        %v5064 = vunpack.c.l.s4 1966171168
        %v5065 = vunpack.c.0.s8 %v5064
        %v5066 = vlaneseq
        %v5067 = vshrl.u32 %v5066, 7
        %v5068 = vsub.s32 %v5065, %v5067
        %v5069 = vrot.slane %v5055, %v5068
        %v5070 = vcombine.high %v5062, %v5062
        %v5071 = vcombine.high %v5069, %v5069
        %5084 = vst.msk [vmem:[#allocation3 + $0x1] sm:$0x1] %vm543, %v5022
        %5085 = vst.msk [vmem:[#allocation3 + $0x11] sm:$0x1] %vm543, %v5036
        %5086 = vst.msk [vmem:[#allocation3 + $0x21] sm:$0x1] %vm543, %v5044
        %5087 = vst.msk [vmem:[#allocation3 + $0x31] sm:$0x1] %vm543, %v5046
        %5088 = vst.msk [vmem:[#allocation3 + $0x41] sm:$0x1] %vm543, %v5029
        %5089 = vst.msk [vmem:[#allocation3 + $0x51] sm:$0x1] %vm543, %v5043
        %5090 = vst.msk [vmem:[#allocation3 + $0x61] sm:$0x1] %vm543, %v5045
        %5091 = vst.msk [vmem:[#allocation3 + $0x71] sm:$0x1] %vm543, %v5047
        %5092 = vst.msk [vmem:[#allocation3 + $0x81] sm:$0x1] %vm543, %v5062
        %5093 = vst.msk [vmem:[#allocation3 + $0x91] sm:$0x1] %vm543, %v5069
        %5094 = vst.msk [vmem:[#allocation3 + $0xa1] sm:$0x1] %vm543, %v5070
        %5095 = vst.msk [vmem:[#allocation3 + $0xb1] sm:$0x1] %vm543, %v5071
        %v5096 = vld [vmem:[#allocation2] sm:$0xff]
        %v5097 = vld [vmem:[#allocation2 + $0x10] sm:$0xf]
        %5100 = vrot.lane.b32.xlu0 %v5096, 96
        %v5101 = vpop.permute.xlu0 %5100
        %5102 = vrot.lane.b32.xlu0 %v5097, 96
        %v5103 = vpop.permute.xlu0 %5102
        %v5104 = vsel %vm374, %v5101, 0
        %v5106 = vsel %vm374, %v5103, 0
        %5108 = vmatprep.subr.mxu0 0.0
        %5109 = vmatpush1.msra.mxu0 0.0
        %5110 = vmatprep.subr.mxu0 0.0
        %5111 = vmatpush1.msra.mxu0 0.0
        %5112 = vmatprep.subr.mxu0 0.0
        %5113 = vmatpush1.msra.mxu0 0.0
        %5114 = vmatprep.subr.mxu0 0.0
        %5115 = vmatpush1.msra.mxu0 0.0
        %5116 = vmatprep.subr.mxu0 0.0
        %5117 = vmatpush1.msra.mxu0 0.0
        %5118 = vmatprep.subr.mxu0 0.0
        %5119 = vmatpush1.msra.mxu0 0.0
        %5120 = vmatprep.subr.mxu0 0.0
        %5121 = vmatpush1.msra.mxu0 0.0
        %5122 = vmatprep.subr.mxu0 0.0
        %5123 = vmatpush1.msra.mxu0 0.0
        %5124 = vmatprep.subr.mxu0 0.0
        %5125 = vmatpush1.msra.mxu0 0.0
        %5126 = vmatprep.subr.mxu0 0.0
        %5127 = vmatpush1.msra.mxu0 0.0
        %5128 = vmatprep.subr.mxu0 0.0
        %5129 = vmatpush1.msra.mxu0 0.0
        %5130 = vmatprep.subr.mxu0 0.0
        %5131 = vmatpush1.msra.mxu0 0.0
        %5132 = vmatprep.subr.mxu0 0.0
        %5133 = vmatpush1.msra.mxu0 0.0
        %5134 = vmatprep.subr.mxu0 0.0
        %5135 = vmatpush1.msra.mxu0 0.0
        %5136 = vmatprep.subr.mxu0 0.0
        %5137 = vmatpush1.msra.mxu0 %v255
        %5138 = vmatprep.subr.mxu0 0.0
        %5139 = vmatpush1.msra.mxu0 %v254
        %5140 = vmatprep.subr.mxu0 0.0
        %5141 = vmatpush2.msra.mxu0 0.0
        %5142 = vmatprep.subr.mxu0 0.0
        %5143 = vmatpush2.msra.mxu0 0.0
        %5144 = vmatprep.subr.mxu0 0.0
        %5145 = vmatpush2.msra.mxu0 0.0
        %5146 = vmatprep.subr.mxu0 0.0
        %5147 = vmatpush2.msra.mxu0 0.0
        %5148 = vmatprep.subr.mxu0 0.0
        %5149 = vmatpush2.msra.mxu0 0.0
        %5150 = vmatprep.subr.mxu0 0.0
        %5151 = vmatpush2.msra.mxu0 0.0
        %5152 = vmatprep.subr.mxu0 0.0
        %5153 = vmatpush2.msra.mxu0 0.0
        %5154 = vmatprep.subr.mxu0 0.0
        %5155 = vmatpush2.msra.mxu0 0.0
        %5156 = vmatprep.subr.mxu0 0.0
        %5157 = vmatpush2.msra.mxu0 0.0
        %5158 = vmatprep.subr.mxu0 0.0
        %5159 = vmatpush2.msra.mxu0 0.0
        %5160 = vmatprep.subr.mxu0 0.0
        %5161 = vmatpush2.msra.mxu0 0.0
        %5162 = vmatprep.subr.mxu0 0.0
        %5163 = vmatpush2.msra.mxu0 0.0
        %5164 = vmatprep.subr.mxu0 0.0
        %5165 = vmatpush2.msra.mxu0 0.0
        %5166 = vmatprep.subr.mxu0 0.0
        %5167 = vmatpush2.msra.mxu0 0.0
        %5168 = vmatprep.subr.mxu0 0.0
        %5169 = vmatpush2.msra.mxu0 0.0
        %5170 = vmatprep.subr.mxu0 0.0
        %5171 = vmatpush2.msra.mxu0 0.0
        %5172 = vmatprep.mubr.f32.mxu0 0.0
        %5173 = vmatmul.mubr.f32.gmra.mxu0 %v5104
        %v5174 = vpop.f32.mrf.mxu0
        %v5175 = vadd.f32 0.0, %v5174
        %v5176 = vpop.f32.mrf.mxu0
        %5177 = vmatprep.mubr.f32.mxu0 0.0
        %5178 = vmatmul.mubr.f32.gmra.mxu0 %v5106
        %v5179 = vpop.f32.mrf.mxu0
        %v5180 = vadd.f32 0.0, %v5179
        %v5181 = vpop.f32.mrf.mxu0
        %5182 = vdwg.mxu0
        %v5185 = vcombine.high %v5175, %v5175
        %v5187 = vunpack.c.l.s4 1966171168
        %v5188 = vunpack.c.0.s8 %v5187
        %v5189 = vlaneseq
        %v5190 = vshrl.u32 %v5189, 7
        %v5191 = vsub.s32 %v5188, %v5190
        %v5192 = vrot.slane %v5175, %v5191
        %v5194 = vunpack.c.l.s4 1966171168
        %v5195 = vunpack.c.0.s8 %v5194
        %v5196 = vlaneseq
        %v5197 = vshrl.u32 %v5196, 7
        %v5198 = vsub.s32 %v5195, %v5197
        %v5199 = vrot.slane %v5185, %v5198
        %v5200 = vcombine.high %v5192, %v5192
        %v5201 = vcombine.high %v5199, %v5199
        %v5203 = vunpack.c.l.s4 1966171168
        %v5204 = vunpack.c.0.s8 %v5203
        %v5205 = vlaneseq
        %v5206 = vshrl.u32 %v5205, 7
        %v5207 = vsub.s32 %v5204, %v5206
        %v5208 = vrot.slane %v5192, %v5207
        %v5210 = vunpack.c.l.s4 1966171168
        %v5211 = vunpack.c.0.s8 %v5210
        %v5212 = vlaneseq
        %v5213 = vshrl.u32 %v5212, 7
        %v5214 = vsub.s32 %v5211, %v5213
        %v5215 = vrot.slane %v5199, %v5214
        %v5217 = vunpack.c.l.s4 1966171168
        %v5218 = vunpack.c.0.s8 %v5217
        %v5219 = vlaneseq
        %v5220 = vshrl.u32 %v5219, 7
        %v5221 = vsub.s32 %v5218, %v5220
        %v5222 = vrot.slane %v5200, %v5221
        %v5224 = vunpack.c.l.s4 1966171168
        %v5225 = vunpack.c.0.s8 %v5224
        %v5226 = vlaneseq
        %v5227 = vshrl.u32 %v5226, 7
        %v5228 = vsub.s32 %v5225, %v5227
        %v5229 = vrot.slane %v5201, %v5228
        %v5230 = vcombine.high %v5208, %v5208
        %v5231 = vcombine.high %v5215, %v5215
        %v5232 = vcombine.high %v5222, %v5222
        %v5233 = vcombine.high %v5229, %v5229
        %v5235 = vunpack.c.l.s4 1966171168
        %v5236 = vunpack.c.0.s8 %v5235
        %v5237 = vlaneseq
        %v5238 = vshrl.u32 %v5237, 7
        %v5239 = vsub.s32 %v5236, %v5238
        %v5240 = vrot.slane %v5180, %v5239
        %v5241 = vcombine.high %v5240, %v5240
        %v5243 = vunpack.c.l.s4 1966171168
        %v5244 = vunpack.c.0.s8 %v5243
        %v5245 = vlaneseq
        %v5246 = vshrl.u32 %v5245, 7
        %v5247 = vsub.s32 %v5244, %v5246
        %v5248 = vrot.slane %v5240, %v5247
        %v5250 = vunpack.c.l.s4 1966171168
        %v5251 = vunpack.c.0.s8 %v5250
        %v5252 = vlaneseq
        %v5253 = vshrl.u32 %v5252, 7
        %v5254 = vsub.s32 %v5251, %v5253
        %v5255 = vrot.slane %v5241, %v5254
        %v5256 = vcombine.high %v5248, %v5248
        %v5257 = vcombine.high %v5255, %v5255
        %5270 = vst.msk [vmem:[#allocation3 + $0x2] sm:$0x1] %vm543, %v5208
        %5271 = vst.msk [vmem:[#allocation3 + $0x12] sm:$0x1] %vm543, %v5222
        %5272 = vst.msk [vmem:[#allocation3 + $0x22] sm:$0x1] %vm543, %v5230
        %5273 = vst.msk [vmem:[#allocation3 + $0x32] sm:$0x1] %vm543, %v5232
        %5274 = vst.msk [vmem:[#allocation3 + $0x42] sm:$0x1] %vm543, %v5215
        %5275 = vst.msk [vmem:[#allocation3 + $0x52] sm:$0x1] %vm543, %v5229
        %5276 = vst.msk [vmem:[#allocation3 + $0x62] sm:$0x1] %vm543, %v5231
        %5277 = vst.msk [vmem:[#allocation3 + $0x72] sm:$0x1] %vm543, %v5233
        %5278 = vst.msk [vmem:[#allocation3 + $0x82] sm:$0x1] %vm543, %v5248
        %5279 = vst.msk [vmem:[#allocation3 + $0x92] sm:$0x1] %vm543, %v5255
        %5280 = vst.msk [vmem:[#allocation3 + $0xa2] sm:$0x1] %vm543, %v5256
        %5281 = vst.msk [vmem:[#allocation3 + $0xb2] sm:$0x1] %vm543, %v5257
        %v5282 = vld [vmem:[#allocation2] sm:$0xff]
        %v5283 = vld [vmem:[#allocation2 + $0x10] sm:$0xf]
        %5286 = vrot.lane.b32.xlu0 %v5282, 80
        %v5287 = vpop.permute.xlu0 %5286
        %5288 = vrot.lane.b32.xlu0 %v5283, 80
        %v5289 = vpop.permute.xlu0 %5288
        %v5290 = vsel %vm374, %v5287, 0
        %v5292 = vsel %vm374, %v5289, 0
        %5294 = vmatprep.subr.mxu0 0.0
        %5295 = vmatpush1.msra.mxu0 0.0
        %5296 = vmatprep.subr.mxu0 0.0
        %5297 = vmatpush1.msra.mxu0 0.0
        %5298 = vmatprep.subr.mxu0 0.0
        %5299 = vmatpush1.msra.mxu0 0.0
        %5300 = vmatprep.subr.mxu0 0.0
        %5301 = vmatpush1.msra.mxu0 0.0
        %5302 = vmatprep.subr.mxu0 0.0
        %5303 = vmatpush1.msra.mxu0 0.0
        %5304 = vmatprep.subr.mxu0 0.0
        %5305 = vmatpush1.msra.mxu0 0.0
        %5306 = vmatprep.subr.mxu0 0.0
        %5307 = vmatpush1.msra.mxu0 0.0
        %5308 = vmatprep.subr.mxu0 0.0
        %5309 = vmatpush1.msra.mxu0 0.0
        %5310 = vmatprep.subr.mxu0 0.0
        %5311 = vmatpush1.msra.mxu0 0.0
        %5312 = vmatprep.subr.mxu0 0.0
        %5313 = vmatpush1.msra.mxu0 0.0
        %5314 = vmatprep.subr.mxu0 0.0
        %5315 = vmatpush1.msra.mxu0 0.0
        %5316 = vmatprep.subr.mxu0 0.0
        %5317 = vmatpush1.msra.mxu0 0.0
        %5318 = vmatprep.subr.mxu0 0.0
        %5319 = vmatpush1.msra.mxu0 0.0
        %5320 = vmatprep.subr.mxu0 0.0
        %5321 = vmatpush1.msra.mxu0 0.0
        %5322 = vmatprep.subr.mxu0 0.0
        %5323 = vmatpush1.msra.mxu0 %v255
        %5324 = vmatprep.subr.mxu0 0.0
        %5325 = vmatpush1.msra.mxu0 %v254
        %5326 = vmatprep.subr.mxu0 0.0
        %5327 = vmatpush2.msra.mxu0 0.0
        %5328 = vmatprep.subr.mxu0 0.0
        %5329 = vmatpush2.msra.mxu0 0.0
        %5330 = vmatprep.subr.mxu0 0.0
        %5331 = vmatpush2.msra.mxu0 0.0
        %5332 = vmatprep.subr.mxu0 0.0
        %5333 = vmatpush2.msra.mxu0 0.0
        %5334 = vmatprep.subr.mxu0 0.0
        %5335 = vmatpush2.msra.mxu0 0.0
        %5336 = vmatprep.subr.mxu0 0.0
        %5337 = vmatpush2.msra.mxu0 0.0
        %5338 = vmatprep.subr.mxu0 0.0
        %5339 = vmatpush2.msra.mxu0 0.0
        %5340 = vmatprep.subr.mxu0 0.0
        %5341 = vmatpush2.msra.mxu0 0.0
        %5342 = vmatprep.subr.mxu0 0.0
        %5343 = vmatpush2.msra.mxu0 0.0
        %5344 = vmatprep.subr.mxu0 0.0
        %5345 = vmatpush2.msra.mxu0 0.0
        %5346 = vmatprep.subr.mxu0 0.0
        %5347 = vmatpush2.msra.mxu0 0.0
        %5348 = vmatprep.subr.mxu0 0.0
        %5349 = vmatpush2.msra.mxu0 0.0
        %5350 = vmatprep.subr.mxu0 0.0
        %5351 = vmatpush2.msra.mxu0 0.0
        %5352 = vmatprep.subr.mxu0 0.0
        %5353 = vmatpush2.msra.mxu0 0.0
        %5354 = vmatprep.subr.mxu0 0.0
        %5355 = vmatpush2.msra.mxu0 0.0
        %5356 = vmatprep.subr.mxu0 0.0
        %5357 = vmatpush2.msra.mxu0 0.0
        %5358 = vmatprep.mubr.f32.mxu0 0.0
        %5359 = vmatmul.mubr.f32.gmra.mxu0 %v5290
        %v5360 = vpop.f32.mrf.mxu0
        %v5361 = vadd.f32 0.0, %v5360
        %v5362 = vpop.f32.mrf.mxu0
        %5363 = vmatprep.mubr.f32.mxu0 0.0
        %5364 = vmatmul.mubr.f32.gmra.mxu0 %v5292
        %v5365 = vpop.f32.mrf.mxu0
        %v5366 = vadd.f32 0.0, %v5365
        %v5367 = vpop.f32.mrf.mxu0
        %5368 = vdwg.mxu0
        %v5371 = vcombine.high %v5361, %v5361
        %v5373 = vunpack.c.l.s4 1966171168
        %v5374 = vunpack.c.0.s8 %v5373
        %v5375 = vlaneseq
        %v5376 = vshrl.u32 %v5375, 7
        %v5377 = vsub.s32 %v5374, %v5376
        %v5378 = vrot.slane %v5361, %v5377
        %v5380 = vunpack.c.l.s4 1966171168
        %v5381 = vunpack.c.0.s8 %v5380
        %v5382 = vlaneseq
        %v5383 = vshrl.u32 %v5382, 7
        %v5384 = vsub.s32 %v5381, %v5383
        %v5385 = vrot.slane %v5371, %v5384
        %v5386 = vcombine.high %v5378, %v5378
        %v5387 = vcombine.high %v5385, %v5385
        %v5389 = vunpack.c.l.s4 1966171168
        %v5390 = vunpack.c.0.s8 %v5389
        %v5391 = vlaneseq
        %v5392 = vshrl.u32 %v5391, 7
        %v5393 = vsub.s32 %v5390, %v5392
        %v5394 = vrot.slane %v5378, %v5393
        %v5396 = vunpack.c.l.s4 1966171168
        %v5397 = vunpack.c.0.s8 %v5396
        %v5398 = vlaneseq
        %v5399 = vshrl.u32 %v5398, 7
        %v5400 = vsub.s32 %v5397, %v5399
        %v5401 = vrot.slane %v5385, %v5400
        %v5403 = vunpack.c.l.s4 1966171168
        %v5404 = vunpack.c.0.s8 %v5403
        %v5405 = vlaneseq
        %v5406 = vshrl.u32 %v5405, 7
        %v5407 = vsub.s32 %v5404, %v5406
        %v5408 = vrot.slane %v5386, %v5407
        %v5410 = vunpack.c.l.s4 1966171168
        %v5411 = vunpack.c.0.s8 %v5410
        %v5412 = vlaneseq
        %v5413 = vshrl.u32 %v5412, 7
        %v5414 = vsub.s32 %v5411, %v5413
        %v5415 = vrot.slane %v5387, %v5414
        %v5416 = vcombine.high %v5394, %v5394
        %v5417 = vcombine.high %v5401, %v5401
        %v5418 = vcombine.high %v5408, %v5408
        %v5419 = vcombine.high %v5415, %v5415
        %v5421 = vunpack.c.l.s4 1966171168
        %v5422 = vunpack.c.0.s8 %v5421
        %v5423 = vlaneseq
        %v5424 = vshrl.u32 %v5423, 7
        %v5425 = vsub.s32 %v5422, %v5424
        %v5426 = vrot.slane %v5366, %v5425
        %v5427 = vcombine.high %v5426, %v5426
        %v5429 = vunpack.c.l.s4 1966171168
        %v5430 = vunpack.c.0.s8 %v5429
        %v5431 = vlaneseq
        %v5432 = vshrl.u32 %v5431, 7
        %v5433 = vsub.s32 %v5430, %v5432
        %v5434 = vrot.slane %v5426, %v5433
        %v5436 = vunpack.c.l.s4 1966171168
        %v5437 = vunpack.c.0.s8 %v5436
        %v5438 = vlaneseq
        %v5439 = vshrl.u32 %v5438, 7
        %v5440 = vsub.s32 %v5437, %v5439
        %v5441 = vrot.slane %v5427, %v5440
        %v5442 = vcombine.high %v5434, %v5434
        %v5443 = vcombine.high %v5441, %v5441
        %5456 = vst.msk [vmem:[#allocation3 + $0x3] sm:$0x1] %vm543, %v5394
        %5457 = vst.msk [vmem:[#allocation3 + $0x13] sm:$0x1] %vm543, %v5408
        %5458 = vst.msk [vmem:[#allocation3 + $0x23] sm:$0x1] %vm543, %v5416
        %5459 = vst.msk [vmem:[#allocation3 + $0x33] sm:$0x1] %vm543, %v5418
        %5460 = vst.msk [vmem:[#allocation3 + $0x43] sm:$0x1] %vm543, %v5401
        %5461 = vst.msk [vmem:[#allocation3 + $0x53] sm:$0x1] %vm543, %v5415
        %5462 = vst.msk [vmem:[#allocation3 + $0x63] sm:$0x1] %vm543, %v5417
        %5463 = vst.msk [vmem:[#allocation3 + $0x73] sm:$0x1] %vm543, %v5419
        %5464 = vst.msk [vmem:[#allocation3 + $0x83] sm:$0x1] %vm543, %v5434
        %5465 = vst.msk [vmem:[#allocation3 + $0x93] sm:$0x1] %vm543, %v5441
        %5466 = vst.msk [vmem:[#allocation3 + $0xa3] sm:$0x1] %vm543, %v5442
        %5467 = vst.msk [vmem:[#allocation3 + $0xb3] sm:$0x1] %vm543, %v5443
        %v5468 = vld [vmem:[#allocation2] sm:$0xff]
        %v5469 = vld [vmem:[#allocation2 + $0x10] sm:$0xf]
        %5472 = vrot.lane.b32.xlu0 %v5468, 64
        %v5473 = vpop.permute.xlu0 %5472
        %5474 = vrot.lane.b32.xlu0 %v5469, 64
        %v5475 = vpop.permute.xlu0 %5474
        %v5476 = vsel %vm374, %v5473, 0
        %v5478 = vsel %vm374, %v5475, 0
        %5480 = vmatprep.subr.mxu0 0.0
        %5481 = vmatpush1.msra.mxu0 0.0
        %5482 = vmatprep.subr.mxu0 0.0
        %5483 = vmatpush1.msra.mxu0 0.0
        %5484 = vmatprep.subr.mxu0 0.0
        %5485 = vmatpush1.msra.mxu0 0.0
        %5486 = vmatprep.subr.mxu0 0.0
        %5487 = vmatpush1.msra.mxu0 0.0
        %5488 = vmatprep.subr.mxu0 0.0
        %5489 = vmatpush1.msra.mxu0 0.0
        %5490 = vmatprep.subr.mxu0 0.0
        %5491 = vmatpush1.msra.mxu0 0.0
        %5492 = vmatprep.subr.mxu0 0.0
        %5493 = vmatpush1.msra.mxu0 0.0
        %5494 = vmatprep.subr.mxu0 0.0
        %5495 = vmatpush1.msra.mxu0 0.0
        %5496 = vmatprep.subr.mxu0 0.0
        %5497 = vmatpush1.msra.mxu0 0.0
        %5498 = vmatprep.subr.mxu0 0.0
        %5499 = vmatpush1.msra.mxu0 0.0
        %5500 = vmatprep.subr.mxu0 0.0
        %5501 = vmatpush1.msra.mxu0 0.0
        %5502 = vmatprep.subr.mxu0 0.0
        %5503 = vmatpush1.msra.mxu0 0.0
        %5504 = vmatprep.subr.mxu0 0.0
        %5505 = vmatpush1.msra.mxu0 0.0
        %5506 = vmatprep.subr.mxu0 0.0
        %5507 = vmatpush1.msra.mxu0 0.0
        %5508 = vmatprep.subr.mxu0 0.0
        %5509 = vmatpush1.msra.mxu0 %v255
        %5510 = vmatprep.subr.mxu0 0.0
        %5511 = vmatpush1.msra.mxu0 %v254
        %5512 = vmatprep.subr.mxu0 0.0
        %5513 = vmatpush2.msra.mxu0 0.0
        %5514 = vmatprep.subr.mxu0 0.0
        %5515 = vmatpush2.msra.mxu0 0.0
        %5516 = vmatprep.subr.mxu0 0.0
        %5517 = vmatpush2.msra.mxu0 0.0
        %5518 = vmatprep.subr.mxu0 0.0
        %5519 = vmatpush2.msra.mxu0 0.0
        %5520 = vmatprep.subr.mxu0 0.0
        %5521 = vmatpush2.msra.mxu0 0.0
        %5522 = vmatprep.subr.mxu0 0.0
        %5523 = vmatpush2.msra.mxu0 0.0
        %5524 = vmatprep.subr.mxu0 0.0
        %5525 = vmatpush2.msra.mxu0 0.0
        %5526 = vmatprep.subr.mxu0 0.0
        %5527 = vmatpush2.msra.mxu0 0.0
        %5528 = vmatprep.subr.mxu0 0.0
        %5529 = vmatpush2.msra.mxu0 0.0
        %5530 = vmatprep.subr.mxu0 0.0
        %5531 = vmatpush2.msra.mxu0 0.0
        %5532 = vmatprep.subr.mxu0 0.0
        %5533 = vmatpush2.msra.mxu0 0.0
        %5534 = vmatprep.subr.mxu0 0.0
        %5535 = vmatpush2.msra.mxu0 0.0
        %5536 = vmatprep.subr.mxu0 0.0
        %5537 = vmatpush2.msra.mxu0 0.0
        %5538 = vmatprep.subr.mxu0 0.0
        %5539 = vmatpush2.msra.mxu0 0.0
        %5540 = vmatprep.subr.mxu0 0.0
        %5541 = vmatpush2.msra.mxu0 0.0
        %5542 = vmatprep.subr.mxu0 0.0
        %5543 = vmatpush2.msra.mxu0 0.0
        %5544 = vmatprep.mubr.f32.mxu0 0.0
        %5545 = vmatmul.mubr.f32.gmra.mxu0 %v5476
        %v5546 = vpop.f32.mrf.mxu0
        %v5547 = vadd.f32 0.0, %v5546
        %v5548 = vpop.f32.mrf.mxu0
        %5549 = vmatprep.mubr.f32.mxu0 0.0
        %5550 = vmatmul.mubr.f32.gmra.mxu0 %v5478
        %v5551 = vpop.f32.mrf.mxu0
        %v5552 = vadd.f32 0.0, %v5551
        %v5553 = vpop.f32.mrf.mxu0
        %5554 = vdwg.mxu0
        %v5557 = vcombine.high %v5547, %v5547
        %v5559 = vunpack.c.l.s4 1966171168
        %v5560 = vunpack.c.0.s8 %v5559
        %v5561 = vlaneseq
        %v5562 = vshrl.u32 %v5561, 7
        %v5563 = vsub.s32 %v5560, %v5562
        %v5564 = vrot.slane %v5547, %v5563
        %v5566 = vunpack.c.l.s4 1966171168
        %v5567 = vunpack.c.0.s8 %v5566
        %v5568 = vlaneseq
        %v5569 = vshrl.u32 %v5568, 7
        %v5570 = vsub.s32 %v5567, %v5569
        %v5571 = vrot.slane %v5557, %v5570
        %v5572 = vcombine.high %v5564, %v5564
        %v5573 = vcombine.high %v5571, %v5571
        %v5575 = vunpack.c.l.s4 1966171168
        %v5576 = vunpack.c.0.s8 %v5575
        %v5577 = vlaneseq
        %v5578 = vshrl.u32 %v5577, 7
        %v5579 = vsub.s32 %v5576, %v5578
        %v5580 = vrot.slane %v5564, %v5579
        %v5582 = vunpack.c.l.s4 1966171168
        %v5583 = vunpack.c.0.s8 %v5582
        %v5584 = vlaneseq
        %v5585 = vshrl.u32 %v5584, 7
        %v5586 = vsub.s32 %v5583, %v5585
        %v5587 = vrot.slane %v5571, %v5586
        %v5589 = vunpack.c.l.s4 1966171168
        %v5590 = vunpack.c.0.s8 %v5589
        %v5591 = vlaneseq
        %v5592 = vshrl.u32 %v5591, 7
        %v5593 = vsub.s32 %v5590, %v5592
        %v5594 = vrot.slane %v5572, %v5593
        %v5596 = vunpack.c.l.s4 1966171168
        %v5597 = vunpack.c.0.s8 %v5596
        %v5598 = vlaneseq
        %v5599 = vshrl.u32 %v5598, 7
        %v5600 = vsub.s32 %v5597, %v5599
        %v5601 = vrot.slane %v5573, %v5600
        %v5602 = vcombine.high %v5580, %v5580
        %v5603 = vcombine.high %v5587, %v5587
        %v5604 = vcombine.high %v5594, %v5594
        %v5605 = vcombine.high %v5601, %v5601
        %v5607 = vunpack.c.l.s4 1966171168
        %v5608 = vunpack.c.0.s8 %v5607
        %v5609 = vlaneseq
        %v5610 = vshrl.u32 %v5609, 7
        %v5611 = vsub.s32 %v5608, %v5610
        %v5612 = vrot.slane %v5552, %v5611
        %v5613 = vcombine.high %v5612, %v5612
        %v5615 = vunpack.c.l.s4 1966171168
        %v5616 = vunpack.c.0.s8 %v5615
        %v5617 = vlaneseq
        %v5618 = vshrl.u32 %v5617, 7
        %v5619 = vsub.s32 %v5616, %v5618
        %v5620 = vrot.slane %v5612, %v5619
        %v5622 = vunpack.c.l.s4 1966171168
        %v5623 = vunpack.c.0.s8 %v5622
        %v5624 = vlaneseq
        %v5625 = vshrl.u32 %v5624, 7
        %v5626 = vsub.s32 %v5623, %v5625
        %v5627 = vrot.slane %v5613, %v5626
        %v5628 = vcombine.high %v5620, %v5620
        %v5629 = vcombine.high %v5627, %v5627
        %5642 = vst.msk [vmem:[#allocation3 + $0x4] sm:$0x1] %vm543, %v5580
        %5643 = vst.msk [vmem:[#allocation3 + $0x14] sm:$0x1] %vm543, %v5594
        %5644 = vst.msk [vmem:[#allocation3 + $0x24] sm:$0x1] %vm543, %v5602
        %5645 = vst.msk [vmem:[#allocation3 + $0x34] sm:$0x1] %vm543, %v5604
        %5646 = vst.msk [vmem:[#allocation3 + $0x44] sm:$0x1] %vm543, %v5587
        %5647 = vst.msk [vmem:[#allocation3 + $0x54] sm:$0x1] %vm543, %v5601
        %5648 = vst.msk [vmem:[#allocation3 + $0x64] sm:$0x1] %vm543, %v5603
        %5649 = vst.msk [vmem:[#allocation3 + $0x74] sm:$0x1] %vm543, %v5605
        %5650 = vst.msk [vmem:[#allocation3 + $0x84] sm:$0x1] %vm543, %v5620
        %5651 = vst.msk [vmem:[#allocation3 + $0x94] sm:$0x1] %vm543, %v5627
        %5652 = vst.msk [vmem:[#allocation3 + $0xa4] sm:$0x1] %vm543, %v5628
        %5653 = vst.msk [vmem:[#allocation3 + $0xb4] sm:$0x1] %vm543, %v5629
        %v5654 = vld [vmem:[#allocation2] sm:$0xff]
        %v5655 = vld [vmem:[#allocation2 + $0x10] sm:$0xf]
        %5658 = vrot.lane.b32.xlu0 %v5654, 48
        %v5659 = vpop.permute.xlu0 %5658
        %5660 = vrot.lane.b32.xlu0 %v5655, 48
        %v5661 = vpop.permute.xlu0 %5660
        %v5662 = vsel %vm374, %v5659, 0
        %v5664 = vsel %vm374, %v5661, 0
        %5666 = vmatprep.subr.mxu0 0.0
        %5667 = vmatpush1.msra.mxu0 0.0
        %5668 = vmatprep.subr.mxu0 0.0
        %5669 = vmatpush1.msra.mxu0 0.0
        %5670 = vmatprep.subr.mxu0 0.0
        %5671 = vmatpush1.msra.mxu0 0.0
        %5672 = vmatprep.subr.mxu0 0.0
        %5673 = vmatpush1.msra.mxu0 0.0
        %5674 = vmatprep.subr.mxu0 0.0
        %5675 = vmatpush1.msra.mxu0 0.0
        %5676 = vmatprep.subr.mxu0 0.0
        %5677 = vmatpush1.msra.mxu0 0.0
        %5678 = vmatprep.subr.mxu0 0.0
        %5679 = vmatpush1.msra.mxu0 0.0
        %5680 = vmatprep.subr.mxu0 0.0
        %5681 = vmatpush1.msra.mxu0 0.0
        %5682 = vmatprep.subr.mxu0 0.0
        %5683 = vmatpush1.msra.mxu0 0.0
        %5684 = vmatprep.subr.mxu0 0.0
        %5685 = vmatpush1.msra.mxu0 0.0
        %5686 = vmatprep.subr.mxu0 0.0
        %5687 = vmatpush1.msra.mxu0 0.0
        %5688 = vmatprep.subr.mxu0 0.0
        %5689 = vmatpush1.msra.mxu0 0.0
        %5690 = vmatprep.subr.mxu0 0.0
        %5691 = vmatpush1.msra.mxu0 0.0
        %5692 = vmatprep.subr.mxu0 0.0
        %5693 = vmatpush1.msra.mxu0 0.0
        %5694 = vmatprep.subr.mxu0 0.0
        %5695 = vmatpush1.msra.mxu0 %v255
        %5696 = vmatprep.subr.mxu0 0.0
        %5697 = vmatpush1.msra.mxu0 %v254
        %5698 = vmatprep.subr.mxu0 0.0
        %5699 = vmatpush2.msra.mxu0 0.0
        %5700 = vmatprep.subr.mxu0 0.0
        %5701 = vmatpush2.msra.mxu0 0.0
        %5702 = vmatprep.subr.mxu0 0.0
        %5703 = vmatpush2.msra.mxu0 0.0
        %5704 = vmatprep.subr.mxu0 0.0
        %5705 = vmatpush2.msra.mxu0 0.0
        %5706 = vmatprep.subr.mxu0 0.0
        %5707 = vmatpush2.msra.mxu0 0.0
        %5708 = vmatprep.subr.mxu0 0.0
        %5709 = vmatpush2.msra.mxu0 0.0
        %5710 = vmatprep.subr.mxu0 0.0
        %5711 = vmatpush2.msra.mxu0 0.0
        %5712 = vmatprep.subr.mxu0 0.0
        %5713 = vmatpush2.msra.mxu0 0.0
        %5714 = vmatprep.subr.mxu0 0.0
        %5715 = vmatpush2.msra.mxu0 0.0
        %5716 = vmatprep.subr.mxu0 0.0
        %5717 = vmatpush2.msra.mxu0 0.0
        %5718 = vmatprep.subr.mxu0 0.0
        %5719 = vmatpush2.msra.mxu0 0.0
        %5720 = vmatprep.subr.mxu0 0.0
        %5721 = vmatpush2.msra.mxu0 0.0
        %5722 = vmatprep.subr.mxu0 0.0
        %5723 = vmatpush2.msra.mxu0 0.0
        %5724 = vmatprep.subr.mxu0 0.0
        %5725 = vmatpush2.msra.mxu0 0.0
        %5726 = vmatprep.subr.mxu0 0.0
        %5727 = vmatpush2.msra.mxu0 0.0
        %5728 = vmatprep.subr.mxu0 0.0
        %5729 = vmatpush2.msra.mxu0 0.0
        %5730 = vmatprep.mubr.f32.mxu0 0.0
        %5731 = vmatmul.mubr.f32.gmra.mxu0 %v5662
        %v5732 = vpop.f32.mrf.mxu0
        %v5733 = vadd.f32 0.0, %v5732
        %v5734 = vpop.f32.mrf.mxu0
        %5735 = vmatprep.mubr.f32.mxu0 0.0
        %5736 = vmatmul.mubr.f32.gmra.mxu0 %v5664
        %v5737 = vpop.f32.mrf.mxu0
        %v5738 = vadd.f32 0.0, %v5737
        %v5739 = vpop.f32.mrf.mxu0
        %5740 = vdwg.mxu0
        %v5743 = vcombine.high %v5733, %v5733
        %v5745 = vunpack.c.l.s4 1966171168
        %v5746 = vunpack.c.0.s8 %v5745
        %v5747 = vlaneseq
        %v5748 = vshrl.u32 %v5747, 7
        %v5749 = vsub.s32 %v5746, %v5748
        %v5750 = vrot.slane %v5733, %v5749
        %v5752 = vunpack.c.l.s4 1966171168
        %v5753 = vunpack.c.0.s8 %v5752
        %v5754 = vlaneseq
        %v5755 = vshrl.u32 %v5754, 7
        %v5756 = vsub.s32 %v5753, %v5755
        %v5757 = vrot.slane %v5743, %v5756
        %v5758 = vcombine.high %v5750, %v5750
        %v5759 = vcombine.high %v5757, %v5757
        %v5761 = vunpack.c.l.s4 1966171168
        %v5762 = vunpack.c.0.s8 %v5761
        %v5763 = vlaneseq
        %v5764 = vshrl.u32 %v5763, 7
        %v5765 = vsub.s32 %v5762, %v5764
        %v5766 = vrot.slane %v5750, %v5765
        %v5768 = vunpack.c.l.s4 1966171168
        %v5769 = vunpack.c.0.s8 %v5768
        %v5770 = vlaneseq
        %v5771 = vshrl.u32 %v5770, 7
        %v5772 = vsub.s32 %v5769, %v5771
        %v5773 = vrot.slane %v5757, %v5772
        %v5775 = vunpack.c.l.s4 1966171168
        %v5776 = vunpack.c.0.s8 %v5775
        %v5777 = vlaneseq
        %v5778 = vshrl.u32 %v5777, 7
        %v5779 = vsub.s32 %v5776, %v5778
        %v5780 = vrot.slane %v5758, %v5779
        %v5782 = vunpack.c.l.s4 1966171168
        %v5783 = vunpack.c.0.s8 %v5782
        %v5784 = vlaneseq
        %v5785 = vshrl.u32 %v5784, 7
        %v5786 = vsub.s32 %v5783, %v5785
        %v5787 = vrot.slane %v5759, %v5786
        %v5788 = vcombine.high %v5766, %v5766
        %v5789 = vcombine.high %v5773, %v5773
        %v5790 = vcombine.high %v5780, %v5780
        %v5791 = vcombine.high %v5787, %v5787
        %v5793 = vunpack.c.l.s4 1966171168
        %v5794 = vunpack.c.0.s8 %v5793
        %v5795 = vlaneseq
        %v5796 = vshrl.u32 %v5795, 7
        %v5797 = vsub.s32 %v5794, %v5796
        %v5798 = vrot.slane %v5738, %v5797
        %v5799 = vcombine.high %v5798, %v5798
        %v5801 = vunpack.c.l.s4 1966171168
        %v5802 = vunpack.c.0.s8 %v5801
        %v5803 = vlaneseq
        %v5804 = vshrl.u32 %v5803, 7
        %v5805 = vsub.s32 %v5802, %v5804
        %v5806 = vrot.slane %v5798, %v5805
        %v5808 = vunpack.c.l.s4 1966171168
        %v5809 = vunpack.c.0.s8 %v5808
        %v5810 = vlaneseq
        %v5811 = vshrl.u32 %v5810, 7
        %v5812 = vsub.s32 %v5809, %v5811
        %v5813 = vrot.slane %v5799, %v5812
        %v5814 = vcombine.high %v5806, %v5806
        %v5815 = vcombine.high %v5813, %v5813
        %5828 = vst.msk [vmem:[#allocation3 + $0x5] sm:$0x1] %vm543, %v5766
        %5829 = vst.msk [vmem:[#allocation3 + $0x15] sm:$0x1] %vm543, %v5780
        %5830 = vst.msk [vmem:[#allocation3 + $0x25] sm:$0x1] %vm543, %v5788
        %5831 = vst.msk [vmem:[#allocation3 + $0x35] sm:$0x1] %vm543, %v5790
        %5832 = vst.msk [vmem:[#allocation3 + $0x45] sm:$0x1] %vm543, %v5773
        %5833 = vst.msk [vmem:[#allocation3 + $0x55] sm:$0x1] %vm543, %v5787
        %5834 = vst.msk [vmem:[#allocation3 + $0x65] sm:$0x1] %vm543, %v5789
        %5835 = vst.msk [vmem:[#allocation3 + $0x75] sm:$0x1] %vm543, %v5791
        %5836 = vst.msk [vmem:[#allocation3 + $0x85] sm:$0x1] %vm543, %v5806
        %5837 = vst.msk [vmem:[#allocation3 + $0x95] sm:$0x1] %vm543, %v5813
        %5838 = vst.msk [vmem:[#allocation3 + $0xa5] sm:$0x1] %vm543, %v5814
        %5839 = vst.msk [vmem:[#allocation3 + $0xb5] sm:$0x1] %vm543, %v5815
        %v5840 = vld [vmem:[#allocation2] sm:$0xff]
        %v5841 = vld [vmem:[#allocation2 + $0x10] sm:$0xf]
        %5844 = vrot.lane.b32.xlu0 %v5840, 32
        %v5845 = vpop.permute.xlu0 %5844
        %5846 = vrot.lane.b32.xlu0 %v5841, 32
        %v5847 = vpop.permute.xlu0 %5846
        %v5848 = vsel %vm374, %v5845, 0
        %v5850 = vsel %vm374, %v5847, 0
        %5852 = vmatprep.subr.mxu0 0.0
        %5853 = vmatpush1.msra.mxu0 0.0
        %5854 = vmatprep.subr.mxu0 0.0
        %5855 = vmatpush1.msra.mxu0 0.0
        %5856 = vmatprep.subr.mxu0 0.0
        %5857 = vmatpush1.msra.mxu0 0.0
        %5858 = vmatprep.subr.mxu0 0.0
        %5859 = vmatpush1.msra.mxu0 0.0
        %5860 = vmatprep.subr.mxu0 0.0
        %5861 = vmatpush1.msra.mxu0 0.0
        %5862 = vmatprep.subr.mxu0 0.0
        %5863 = vmatpush1.msra.mxu0 0.0
        %5864 = vmatprep.subr.mxu0 0.0
        %5865 = vmatpush1.msra.mxu0 0.0
        %5866 = vmatprep.subr.mxu0 0.0
        %5867 = vmatpush1.msra.mxu0 0.0
        %5868 = vmatprep.subr.mxu0 0.0
        %5869 = vmatpush1.msra.mxu0 0.0
        %5870 = vmatprep.subr.mxu0 0.0
        %5871 = vmatpush1.msra.mxu0 0.0
        %5872 = vmatprep.subr.mxu0 0.0
        %5873 = vmatpush1.msra.mxu0 0.0
        %5874 = vmatprep.subr.mxu0 0.0
        %5875 = vmatpush1.msra.mxu0 0.0
        %5876 = vmatprep.subr.mxu0 0.0
        %5877 = vmatpush1.msra.mxu0 0.0
        %5878 = vmatprep.subr.mxu0 0.0
        %5879 = vmatpush1.msra.mxu0 0.0
        %5880 = vmatprep.subr.mxu0 0.0
        %5881 = vmatpush1.msra.mxu0 %v255
        %5882 = vmatprep.subr.mxu0 0.0
        %5883 = vmatpush1.msra.mxu0 %v254
        %5884 = vmatprep.subr.mxu0 0.0
        %5885 = vmatpush2.msra.mxu0 0.0
        %5886 = vmatprep.subr.mxu0 0.0
        %5887 = vmatpush2.msra.mxu0 0.0
        %5888 = vmatprep.subr.mxu0 0.0
        %5889 = vmatpush2.msra.mxu0 0.0
        %5890 = vmatprep.subr.mxu0 0.0
        %5891 = vmatpush2.msra.mxu0 0.0
        %5892 = vmatprep.subr.mxu0 0.0
        %5893 = vmatpush2.msra.mxu0 0.0
        %5894 = vmatprep.subr.mxu0 0.0
        %5895 = vmatpush2.msra.mxu0 0.0
        %5896 = vmatprep.subr.mxu0 0.0
        %5897 = vmatpush2.msra.mxu0 0.0
        %5898 = vmatprep.subr.mxu0 0.0
        %5899 = vmatpush2.msra.mxu0 0.0
        %5900 = vmatprep.subr.mxu0 0.0
        %5901 = vmatpush2.msra.mxu0 0.0
        %5902 = vmatprep.subr.mxu0 0.0
        %5903 = vmatpush2.msra.mxu0 0.0
        %5904 = vmatprep.subr.mxu0 0.0
        %5905 = vmatpush2.msra.mxu0 0.0
        %5906 = vmatprep.subr.mxu0 0.0
        %5907 = vmatpush2.msra.mxu0 0.0
        %5908 = vmatprep.subr.mxu0 0.0
        %5909 = vmatpush2.msra.mxu0 0.0
        %5910 = vmatprep.subr.mxu0 0.0
        %5911 = vmatpush2.msra.mxu0 0.0
        %5912 = vmatprep.subr.mxu0 0.0
        %5913 = vmatpush2.msra.mxu0 0.0
        %5914 = vmatprep.subr.mxu0 0.0
        %5915 = vmatpush2.msra.mxu0 0.0
        %5916 = vmatprep.mubr.f32.mxu0 0.0
        %5917 = vmatmul.mubr.f32.gmra.mxu0 %v5848
        %v5918 = vpop.f32.mrf.mxu0
        %v5919 = vadd.f32 0.0, %v5918
        %v5920 = vpop.f32.mrf.mxu0
        %5921 = vmatprep.mubr.f32.mxu0 0.0
        %5922 = vmatmul.mubr.f32.gmra.mxu0 %v5850
        %v5923 = vpop.f32.mrf.mxu0
        %v5924 = vadd.f32 0.0, %v5923
        %v5925 = vpop.f32.mrf.mxu0
        %5926 = vdwg.mxu0
        %v5929 = vcombine.high %v5919, %v5919
        %v5931 = vunpack.c.l.s4 1966171168
        %v5932 = vunpack.c.0.s8 %v5931
        %v5933 = vlaneseq
        %v5934 = vshrl.u32 %v5933, 7
        %v5935 = vsub.s32 %v5932, %v5934
        %v5936 = vrot.slane %v5919, %v5935
        %v5938 = vunpack.c.l.s4 1966171168
        %v5939 = vunpack.c.0.s8 %v5938
        %v5940 = vlaneseq
        %v5941 = vshrl.u32 %v5940, 7
        %v5942 = vsub.s32 %v5939, %v5941
        %v5943 = vrot.slane %v5929, %v5942
        %v5944 = vcombine.high %v5936, %v5936
        %v5945 = vcombine.high %v5943, %v5943
        %v5947 = vunpack.c.l.s4 1966171168
        %v5948 = vunpack.c.0.s8 %v5947
        %v5949 = vlaneseq
        %v5950 = vshrl.u32 %v5949, 7
        %v5951 = vsub.s32 %v5948, %v5950
        %v5952 = vrot.slane %v5936, %v5951
        %v5954 = vunpack.c.l.s4 1966171168
        %v5955 = vunpack.c.0.s8 %v5954
        %v5956 = vlaneseq
        %v5957 = vshrl.u32 %v5956, 7
        %v5958 = vsub.s32 %v5955, %v5957
        %v5959 = vrot.slane %v5943, %v5958
        %v5961 = vunpack.c.l.s4 1966171168
        %v5962 = vunpack.c.0.s8 %v5961
        %v5963 = vlaneseq
        %v5964 = vshrl.u32 %v5963, 7
        %v5965 = vsub.s32 %v5962, %v5964
        %v5966 = vrot.slane %v5944, %v5965
        %v5968 = vunpack.c.l.s4 1966171168
        %v5969 = vunpack.c.0.s8 %v5968
        %v5970 = vlaneseq
        %v5971 = vshrl.u32 %v5970, 7
        %v5972 = vsub.s32 %v5969, %v5971
        %v5973 = vrot.slane %v5945, %v5972
        %v5974 = vcombine.high %v5952, %v5952
        %v5975 = vcombine.high %v5959, %v5959
        %v5976 = vcombine.high %v5966, %v5966
        %v5977 = vcombine.high %v5973, %v5973
        %v5979 = vunpack.c.l.s4 1966171168
        %v5980 = vunpack.c.0.s8 %v5979
        %v5981 = vlaneseq
        %v5982 = vshrl.u32 %v5981, 7
        %v5983 = vsub.s32 %v5980, %v5982
        %v5984 = vrot.slane %v5924, %v5983
        %v5985 = vcombine.high %v5984, %v5984
        %v5987 = vunpack.c.l.s4 1966171168
        %v5988 = vunpack.c.0.s8 %v5987
        %v5989 = vlaneseq
        %v5990 = vshrl.u32 %v5989, 7
        %v5991 = vsub.s32 %v5988, %v5990
        %v5992 = vrot.slane %v5984, %v5991
        %v5994 = vunpack.c.l.s4 1966171168
        %v5995 = vunpack.c.0.s8 %v5994
        %v5996 = vlaneseq
        %v5997 = vshrl.u32 %v5996, 7
        %v5998 = vsub.s32 %v5995, %v5997
        %v5999 = vrot.slane %v5985, %v5998
        %v6000 = vcombine.high %v5992, %v5992
        %v6001 = vcombine.high %v5999, %v5999
        %6014 = vst.msk [vmem:[#allocation3 + $0x6] sm:$0x1] %vm543, %v5952
        %6015 = vst.msk [vmem:[#allocation3 + $0x16] sm:$0x1] %vm543, %v5966
        %6016 = vst.msk [vmem:[#allocation3 + $0x26] sm:$0x1] %vm543, %v5974
        %6017 = vst.msk [vmem:[#allocation3 + $0x36] sm:$0x1] %vm543, %v5976
        %6018 = vst.msk [vmem:[#allocation3 + $0x46] sm:$0x1] %vm543, %v5959
        %6019 = vst.msk [vmem:[#allocation3 + $0x56] sm:$0x1] %vm543, %v5973
        %6020 = vst.msk [vmem:[#allocation3 + $0x66] sm:$0x1] %vm543, %v5975
        %6021 = vst.msk [vmem:[#allocation3 + $0x76] sm:$0x1] %vm543, %v5977
        %6022 = vst.msk [vmem:[#allocation3 + $0x86] sm:$0x1] %vm543, %v5992
        %6023 = vst.msk [vmem:[#allocation3 + $0x96] sm:$0x1] %vm543, %v5999
        %6024 = vst.msk [vmem:[#allocation3 + $0xa6] sm:$0x1] %vm543, %v6000
        %6025 = vst.msk [vmem:[#allocation3 + $0xb6] sm:$0x1] %vm543, %v6001
        %v6026 = vld [vmem:[#allocation2] sm:$0xff]
        %v6027 = vld [vmem:[#allocation2 + $0x10] sm:$0xf]
        %6030 = vrot.lane.b32.xlu0 %v6026, 16
        %v6031 = vpop.permute.xlu0 %6030
        %6032 = vrot.lane.b32.xlu0 %v6027, 16
        %v6033 = vpop.permute.xlu0 %6032
        %v6034 = vsel %vm374, %v6031, 0
        %v6036 = vsel %vm374, %v6033, 0
        %6038 = vmatprep.subr.mxu0 0.0
        %6039 = vmatpush1.msra.mxu0 0.0
        %6040 = vmatprep.subr.mxu0 0.0
        %6041 = vmatpush1.msra.mxu0 0.0
        %6042 = vmatprep.subr.mxu0 0.0
        %6043 = vmatpush1.msra.mxu0 0.0
        %6044 = vmatprep.subr.mxu0 0.0
        %6045 = vmatpush1.msra.mxu0 0.0
        %6046 = vmatprep.subr.mxu0 0.0
        %6047 = vmatpush1.msra.mxu0 0.0
        %6048 = vmatprep.subr.mxu0 0.0
        %6049 = vmatpush1.msra.mxu0 0.0
        %6050 = vmatprep.subr.mxu0 0.0
        %6051 = vmatpush1.msra.mxu0 0.0
        %6052 = vmatprep.subr.mxu0 0.0
        %6053 = vmatpush1.msra.mxu0 0.0
        %6054 = vmatprep.subr.mxu0 0.0
        %6055 = vmatpush1.msra.mxu0 0.0
        %6056 = vmatprep.subr.mxu0 0.0
        %6057 = vmatpush1.msra.mxu0 0.0
        %6058 = vmatprep.subr.mxu0 0.0
        %6059 = vmatpush1.msra.mxu0 0.0
        %6060 = vmatprep.subr.mxu0 0.0
        %6061 = vmatpush1.msra.mxu0 0.0
        %6062 = vmatprep.subr.mxu0 0.0
        %6063 = vmatpush1.msra.mxu0 0.0
        %6064 = vmatprep.subr.mxu0 0.0
        %6065 = vmatpush1.msra.mxu0 0.0
        %6066 = vmatprep.subr.mxu0 0.0
        %6067 = vmatpush1.msra.mxu0 %v255
        %6068 = vmatprep.subr.mxu0 0.0
        %6069 = vmatpush1.msra.mxu0 %v254
        %6070 = vmatprep.subr.mxu0 0.0
        %6071 = vmatpush2.msra.mxu0 0.0
        %6072 = vmatprep.subr.mxu0 0.0
        %6073 = vmatpush2.msra.mxu0 0.0
        %6074 = vmatprep.subr.mxu0 0.0
        %6075 = vmatpush2.msra.mxu0 0.0
        %6076 = vmatprep.subr.mxu0 0.0
        %6077 = vmatpush2.msra.mxu0 0.0
        %6078 = vmatprep.subr.mxu0 0.0
        %6079 = vmatpush2.msra.mxu0 0.0
        %6080 = vmatprep.subr.mxu0 0.0
        %6081 = vmatpush2.msra.mxu0 0.0
        %6082 = vmatprep.subr.mxu0 0.0
        %6083 = vmatpush2.msra.mxu0 0.0
        %6084 = vmatprep.subr.mxu0 0.0
        %6085 = vmatpush2.msra.mxu0 0.0
        %6086 = vmatprep.subr.mxu0 0.0
        %6087 = vmatpush2.msra.mxu0 0.0
        %6088 = vmatprep.subr.mxu0 0.0
        %6089 = vmatpush2.msra.mxu0 0.0
        %6090 = vmatprep.subr.mxu0 0.0
        %6091 = vmatpush2.msra.mxu0 0.0
        %6092 = vmatprep.subr.mxu0 0.0
        %6093 = vmatpush2.msra.mxu0 0.0
        %6094 = vmatprep.subr.mxu0 0.0
        %6095 = vmatpush2.msra.mxu0 0.0
        %6096 = vmatprep.subr.mxu0 0.0
        %6097 = vmatpush2.msra.mxu0 0.0
        %6098 = vmatprep.subr.mxu0 0.0
        %6099 = vmatpush2.msra.mxu0 0.0
        %6100 = vmatprep.subr.mxu0 0.0
        %6101 = vmatpush2.msra.mxu0 0.0
        %6102 = vmatprep.mubr.f32.mxu0 0.0
        %6103 = vmatmul.mubr.f32.gmra.mxu0 %v6034
        %v6104 = vpop.f32.mrf.mxu0
        %v6105 = vadd.f32 0.0, %v6104
        %v6106 = vpop.f32.mrf.mxu0
        %6107 = vmatprep.mubr.f32.mxu0 0.0
        %6108 = vmatmul.mubr.f32.gmra.mxu0 %v6036
        %v6109 = vpop.f32.mrf.mxu0
        %v6110 = vadd.f32 0.0, %v6109
        %v6111 = vpop.f32.mrf.mxu0
        %6112 = vdwg.mxu0
        %v6115 = vcombine.high %v6105, %v6105
        %v6117 = vunpack.c.l.s4 1966171168
        %v6118 = vunpack.c.0.s8 %v6117
        %v6119 = vlaneseq
        %v6120 = vshrl.u32 %v6119, 7
        %v6121 = vsub.s32 %v6118, %v6120
        %v6122 = vrot.slane %v6105, %v6121
        %v6124 = vunpack.c.l.s4 1966171168
        %v6125 = vunpack.c.0.s8 %v6124
        %v6126 = vlaneseq
        %v6127 = vshrl.u32 %v6126, 7
        %v6128 = vsub.s32 %v6125, %v6127
        %v6129 = vrot.slane %v6115, %v6128
        %v6130 = vcombine.high %v6122, %v6122
        %v6131 = vcombine.high %v6129, %v6129
        %v6133 = vunpack.c.l.s4 1966171168
        %v6134 = vunpack.c.0.s8 %v6133
        %v6135 = vlaneseq
        %v6136 = vshrl.u32 %v6135, 7
        %v6137 = vsub.s32 %v6134, %v6136
        %v6138 = vrot.slane %v6122, %v6137
        %v6140 = vunpack.c.l.s4 1966171168
        %v6141 = vunpack.c.0.s8 %v6140
        %v6142 = vlaneseq
        %v6143 = vshrl.u32 %v6142, 7
        %v6144 = vsub.s32 %v6141, %v6143
        %v6145 = vrot.slane %v6129, %v6144
        %v6147 = vunpack.c.l.s4 1966171168
        %v6148 = vunpack.c.0.s8 %v6147
        %v6149 = vlaneseq
        %v6150 = vshrl.u32 %v6149, 7
        %v6151 = vsub.s32 %v6148, %v6150
        %v6152 = vrot.slane %v6130, %v6151
        %v6154 = vunpack.c.l.s4 1966171168
        %v6155 = vunpack.c.0.s8 %v6154
        %v6156 = vlaneseq
        %v6157 = vshrl.u32 %v6156, 7
        %v6158 = vsub.s32 %v6155, %v6157
        %v6159 = vrot.slane %v6131, %v6158
        %v6160 = vcombine.high %v6138, %v6138
        %v6161 = vcombine.high %v6145, %v6145
        %v6162 = vcombine.high %v6152, %v6152
        %v6163 = vcombine.high %v6159, %v6159
        %v6165 = vunpack.c.l.s4 1966171168
        %v6166 = vunpack.c.0.s8 %v6165
        %v6167 = vlaneseq
        %v6168 = vshrl.u32 %v6167, 7
        %v6169 = vsub.s32 %v6166, %v6168
        %v6170 = vrot.slane %v6110, %v6169
        %v6171 = vcombine.high %v6170, %v6170
        %v6173 = vunpack.c.l.s4 1966171168
        %v6174 = vunpack.c.0.s8 %v6173
        %v6175 = vlaneseq
        %v6176 = vshrl.u32 %v6175, 7
        %v6177 = vsub.s32 %v6174, %v6176
        %v6178 = vrot.slane %v6170, %v6177
        %v6180 = vunpack.c.l.s4 1966171168
        %v6181 = vunpack.c.0.s8 %v6180
        %v6182 = vlaneseq
        %v6183 = vshrl.u32 %v6182, 7
        %v6184 = vsub.s32 %v6181, %v6183
        %v6185 = vrot.slane %v6171, %v6184
        %v6186 = vcombine.high %v6178, %v6178
        %v6187 = vcombine.high %v6185, %v6185
        %6200 = vst.msk [vmem:[#allocation3 + $0x7] sm:$0x1] %vm543, %v6138
        %6201 = vst.msk [vmem:[#allocation3 + $0x17] sm:$0x1] %vm543, %v6152
        %6202 = vst.msk [vmem:[#allocation3 + $0x27] sm:$0x1] %vm543, %v6160
        %6203 = vst.msk [vmem:[#allocation3 + $0x37] sm:$0x1] %vm543, %v6162
        %6204 = vst.msk [vmem:[#allocation3 + $0x47] sm:$0x1] %vm543, %v6145
        %6205 = vst.msk [vmem:[#allocation3 + $0x57] sm:$0x1] %vm543, %v6159
        %6206 = vst.msk [vmem:[#allocation3 + $0x67] sm:$0x1] %vm543, %v6161
        %6207 = vst.msk [vmem:[#allocation3 + $0x77] sm:$0x1] %vm543, %v6163
        %6208 = vst.msk [vmem:[#allocation3 + $0x87] sm:$0x1] %vm543, %v6178
        %6209 = vst.msk [vmem:[#allocation3 + $0x97] sm:$0x1] %vm543, %v6185
        %6210 = vst.msk [vmem:[#allocation3 + $0xa7] sm:$0x1] %vm543, %v6186
        %6211 = vst.msk [vmem:[#allocation3 + $0xb7] sm:$0x1] %vm543, %v6187
        %v6212 = vld [vmem:[#allocation2 + $0x8] sm:$0xff]
        %v6213 = vld [vmem:[#allocation2 + $0x18] sm:$0xf]
        %v6215 = vsel %vm374, %v6212, 0
        %v6218 = vsel %vm374, %v6213, 0
        %6220 = vmatprep.subr.mxu0 0.0
        %6221 = vmatpush1.msra.mxu0 0.0
        %6222 = vmatprep.subr.mxu0 0.0
        %6223 = vmatpush1.msra.mxu0 0.0
        %6224 = vmatprep.subr.mxu0 0.0
        %6225 = vmatpush1.msra.mxu0 0.0
        %6226 = vmatprep.subr.mxu0 0.0
        %6227 = vmatpush1.msra.mxu0 0.0
        %6228 = vmatprep.subr.mxu0 0.0
        %6229 = vmatpush1.msra.mxu0 0.0
        %6230 = vmatprep.subr.mxu0 0.0
        %6231 = vmatpush1.msra.mxu0 0.0
        %6232 = vmatprep.subr.mxu0 0.0
        %6233 = vmatpush1.msra.mxu0 0.0
        %6234 = vmatprep.subr.mxu0 0.0
        %6235 = vmatpush1.msra.mxu0 0.0
        %6236 = vmatprep.subr.mxu0 0.0
        %6237 = vmatpush1.msra.mxu0 0.0
        %6238 = vmatprep.subr.mxu0 0.0
        %6239 = vmatpush1.msra.mxu0 0.0
        %6240 = vmatprep.subr.mxu0 0.0
        %6241 = vmatpush1.msra.mxu0 0.0
        %6242 = vmatprep.subr.mxu0 0.0
        %6243 = vmatpush1.msra.mxu0 0.0
        %6244 = vmatprep.subr.mxu0 0.0
        %6245 = vmatpush1.msra.mxu0 0.0
        %6246 = vmatprep.subr.mxu0 0.0
        %6247 = vmatpush1.msra.mxu0 0.0
        %6248 = vmatprep.subr.mxu0 0.0
        %6249 = vmatpush1.msra.mxu0 %v255
        %6250 = vmatprep.subr.mxu0 0.0
        %6251 = vmatpush1.msra.mxu0 %v254
        %6252 = vmatprep.subr.mxu0 0.0
        %6253 = vmatpush2.msra.mxu0 0.0
        %6254 = vmatprep.subr.mxu0 0.0
        %6255 = vmatpush2.msra.mxu0 0.0
        %6256 = vmatprep.subr.mxu0 0.0
        %6257 = vmatpush2.msra.mxu0 0.0
        %6258 = vmatprep.subr.mxu0 0.0
        %6259 = vmatpush2.msra.mxu0 0.0
        %6260 = vmatprep.subr.mxu0 0.0
        %6261 = vmatpush2.msra.mxu0 0.0
        %6262 = vmatprep.subr.mxu0 0.0
        %6263 = vmatpush2.msra.mxu0 0.0
        %6264 = vmatprep.subr.mxu0 0.0
        %6265 = vmatpush2.msra.mxu0 0.0
        %6266 = vmatprep.subr.mxu0 0.0
        %6267 = vmatpush2.msra.mxu0 0.0
        %6268 = vmatprep.subr.mxu0 0.0
        %6269 = vmatpush2.msra.mxu0 0.0
        %6270 = vmatprep.subr.mxu0 0.0
        %6271 = vmatpush2.msra.mxu0 0.0
        %6272 = vmatprep.subr.mxu0 0.0
        %6273 = vmatpush2.msra.mxu0 0.0
        %6274 = vmatprep.subr.mxu0 0.0
        %6275 = vmatpush2.msra.mxu0 0.0
        %6276 = vmatprep.subr.mxu0 0.0
        %6277 = vmatpush2.msra.mxu0 0.0
        %6278 = vmatprep.subr.mxu0 0.0
        %6279 = vmatpush2.msra.mxu0 0.0
        %6280 = vmatprep.subr.mxu0 0.0
        %6281 = vmatpush2.msra.mxu0 0.0
        %6282 = vmatprep.subr.mxu0 0.0
        %6283 = vmatpush2.msra.mxu0 0.0
        %6284 = vmatprep.mubr.f32.mxu0 0.0
        %6285 = vmatmul.mubr.f32.gmra.mxu0 %v6215
        %v6286 = vpop.f32.mrf.mxu0
        %v6287 = vadd.f32 0.0, %v6286
        %v6288 = vpop.f32.mrf.mxu0
        %6289 = vmatprep.mubr.f32.mxu0 0.0
        %6290 = vmatmul.mubr.f32.gmra.mxu0 %v6218
        %v6291 = vpop.f32.mrf.mxu0
        %v6292 = vadd.f32 0.0, %v6291
        %v6293 = vpop.f32.mrf.mxu0
        %6294 = vdwg.mxu0
        %v6297 = vcombine.high %v6287, %v6287
        %v6299 = vunpack.c.l.s4 1966171168
        %v6300 = vunpack.c.0.s8 %v6299
        %v6301 = vlaneseq
        %v6302 = vshrl.u32 %v6301, 7
        %v6303 = vsub.s32 %v6300, %v6302
        %v6304 = vrot.slane %v6287, %v6303
        %v6306 = vunpack.c.l.s4 1966171168
        %v6307 = vunpack.c.0.s8 %v6306
        %v6308 = vlaneseq
        %v6309 = vshrl.u32 %v6308, 7
        %v6310 = vsub.s32 %v6307, %v6309
        %v6311 = vrot.slane %v6297, %v6310
        %v6312 = vcombine.high %v6304, %v6304
        %v6313 = vcombine.high %v6311, %v6311
        %v6315 = vunpack.c.l.s4 1966171168
        %v6316 = vunpack.c.0.s8 %v6315
        %v6317 = vlaneseq
        %v6318 = vshrl.u32 %v6317, 7
        %v6319 = vsub.s32 %v6316, %v6318
        %v6320 = vrot.slane %v6304, %v6319
        %v6322 = vunpack.c.l.s4 1966171168
        %v6323 = vunpack.c.0.s8 %v6322
        %v6324 = vlaneseq
        %v6325 = vshrl.u32 %v6324, 7
        %v6326 = vsub.s32 %v6323, %v6325
        %v6327 = vrot.slane %v6311, %v6326
        %v6329 = vunpack.c.l.s4 1966171168
        %v6330 = vunpack.c.0.s8 %v6329
        %v6331 = vlaneseq
        %v6332 = vshrl.u32 %v6331, 7
        %v6333 = vsub.s32 %v6330, %v6332
        %v6334 = vrot.slane %v6312, %v6333
        %v6336 = vunpack.c.l.s4 1966171168
        %v6337 = vunpack.c.0.s8 %v6336
        %v6338 = vlaneseq
        %v6339 = vshrl.u32 %v6338, 7
        %v6340 = vsub.s32 %v6337, %v6339
        %v6341 = vrot.slane %v6313, %v6340
        %v6342 = vcombine.high %v6320, %v6320
        %v6343 = vcombine.high %v6327, %v6327
        %v6344 = vcombine.high %v6334, %v6334
        %v6345 = vcombine.high %v6341, %v6341
        %v6347 = vunpack.c.l.s4 1966171168
        %v6348 = vunpack.c.0.s8 %v6347
        %v6349 = vlaneseq
        %v6350 = vshrl.u32 %v6349, 7
        %v6351 = vsub.s32 %v6348, %v6350
        %v6352 = vrot.slane %v6292, %v6351
        %v6353 = vcombine.high %v6352, %v6352
        %v6355 = vunpack.c.l.s4 1966171168
        %v6356 = vunpack.c.0.s8 %v6355
        %v6357 = vlaneseq
        %v6358 = vshrl.u32 %v6357, 7
        %v6359 = vsub.s32 %v6356, %v6358
        %v6360 = vrot.slane %v6352, %v6359
        %v6362 = vunpack.c.l.s4 1966171168
        %v6363 = vunpack.c.0.s8 %v6362
        %v6364 = vlaneseq
        %v6365 = vshrl.u32 %v6364, 7
        %v6366 = vsub.s32 %v6363, %v6365
        %v6367 = vrot.slane %v6353, %v6366
        %v6368 = vcombine.high %v6360, %v6360
        %v6369 = vcombine.high %v6367, %v6367
        %6382 = vst.msk [vmem:[#allocation3 + $0x8] sm:$0x1] %vm543, %v6320
        %6383 = vst.msk [vmem:[#allocation3 + $0x18] sm:$0x1] %vm543, %v6334
        %6384 = vst.msk [vmem:[#allocation3 + $0x28] sm:$0x1] %vm543, %v6342
        %6385 = vst.msk [vmem:[#allocation3 + $0x38] sm:$0x1] %vm543, %v6344
        %6386 = vst.msk [vmem:[#allocation3 + $0x48] sm:$0x1] %vm543, %v6327
        %6387 = vst.msk [vmem:[#allocation3 + $0x58] sm:$0x1] %vm543, %v6341
        %6388 = vst.msk [vmem:[#allocation3 + $0x68] sm:$0x1] %vm543, %v6343
        %6389 = vst.msk [vmem:[#allocation3 + $0x78] sm:$0x1] %vm543, %v6345
        %6390 = vst.msk [vmem:[#allocation3 + $0x88] sm:$0x1] %vm543, %v6360
        %6391 = vst.msk [vmem:[#allocation3 + $0x98] sm:$0x1] %vm543, %v6367
        %6392 = vst.msk [vmem:[#allocation3 + $0xa8] sm:$0x1] %vm543, %v6368
        %6393 = vst.msk [vmem:[#allocation3 + $0xb8] sm:$0x1] %vm543, %v6369
        %v6394 = vld [vmem:[#allocation2 + $0x8] sm:$0xff]
        %v6395 = vld [vmem:[#allocation2 + $0x18] sm:$0xf]
        %6398 = vrot.lane.b32.xlu0 %v6394, 112
        %v6399 = vpop.permute.xlu0 %6398
        %6400 = vrot.lane.b32.xlu0 %v6395, 112
        %v6401 = vpop.permute.xlu0 %6400
        %v6402 = vsel %vm374, %v6399, 0
        %v6404 = vsel %vm374, %v6401, 0
        %6406 = vmatprep.subr.mxu0 0.0
        %6407 = vmatpush1.msra.mxu0 0.0
        %6408 = vmatprep.subr.mxu0 0.0
        %6409 = vmatpush1.msra.mxu0 0.0
        %6410 = vmatprep.subr.mxu0 0.0
        %6411 = vmatpush1.msra.mxu0 0.0
        %6412 = vmatprep.subr.mxu0 0.0
        %6413 = vmatpush1.msra.mxu0 0.0
        %6414 = vmatprep.subr.mxu0 0.0
        %6415 = vmatpush1.msra.mxu0 0.0
        %6416 = vmatprep.subr.mxu0 0.0
        %6417 = vmatpush1.msra.mxu0 0.0
        %6418 = vmatprep.subr.mxu0 0.0
        %6419 = vmatpush1.msra.mxu0 0.0
        %6420 = vmatprep.subr.mxu0 0.0
        %6421 = vmatpush1.msra.mxu0 0.0
        %6422 = vmatprep.subr.mxu0 0.0
        %6423 = vmatpush1.msra.mxu0 0.0
        %6424 = vmatprep.subr.mxu0 0.0
        %6425 = vmatpush1.msra.mxu0 0.0
        %6426 = vmatprep.subr.mxu0 0.0
        %6427 = vmatpush1.msra.mxu0 0.0
        %6428 = vmatprep.subr.mxu0 0.0
        %6429 = vmatpush1.msra.mxu0 0.0
        %6430 = vmatprep.subr.mxu0 0.0
        %6431 = vmatpush1.msra.mxu0 0.0
        %6432 = vmatprep.subr.mxu0 0.0
        %6433 = vmatpush1.msra.mxu0 0.0
        %6434 = vmatprep.subr.mxu0 0.0
        %6435 = vmatpush1.msra.mxu0 %v255
        %6436 = vmatprep.subr.mxu0 0.0
        %6437 = vmatpush1.msra.mxu0 %v254
        %6438 = vmatprep.subr.mxu0 0.0
        %6439 = vmatpush2.msra.mxu0 0.0
        %6440 = vmatprep.subr.mxu0 0.0
        %6441 = vmatpush2.msra.mxu0 0.0
        %6442 = vmatprep.subr.mxu0 0.0
        %6443 = vmatpush2.msra.mxu0 0.0
        %6444 = vmatprep.subr.mxu0 0.0
        %6445 = vmatpush2.msra.mxu0 0.0
        %6446 = vmatprep.subr.mxu0 0.0
        %6447 = vmatpush2.msra.mxu0 0.0
        %6448 = vmatprep.subr.mxu0 0.0
        %6449 = vmatpush2.msra.mxu0 0.0
        %6450 = vmatprep.subr.mxu0 0.0
        %6451 = vmatpush2.msra.mxu0 0.0
        %6452 = vmatprep.subr.mxu0 0.0
        %6453 = vmatpush2.msra.mxu0 0.0
        %6454 = vmatprep.subr.mxu0 0.0
        %6455 = vmatpush2.msra.mxu0 0.0
        %6456 = vmatprep.subr.mxu0 0.0
        %6457 = vmatpush2.msra.mxu0 0.0
        %6458 = vmatprep.subr.mxu0 0.0
        %6459 = vmatpush2.msra.mxu0 0.0
        %6460 = vmatprep.subr.mxu0 0.0
        %6461 = vmatpush2.msra.mxu0 0.0
        %6462 = vmatprep.subr.mxu0 0.0
        %6463 = vmatpush2.msra.mxu0 0.0
        %6464 = vmatprep.subr.mxu0 0.0
        %6465 = vmatpush2.msra.mxu0 0.0
        %6466 = vmatprep.subr.mxu0 0.0
        %6467 = vmatpush2.msra.mxu0 0.0
        %6468 = vmatprep.subr.mxu0 0.0
        %6469 = vmatpush2.msra.mxu0 0.0
        %6470 = vmatprep.mubr.f32.mxu0 0.0
        %6471 = vmatmul.mubr.f32.gmra.mxu0 %v6402
        %v6472 = vpop.f32.mrf.mxu0
        %v6473 = vadd.f32 0.0, %v6472
        %v6474 = vpop.f32.mrf.mxu0
        %6475 = vmatprep.mubr.f32.mxu0 0.0
        %6476 = vmatmul.mubr.f32.gmra.mxu0 %v6404
        %v6477 = vpop.f32.mrf.mxu0
        %v6478 = vadd.f32 0.0, %v6477
        %v6479 = vpop.f32.mrf.mxu0
        %6480 = vdwg.mxu0
        %v6483 = vcombine.high %v6473, %v6473
        %v6485 = vunpack.c.l.s4 1966171168
        %v6486 = vunpack.c.0.s8 %v6485
        %v6487 = vlaneseq
        %v6488 = vshrl.u32 %v6487, 7
        %v6489 = vsub.s32 %v6486, %v6488
        %v6490 = vrot.slane %v6473, %v6489
        %v6492 = vunpack.c.l.s4 1966171168
        %v6493 = vunpack.c.0.s8 %v6492
        %v6494 = vlaneseq
        %v6495 = vshrl.u32 %v6494, 7
        %v6496 = vsub.s32 %v6493, %v6495
        %v6497 = vrot.slane %v6483, %v6496
        %v6498 = vcombine.high %v6490, %v6490
        %v6499 = vcombine.high %v6497, %v6497
        %v6501 = vunpack.c.l.s4 1966171168
        %v6502 = vunpack.c.0.s8 %v6501
        %v6503 = vlaneseq
        %v6504 = vshrl.u32 %v6503, 7
        %v6505 = vsub.s32 %v6502, %v6504
        %v6506 = vrot.slane %v6490, %v6505
        %v6508 = vunpack.c.l.s4 1966171168
        %v6509 = vunpack.c.0.s8 %v6508
        %v6510 = vlaneseq
        %v6511 = vshrl.u32 %v6510, 7
        %v6512 = vsub.s32 %v6509, %v6511
        %v6513 = vrot.slane %v6497, %v6512
        %v6515 = vunpack.c.l.s4 1966171168
        %v6516 = vunpack.c.0.s8 %v6515
        %v6517 = vlaneseq
        %v6518 = vshrl.u32 %v6517, 7
        %v6519 = vsub.s32 %v6516, %v6518
        %v6520 = vrot.slane %v6498, %v6519
        %v6522 = vunpack.c.l.s4 1966171168
        %v6523 = vunpack.c.0.s8 %v6522
        %v6524 = vlaneseq
        %v6525 = vshrl.u32 %v6524, 7
        %v6526 = vsub.s32 %v6523, %v6525
        %v6527 = vrot.slane %v6499, %v6526
        %v6528 = vcombine.high %v6506, %v6506
        %v6529 = vcombine.high %v6513, %v6513
        %v6530 = vcombine.high %v6520, %v6520
        %v6531 = vcombine.high %v6527, %v6527
        %v6533 = vunpack.c.l.s4 1966171168
        %v6534 = vunpack.c.0.s8 %v6533
        %v6535 = vlaneseq
        %v6536 = vshrl.u32 %v6535, 7
        %v6537 = vsub.s32 %v6534, %v6536
        %v6538 = vrot.slane %v6478, %v6537
        %v6539 = vcombine.high %v6538, %v6538
        %v6541 = vunpack.c.l.s4 1966171168
        %v6542 = vunpack.c.0.s8 %v6541
        %v6543 = vlaneseq
        %v6544 = vshrl.u32 %v6543, 7
        %v6545 = vsub.s32 %v6542, %v6544
        %v6546 = vrot.slane %v6538, %v6545
        %v6548 = vunpack.c.l.s4 1966171168
        %v6549 = vunpack.c.0.s8 %v6548
        %v6550 = vlaneseq
        %v6551 = vshrl.u32 %v6550, 7
        %v6552 = vsub.s32 %v6549, %v6551
        %v6553 = vrot.slane %v6539, %v6552
        %v6554 = vcombine.high %v6546, %v6546
        %v6555 = vcombine.high %v6553, %v6553
        %6568 = vst.msk [vmem:[#allocation3 + $0x9] sm:$0x1] %vm543, %v6506
        %6569 = vst.msk [vmem:[#allocation3 + $0x19] sm:$0x1] %vm543, %v6520
        %6570 = vst.msk [vmem:[#allocation3 + $0x29] sm:$0x1] %vm543, %v6528
        %6571 = vst.msk [vmem:[#allocation3 + $0x39] sm:$0x1] %vm543, %v6530
        %6572 = vst.msk [vmem:[#allocation3 + $0x49] sm:$0x1] %vm543, %v6513
        %6573 = vst.msk [vmem:[#allocation3 + $0x59] sm:$0x1] %vm543, %v6527
        %6574 = vst.msk [vmem:[#allocation3 + $0x69] sm:$0x1] %vm543, %v6529
        %6575 = vst.msk [vmem:[#allocation3 + $0x79] sm:$0x1] %vm543, %v6531
        %6576 = vst.msk [vmem:[#allocation3 + $0x89] sm:$0x1] %vm543, %v6546
        %6577 = vst.msk [vmem:[#allocation3 + $0x99] sm:$0x1] %vm543, %v6553
        %6578 = vst.msk [vmem:[#allocation3 + $0xa9] sm:$0x1] %vm543, %v6554
        %6579 = vst.msk [vmem:[#allocation3 + $0xb9] sm:$0x1] %vm543, %v6555
        %v6580 = vld [vmem:[#allocation2 + $0x8] sm:$0xff]
        %v6581 = vld [vmem:[#allocation2 + $0x18] sm:$0xf]
        %6584 = vrot.lane.b32.xlu0 %v6580, 96
        %v6585 = vpop.permute.xlu0 %6584
        %6586 = vrot.lane.b32.xlu0 %v6581, 96
        %v6587 = vpop.permute.xlu0 %6586
        %v6588 = vsel %vm374, %v6585, 0
        %v6590 = vsel %vm374, %v6587, 0
        %6592 = vmatprep.subr.mxu0 0.0
        %6593 = vmatpush1.msra.mxu0 0.0
        %6594 = vmatprep.subr.mxu0 0.0
        %6595 = vmatpush1.msra.mxu0 0.0
        %6596 = vmatprep.subr.mxu0 0.0
        %6597 = vmatpush1.msra.mxu0 0.0
        %6598 = vmatprep.subr.mxu0 0.0
        %6599 = vmatpush1.msra.mxu0 0.0
        %6600 = vmatprep.subr.mxu0 0.0
        %6601 = vmatpush1.msra.mxu0 0.0
        %6602 = vmatprep.subr.mxu0 0.0
        %6603 = vmatpush1.msra.mxu0 0.0
        %6604 = vmatprep.subr.mxu0 0.0
        %6605 = vmatpush1.msra.mxu0 0.0
        %6606 = vmatprep.subr.mxu0 0.0
        %6607 = vmatpush1.msra.mxu0 0.0
        %6608 = vmatprep.subr.mxu0 0.0
        %6609 = vmatpush1.msra.mxu0 0.0
        %6610 = vmatprep.subr.mxu0 0.0
        %6611 = vmatpush1.msra.mxu0 0.0
        %6612 = vmatprep.subr.mxu0 0.0
        %6613 = vmatpush1.msra.mxu0 0.0
        %6614 = vmatprep.subr.mxu0 0.0
        %6615 = vmatpush1.msra.mxu0 0.0
        %6616 = vmatprep.subr.mxu0 0.0
        %6617 = vmatpush1.msra.mxu0 0.0
        %6618 = vmatprep.subr.mxu0 0.0
        %6619 = vmatpush1.msra.mxu0 0.0
        %6620 = vmatprep.subr.mxu0 0.0
        %6621 = vmatpush1.msra.mxu0 %v255
        %6622 = vmatprep.subr.mxu0 0.0
        %6623 = vmatpush1.msra.mxu0 %v254
        %6624 = vmatprep.subr.mxu0 0.0
        %6625 = vmatpush2.msra.mxu0 0.0
        %6626 = vmatprep.subr.mxu0 0.0
        %6627 = vmatpush2.msra.mxu0 0.0
        %6628 = vmatprep.subr.mxu0 0.0
        %6629 = vmatpush2.msra.mxu0 0.0
        %6630 = vmatprep.subr.mxu0 0.0
        %6631 = vmatpush2.msra.mxu0 0.0
        %6632 = vmatprep.subr.mxu0 0.0
        %6633 = vmatpush2.msra.mxu0 0.0
        %6634 = vmatprep.subr.mxu0 0.0
        %6635 = vmatpush2.msra.mxu0 0.0
        %6636 = vmatprep.subr.mxu0 0.0
        %6637 = vmatpush2.msra.mxu0 0.0
        %6638 = vmatprep.subr.mxu0 0.0
        %6639 = vmatpush2.msra.mxu0 0.0
        %6640 = vmatprep.subr.mxu0 0.0
        %6641 = vmatpush2.msra.mxu0 0.0
        %6642 = vmatprep.subr.mxu0 0.0
        %6643 = vmatpush2.msra.mxu0 0.0
        %6644 = vmatprep.subr.mxu0 0.0
        %6645 = vmatpush2.msra.mxu0 0.0
        %6646 = vmatprep.subr.mxu0 0.0
        %6647 = vmatpush2.msra.mxu0 0.0
        %6648 = vmatprep.subr.mxu0 0.0
        %6649 = vmatpush2.msra.mxu0 0.0
        %6650 = vmatprep.subr.mxu0 0.0
        %6651 = vmatpush2.msra.mxu0 0.0
        %6652 = vmatprep.subr.mxu0 0.0
        %6653 = vmatpush2.msra.mxu0 0.0
        %6654 = vmatprep.subr.mxu0 0.0
        %6655 = vmatpush2.msra.mxu0 0.0
        %6656 = vmatprep.mubr.f32.mxu0 0.0
        %6657 = vmatmul.mubr.f32.gmra.mxu0 %v6588
        %v6658 = vpop.f32.mrf.mxu0
        %v6659 = vadd.f32 0.0, %v6658
        %v6660 = vpop.f32.mrf.mxu0
        %6661 = vmatprep.mubr.f32.mxu0 0.0
        %6662 = vmatmul.mubr.f32.gmra.mxu0 %v6590
        %v6663 = vpop.f32.mrf.mxu0
        %v6664 = vadd.f32 0.0, %v6663
        %v6665 = vpop.f32.mrf.mxu0
        %6666 = vdwg.mxu0
        %v6669 = vcombine.high %v6659, %v6659
        %v6671 = vunpack.c.l.s4 1966171168
        %v6672 = vunpack.c.0.s8 %v6671
        %v6673 = vlaneseq
        %v6674 = vshrl.u32 %v6673, 7
        %v6675 = vsub.s32 %v6672, %v6674
        %v6676 = vrot.slane %v6659, %v6675
        %v6678 = vunpack.c.l.s4 1966171168
        %v6679 = vunpack.c.0.s8 %v6678
        %v6680 = vlaneseq
        %v6681 = vshrl.u32 %v6680, 7
        %v6682 = vsub.s32 %v6679, %v6681
        %v6683 = vrot.slane %v6669, %v6682
        %v6684 = vcombine.high %v6676, %v6676
        %v6685 = vcombine.high %v6683, %v6683
        %v6687 = vunpack.c.l.s4 1966171168
        %v6688 = vunpack.c.0.s8 %v6687
        %v6689 = vlaneseq
        %v6690 = vshrl.u32 %v6689, 7
        %v6691 = vsub.s32 %v6688, %v6690
        %v6692 = vrot.slane %v6676, %v6691
        %v6694 = vunpack.c.l.s4 1966171168
        %v6695 = vunpack.c.0.s8 %v6694
        %v6696 = vlaneseq
        %v6697 = vshrl.u32 %v6696, 7
        %v6698 = vsub.s32 %v6695, %v6697
        %v6699 = vrot.slane %v6683, %v6698
        %v6701 = vunpack.c.l.s4 1966171168
        %v6702 = vunpack.c.0.s8 %v6701
        %v6703 = vlaneseq
        %v6704 = vshrl.u32 %v6703, 7
        %v6705 = vsub.s32 %v6702, %v6704
        %v6706 = vrot.slane %v6684, %v6705
        %v6708 = vunpack.c.l.s4 1966171168
        %v6709 = vunpack.c.0.s8 %v6708
        %v6710 = vlaneseq
        %v6711 = vshrl.u32 %v6710, 7
        %v6712 = vsub.s32 %v6709, %v6711
        %v6713 = vrot.slane %v6685, %v6712
        %v6714 = vcombine.high %v6692, %v6692
        %v6715 = vcombine.high %v6699, %v6699
        %v6716 = vcombine.high %v6706, %v6706
        %v6717 = vcombine.high %v6713, %v6713
        %v6719 = vunpack.c.l.s4 1966171168
        %v6720 = vunpack.c.0.s8 %v6719
        %v6721 = vlaneseq
        %v6722 = vshrl.u32 %v6721, 7
        %v6723 = vsub.s32 %v6720, %v6722
        %v6724 = vrot.slane %v6664, %v6723
        %v6725 = vcombine.high %v6724, %v6724
        %v6727 = vunpack.c.l.s4 1966171168
        %v6728 = vunpack.c.0.s8 %v6727
        %v6729 = vlaneseq
        %v6730 = vshrl.u32 %v6729, 7
        %v6731 = vsub.s32 %v6728, %v6730
        %v6732 = vrot.slane %v6724, %v6731
        %v6734 = vunpack.c.l.s4 1966171168
        %v6735 = vunpack.c.0.s8 %v6734
        %v6736 = vlaneseq
        %v6737 = vshrl.u32 %v6736, 7
        %v6738 = vsub.s32 %v6735, %v6737
        %v6739 = vrot.slane %v6725, %v6738
        %v6740 = vcombine.high %v6732, %v6732
        %v6741 = vcombine.high %v6739, %v6739
        %6754 = vst.msk [vmem:[#allocation3 + $0xa] sm:$0x1] %vm543, %v6692
        %6755 = vst.msk [vmem:[#allocation3 + $0x1a] sm:$0x1] %vm543, %v6706
        %6756 = vst.msk [vmem:[#allocation3 + $0x2a] sm:$0x1] %vm543, %v6714
        %6757 = vst.msk [vmem:[#allocation3 + $0x3a] sm:$0x1] %vm543, %v6716
        %6758 = vst.msk [vmem:[#allocation3 + $0x4a] sm:$0x1] %vm543, %v6699
        %6759 = vst.msk [vmem:[#allocation3 + $0x5a] sm:$0x1] %vm543, %v6713
        %6760 = vst.msk [vmem:[#allocation3 + $0x6a] sm:$0x1] %vm543, %v6715
        %6761 = vst.msk [vmem:[#allocation3 + $0x7a] sm:$0x1] %vm543, %v6717
        %6762 = vst.msk [vmem:[#allocation3 + $0x8a] sm:$0x1] %vm543, %v6732
        %6763 = vst.msk [vmem:[#allocation3 + $0x9a] sm:$0x1] %vm543, %v6739
        %6764 = vst.msk [vmem:[#allocation3 + $0xaa] sm:$0x1] %vm543, %v6740
        %6765 = vst.msk [vmem:[#allocation3 + $0xba] sm:$0x1] %vm543, %v6741
        %v6766 = vld [vmem:[#allocation2 + $0x8] sm:$0xff]
        %v6767 = vld [vmem:[#allocation2 + $0x18] sm:$0xf]
        %6770 = vrot.lane.b32.xlu0 %v6766, 80
        %v6771 = vpop.permute.xlu0 %6770
        %6772 = vrot.lane.b32.xlu0 %v6767, 80
        %v6773 = vpop.permute.xlu0 %6772
        %v6774 = vsel %vm374, %v6771, 0
        %v6776 = vsel %vm374, %v6773, 0
        %6778 = vmatprep.subr.mxu0 0.0
        %6779 = vmatpush1.msra.mxu0 0.0
        %6780 = vmatprep.subr.mxu0 0.0
        %6781 = vmatpush1.msra.mxu0 0.0
        %6782 = vmatprep.subr.mxu0 0.0
        %6783 = vmatpush1.msra.mxu0 0.0
        %6784 = vmatprep.subr.mxu0 0.0
        %6785 = vmatpush1.msra.mxu0 0.0
        %6786 = vmatprep.subr.mxu0 0.0
        %6787 = vmatpush1.msra.mxu0 0.0
        %6788 = vmatprep.subr.mxu0 0.0
        %6789 = vmatpush1.msra.mxu0 0.0
        %6790 = vmatprep.subr.mxu0 0.0
        %6791 = vmatpush1.msra.mxu0 0.0
        %6792 = vmatprep.subr.mxu0 0.0
        %6793 = vmatpush1.msra.mxu0 0.0
        %6794 = vmatprep.subr.mxu0 0.0
        %6795 = vmatpush1.msra.mxu0 0.0
        %6796 = vmatprep.subr.mxu0 0.0
        %6797 = vmatpush1.msra.mxu0 0.0
        %6798 = vmatprep.subr.mxu0 0.0
        %6799 = vmatpush1.msra.mxu0 0.0
        %6800 = vmatprep.subr.mxu0 0.0
        %6801 = vmatpush1.msra.mxu0 0.0
        %6802 = vmatprep.subr.mxu0 0.0
        %6803 = vmatpush1.msra.mxu0 0.0
        %6804 = vmatprep.subr.mxu0 0.0
        %6805 = vmatpush1.msra.mxu0 0.0
        %6806 = vmatprep.subr.mxu0 0.0
        %6807 = vmatpush1.msra.mxu0 %v255
        %6808 = vmatprep.subr.mxu0 0.0
        %6809 = vmatpush1.msra.mxu0 %v254
        %6810 = vmatprep.subr.mxu0 0.0
        %6811 = vmatpush2.msra.mxu0 0.0
        %6812 = vmatprep.subr.mxu0 0.0
        %6813 = vmatpush2.msra.mxu0 0.0
        %6814 = vmatprep.subr.mxu0 0.0
        %6815 = vmatpush2.msra.mxu0 0.0
        %6816 = vmatprep.subr.mxu0 0.0
        %6817 = vmatpush2.msra.mxu0 0.0
        %6818 = vmatprep.subr.mxu0 0.0
        %6819 = vmatpush2.msra.mxu0 0.0
        %6820 = vmatprep.subr.mxu0 0.0
        %6821 = vmatpush2.msra.mxu0 0.0
        %6822 = vmatprep.subr.mxu0 0.0
        %6823 = vmatpush2.msra.mxu0 0.0
        %6824 = vmatprep.subr.mxu0 0.0
        %6825 = vmatpush2.msra.mxu0 0.0
        %6826 = vmatprep.subr.mxu0 0.0
        %6827 = vmatpush2.msra.mxu0 0.0
        %6828 = vmatprep.subr.mxu0 0.0
        %6829 = vmatpush2.msra.mxu0 0.0
        %6830 = vmatprep.subr.mxu0 0.0
        %6831 = vmatpush2.msra.mxu0 0.0
        %6832 = vmatprep.subr.mxu0 0.0
        %6833 = vmatpush2.msra.mxu0 0.0
        %6834 = vmatprep.subr.mxu0 0.0
        %6835 = vmatpush2.msra.mxu0 0.0
        %6836 = vmatprep.subr.mxu0 0.0
        %6837 = vmatpush2.msra.mxu0 0.0
        %6838 = vmatprep.subr.mxu0 0.0
        %6839 = vmatpush2.msra.mxu0 0.0
        %6840 = vmatprep.subr.mxu0 0.0
        %6841 = vmatpush2.msra.mxu0 0.0
        %6842 = vmatprep.mubr.f32.mxu0 0.0
        %6843 = vmatmul.mubr.f32.gmra.mxu0 %v6774
        %v6844 = vpop.f32.mrf.mxu0
        %v6845 = vadd.f32 0.0, %v6844
        %v6846 = vpop.f32.mrf.mxu0
        %6847 = vmatprep.mubr.f32.mxu0 0.0
        %6848 = vmatmul.mubr.f32.gmra.mxu0 %v6776
        %v6849 = vpop.f32.mrf.mxu0
        %v6850 = vadd.f32 0.0, %v6849
        %v6851 = vpop.f32.mrf.mxu0
        %6852 = vdwg.mxu0
        %v6855 = vcombine.high %v6845, %v6845
        %v6857 = vunpack.c.l.s4 1966171168
        %v6858 = vunpack.c.0.s8 %v6857
        %v6859 = vlaneseq
        %v6860 = vshrl.u32 %v6859, 7
        %v6861 = vsub.s32 %v6858, %v6860
        %v6862 = vrot.slane %v6845, %v6861
        %v6864 = vunpack.c.l.s4 1966171168
        %v6865 = vunpack.c.0.s8 %v6864
        %v6866 = vlaneseq
        %v6867 = vshrl.u32 %v6866, 7
        %v6868 = vsub.s32 %v6865, %v6867
        %v6869 = vrot.slane %v6855, %v6868
        %v6870 = vcombine.high %v6862, %v6862
        %v6871 = vcombine.high %v6869, %v6869
        %v6873 = vunpack.c.l.s4 1966171168
        %v6874 = vunpack.c.0.s8 %v6873
        %v6875 = vlaneseq
        %v6876 = vshrl.u32 %v6875, 7
        %v6877 = vsub.s32 %v6874, %v6876
        %v6878 = vrot.slane %v6862, %v6877
        %v6880 = vunpack.c.l.s4 1966171168
        %v6881 = vunpack.c.0.s8 %v6880
        %v6882 = vlaneseq
        %v6883 = vshrl.u32 %v6882, 7
        %v6884 = vsub.s32 %v6881, %v6883
        %v6885 = vrot.slane %v6869, %v6884
        %v6887 = vunpack.c.l.s4 1966171168
        %v6888 = vunpack.c.0.s8 %v6887
        %v6889 = vlaneseq
        %v6890 = vshrl.u32 %v6889, 7
        %v6891 = vsub.s32 %v6888, %v6890
        %v6892 = vrot.slane %v6870, %v6891
        %v6894 = vunpack.c.l.s4 1966171168
        %v6895 = vunpack.c.0.s8 %v6894
        %v6896 = vlaneseq
        %v6897 = vshrl.u32 %v6896, 7
        %v6898 = vsub.s32 %v6895, %v6897
        %v6899 = vrot.slane %v6871, %v6898
        %v6900 = vcombine.high %v6878, %v6878
        %v6901 = vcombine.high %v6885, %v6885
        %v6902 = vcombine.high %v6892, %v6892
        %v6903 = vcombine.high %v6899, %v6899
        %v6905 = vunpack.c.l.s4 1966171168
        %v6906 = vunpack.c.0.s8 %v6905
        %v6907 = vlaneseq
        %v6908 = vshrl.u32 %v6907, 7
        %v6909 = vsub.s32 %v6906, %v6908
        %v6910 = vrot.slane %v6850, %v6909
        %v6911 = vcombine.high %v6910, %v6910
        %v6913 = vunpack.c.l.s4 1966171168
        %v6914 = vunpack.c.0.s8 %v6913
        %v6915 = vlaneseq
        %v6916 = vshrl.u32 %v6915, 7
        %v6917 = vsub.s32 %v6914, %v6916
        %v6918 = vrot.slane %v6910, %v6917
        %v6920 = vunpack.c.l.s4 1966171168
        %v6921 = vunpack.c.0.s8 %v6920
        %v6922 = vlaneseq
        %v6923 = vshrl.u32 %v6922, 7
        %v6924 = vsub.s32 %v6921, %v6923
        %v6925 = vrot.slane %v6911, %v6924
        %v6926 = vcombine.high %v6918, %v6918
        %v6927 = vcombine.high %v6925, %v6925
        %6940 = vst.msk [vmem:[#allocation3 + $0xb] sm:$0x1] %vm543, %v6878
        %6941 = vst.msk [vmem:[#allocation3 + $0x1b] sm:$0x1] %vm543, %v6892
        %6942 = vst.msk [vmem:[#allocation3 + $0x2b] sm:$0x1] %vm543, %v6900
        %6943 = vst.msk [vmem:[#allocation3 + $0x3b] sm:$0x1] %vm543, %v6902
        %6944 = vst.msk [vmem:[#allocation3 + $0x4b] sm:$0x1] %vm543, %v6885
        %6945 = vst.msk [vmem:[#allocation3 + $0x5b] sm:$0x1] %vm543, %v6899
        %6946 = vst.msk [vmem:[#allocation3 + $0x6b] sm:$0x1] %vm543, %v6901
        %6947 = vst.msk [vmem:[#allocation3 + $0x7b] sm:$0x1] %vm543, %v6903
        %6948 = vst.msk [vmem:[#allocation3 + $0x8b] sm:$0x1] %vm543, %v6918
        %6949 = vst.msk [vmem:[#allocation3 + $0x9b] sm:$0x1] %vm543, %v6925
        %6950 = vst.msk [vmem:[#allocation3 + $0xab] sm:$0x1] %vm543, %v6926
        %6951 = vst.msk [vmem:[#allocation3 + $0xbb] sm:$0x1] %vm543, %v6927
        %v6952 = vld [vmem:[#allocation2 + $0x8] sm:$0xff]
        %v6953 = vld [vmem:[#allocation2 + $0x18] sm:$0xf]
        %6956 = vrot.lane.b32.xlu0 %v6952, 64
        %v6957 = vpop.permute.xlu0 %6956
        %6958 = vrot.lane.b32.xlu0 %v6953, 64
        %v6959 = vpop.permute.xlu0 %6958
        %v6960 = vsel %vm374, %v6957, 0
        %v6962 = vsel %vm374, %v6959, 0
        %6964 = vmatprep.subr.mxu0 0.0
        %6965 = vmatpush1.msra.mxu0 0.0
        %6966 = vmatprep.subr.mxu0 0.0
        %6967 = vmatpush1.msra.mxu0 0.0
        %6968 = vmatprep.subr.mxu0 0.0
        %6969 = vmatpush1.msra.mxu0 0.0
        %6970 = vmatprep.subr.mxu0 0.0
        %6971 = vmatpush1.msra.mxu0 0.0
        %6972 = vmatprep.subr.mxu0 0.0
        %6973 = vmatpush1.msra.mxu0 0.0
        %6974 = vmatprep.subr.mxu0 0.0
        %6975 = vmatpush1.msra.mxu0 0.0
        %6976 = vmatprep.subr.mxu0 0.0
        %6977 = vmatpush1.msra.mxu0 0.0
        %6978 = vmatprep.subr.mxu0 0.0
        %6979 = vmatpush1.msra.mxu0 0.0
        %6980 = vmatprep.subr.mxu0 0.0
        %6981 = vmatpush1.msra.mxu0 0.0
        %6982 = vmatprep.subr.mxu0 0.0
        %6983 = vmatpush1.msra.mxu0 0.0
        %6984 = vmatprep.subr.mxu0 0.0
        %6985 = vmatpush1.msra.mxu0 0.0
        %6986 = vmatprep.subr.mxu0 0.0
        %6987 = vmatpush1.msra.mxu0 0.0
        %6988 = vmatprep.subr.mxu0 0.0
        %6989 = vmatpush1.msra.mxu0 0.0
        %6990 = vmatprep.subr.mxu0 0.0
        %6991 = vmatpush1.msra.mxu0 0.0
        %6992 = vmatprep.subr.mxu0 0.0
        %6993 = vmatpush1.msra.mxu0 %v255
        %6994 = vmatprep.subr.mxu0 0.0
        %6995 = vmatpush1.msra.mxu0 %v254
        %6996 = vmatprep.subr.mxu0 0.0
        %6997 = vmatpush2.msra.mxu0 0.0
        %6998 = vmatprep.subr.mxu0 0.0
        %6999 = vmatpush2.msra.mxu0 0.0
        %7000 = vmatprep.subr.mxu0 0.0
        %7001 = vmatpush2.msra.mxu0 0.0
        %7002 = vmatprep.subr.mxu0 0.0
        %7003 = vmatpush2.msra.mxu0 0.0
        %7004 = vmatprep.subr.mxu0 0.0
        %7005 = vmatpush2.msra.mxu0 0.0
        %7006 = vmatprep.subr.mxu0 0.0
        %7007 = vmatpush2.msra.mxu0 0.0
        %7008 = vmatprep.subr.mxu0 0.0
        %7009 = vmatpush2.msra.mxu0 0.0
        %7010 = vmatprep.subr.mxu0 0.0
        %7011 = vmatpush2.msra.mxu0 0.0
        %7012 = vmatprep.subr.mxu0 0.0
        %7013 = vmatpush2.msra.mxu0 0.0
        %7014 = vmatprep.subr.mxu0 0.0
        %7015 = vmatpush2.msra.mxu0 0.0
        %7016 = vmatprep.subr.mxu0 0.0
        %7017 = vmatpush2.msra.mxu0 0.0
        %7018 = vmatprep.subr.mxu0 0.0
        %7019 = vmatpush2.msra.mxu0 0.0
        %7020 = vmatprep.subr.mxu0 0.0
        %7021 = vmatpush2.msra.mxu0 0.0
        %7022 = vmatprep.subr.mxu0 0.0
        %7023 = vmatpush2.msra.mxu0 0.0
        %7024 = vmatprep.subr.mxu0 0.0
        %7025 = vmatpush2.msra.mxu0 0.0
        %7026 = vmatprep.subr.mxu0 0.0
        %7027 = vmatpush2.msra.mxu0 0.0
        %7028 = vmatprep.mubr.f32.mxu0 0.0
        %7029 = vmatmul.mubr.f32.gmra.mxu0 %v6960
        %v7030 = vpop.f32.mrf.mxu0
        %v7031 = vadd.f32 0.0, %v7030
        %v7032 = vpop.f32.mrf.mxu0
        %7033 = vmatprep.mubr.f32.mxu0 0.0
        %7034 = vmatmul.mubr.f32.gmra.mxu0 %v6962
        %v7035 = vpop.f32.mrf.mxu0
        %v7036 = vadd.f32 0.0, %v7035
        %v7037 = vpop.f32.mrf.mxu0
        %7038 = vdwg.mxu0
        %v7041 = vcombine.high %v7031, %v7031
        %v7043 = vunpack.c.l.s4 1966171168
        %v7044 = vunpack.c.0.s8 %v7043
        %v7045 = vlaneseq
        %v7046 = vshrl.u32 %v7045, 7
        %v7047 = vsub.s32 %v7044, %v7046
        %v7048 = vrot.slane %v7031, %v7047
        %v7050 = vunpack.c.l.s4 1966171168
        %v7051 = vunpack.c.0.s8 %v7050
        %v7052 = vlaneseq
        %v7053 = vshrl.u32 %v7052, 7
        %v7054 = vsub.s32 %v7051, %v7053
        %v7055 = vrot.slane %v7041, %v7054
        %v7056 = vcombine.high %v7048, %v7048
        %v7057 = vcombine.high %v7055, %v7055
        %v7059 = vunpack.c.l.s4 1966171168
        %v7060 = vunpack.c.0.s8 %v7059
        %v7061 = vlaneseq
        %v7062 = vshrl.u32 %v7061, 7
        %v7063 = vsub.s32 %v7060, %v7062
        %v7064 = vrot.slane %v7048, %v7063
        %v7066 = vunpack.c.l.s4 1966171168
        %v7067 = vunpack.c.0.s8 %v7066
        %v7068 = vlaneseq
        %v7069 = vshrl.u32 %v7068, 7
        %v7070 = vsub.s32 %v7067, %v7069
        %v7071 = vrot.slane %v7055, %v7070
        %v7073 = vunpack.c.l.s4 1966171168
        %v7074 = vunpack.c.0.s8 %v7073
        %v7075 = vlaneseq
        %v7076 = vshrl.u32 %v7075, 7
        %v7077 = vsub.s32 %v7074, %v7076
        %v7078 = vrot.slane %v7056, %v7077
        %v7080 = vunpack.c.l.s4 1966171168
        %v7081 = vunpack.c.0.s8 %v7080
        %v7082 = vlaneseq
        %v7083 = vshrl.u32 %v7082, 7
        %v7084 = vsub.s32 %v7081, %v7083
        %v7085 = vrot.slane %v7057, %v7084
        %v7086 = vcombine.high %v7064, %v7064
        %v7087 = vcombine.high %v7071, %v7071
        %v7088 = vcombine.high %v7078, %v7078
        %v7089 = vcombine.high %v7085, %v7085
        %v7091 = vunpack.c.l.s4 1966171168
        %v7092 = vunpack.c.0.s8 %v7091
        %v7093 = vlaneseq
        %v7094 = vshrl.u32 %v7093, 7
        %v7095 = vsub.s32 %v7092, %v7094
        %v7096 = vrot.slane %v7036, %v7095
        %v7097 = vcombine.high %v7096, %v7096
        %v7099 = vunpack.c.l.s4 1966171168
        %v7100 = vunpack.c.0.s8 %v7099
        %v7101 = vlaneseq
        %v7102 = vshrl.u32 %v7101, 7
        %v7103 = vsub.s32 %v7100, %v7102
        %v7104 = vrot.slane %v7096, %v7103
        %v7106 = vunpack.c.l.s4 1966171168
        %v7107 = vunpack.c.0.s8 %v7106
        %v7108 = vlaneseq
        %v7109 = vshrl.u32 %v7108, 7
        %v7110 = vsub.s32 %v7107, %v7109
        %v7111 = vrot.slane %v7097, %v7110
        %v7112 = vcombine.high %v7104, %v7104
        %v7113 = vcombine.high %v7111, %v7111
        %7126 = vst.msk [vmem:[#allocation3 + $0xc] sm:$0x1] %vm543, %v7064
        %7127 = vst.msk [vmem:[#allocation3 + $0x1c] sm:$0x1] %vm543, %v7078
        %7128 = vst.msk [vmem:[#allocation3 + $0x2c] sm:$0x1] %vm543, %v7086
        %7129 = vst.msk [vmem:[#allocation3 + $0x3c] sm:$0x1] %vm543, %v7088
        %7130 = vst.msk [vmem:[#allocation3 + $0x4c] sm:$0x1] %vm543, %v7071
        %7131 = vst.msk [vmem:[#allocation3 + $0x5c] sm:$0x1] %vm543, %v7085
        %7132 = vst.msk [vmem:[#allocation3 + $0x6c] sm:$0x1] %vm543, %v7087
        %7133 = vst.msk [vmem:[#allocation3 + $0x7c] sm:$0x1] %vm543, %v7089
        %7134 = vst.msk [vmem:[#allocation3 + $0x8c] sm:$0x1] %vm543, %v7104
        %7135 = vst.msk [vmem:[#allocation3 + $0x9c] sm:$0x1] %vm543, %v7111
        %7136 = vst.msk [vmem:[#allocation3 + $0xac] sm:$0x1] %vm543, %v7112
        %7137 = vst.msk [vmem:[#allocation3 + $0xbc] sm:$0x1] %vm543, %v7113
        %v7138 = vld [vmem:[#allocation2 + $0x8] sm:$0xff]
        %v7139 = vld [vmem:[#allocation2 + $0x18] sm:$0xf]
        %7142 = vrot.lane.b32.xlu0 %v7138, 48
        %v7143 = vpop.permute.xlu0 %7142
        %7144 = vrot.lane.b32.xlu0 %v7139, 48
        %v7145 = vpop.permute.xlu0 %7144
        %v7146 = vsel %vm374, %v7143, 0
        %v7148 = vsel %vm374, %v7145, 0
        %7150 = vmatprep.subr.mxu0 0.0
        %7151 = vmatpush1.msra.mxu0 0.0
        %7152 = vmatprep.subr.mxu0 0.0
        %7153 = vmatpush1.msra.mxu0 0.0
        %7154 = vmatprep.subr.mxu0 0.0
        %7155 = vmatpush1.msra.mxu0 0.0
        %7156 = vmatprep.subr.mxu0 0.0
        %7157 = vmatpush1.msra.mxu0 0.0
        %7158 = vmatprep.subr.mxu0 0.0
        %7159 = vmatpush1.msra.mxu0 0.0
        %7160 = vmatprep.subr.mxu0 0.0
        %7161 = vmatpush1.msra.mxu0 0.0
        %7162 = vmatprep.subr.mxu0 0.0
        %7163 = vmatpush1.msra.mxu0 0.0
        %7164 = vmatprep.subr.mxu0 0.0
        %7165 = vmatpush1.msra.mxu0 0.0
        %7166 = vmatprep.subr.mxu0 0.0
        %7167 = vmatpush1.msra.mxu0 0.0
        %7168 = vmatprep.subr.mxu0 0.0
        %7169 = vmatpush1.msra.mxu0 0.0
        %7170 = vmatprep.subr.mxu0 0.0
        %7171 = vmatpush1.msra.mxu0 0.0
        %7172 = vmatprep.subr.mxu0 0.0
        %7173 = vmatpush1.msra.mxu0 0.0
        %7174 = vmatprep.subr.mxu0 0.0
        %7175 = vmatpush1.msra.mxu0 0.0
        %7176 = vmatprep.subr.mxu0 0.0
        %7177 = vmatpush1.msra.mxu0 0.0
        %7178 = vmatprep.subr.mxu0 0.0
        %7179 = vmatpush1.msra.mxu0 %v255
        %7180 = vmatprep.subr.mxu0 0.0
        %7181 = vmatpush1.msra.mxu0 %v254
        %7182 = vmatprep.subr.mxu0 0.0
        %7183 = vmatpush2.msra.mxu0 0.0
        %7184 = vmatprep.subr.mxu0 0.0
        %7185 = vmatpush2.msra.mxu0 0.0
        %7186 = vmatprep.subr.mxu0 0.0
        %7187 = vmatpush2.msra.mxu0 0.0
        %7188 = vmatprep.subr.mxu0 0.0
        %7189 = vmatpush2.msra.mxu0 0.0
        %7190 = vmatprep.subr.mxu0 0.0
        %7191 = vmatpush2.msra.mxu0 0.0
        %7192 = vmatprep.subr.mxu0 0.0
        %7193 = vmatpush2.msra.mxu0 0.0
        %7194 = vmatprep.subr.mxu0 0.0
        %7195 = vmatpush2.msra.mxu0 0.0
        %7196 = vmatprep.subr.mxu0 0.0
        %7197 = vmatpush2.msra.mxu0 0.0
        %7198 = vmatprep.subr.mxu0 0.0
        %7199 = vmatpush2.msra.mxu0 0.0
        %7200 = vmatprep.subr.mxu0 0.0
        %7201 = vmatpush2.msra.mxu0 0.0
        %7202 = vmatprep.subr.mxu0 0.0
        %7203 = vmatpush2.msra.mxu0 0.0
        %7204 = vmatprep.subr.mxu0 0.0
        %7205 = vmatpush2.msra.mxu0 0.0
        %7206 = vmatprep.subr.mxu0 0.0
        %7207 = vmatpush2.msra.mxu0 0.0
        %7208 = vmatprep.subr.mxu0 0.0
        %7209 = vmatpush2.msra.mxu0 0.0
        %7210 = vmatprep.subr.mxu0 0.0
        %7211 = vmatpush2.msra.mxu0 0.0
        %7212 = vmatprep.subr.mxu0 0.0
        %7213 = vmatpush2.msra.mxu0 0.0
        %7214 = vmatprep.mubr.f32.mxu0 0.0
        %7215 = vmatmul.mubr.f32.gmra.mxu0 %v7146
        %v7216 = vpop.f32.mrf.mxu0
        %v7217 = vadd.f32 0.0, %v7216
        %v7218 = vpop.f32.mrf.mxu0
        %7219 = vmatprep.mubr.f32.mxu0 0.0
        %7220 = vmatmul.mubr.f32.gmra.mxu0 %v7148
        %v7221 = vpop.f32.mrf.mxu0
        %v7222 = vadd.f32 0.0, %v7221
        %v7223 = vpop.f32.mrf.mxu0
        %7224 = vdwg.mxu0
        %v7227 = vcombine.high %v7217, %v7217
        %v7229 = vunpack.c.l.s4 1966171168
        %v7230 = vunpack.c.0.s8 %v7229
        %v7231 = vlaneseq
        %v7232 = vshrl.u32 %v7231, 7
        %v7233 = vsub.s32 %v7230, %v7232
        %v7234 = vrot.slane %v7217, %v7233
        %v7236 = vunpack.c.l.s4 1966171168
        %v7237 = vunpack.c.0.s8 %v7236
        %v7238 = vlaneseq
        %v7239 = vshrl.u32 %v7238, 7
        %v7240 = vsub.s32 %v7237, %v7239
        %v7241 = vrot.slane %v7227, %v7240
        %v7242 = vcombine.high %v7234, %v7234
        %v7243 = vcombine.high %v7241, %v7241
        %v7245 = vunpack.c.l.s4 1966171168
        %v7246 = vunpack.c.0.s8 %v7245
        %v7247 = vlaneseq
        %v7248 = vshrl.u32 %v7247, 7
        %v7249 = vsub.s32 %v7246, %v7248
        %v7250 = vrot.slane %v7234, %v7249
        %v7252 = vunpack.c.l.s4 1966171168
        %v7253 = vunpack.c.0.s8 %v7252
        %v7254 = vlaneseq
        %v7255 = vshrl.u32 %v7254, 7
        %v7256 = vsub.s32 %v7253, %v7255
        %v7257 = vrot.slane %v7241, %v7256
        %v7259 = vunpack.c.l.s4 1966171168
        %v7260 = vunpack.c.0.s8 %v7259
        %v7261 = vlaneseq
        %v7262 = vshrl.u32 %v7261, 7
        %v7263 = vsub.s32 %v7260, %v7262
        %v7264 = vrot.slane %v7242, %v7263
        %v7266 = vunpack.c.l.s4 1966171168
        %v7267 = vunpack.c.0.s8 %v7266
        %v7268 = vlaneseq
        %v7269 = vshrl.u32 %v7268, 7
        %v7270 = vsub.s32 %v7267, %v7269
        %v7271 = vrot.slane %v7243, %v7270
        %v7272 = vcombine.high %v7250, %v7250
        %v7273 = vcombine.high %v7257, %v7257
        %v7274 = vcombine.high %v7264, %v7264
        %v7275 = vcombine.high %v7271, %v7271
        %v7277 = vunpack.c.l.s4 1966171168
        %v7278 = vunpack.c.0.s8 %v7277
        %v7279 = vlaneseq
        %v7280 = vshrl.u32 %v7279, 7
        %v7281 = vsub.s32 %v7278, %v7280
        %v7282 = vrot.slane %v7222, %v7281
        %v7283 = vcombine.high %v7282, %v7282
        %v7285 = vunpack.c.l.s4 1966171168
        %v7286 = vunpack.c.0.s8 %v7285
        %v7287 = vlaneseq
        %v7288 = vshrl.u32 %v7287, 7
        %v7289 = vsub.s32 %v7286, %v7288
        %v7290 = vrot.slane %v7282, %v7289
        %v7292 = vunpack.c.l.s4 1966171168
        %v7293 = vunpack.c.0.s8 %v7292
        %v7294 = vlaneseq
        %v7295 = vshrl.u32 %v7294, 7
        %v7296 = vsub.s32 %v7293, %v7295
        %v7297 = vrot.slane %v7283, %v7296
        %v7298 = vcombine.high %v7290, %v7290
        %v7299 = vcombine.high %v7297, %v7297
        %7312 = vst.msk [vmem:[#allocation3 + $0xd] sm:$0x1] %vm543, %v7250
        %7313 = vst.msk [vmem:[#allocation3 + $0x1d] sm:$0x1] %vm543, %v7264
        %7314 = vst.msk [vmem:[#allocation3 + $0x2d] sm:$0x1] %vm543, %v7272
        %7315 = vst.msk [vmem:[#allocation3 + $0x3d] sm:$0x1] %vm543, %v7274
        %7316 = vst.msk [vmem:[#allocation3 + $0x4d] sm:$0x1] %vm543, %v7257
        %7317 = vst.msk [vmem:[#allocation3 + $0x5d] sm:$0x1] %vm543, %v7271
        %7318 = vst.msk [vmem:[#allocation3 + $0x6d] sm:$0x1] %vm543, %v7273
        %7319 = vst.msk [vmem:[#allocation3 + $0x7d] sm:$0x1] %vm543, %v7275
        %7320 = vst.msk [vmem:[#allocation3 + $0x8d] sm:$0x1] %vm543, %v7290
        %7321 = vst.msk [vmem:[#allocation3 + $0x9d] sm:$0x1] %vm543, %v7297
        %7322 = vst.msk [vmem:[#allocation3 + $0xad] sm:$0x1] %vm543, %v7298
        %7323 = vst.msk [vmem:[#allocation3 + $0xbd] sm:$0x1] %vm543, %v7299
        %v7324 = vld [vmem:[#allocation2 + $0x8] sm:$0xff]
        %v7325 = vld [vmem:[#allocation2 + $0x18] sm:$0xf]
        %7328 = vrot.lane.b32.xlu0 %v7324, 32
        %v7329 = vpop.permute.xlu0 %7328
        %7330 = vrot.lane.b32.xlu0 %v7325, 32
        %v7331 = vpop.permute.xlu0 %7330
        %v7332 = vsel %vm374, %v7329, 0
        %v7334 = vsel %vm374, %v7331, 0
        %7336 = vmatprep.subr.mxu0 0.0
        %7337 = vmatpush1.msra.mxu0 0.0
        %7338 = vmatprep.subr.mxu0 0.0
        %7339 = vmatpush1.msra.mxu0 0.0
        %7340 = vmatprep.subr.mxu0 0.0
        %7341 = vmatpush1.msra.mxu0 0.0
        %7342 = vmatprep.subr.mxu0 0.0
        %7343 = vmatpush1.msra.mxu0 0.0
        %7344 = vmatprep.subr.mxu0 0.0
        %7345 = vmatpush1.msra.mxu0 0.0
        %7346 = vmatprep.subr.mxu0 0.0
        %7347 = vmatpush1.msra.mxu0 0.0
        %7348 = vmatprep.subr.mxu0 0.0
        %7349 = vmatpush1.msra.mxu0 0.0
        %7350 = vmatprep.subr.mxu0 0.0
        %7351 = vmatpush1.msra.mxu0 0.0
        %7352 = vmatprep.subr.mxu0 0.0
        %7353 = vmatpush1.msra.mxu0 0.0
        %7354 = vmatprep.subr.mxu0 0.0
        %7355 = vmatpush1.msra.mxu0 0.0
        %7356 = vmatprep.subr.mxu0 0.0
        %7357 = vmatpush1.msra.mxu0 0.0
        %7358 = vmatprep.subr.mxu0 0.0
        %7359 = vmatpush1.msra.mxu0 0.0
        %7360 = vmatprep.subr.mxu0 0.0
        %7361 = vmatpush1.msra.mxu0 0.0
        %7362 = vmatprep.subr.mxu0 0.0
        %7363 = vmatpush1.msra.mxu0 0.0
        %7364 = vmatprep.subr.mxu0 0.0
        %7365 = vmatpush1.msra.mxu0 %v255
        %7366 = vmatprep.subr.mxu0 0.0
        %7367 = vmatpush1.msra.mxu0 %v254
        %7368 = vmatprep.subr.mxu0 0.0
        %7369 = vmatpush2.msra.mxu0 0.0
        %7370 = vmatprep.subr.mxu0 0.0
        %7371 = vmatpush2.msra.mxu0 0.0
        %7372 = vmatprep.subr.mxu0 0.0
        %7373 = vmatpush2.msra.mxu0 0.0
        %7374 = vmatprep.subr.mxu0 0.0
        %7375 = vmatpush2.msra.mxu0 0.0
        %7376 = vmatprep.subr.mxu0 0.0
        %7377 = vmatpush2.msra.mxu0 0.0
        %7378 = vmatprep.subr.mxu0 0.0
        %7379 = vmatpush2.msra.mxu0 0.0
        %7380 = vmatprep.subr.mxu0 0.0
        %7381 = vmatpush2.msra.mxu0 0.0
        %7382 = vmatprep.subr.mxu0 0.0
        %7383 = vmatpush2.msra.mxu0 0.0
        %7384 = vmatprep.subr.mxu0 0.0
        %7385 = vmatpush2.msra.mxu0 0.0
        %7386 = vmatprep.subr.mxu0 0.0
        %7387 = vmatpush2.msra.mxu0 0.0
        %7388 = vmatprep.subr.mxu0 0.0
        %7389 = vmatpush2.msra.mxu0 0.0
        %7390 = vmatprep.subr.mxu0 0.0
        %7391 = vmatpush2.msra.mxu0 0.0
        %7392 = vmatprep.subr.mxu0 0.0
        %7393 = vmatpush2.msra.mxu0 0.0
        %7394 = vmatprep.subr.mxu0 0.0
        %7395 = vmatpush2.msra.mxu0 0.0
        %7396 = vmatprep.subr.mxu0 0.0
        %7397 = vmatpush2.msra.mxu0 0.0
        %7398 = vmatprep.subr.mxu0 0.0
        %7399 = vmatpush2.msra.mxu0 0.0
        %7400 = vmatprep.mubr.f32.mxu0 0.0
        %7401 = vmatmul.mubr.f32.gmra.mxu0 %v7332
        %v7402 = vpop.f32.mrf.mxu0
        %v7403 = vadd.f32 0.0, %v7402
        %v7404 = vpop.f32.mrf.mxu0
        %7405 = vmatprep.mubr.f32.mxu0 0.0
        %7406 = vmatmul.mubr.f32.gmra.mxu0 %v7334
        %v7407 = vpop.f32.mrf.mxu0
        %v7408 = vadd.f32 0.0, %v7407
        %v7409 = vpop.f32.mrf.mxu0
        %7410 = vdwg.mxu0
        %v7413 = vcombine.high %v7403, %v7403
        %v7415 = vunpack.c.l.s4 1966171168
        %v7416 = vunpack.c.0.s8 %v7415
        %v7417 = vlaneseq
        %v7418 = vshrl.u32 %v7417, 7
        %v7419 = vsub.s32 %v7416, %v7418
        %v7420 = vrot.slane %v7403, %v7419
        %v7422 = vunpack.c.l.s4 1966171168
        %v7423 = vunpack.c.0.s8 %v7422
        %v7424 = vlaneseq
        %v7425 = vshrl.u32 %v7424, 7
        %v7426 = vsub.s32 %v7423, %v7425
        %v7427 = vrot.slane %v7413, %v7426
        %v7428 = vcombine.high %v7420, %v7420
        %v7429 = vcombine.high %v7427, %v7427
        %v7431 = vunpack.c.l.s4 1966171168
        %v7432 = vunpack.c.0.s8 %v7431
        %v7433 = vlaneseq
        %v7434 = vshrl.u32 %v7433, 7
        %v7435 = vsub.s32 %v7432, %v7434
        %v7436 = vrot.slane %v7420, %v7435
        %v7438 = vunpack.c.l.s4 1966171168
        %v7439 = vunpack.c.0.s8 %v7438
        %v7440 = vlaneseq
        %v7441 = vshrl.u32 %v7440, 7
        %v7442 = vsub.s32 %v7439, %v7441
        %v7443 = vrot.slane %v7427, %v7442
        %v7445 = vunpack.c.l.s4 1966171168
        %v7446 = vunpack.c.0.s8 %v7445
        %v7447 = vlaneseq
        %v7448 = vshrl.u32 %v7447, 7
        %v7449 = vsub.s32 %v7446, %v7448
        %v7450 = vrot.slane %v7428, %v7449
        %v7452 = vunpack.c.l.s4 1966171168
        %v7453 = vunpack.c.0.s8 %v7452
        %v7454 = vlaneseq
        %v7455 = vshrl.u32 %v7454, 7
        %v7456 = vsub.s32 %v7453, %v7455
        %v7457 = vrot.slane %v7429, %v7456
        %v7458 = vcombine.high %v7436, %v7436
        %v7459 = vcombine.high %v7443, %v7443
        %v7460 = vcombine.high %v7450, %v7450
        %v7461 = vcombine.high %v7457, %v7457
        %v7463 = vunpack.c.l.s4 1966171168
        %v7464 = vunpack.c.0.s8 %v7463
        %v7465 = vlaneseq
        %v7466 = vshrl.u32 %v7465, 7
        %v7467 = vsub.s32 %v7464, %v7466
        %v7468 = vrot.slane %v7408, %v7467
        %v7469 = vcombine.high %v7468, %v7468
        %v7471 = vunpack.c.l.s4 1966171168
        %v7472 = vunpack.c.0.s8 %v7471
        %v7473 = vlaneseq
        %v7474 = vshrl.u32 %v7473, 7
        %v7475 = vsub.s32 %v7472, %v7474
        %v7476 = vrot.slane %v7468, %v7475
        %v7478 = vunpack.c.l.s4 1966171168
        %v7479 = vunpack.c.0.s8 %v7478
        %v7480 = vlaneseq
        %v7481 = vshrl.u32 %v7480, 7
        %v7482 = vsub.s32 %v7479, %v7481
        %v7483 = vrot.slane %v7469, %v7482
        %v7484 = vcombine.high %v7476, %v7476
        %v7485 = vcombine.high %v7483, %v7483
        %7498 = vst.msk [vmem:[#allocation3 + $0xe] sm:$0x1] %vm543, %v7436
        %7499 = vst.msk [vmem:[#allocation3 + $0x1e] sm:$0x1] %vm543, %v7450
        %7500 = vst.msk [vmem:[#allocation3 + $0x2e] sm:$0x1] %vm543, %v7458
        %7501 = vst.msk [vmem:[#allocation3 + $0x3e] sm:$0x1] %vm543, %v7460
        %7502 = vst.msk [vmem:[#allocation3 + $0x4e] sm:$0x1] %vm543, %v7443
        %7503 = vst.msk [vmem:[#allocation3 + $0x5e] sm:$0x1] %vm543, %v7457
        %7504 = vst.msk [vmem:[#allocation3 + $0x6e] sm:$0x1] %vm543, %v7459
        %7505 = vst.msk [vmem:[#allocation3 + $0x7e] sm:$0x1] %vm543, %v7461
        %7506 = vst.msk [vmem:[#allocation3 + $0x8e] sm:$0x1] %vm543, %v7476
        %7507 = vst.msk [vmem:[#allocation3 + $0x9e] sm:$0x1] %vm543, %v7483
        %7508 = vst.msk [vmem:[#allocation3 + $0xae] sm:$0x1] %vm543, %v7484
        %7509 = vst.msk [vmem:[#allocation3 + $0xbe] sm:$0x1] %vm543, %v7485
        %v7510 = vld [vmem:[#allocation2 + $0x8] sm:$0xff]
        %v7511 = vld [vmem:[#allocation2 + $0x18] sm:$0xf]
        %7514 = vrot.lane.b32.xlu0 %v7510, 16
        %v7515 = vpop.permute.xlu0 %7514
        %7516 = vrot.lane.b32.xlu0 %v7511, 16
        %v7517 = vpop.permute.xlu0 %7516
        %v7518 = vsel %vm374, %v7515, 0
        %v7520 = vsel %vm374, %v7517, 0
        %7522 = vmatprep.subr.mxu0 0.0
        %7523 = vmatpush1.msra.mxu0 0.0
        %7524 = vmatprep.subr.mxu0 0.0
        %7525 = vmatpush1.msra.mxu0 0.0
        %7526 = vmatprep.subr.mxu0 0.0
        %7527 = vmatpush1.msra.mxu0 0.0
        %7528 = vmatprep.subr.mxu0 0.0
        %7529 = vmatpush1.msra.mxu0 0.0
        %7530 = vmatprep.subr.mxu0 0.0
        %7531 = vmatpush1.msra.mxu0 0.0
        %7532 = vmatprep.subr.mxu0 0.0
        %7533 = vmatpush1.msra.mxu0 0.0
        %7534 = vmatprep.subr.mxu0 0.0
        %7535 = vmatpush1.msra.mxu0 0.0
        %7536 = vmatprep.subr.mxu0 0.0
        %7537 = vmatpush1.msra.mxu0 0.0
        %7538 = vmatprep.subr.mxu0 0.0
        %7539 = vmatpush1.msra.mxu0 0.0
        %7540 = vmatprep.subr.mxu0 0.0
        %7541 = vmatpush1.msra.mxu0 0.0
        %7542 = vmatprep.subr.mxu0 0.0
        %7543 = vmatpush1.msra.mxu0 0.0
        %7544 = vmatprep.subr.mxu0 0.0
        %7545 = vmatpush1.msra.mxu0 0.0
        %7546 = vmatprep.subr.mxu0 0.0
        %7547 = vmatpush1.msra.mxu0 0.0
        %7548 = vmatprep.subr.mxu0 0.0
        %7549 = vmatpush1.msra.mxu0 0.0
        %7550 = vmatprep.subr.mxu0 0.0
        %7551 = vmatpush1.msra.mxu0 %v255
        %7552 = vmatprep.subr.mxu0 0.0
        %7553 = vmatpush1.msra.mxu0 %v254
        %7554 = vmatprep.subr.mxu0 0.0
        %7555 = vmatpush2.msra.mxu0 0.0
        %7556 = vmatprep.subr.mxu0 0.0
        %7557 = vmatpush2.msra.mxu0 0.0
        %7558 = vmatprep.subr.mxu0 0.0
        %7559 = vmatpush2.msra.mxu0 0.0
        %7560 = vmatprep.subr.mxu0 0.0
        %7561 = vmatpush2.msra.mxu0 0.0
        %7562 = vmatprep.subr.mxu0 0.0
        %7563 = vmatpush2.msra.mxu0 0.0
        %7564 = vmatprep.subr.mxu0 0.0
        %7565 = vmatpush2.msra.mxu0 0.0
        %7566 = vmatprep.subr.mxu0 0.0
        %7567 = vmatpush2.msra.mxu0 0.0
        %7568 = vmatprep.subr.mxu0 0.0
        %7569 = vmatpush2.msra.mxu0 0.0
        %7570 = vmatprep.subr.mxu0 0.0
        %7571 = vmatpush2.msra.mxu0 0.0
        %7572 = vmatprep.subr.mxu0 0.0
        %7573 = vmatpush2.msra.mxu0 0.0
        %7574 = vmatprep.subr.mxu0 0.0
        %7575 = vmatpush2.msra.mxu0 0.0
        %7576 = vmatprep.subr.mxu0 0.0
        %7577 = vmatpush2.msra.mxu0 0.0
        %7578 = vmatprep.subr.mxu0 0.0
        %7579 = vmatpush2.msra.mxu0 0.0
        %7580 = vmatprep.subr.mxu0 0.0
        %7581 = vmatpush2.msra.mxu0 0.0
        %7582 = vmatprep.subr.mxu0 0.0
        %7583 = vmatpush2.msra.mxu0 0.0
        %7584 = vmatprep.subr.mxu0 0.0
        %7585 = vmatpush2.msra.mxu0 0.0
        %7586 = vmatprep.mubr.f32.mxu0 0.0
        %7587 = vmatmul.mubr.f32.gmra.mxu0 %v7518
        %v7588 = vpop.f32.mrf.mxu0
        %v7589 = vadd.f32 0.0, %v7588
        %v7590 = vpop.f32.mrf.mxu0
        %7591 = vmatprep.mubr.f32.mxu0 0.0
        %7592 = vmatmul.mubr.f32.gmra.mxu0 %v7520
        %v7593 = vpop.f32.mrf.mxu0
        %v7594 = vadd.f32 0.0, %v7593
        %v7595 = vpop.f32.mrf.mxu0
        %7596 = vdwg.mxu0
        %v7599 = vcombine.high %v7589, %v7589
        %v7601 = vunpack.c.l.s4 1966171168
        %v7602 = vunpack.c.0.s8 %v7601
        %v7603 = vlaneseq
        %v7604 = vshrl.u32 %v7603, 7
        %v7605 = vsub.s32 %v7602, %v7604
        %v7606 = vrot.slane %v7589, %v7605
        %v7608 = vunpack.c.l.s4 1966171168
        %v7609 = vunpack.c.0.s8 %v7608
        %v7610 = vlaneseq
        %v7611 = vshrl.u32 %v7610, 7
        %v7612 = vsub.s32 %v7609, %v7611
        %v7613 = vrot.slane %v7599, %v7612
        %v7614 = vcombine.high %v7606, %v7606
        %v7615 = vcombine.high %v7613, %v7613
        %v7617 = vunpack.c.l.s4 1966171168
        %v7618 = vunpack.c.0.s8 %v7617
        %v7619 = vlaneseq
        %v7620 = vshrl.u32 %v7619, 7
        %v7621 = vsub.s32 %v7618, %v7620
        %v7622 = vrot.slane %v7606, %v7621
        %v7624 = vunpack.c.l.s4 1966171168
        %v7625 = vunpack.c.0.s8 %v7624
        %v7626 = vlaneseq
        %v7627 = vshrl.u32 %v7626, 7
        %v7628 = vsub.s32 %v7625, %v7627
        %v7629 = vrot.slane %v7613, %v7628
        %v7631 = vunpack.c.l.s4 1966171168
        %v7632 = vunpack.c.0.s8 %v7631
        %v7633 = vlaneseq
        %v7634 = vshrl.u32 %v7633, 7
        %v7635 = vsub.s32 %v7632, %v7634
        %v7636 = vrot.slane %v7614, %v7635
        %v7638 = vunpack.c.l.s4 1966171168
        %v7639 = vunpack.c.0.s8 %v7638
        %v7640 = vlaneseq
        %v7641 = vshrl.u32 %v7640, 7
        %v7642 = vsub.s32 %v7639, %v7641
        %v7643 = vrot.slane %v7615, %v7642
        %v7644 = vcombine.high %v7622, %v7622
        %v7645 = vcombine.high %v7629, %v7629
        %v7646 = vcombine.high %v7636, %v7636
        %v7647 = vcombine.high %v7643, %v7643
        %v7649 = vunpack.c.l.s4 1966171168
        %v7650 = vunpack.c.0.s8 %v7649
        %v7651 = vlaneseq
        %v7652 = vshrl.u32 %v7651, 7
        %v7653 = vsub.s32 %v7650, %v7652
        %v7654 = vrot.slane %v7594, %v7653
        %v7655 = vcombine.high %v7654, %v7654
        %v7657 = vunpack.c.l.s4 1966171168
        %v7658 = vunpack.c.0.s8 %v7657
        %v7659 = vlaneseq
        %v7660 = vshrl.u32 %v7659, 7
        %v7661 = vsub.s32 %v7658, %v7660
        %v7662 = vrot.slane %v7654, %v7661
        %v7664 = vunpack.c.l.s4 1966171168
        %v7665 = vunpack.c.0.s8 %v7664
        %v7666 = vlaneseq
        %v7667 = vshrl.u32 %v7666, 7
        %v7668 = vsub.s32 %v7665, %v7667
        %v7669 = vrot.slane %v7655, %v7668
        %v7670 = vcombine.high %v7662, %v7662
        %v7671 = vcombine.high %v7669, %v7669
        %7684 = vst.msk [vmem:[#allocation3 + $0xf] sm:$0x1] %vm543, %v7622
        %7685 = vst.msk [vmem:[#allocation3 + $0x1f] sm:$0x1] %vm543, %v7636
        %7686 = vst.msk [vmem:[#allocation3 + $0x2f] sm:$0x1] %vm543, %v7644
        %7687 = vst.msk [vmem:[#allocation3 + $0x3f] sm:$0x1] %vm543, %v7646
        %7688 = vst.msk [vmem:[#allocation3 + $0x4f] sm:$0x1] %vm543, %v7629
        %7689 = vst.msk [vmem:[#allocation3 + $0x5f] sm:$0x1] %vm543, %v7643
        %7690 = vst.msk [vmem:[#allocation3 + $0x6f] sm:$0x1] %vm543, %v7645
        %7691 = vst.msk [vmem:[#allocation3 + $0x7f] sm:$0x1] %vm543, %v7647
        %7692 = vst.msk [vmem:[#allocation3 + $0x8f] sm:$0x1] %vm543, %v7662
        %7693 = vst.msk [vmem:[#allocation3 + $0x9f] sm:$0x1] %vm543, %v7669
        %7694 = vst.msk [vmem:[#allocation3 + $0xaf] sm:$0x1] %vm543, %v7670
        %7695 = vst.msk [vmem:[#allocation3 + $0xbf] sm:$0x1] %vm543, %v7671
        %v7696 = vld [vmem:[#allocation3] sm:$0xff]
        %v7697 = vld [vmem:[#allocation3 + $0x8] sm:$0xff]
        %7698 = vmatprep.subr.mxu0 0.0
        %7699 = vmatpush1.msra.mxu0 0.0
        %7700 = vmatprep.subr.mxu0 0.0
        %7701 = vmatpush1.msra.mxu0 0.0
        %7702 = vmatprep.subr.mxu0 0.0
        %7703 = vmatpush1.msra.mxu0 0.0
        %7704 = vmatprep.subr.mxu0 0.0
        %7705 = vmatpush1.msra.mxu0 0.0
        %7706 = vmatprep.subr.mxu0 0.0
        %7707 = vmatpush1.msra.mxu0 0.0
        %7708 = vmatprep.subr.mxu0 0.0
        %7709 = vmatpush1.msra.mxu0 0.0
        %7710 = vmatprep.subr.mxu0 0.0
        %7711 = vmatpush1.msra.mxu0 0.0
        %7712 = vmatprep.subr.mxu0 0.0
        %7713 = vmatpush1.msra.mxu0 0.0
        %7714 = vmatprep.subr.mxu0 0.0
        %7715 = vmatpush1.msra.mxu0 0.0
        %7716 = vmatprep.subr.mxu0 0.0
        %7717 = vmatpush1.msra.mxu0 0.0
        %7718 = vmatprep.subr.mxu0 0.0
        %7719 = vmatpush1.msra.mxu0 0.0
        %7720 = vmatprep.subr.mxu0 0.0
        %7721 = vmatpush1.msra.mxu0 0.0
        %7722 = vmatprep.subr.mxu0 0.0
        %7723 = vmatpush1.msra.mxu0 0.0
        %7724 = vmatprep.subr.mxu0 0.0
        %7725 = vmatpush1.msra.mxu0 0.0
        %7726 = vmatprep.subr.mxu0 0.0
        %7727 = vmatpush1.msra.mxu0 %v7697
        %7728 = vmatprep.subr.mxu0 0.0
        %7729 = vmatpush1.msra.mxu0 %v7696
        %7730 = vmatprep.subr.mxu0 0.0
        %7731 = vmatpush2.msra.mxu0 0.0
        %7732 = vmatprep.subr.mxu0 0.0
        %7733 = vmatpush2.msra.mxu0 0.0
        %7734 = vmatprep.subr.mxu0 0.0
        %7735 = vmatpush2.msra.mxu0 0.0
        %7736 = vmatprep.subr.mxu0 0.0
        %7737 = vmatpush2.msra.mxu0 0.0
        %7738 = vmatprep.subr.mxu0 0.0
        %7739 = vmatpush2.msra.mxu0 0.0
        %7740 = vmatprep.subr.mxu0 0.0
        %7741 = vmatpush2.msra.mxu0 0.0
        %7742 = vmatprep.subr.mxu0 0.0
        %7743 = vmatpush2.msra.mxu0 0.0
        %7744 = vmatprep.subr.mxu0 0.0
        %7745 = vmatpush2.msra.mxu0 0.0
        %7746 = vmatprep.subr.mxu0 0.0
        %7747 = vmatpush2.msra.mxu0 0.0
        %7748 = vmatprep.subr.mxu0 0.0
        %7749 = vmatpush2.msra.mxu0 0.0
        %7750 = vmatprep.subr.mxu0 0.0
        %7751 = vmatpush2.msra.mxu0 0.0
        %7752 = vmatprep.subr.mxu0 0.0
        %7753 = vmatpush2.msra.mxu0 0.0
        %7754 = vmatprep.subr.mxu0 0.0
        %7755 = vmatpush2.msra.mxu0 0.0
        %7756 = vmatprep.subr.mxu0 0.0
        %7757 = vmatpush2.msra.mxu0 0.0
        %7758 = vmatprep.subr.mxu0 0.0
        %7759 = vmatpush2.msra.mxu0 0.0
        %7760 = vmatprep.subr.mxu0 0.0
        %7761 = vmatpush2.msra.mxu0 0.0
        %7762 = vmatprep.mubr.f32.mxu0 0.0
        %7763 = vmatmul.mubr.f32.gmra.mxu0 %v3345
        %v7764 = vpop.f32.mrf.mxu0
        %v7765 = vadd.f32 0.0, %v7764
        %v7766 = vpop.f32.mrf.mxu0
        %7767 = vmatprep.mubr.f32.mxu0 0.0
        %7768 = vmatmul.mubr.f32.gmra.mxu0 %v3348
        %v7769 = vpop.f32.mrf.mxu0
        %v7770 = vadd.f32 0.0, %v7769
        %v7771 = vpop.f32.mrf.mxu0
        %7772 = vmatprep.mubr.f32.mxu0 0.0
        %7773 = vmatmul.mubr.f32.gmra.mxu0 %v3351
        %v7774 = vpop.f32.mrf.mxu0
        %v7775 = vadd.f32 0.0, %v7774
        %v7776 = vpop.f32.mrf.mxu0
        %7777 = vmatprep.mubr.f32.mxu0 0.0
        %7778 = vmatmul.mubr.f32.gmra.mxu0 %v3354
        %v7779 = vpop.f32.mrf.mxu0
        %v7780 = vadd.f32 0.0, %v7779
        %v7781 = vpop.f32.mrf.mxu0
        %7782 = vdwg.mxu0
        %7783 = vst.msk [vmem:[#allocation4] sm:$0xff] %vm3441, %v7765
        %7784 = vst.msk [vmem:[#allocation4 + $0x8] sm:$0xff] %vm3441, %v7770
        %7785 = vst.msk [vmem:[#allocation4 + $0x10] sm:$0xff] %vm3441, %v7775
        %7786 = vst.msk [vmem:[#allocation4 + $0x18] sm:$0xff] %vm3441, %v7780
        %v7787 = vld [vmem:[%s3446] sm:$0xff]
        %v7788 = vld [vmem:[%s3446 + $0x8] sm:$0xff]
        %7789 = vmatprep.subr.mxu0 0.0
        %7790 = vmatpush1.msra.mxu0 0.0
        %7791 = vmatprep.subr.mxu0 0.0
        %7792 = vmatpush1.msra.mxu0 0.0
        %7793 = vmatprep.subr.mxu0 0.0
        %7794 = vmatpush1.msra.mxu0 0.0
        %7795 = vmatprep.subr.mxu0 0.0
        %7796 = vmatpush1.msra.mxu0 0.0
        %7797 = vmatprep.subr.mxu0 0.0
        %7798 = vmatpush1.msra.mxu0 0.0
        %7799 = vmatprep.subr.mxu0 0.0
        %7800 = vmatpush1.msra.mxu0 0.0
        %7801 = vmatprep.subr.mxu0 0.0
        %7802 = vmatpush1.msra.mxu0 0.0
        %7803 = vmatprep.subr.mxu0 0.0
        %7804 = vmatpush1.msra.mxu0 0.0
        %7805 = vmatprep.subr.mxu0 0.0
        %7806 = vmatpush1.msra.mxu0 0.0
        %7807 = vmatprep.subr.mxu0 0.0
        %7808 = vmatpush1.msra.mxu0 0.0
        %7809 = vmatprep.subr.mxu0 0.0
        %7810 = vmatpush1.msra.mxu0 0.0
        %7811 = vmatprep.subr.mxu0 0.0
        %7812 = vmatpush1.msra.mxu0 0.0
        %7813 = vmatprep.subr.mxu0 0.0
        %7814 = vmatpush1.msra.mxu0 0.0
        %7815 = vmatprep.subr.mxu0 0.0
        %7816 = vmatpush1.msra.mxu0 0.0
        %7817 = vmatprep.subr.mxu0 0.0
        %7818 = vmatpush1.msra.mxu0 %v7788
        %7819 = vmatprep.subr.mxu0 0.0
        %7820 = vmatpush1.msra.mxu0 %v7787
        %7821 = vmatprep.subr.mxu0 0.0
        %7822 = vmatpush2.msra.mxu0 0.0
        %7823 = vmatprep.subr.mxu0 0.0
        %7824 = vmatpush2.msra.mxu0 0.0
        %7825 = vmatprep.subr.mxu0 0.0
        %7826 = vmatpush2.msra.mxu0 0.0
        %7827 = vmatprep.subr.mxu0 0.0
        %7828 = vmatpush2.msra.mxu0 0.0
        %7829 = vmatprep.subr.mxu0 0.0
        %7830 = vmatpush2.msra.mxu0 0.0
        %7831 = vmatprep.subr.mxu0 0.0
        %7832 = vmatpush2.msra.mxu0 0.0
        %7833 = vmatprep.subr.mxu0 0.0
        %7834 = vmatpush2.msra.mxu0 0.0
        %7835 = vmatprep.subr.mxu0 0.0
        %7836 = vmatpush2.msra.mxu0 0.0
        %7837 = vmatprep.subr.mxu0 0.0
        %7838 = vmatpush2.msra.mxu0 0.0
        %7839 = vmatprep.subr.mxu0 0.0
        %7840 = vmatpush2.msra.mxu0 0.0
        %7841 = vmatprep.subr.mxu0 0.0
        %7842 = vmatpush2.msra.mxu0 0.0
        %7843 = vmatprep.subr.mxu0 0.0
        %7844 = vmatpush2.msra.mxu0 0.0
        %7845 = vmatprep.subr.mxu0 0.0
        %7846 = vmatpush2.msra.mxu0 0.0
        %7847 = vmatprep.subr.mxu0 0.0
        %7848 = vmatpush2.msra.mxu0 0.0
        %7849 = vmatprep.subr.mxu0 0.0
        %7850 = vmatpush2.msra.mxu0 0.0
        %7851 = vmatprep.subr.mxu0 0.0
        %7852 = vmatpush2.msra.mxu0 0.0
        %7853 = vmatprep.mubr.f32.mxu0 0.0
        %7854 = vmatmul.mubr.f32.gmra.mxu0 %v3345
        %v7855 = vpop.f32.mrf.mxu0
        %v7856 = vadd.f32 0.0, %v7855
        %v7857 = vpop.f32.mrf.mxu0
        %7858 = vmatprep.mubr.f32.mxu0 0.0
        %7859 = vmatmul.mubr.f32.gmra.mxu0 %v3348
        %v7860 = vpop.f32.mrf.mxu0
        %v7861 = vadd.f32 0.0, %v7860
        %v7862 = vpop.f32.mrf.mxu0
        %7863 = vmatprep.mubr.f32.mxu0 0.0
        %7864 = vmatmul.mubr.f32.gmra.mxu0 %v3351
        %v7865 = vpop.f32.mrf.mxu0
        %v7866 = vadd.f32 0.0, %v7865
        %v7867 = vpop.f32.mrf.mxu0
        %7868 = vmatprep.mubr.f32.mxu0 0.0
        %7869 = vmatmul.mubr.f32.gmra.mxu0 %v3354
        %v7870 = vpop.f32.mrf.mxu0
        %v7871 = vadd.f32 0.0, %v7870
        %v7872 = vpop.f32.mrf.mxu0
        %7873 = vdwg.mxu0
        %7874 = vst.msk [vmem:[%s3534] sm:$0xff] %vm3441, %v7856
        %7875 = vst.msk [vmem:[%s3534 + $0x8] sm:$0xff] %vm3441, %v7861
        %7876 = vst.msk [vmem:[%s3534 + $0x10] sm:$0xff] %vm3441, %v7866
        %7877 = vst.msk [vmem:[%s3534 + $0x18] sm:$0xff] %vm3441, %v7871
        %v7878 = vld [vmem:[%s3539] sm:$0xff]
        %v7879 = vld [vmem:[%s3539 + $0x8] sm:$0xff]
        %7880 = vmatprep.subr.mxu0 0.0
        %7881 = vmatpush1.msra.mxu0 0.0
        %7882 = vmatprep.subr.mxu0 0.0
        %7883 = vmatpush1.msra.mxu0 0.0
        %7884 = vmatprep.subr.mxu0 0.0
        %7885 = vmatpush1.msra.mxu0 0.0
        %7886 = vmatprep.subr.mxu0 0.0
        %7887 = vmatpush1.msra.mxu0 0.0
        %7888 = vmatprep.subr.mxu0 0.0
        %7889 = vmatpush1.msra.mxu0 0.0
        %7890 = vmatprep.subr.mxu0 0.0
        %7891 = vmatpush1.msra.mxu0 0.0
        %7892 = vmatprep.subr.mxu0 0.0
        %7893 = vmatpush1.msra.mxu0 0.0
        %7894 = vmatprep.subr.mxu0 0.0
        %7895 = vmatpush1.msra.mxu0 0.0
        %7896 = vmatprep.subr.mxu0 0.0
        %7897 = vmatpush1.msra.mxu0 0.0
        %7898 = vmatprep.subr.mxu0 0.0
        %7899 = vmatpush1.msra.mxu0 0.0
        %7900 = vmatprep.subr.mxu0 0.0
        %7901 = vmatpush1.msra.mxu0 0.0
        %7902 = vmatprep.subr.mxu0 0.0
        %7903 = vmatpush1.msra.mxu0 0.0
        %7904 = vmatprep.subr.mxu0 0.0
        %7905 = vmatpush1.msra.mxu0 0.0
        %7906 = vmatprep.subr.mxu0 0.0
        %7907 = vmatpush1.msra.mxu0 0.0
        %7908 = vmatprep.subr.mxu0 0.0
        %7909 = vmatpush1.msra.mxu0 %v7879
        %7910 = vmatprep.subr.mxu0 0.0
        %7911 = vmatpush1.msra.mxu0 %v7878
        %7912 = vmatprep.subr.mxu0 0.0
        %7913 = vmatpush2.msra.mxu0 0.0
        %7914 = vmatprep.subr.mxu0 0.0
        %7915 = vmatpush2.msra.mxu0 0.0
        %7916 = vmatprep.subr.mxu0 0.0
        %7917 = vmatpush2.msra.mxu0 0.0
        %7918 = vmatprep.subr.mxu0 0.0
        %7919 = vmatpush2.msra.mxu0 0.0
        %7920 = vmatprep.subr.mxu0 0.0
        %7921 = vmatpush2.msra.mxu0 0.0
        %7922 = vmatprep.subr.mxu0 0.0
        %7923 = vmatpush2.msra.mxu0 0.0
        %7924 = vmatprep.subr.mxu0 0.0
        %7925 = vmatpush2.msra.mxu0 0.0
        %7926 = vmatprep.subr.mxu0 0.0
        %7927 = vmatpush2.msra.mxu0 0.0
        %7928 = vmatprep.subr.mxu0 0.0
        %7929 = vmatpush2.msra.mxu0 0.0
        %7930 = vmatprep.subr.mxu0 0.0
        %7931 = vmatpush2.msra.mxu0 0.0
        %7932 = vmatprep.subr.mxu0 0.0
        %7933 = vmatpush2.msra.mxu0 0.0
        %7934 = vmatprep.subr.mxu0 0.0
        %7935 = vmatpush2.msra.mxu0 0.0
        %7936 = vmatprep.subr.mxu0 0.0
        %7937 = vmatpush2.msra.mxu0 0.0
        %7938 = vmatprep.subr.mxu0 0.0
        %7939 = vmatpush2.msra.mxu0 0.0
        %7940 = vmatprep.subr.mxu0 0.0
        %7941 = vmatpush2.msra.mxu0 0.0
        %7942 = vmatprep.subr.mxu0 0.0
        %7943 = vmatpush2.msra.mxu0 0.0
        %7944 = vmatprep.mubr.f32.mxu0 0.0
        %7945 = vmatmul.mubr.f32.gmra.mxu0 %v3345
        %v7946 = vpop.f32.mrf.mxu0
        %v7947 = vadd.f32 0.0, %v7946
        %v7948 = vpop.f32.mrf.mxu0
        %7949 = vmatprep.mubr.f32.mxu0 0.0
        %7950 = vmatmul.mubr.f32.gmra.mxu0 %v3348
        %v7951 = vpop.f32.mrf.mxu0
        %v7952 = vadd.f32 0.0, %v7951
        %v7953 = vpop.f32.mrf.mxu0
        %7954 = vmatprep.mubr.f32.mxu0 0.0
        %7955 = vmatmul.mubr.f32.gmra.mxu0 %v3351
        %v7956 = vpop.f32.mrf.mxu0
        %v7957 = vadd.f32 0.0, %v7956
        %v7958 = vpop.f32.mrf.mxu0
        %7959 = vmatprep.mubr.f32.mxu0 0.0
        %7960 = vmatmul.mubr.f32.gmra.mxu0 %v3354
        %v7961 = vpop.f32.mrf.mxu0
        %v7962 = vadd.f32 0.0, %v7961
        %v7963 = vpop.f32.mrf.mxu0
        %7964 = vdwg.mxu0
        %7965 = vst.msk [vmem:[%s3627] sm:$0xff] %vm3441, %v7947
        %7966 = vst.msk [vmem:[%s3627 + $0x8] sm:$0xff] %vm3441, %v7952
        %7967 = vst.msk [vmem:[%s3627 + $0x10] sm:$0xff] %vm3441, %v7957
        %7968 = vst.msk [vmem:[%s3627 + $0x18] sm:$0xff] %vm3441, %v7962
        %v7969 = vld [vmem:[%s3632] sm:$0xff]
        %v7970 = vld [vmem:[%s3632 + $0x8] sm:$0xff]
        %7971 = vmatprep.subr.mxu0 0.0
        %7972 = vmatpush1.msra.mxu0 0.0
        %7973 = vmatprep.subr.mxu0 0.0
        %7974 = vmatpush1.msra.mxu0 0.0
        %7975 = vmatprep.subr.mxu0 0.0
        %7976 = vmatpush1.msra.mxu0 0.0
        %7977 = vmatprep.subr.mxu0 0.0
        %7978 = vmatpush1.msra.mxu0 0.0
        %7979 = vmatprep.subr.mxu0 0.0
        %7980 = vmatpush1.msra.mxu0 0.0
        %7981 = vmatprep.subr.mxu0 0.0
        %7982 = vmatpush1.msra.mxu0 0.0
        %7983 = vmatprep.subr.mxu0 0.0
        %7984 = vmatpush1.msra.mxu0 0.0
        %7985 = vmatprep.subr.mxu0 0.0
        %7986 = vmatpush1.msra.mxu0 0.0
        %7987 = vmatprep.subr.mxu0 0.0
        %7988 = vmatpush1.msra.mxu0 0.0
        %7989 = vmatprep.subr.mxu0 0.0
        %7990 = vmatpush1.msra.mxu0 0.0
        %7991 = vmatprep.subr.mxu0 0.0
        %7992 = vmatpush1.msra.mxu0 0.0
        %7993 = vmatprep.subr.mxu0 0.0
        %7994 = vmatpush1.msra.mxu0 0.0
        %7995 = vmatprep.subr.mxu0 0.0
        %7996 = vmatpush1.msra.mxu0 0.0
        %7997 = vmatprep.subr.mxu0 0.0
        %7998 = vmatpush1.msra.mxu0 0.0
        %7999 = vmatprep.subr.mxu0 0.0
        %8000 = vmatpush1.msra.mxu0 %v7970
        %8001 = vmatprep.subr.mxu0 0.0
        %8002 = vmatpush1.msra.mxu0 %v7969
        %8003 = vmatprep.subr.mxu0 0.0
        %8004 = vmatpush2.msra.mxu0 0.0
        %8005 = vmatprep.subr.mxu0 0.0
        %8006 = vmatpush2.msra.mxu0 0.0
        %8007 = vmatprep.subr.mxu0 0.0
        %8008 = vmatpush2.msra.mxu0 0.0
        %8009 = vmatprep.subr.mxu0 0.0
        %8010 = vmatpush2.msra.mxu0 0.0
        %8011 = vmatprep.subr.mxu0 0.0
        %8012 = vmatpush2.msra.mxu0 0.0
        %8013 = vmatprep.subr.mxu0 0.0
        %8014 = vmatpush2.msra.mxu0 0.0
        %8015 = vmatprep.subr.mxu0 0.0
        %8016 = vmatpush2.msra.mxu0 0.0
        %8017 = vmatprep.subr.mxu0 0.0
        %8018 = vmatpush2.msra.mxu0 0.0
        %8019 = vmatprep.subr.mxu0 0.0
        %8020 = vmatpush2.msra.mxu0 0.0
        %8021 = vmatprep.subr.mxu0 0.0
        %8022 = vmatpush2.msra.mxu0 0.0
        %8023 = vmatprep.subr.mxu0 0.0
        %8024 = vmatpush2.msra.mxu0 0.0
        %8025 = vmatprep.subr.mxu0 0.0
        %8026 = vmatpush2.msra.mxu0 0.0
        %8027 = vmatprep.subr.mxu0 0.0
        %8028 = vmatpush2.msra.mxu0 0.0
        %8029 = vmatprep.subr.mxu0 0.0
        %8030 = vmatpush2.msra.mxu0 0.0
        %8031 = vmatprep.subr.mxu0 0.0
        %8032 = vmatpush2.msra.mxu0 0.0
        %8033 = vmatprep.subr.mxu0 0.0
        %8034 = vmatpush2.msra.mxu0 0.0
        %8035 = vmatprep.mubr.f32.mxu0 0.0
        %8036 = vmatmul.mubr.f32.gmra.mxu0 %v3345
        %v8037 = vpop.f32.mrf.mxu0
        %v8038 = vadd.f32 0.0, %v8037
        %v8039 = vpop.f32.mrf.mxu0
        %8040 = vmatprep.mubr.f32.mxu0 0.0
        %8041 = vmatmul.mubr.f32.gmra.mxu0 %v3348
        %v8042 = vpop.f32.mrf.mxu0
        %v8043 = vadd.f32 0.0, %v8042
        %v8044 = vpop.f32.mrf.mxu0
        %8045 = vmatprep.mubr.f32.mxu0 0.0
        %8046 = vmatmul.mubr.f32.gmra.mxu0 %v3351
        %v8047 = vpop.f32.mrf.mxu0
        %v8048 = vadd.f32 0.0, %v8047
        %v8049 = vpop.f32.mrf.mxu0
        %8050 = vmatprep.mubr.f32.mxu0 0.0
        %8051 = vmatmul.mubr.f32.gmra.mxu0 %v3354
        %v8052 = vpop.f32.mrf.mxu0
        %v8053 = vadd.f32 0.0, %v8052
        %v8054 = vpop.f32.mrf.mxu0
        %8055 = vdwg.mxu0
        %8056 = vst.msk [vmem:[%s3720] sm:$0xff] %vm3441, %v8038
        %8057 = vst.msk [vmem:[%s3720 + $0x8] sm:$0xff] %vm3441, %v8043
        %8058 = vst.msk [vmem:[%s3720 + $0x10] sm:$0xff] %vm3441, %v8048
        %8059 = vst.msk [vmem:[%s3720 + $0x18] sm:$0xff] %vm3441, %v8053
        %v8060 = vld [vmem:[%s3725] sm:$0xff]
        %v8061 = vld [vmem:[%s3725 + $0x8] sm:$0xff]
        %8062 = vmatprep.subr.mxu0 0.0
        %8063 = vmatpush1.msra.mxu0 0.0
        %8064 = vmatprep.subr.mxu0 0.0
        %8065 = vmatpush1.msra.mxu0 0.0
        %8066 = vmatprep.subr.mxu0 0.0
        %8067 = vmatpush1.msra.mxu0 0.0
        %8068 = vmatprep.subr.mxu0 0.0
        %8069 = vmatpush1.msra.mxu0 0.0
        %8070 = vmatprep.subr.mxu0 0.0
        %8071 = vmatpush1.msra.mxu0 0.0
        %8072 = vmatprep.subr.mxu0 0.0
        %8073 = vmatpush1.msra.mxu0 0.0
        %8074 = vmatprep.subr.mxu0 0.0
        %8075 = vmatpush1.msra.mxu0 0.0
        %8076 = vmatprep.subr.mxu0 0.0
        %8077 = vmatpush1.msra.mxu0 0.0
        %8078 = vmatprep.subr.mxu0 0.0
        %8079 = vmatpush1.msra.mxu0 0.0
        %8080 = vmatprep.subr.mxu0 0.0
        %8081 = vmatpush1.msra.mxu0 0.0
        %8082 = vmatprep.subr.mxu0 0.0
        %8083 = vmatpush1.msra.mxu0 0.0
        %8084 = vmatprep.subr.mxu0 0.0
        %8085 = vmatpush1.msra.mxu0 0.0
        %8086 = vmatprep.subr.mxu0 0.0
        %8087 = vmatpush1.msra.mxu0 0.0
        %8088 = vmatprep.subr.mxu0 0.0
        %8089 = vmatpush1.msra.mxu0 0.0
        %8090 = vmatprep.subr.mxu0 0.0
        %8091 = vmatpush1.msra.mxu0 %v8061
        %8092 = vmatprep.subr.mxu0 0.0
        %8093 = vmatpush1.msra.mxu0 %v8060
        %8094 = vmatprep.subr.mxu0 0.0
        %8095 = vmatpush2.msra.mxu0 0.0
        %8096 = vmatprep.subr.mxu0 0.0
        %8097 = vmatpush2.msra.mxu0 0.0
        %8098 = vmatprep.subr.mxu0 0.0
        %8099 = vmatpush2.msra.mxu0 0.0
        %8100 = vmatprep.subr.mxu0 0.0
        %8101 = vmatpush2.msra.mxu0 0.0
        %8102 = vmatprep.subr.mxu0 0.0
        %8103 = vmatpush2.msra.mxu0 0.0
        %8104 = vmatprep.subr.mxu0 0.0
        %8105 = vmatpush2.msra.mxu0 0.0
        %8106 = vmatprep.subr.mxu0 0.0
        %8107 = vmatpush2.msra.mxu0 0.0
        %8108 = vmatprep.subr.mxu0 0.0
        %8109 = vmatpush2.msra.mxu0 0.0
        %8110 = vmatprep.subr.mxu0 0.0
        %8111 = vmatpush2.msra.mxu0 0.0
        %8112 = vmatprep.subr.mxu0 0.0
        %8113 = vmatpush2.msra.mxu0 0.0
        %8114 = vmatprep.subr.mxu0 0.0
        %8115 = vmatpush2.msra.mxu0 0.0
        %8116 = vmatprep.subr.mxu0 0.0
        %8117 = vmatpush2.msra.mxu0 0.0
        %8118 = vmatprep.subr.mxu0 0.0
        %8119 = vmatpush2.msra.mxu0 0.0
        %8120 = vmatprep.subr.mxu0 0.0
        %8121 = vmatpush2.msra.mxu0 0.0
        %8122 = vmatprep.subr.mxu0 0.0
        %8123 = vmatpush2.msra.mxu0 0.0
        %8124 = vmatprep.subr.mxu0 0.0
        %8125 = vmatpush2.msra.mxu0 0.0
        %8126 = vmatprep.mubr.f32.mxu0 0.0
        %8127 = vmatmul.mubr.f32.gmra.mxu0 %v3345
        %v8128 = vpop.f32.mrf.mxu0
        %v8129 = vadd.f32 0.0, %v8128
        %v8130 = vpop.f32.mrf.mxu0
        %8131 = vmatprep.mubr.f32.mxu0 0.0
        %8132 = vmatmul.mubr.f32.gmra.mxu0 %v3348
        %v8133 = vpop.f32.mrf.mxu0
        %v8134 = vadd.f32 0.0, %v8133
        %v8135 = vpop.f32.mrf.mxu0
        %8136 = vmatprep.mubr.f32.mxu0 0.0
        %8137 = vmatmul.mubr.f32.gmra.mxu0 %v3351
        %v8138 = vpop.f32.mrf.mxu0
        %v8139 = vadd.f32 0.0, %v8138
        %v8140 = vpop.f32.mrf.mxu0
        %8141 = vmatprep.mubr.f32.mxu0 0.0
        %8142 = vmatmul.mubr.f32.gmra.mxu0 %v3354
        %v8143 = vpop.f32.mrf.mxu0
        %v8144 = vadd.f32 0.0, %v8143
        %v8145 = vpop.f32.mrf.mxu0
        %8146 = vdwg.mxu0
        %s8147 = scalar_lea.vmem %s243, 512 [#allocation8]
        %8148 = vst.msk [vmem:[%s8147] sm:$0xff] %vm3441, %v8129
        %8149 = vst.msk [vmem:[%s8147 + $0x8] sm:$0xff] %vm3441, %v8134
        %8150 = vst.msk [vmem:[%s8147 + $0x10] sm:$0xff] %vm3441, %v8139
        %8151 = vst.msk [vmem:[%s8147 + $0x18] sm:$0xff] %vm3441, %v8144
        %v8152 = vld [vmem:[%s3818] sm:$0xff]
        %v8153 = vld [vmem:[%s3818 + $0x8] sm:$0xff]
        %8154 = vmatprep.subr.mxu0 0.0
        %8155 = vmatpush1.msra.mxu0 0.0
        %8156 = vmatprep.subr.mxu0 0.0
        %8157 = vmatpush1.msra.mxu0 0.0
        %8158 = vmatprep.subr.mxu0 0.0
        %8159 = vmatpush1.msra.mxu0 0.0
        %8160 = vmatprep.subr.mxu0 0.0
        %8161 = vmatpush1.msra.mxu0 0.0
        %8162 = vmatprep.subr.mxu0 0.0
        %8163 = vmatpush1.msra.mxu0 0.0
        %8164 = vmatprep.subr.mxu0 0.0
        %8165 = vmatpush1.msra.mxu0 0.0
        %8166 = vmatprep.subr.mxu0 0.0
        %8167 = vmatpush1.msra.mxu0 0.0
        %8168 = vmatprep.subr.mxu0 0.0
        %8169 = vmatpush1.msra.mxu0 0.0
        %8170 = vmatprep.subr.mxu0 0.0
        %8171 = vmatpush1.msra.mxu0 0.0
        %8172 = vmatprep.subr.mxu0 0.0
        %8173 = vmatpush1.msra.mxu0 0.0
        %8174 = vmatprep.subr.mxu0 0.0
        %8175 = vmatpush1.msra.mxu0 0.0
        %8176 = vmatprep.subr.mxu0 0.0
        %8177 = vmatpush1.msra.mxu0 0.0
        %8178 = vmatprep.subr.mxu0 0.0
        %8179 = vmatpush1.msra.mxu0 0.0
        %8180 = vmatprep.subr.mxu0 0.0
        %8181 = vmatpush1.msra.mxu0 0.0
        %8182 = vmatprep.subr.mxu0 0.0
        %8183 = vmatpush1.msra.mxu0 %v8153
        %8184 = vmatprep.subr.mxu0 0.0
        %8185 = vmatpush1.msra.mxu0 %v8152
        %8186 = vmatprep.subr.mxu0 0.0
        %8187 = vmatpush2.msra.mxu0 0.0
        %8188 = vmatprep.subr.mxu0 0.0
        %8189 = vmatpush2.msra.mxu0 0.0
        %8190 = vmatprep.subr.mxu0 0.0
        %8191 = vmatpush2.msra.mxu0 0.0
        %8192 = vmatprep.subr.mxu0 0.0
        %8193 = vmatpush2.msra.mxu0 0.0
        %8194 = vmatprep.subr.mxu0 0.0
        %8195 = vmatpush2.msra.mxu0 0.0
        %8196 = vmatprep.subr.mxu0 0.0
        %8197 = vmatpush2.msra.mxu0 0.0
        %8198 = vmatprep.subr.mxu0 0.0
        %8199 = vmatpush2.msra.mxu0 0.0
        %8200 = vmatprep.subr.mxu0 0.0
        %8201 = vmatpush2.msra.mxu0 0.0
        %8202 = vmatprep.subr.mxu0 0.0
        %8203 = vmatpush2.msra.mxu0 0.0
        %8204 = vmatprep.subr.mxu0 0.0
        %8205 = vmatpush2.msra.mxu0 0.0
        %8206 = vmatprep.subr.mxu0 0.0
        %8207 = vmatpush2.msra.mxu0 0.0
        %8208 = vmatprep.subr.mxu0 0.0
        %8209 = vmatpush2.msra.mxu0 0.0
        %8210 = vmatprep.subr.mxu0 0.0
        %8211 = vmatpush2.msra.mxu0 0.0
        %8212 = vmatprep.subr.mxu0 0.0
        %8213 = vmatpush2.msra.mxu0 0.0
        %8214 = vmatprep.subr.mxu0 0.0
        %8215 = vmatpush2.msra.mxu0 0.0
        %8216 = vmatprep.subr.mxu0 0.0
        %8217 = vmatpush2.msra.mxu0 0.0
        %8218 = vmatprep.mubr.f32.mxu0 0.0
        %8219 = vmatmul.mubr.f32.gmra.mxu0 %v3345
        %v8220 = vpop.f32.mrf.mxu0
        %v8221 = vadd.f32 0.0, %v8220
        %v8222 = vpop.f32.mrf.mxu0
        %8223 = vmatprep.mubr.f32.mxu0 0.0
        %8224 = vmatmul.mubr.f32.gmra.mxu0 %v3348
        %v8225 = vpop.f32.mrf.mxu0
        %v8226 = vadd.f32 0.0, %v8225
        %v8227 = vpop.f32.mrf.mxu0
        %8228 = vmatprep.mubr.f32.mxu0 0.0
        %8229 = vmatmul.mubr.f32.gmra.mxu0 %v3351
        %v8230 = vpop.f32.mrf.mxu0
        %v8231 = vadd.f32 0.0, %v8230
        %v8232 = vpop.f32.mrf.mxu0
        %8233 = vmatprep.mubr.f32.mxu0 0.0
        %8234 = vmatmul.mubr.f32.gmra.mxu0 %v3354
        %v8235 = vpop.f32.mrf.mxu0
        %v8236 = vadd.f32 0.0, %v8235
        %v8237 = vpop.f32.mrf.mxu0
        %8238 = vdwg.mxu0
        %s8239 = scalar_lea.vmem %s243, 544 [#allocation8]
        %8240 = vst.msk [vmem:[%s8239] sm:$0xff] %vm3441, %v8221
        %8241 = vst.msk [vmem:[%s8239 + $0x8] sm:$0xff] %vm3441, %v8226
        %8242 = vst.msk [vmem:[%s8239 + $0x10] sm:$0xff] %vm3441, %v8231
        %8243 = vst.msk [vmem:[%s8239 + $0x18] sm:$0xff] %vm3441, %v8236
        %v8244 = vld [vmem:[%s3911] sm:$0xff]
        %v8245 = vld [vmem:[%s3911 + $0x8] sm:$0xff]
        %8246 = vmatprep.subr.mxu0 0.0
        %8247 = vmatpush1.msra.mxu0 0.0
        %8248 = vmatprep.subr.mxu0 0.0
        %8249 = vmatpush1.msra.mxu0 0.0
        %8250 = vmatprep.subr.mxu0 0.0
        %8251 = vmatpush1.msra.mxu0 0.0
        %8252 = vmatprep.subr.mxu0 0.0
        %8253 = vmatpush1.msra.mxu0 0.0
        %8254 = vmatprep.subr.mxu0 0.0
        %8255 = vmatpush1.msra.mxu0 0.0
        %8256 = vmatprep.subr.mxu0 0.0
        %8257 = vmatpush1.msra.mxu0 0.0
        %8258 = vmatprep.subr.mxu0 0.0
        %8259 = vmatpush1.msra.mxu0 0.0
        %8260 = vmatprep.subr.mxu0 0.0
        %8261 = vmatpush1.msra.mxu0 0.0
        %8262 = vmatprep.subr.mxu0 0.0
        %8263 = vmatpush1.msra.mxu0 0.0
        %8264 = vmatprep.subr.mxu0 0.0
        %8265 = vmatpush1.msra.mxu0 0.0
        %8266 = vmatprep.subr.mxu0 0.0
        %8267 = vmatpush1.msra.mxu0 0.0
        %8268 = vmatprep.subr.mxu0 0.0
        %8269 = vmatpush1.msra.mxu0 0.0
        %8270 = vmatprep.subr.mxu0 0.0
        %8271 = vmatpush1.msra.mxu0 0.0
        %8272 = vmatprep.subr.mxu0 0.0
        %8273 = vmatpush1.msra.mxu0 0.0
        %8274 = vmatprep.subr.mxu0 0.0
        %8275 = vmatpush1.msra.mxu0 %v8245
        %8276 = vmatprep.subr.mxu0 0.0
        %8277 = vmatpush1.msra.mxu0 %v8244
        %8278 = vmatprep.subr.mxu0 0.0
        %8279 = vmatpush2.msra.mxu0 0.0
        %8280 = vmatprep.subr.mxu0 0.0
        %8281 = vmatpush2.msra.mxu0 0.0
        %8282 = vmatprep.subr.mxu0 0.0
        %8283 = vmatpush2.msra.mxu0 0.0
        %8284 = vmatprep.subr.mxu0 0.0
        %8285 = vmatpush2.msra.mxu0 0.0
        %8286 = vmatprep.subr.mxu0 0.0
        %8287 = vmatpush2.msra.mxu0 0.0
        %8288 = vmatprep.subr.mxu0 0.0
        %8289 = vmatpush2.msra.mxu0 0.0
        %8290 = vmatprep.subr.mxu0 0.0
        %8291 = vmatpush2.msra.mxu0 0.0
        %8292 = vmatprep.subr.mxu0 0.0
        %8293 = vmatpush2.msra.mxu0 0.0
        %8294 = vmatprep.subr.mxu0 0.0
        %8295 = vmatpush2.msra.mxu0 0.0
        %8296 = vmatprep.subr.mxu0 0.0
        %8297 = vmatpush2.msra.mxu0 0.0
        %8298 = vmatprep.subr.mxu0 0.0
        %8299 = vmatpush2.msra.mxu0 0.0
        %8300 = vmatprep.subr.mxu0 0.0
        %8301 = vmatpush2.msra.mxu0 0.0
        %8302 = vmatprep.subr.mxu0 0.0
        %8303 = vmatpush2.msra.mxu0 0.0
        %8304 = vmatprep.subr.mxu0 0.0
        %8305 = vmatpush2.msra.mxu0 0.0
        %8306 = vmatprep.subr.mxu0 0.0
        %8307 = vmatpush2.msra.mxu0 0.0
        %8308 = vmatprep.subr.mxu0 0.0
        %8309 = vmatpush2.msra.mxu0 0.0
        %8310 = vmatprep.mubr.f32.mxu0 0.0
        %8311 = vmatmul.mubr.f32.gmra.mxu0 %v3345
        %v8312 = vpop.f32.mrf.mxu0
        %v8313 = vadd.f32 0.0, %v8312
        %v8314 = vpop.f32.mrf.mxu0
        %8315 = vmatprep.mubr.f32.mxu0 0.0
        %8316 = vmatmul.mubr.f32.gmra.mxu0 %v3348
        %v8317 = vpop.f32.mrf.mxu0
        %v8318 = vadd.f32 0.0, %v8317
        %v8319 = vpop.f32.mrf.mxu0
        %8320 = vmatprep.mubr.f32.mxu0 0.0
        %8321 = vmatmul.mubr.f32.gmra.mxu0 %v3351
        %v8322 = vpop.f32.mrf.mxu0
        %v8323 = vadd.f32 0.0, %v8322
        %v8324 = vpop.f32.mrf.mxu0
        %8325 = vmatprep.mubr.f32.mxu0 0.0
        %8326 = vmatmul.mubr.f32.gmra.mxu0 %v3354
        %v8327 = vpop.f32.mrf.mxu0
        %v8328 = vadd.f32 0.0, %v8327
        %v8329 = vpop.f32.mrf.mxu0
        %8330 = vdwg.mxu0
        %s8331 = scalar_lea.vmem %s243, 576 [#allocation8]
        %8332 = vst.msk [vmem:[%s8331] sm:$0xff] %vm3441, %v8313
        %8333 = vst.msk [vmem:[%s8331 + $0x8] sm:$0xff] %vm3441, %v8318
        %8334 = vst.msk [vmem:[%s8331 + $0x10] sm:$0xff] %vm3441, %v8323
        %8335 = vst.msk [vmem:[%s8331 + $0x18] sm:$0xff] %vm3441, %v8328
        %v8336 = vld [vmem:[%s4004] sm:$0xff]
        %v8337 = vld [vmem:[%s4004 + $0x8] sm:$0xff]
        %8338 = vmatprep.subr.mxu0 0.0
        %8339 = vmatpush1.msra.mxu0 0.0
        %8340 = vmatprep.subr.mxu0 0.0
        %8341 = vmatpush1.msra.mxu0 0.0
        %8342 = vmatprep.subr.mxu0 0.0
        %8343 = vmatpush1.msra.mxu0 0.0
        %8344 = vmatprep.subr.mxu0 0.0
        %8345 = vmatpush1.msra.mxu0 0.0
        %8346 = vmatprep.subr.mxu0 0.0
        %8347 = vmatpush1.msra.mxu0 0.0
        %8348 = vmatprep.subr.mxu0 0.0
        %8349 = vmatpush1.msra.mxu0 0.0
        %8350 = vmatprep.subr.mxu0 0.0
        %8351 = vmatpush1.msra.mxu0 0.0
        %8352 = vmatprep.subr.mxu0 0.0
        %8353 = vmatpush1.msra.mxu0 0.0
        %8354 = vmatprep.subr.mxu0 0.0
        %8355 = vmatpush1.msra.mxu0 0.0
        %8356 = vmatprep.subr.mxu0 0.0
        %8357 = vmatpush1.msra.mxu0 0.0
        %8358 = vmatprep.subr.mxu0 0.0
        %8359 = vmatpush1.msra.mxu0 0.0
        %8360 = vmatprep.subr.mxu0 0.0
        %8361 = vmatpush1.msra.mxu0 0.0
        %8362 = vmatprep.subr.mxu0 0.0
        %8363 = vmatpush1.msra.mxu0 0.0
        %8364 = vmatprep.subr.mxu0 0.0
        %8365 = vmatpush1.msra.mxu0 0.0
        %8366 = vmatprep.subr.mxu0 0.0
        %8367 = vmatpush1.msra.mxu0 %v8337
        %8368 = vmatprep.subr.mxu0 0.0
        %8369 = vmatpush1.msra.mxu0 %v8336
        %8370 = vmatprep.subr.mxu0 0.0
        %8371 = vmatpush2.msra.mxu0 0.0
        %8372 = vmatprep.subr.mxu0 0.0
        %8373 = vmatpush2.msra.mxu0 0.0
        %8374 = vmatprep.subr.mxu0 0.0
        %8375 = vmatpush2.msra.mxu0 0.0
        %8376 = vmatprep.subr.mxu0 0.0
        %8377 = vmatpush2.msra.mxu0 0.0
        %8378 = vmatprep.subr.mxu0 0.0
        %8379 = vmatpush2.msra.mxu0 0.0
        %8380 = vmatprep.subr.mxu0 0.0
        %8381 = vmatpush2.msra.mxu0 0.0
        %8382 = vmatprep.subr.mxu0 0.0
        %8383 = vmatpush2.msra.mxu0 0.0
        %8384 = vmatprep.subr.mxu0 0.0
        %8385 = vmatpush2.msra.mxu0 0.0
        %8386 = vmatprep.subr.mxu0 0.0
        %8387 = vmatpush2.msra.mxu0 0.0
        %8388 = vmatprep.subr.mxu0 0.0
        %8389 = vmatpush2.msra.mxu0 0.0
        %8390 = vmatprep.subr.mxu0 0.0
        %8391 = vmatpush2.msra.mxu0 0.0
        %8392 = vmatprep.subr.mxu0 0.0
        %8393 = vmatpush2.msra.mxu0 0.0
        %8394 = vmatprep.subr.mxu0 0.0
        %8395 = vmatpush2.msra.mxu0 0.0
        %8396 = vmatprep.subr.mxu0 0.0
        %8397 = vmatpush2.msra.mxu0 0.0
        %8398 = vmatprep.subr.mxu0 0.0
        %8399 = vmatpush2.msra.mxu0 0.0
        %8400 = vmatprep.subr.mxu0 0.0
        %8401 = vmatpush2.msra.mxu0 0.0
        %8402 = vmatprep.mubr.f32.mxu0 0.0
        %8403 = vmatmul.mubr.f32.gmra.mxu0 %v3345
        %v8404 = vpop.f32.mrf.mxu0
        %v8405 = vadd.f32 0.0, %v8404
        %v8406 = vpop.f32.mrf.mxu0
        %8407 = vmatprep.mubr.f32.mxu0 0.0
        %8408 = vmatmul.mubr.f32.gmra.mxu0 %v3348
        %v8409 = vpop.f32.mrf.mxu0
        %v8410 = vadd.f32 0.0, %v8409
        %v8411 = vpop.f32.mrf.mxu0
        %8412 = vmatprep.mubr.f32.mxu0 0.0
        %8413 = vmatmul.mubr.f32.gmra.mxu0 %v3351
        %v8414 = vpop.f32.mrf.mxu0
        %v8415 = vadd.f32 0.0, %v8414
        %v8416 = vpop.f32.mrf.mxu0
        %8417 = vmatprep.mubr.f32.mxu0 0.0
        %8418 = vmatmul.mubr.f32.gmra.mxu0 %v3354
        %v8419 = vpop.f32.mrf.mxu0
        %v8420 = vadd.f32 0.0, %v8419
        %v8421 = vpop.f32.mrf.mxu0
        %8422 = vdwg.mxu0
        %s8423 = scalar_lea.vmem %s243, 608 [#allocation8]
        %8424 = vst.msk [vmem:[%s8423] sm:$0xff] %vm3441, %v8405
        %8425 = vst.msk [vmem:[%s8423 + $0x8] sm:$0xff] %vm3441, %v8410
        %8426 = vst.msk [vmem:[%s8423 + $0x10] sm:$0xff] %vm3441, %v8415
        %8427 = vst.msk [vmem:[%s8423 + $0x18] sm:$0xff] %vm3441, %v8420
        %v8428 = vld [vmem:[%s4097] sm:$0xff]
        %v8429 = vld [vmem:[%s4097 + $0x8] sm:$0xff]
        %8430 = vmatprep.subr.mxu0 0.0
        %8431 = vmatpush1.msra.mxu0 0.0
        %8432 = vmatprep.subr.mxu0 0.0
        %8433 = vmatpush1.msra.mxu0 0.0
        %8434 = vmatprep.subr.mxu0 0.0
        %8435 = vmatpush1.msra.mxu0 0.0
        %8436 = vmatprep.subr.mxu0 0.0
        %8437 = vmatpush1.msra.mxu0 0.0
        %8438 = vmatprep.subr.mxu0 0.0
        %8439 = vmatpush1.msra.mxu0 0.0
        %8440 = vmatprep.subr.mxu0 0.0
        %8441 = vmatpush1.msra.mxu0 0.0
        %8442 = vmatprep.subr.mxu0 0.0
        %8443 = vmatpush1.msra.mxu0 0.0
        %8444 = vmatprep.subr.mxu0 0.0
        %8445 = vmatpush1.msra.mxu0 0.0
        %8446 = vmatprep.subr.mxu0 0.0
        %8447 = vmatpush1.msra.mxu0 0.0
        %8448 = vmatprep.subr.mxu0 0.0
        %8449 = vmatpush1.msra.mxu0 0.0
        %8450 = vmatprep.subr.mxu0 0.0
        %8451 = vmatpush1.msra.mxu0 0.0
        %8452 = vmatprep.subr.mxu0 0.0
        %8453 = vmatpush1.msra.mxu0 0.0
        %8454 = vmatprep.subr.mxu0 0.0
        %8455 = vmatpush1.msra.mxu0 0.0
        %8456 = vmatprep.subr.mxu0 0.0
        %8457 = vmatpush1.msra.mxu0 0.0
        %8458 = vmatprep.subr.mxu0 0.0
        %8459 = vmatpush1.msra.mxu0 %v8429
        %8460 = vmatprep.subr.mxu0 0.0
        %8461 = vmatpush1.msra.mxu0 %v8428
        %8462 = vmatprep.subr.mxu0 0.0
        %8463 = vmatpush2.msra.mxu0 0.0
        %8464 = vmatprep.subr.mxu0 0.0
        %8465 = vmatpush2.msra.mxu0 0.0
        %8466 = vmatprep.subr.mxu0 0.0
        %8467 = vmatpush2.msra.mxu0 0.0
        %8468 = vmatprep.subr.mxu0 0.0
        %8469 = vmatpush2.msra.mxu0 0.0
        %8470 = vmatprep.subr.mxu0 0.0
        %8471 = vmatpush2.msra.mxu0 0.0
        %8472 = vmatprep.subr.mxu0 0.0
        %8473 = vmatpush2.msra.mxu0 0.0
        %8474 = vmatprep.subr.mxu0 0.0
        %8475 = vmatpush2.msra.mxu0 0.0
        %8476 = vmatprep.subr.mxu0 0.0
        %8477 = vmatpush2.msra.mxu0 0.0
        %8478 = vmatprep.subr.mxu0 0.0
        %8479 = vmatpush2.msra.mxu0 0.0
        %8480 = vmatprep.subr.mxu0 0.0
        %8481 = vmatpush2.msra.mxu0 0.0
        %8482 = vmatprep.subr.mxu0 0.0
        %8483 = vmatpush2.msra.mxu0 0.0
        %8484 = vmatprep.subr.mxu0 0.0
        %8485 = vmatpush2.msra.mxu0 0.0
        %8486 = vmatprep.subr.mxu0 0.0
        %8487 = vmatpush2.msra.mxu0 0.0
        %8488 = vmatprep.subr.mxu0 0.0
        %8489 = vmatpush2.msra.mxu0 0.0
        %8490 = vmatprep.subr.mxu0 0.0
        %8491 = vmatpush2.msra.mxu0 0.0
        %8492 = vmatprep.subr.mxu0 0.0
        %8493 = vmatpush2.msra.mxu0 0.0
        %8494 = vmatprep.mubr.f32.mxu0 0.0
        %8495 = vmatmul.mubr.f32.gmra.mxu0 %v3345
        %v8496 = vpop.f32.mrf.mxu0
        %v8497 = vadd.f32 0.0, %v8496
        %v8498 = vpop.f32.mrf.mxu0
        %8499 = vmatprep.mubr.f32.mxu0 0.0
        %8500 = vmatmul.mubr.f32.gmra.mxu0 %v3348
        %v8501 = vpop.f32.mrf.mxu0
        %v8502 = vadd.f32 0.0, %v8501
        %v8503 = vpop.f32.mrf.mxu0
        %8504 = vmatprep.mubr.f32.mxu0 0.0
        %8505 = vmatmul.mubr.f32.gmra.mxu0 %v3351
        %v8506 = vpop.f32.mrf.mxu0
        %v8507 = vadd.f32 0.0, %v8506
        %v8508 = vpop.f32.mrf.mxu0
        %8509 = vmatprep.mubr.f32.mxu0 0.0
        %8510 = vmatmul.mubr.f32.gmra.mxu0 %v3354
        %v8511 = vpop.f32.mrf.mxu0
        %v8512 = vadd.f32 0.0, %v8511
        %v8513 = vpop.f32.mrf.mxu0
        %8514 = vdwg.mxu0
        %v8515 = vmul.f32 %v8497, 1.442695
        %v8516 = vpow.pop %v8515
        %v8517 = vmul.f32 %v8502, 1.442695
        %v8518 = vpow.pop %v8517
        %v8519 = vmul.f32 %v8507, 1.442695
        %v8520 = vpow.pop %v8519
        %v8521 = vmul.f32 %v8512, 1.442695
        %v8522 = vpow.pop %v8521
        %s8523 = scalar_lea.vmem %s243, 640 [#allocation8]
        %8524 = vst.msk [vmem:[%s8523] sm:$0xff] %vm3441, %v8516
        %8525 = vst.msk [vmem:[%s8523 + $0x8] sm:$0xff] %vm3441, %v8518
        %8526 = vst.msk [vmem:[%s8523 + $0x10] sm:$0xff] %vm3441, %v8520
        %8527 = vst.msk [vmem:[%s8523 + $0x18] sm:$0xff] %vm3441, %v8522
        %v8528 = vld [vmem:[%s4198] sm:$0xff]
        %v8529 = vld [vmem:[%s4198 + $0x8] sm:$0xff]
        %8530 = vmatprep.subr.mxu0 0.0
        %8531 = vmatpush1.msra.mxu0 0.0
        %8532 = vmatprep.subr.mxu0 0.0
        %8533 = vmatpush1.msra.mxu0 0.0
        %8534 = vmatprep.subr.mxu0 0.0
        %8535 = vmatpush1.msra.mxu0 0.0
        %8536 = vmatprep.subr.mxu0 0.0
        %8537 = vmatpush1.msra.mxu0 0.0
        %8538 = vmatprep.subr.mxu0 0.0
        %8539 = vmatpush1.msra.mxu0 0.0
        %8540 = vmatprep.subr.mxu0 0.0
        %8541 = vmatpush1.msra.mxu0 0.0
        %8542 = vmatprep.subr.mxu0 0.0
        %8543 = vmatpush1.msra.mxu0 0.0
        %8544 = vmatprep.subr.mxu0 0.0
        %8545 = vmatpush1.msra.mxu0 0.0
        %8546 = vmatprep.subr.mxu0 0.0
        %8547 = vmatpush1.msra.mxu0 0.0
        %8548 = vmatprep.subr.mxu0 0.0
        %8549 = vmatpush1.msra.mxu0 0.0
        %8550 = vmatprep.subr.mxu0 0.0
        %8551 = vmatpush1.msra.mxu0 0.0
        %8552 = vmatprep.subr.mxu0 0.0
        %8553 = vmatpush1.msra.mxu0 0.0
        %8554 = vmatprep.subr.mxu0 0.0
        %8555 = vmatpush1.msra.mxu0 0.0
        %8556 = vmatprep.subr.mxu0 0.0
        %8557 = vmatpush1.msra.mxu0 0.0
        %8558 = vmatprep.subr.mxu0 0.0
        %8559 = vmatpush1.msra.mxu0 %v8529
        %8560 = vmatprep.subr.mxu0 0.0
        %8561 = vmatpush1.msra.mxu0 %v8528
        %8562 = vmatprep.subr.mxu0 0.0
        %8563 = vmatpush2.msra.mxu0 0.0
        %8564 = vmatprep.subr.mxu0 0.0
        %8565 = vmatpush2.msra.mxu0 0.0
        %8566 = vmatprep.subr.mxu0 0.0
        %8567 = vmatpush2.msra.mxu0 0.0
        %8568 = vmatprep.subr.mxu0 0.0
        %8569 = vmatpush2.msra.mxu0 0.0
        %8570 = vmatprep.subr.mxu0 0.0
        %8571 = vmatpush2.msra.mxu0 0.0
        %8572 = vmatprep.subr.mxu0 0.0
        %8573 = vmatpush2.msra.mxu0 0.0
        %8574 = vmatprep.subr.mxu0 0.0
        %8575 = vmatpush2.msra.mxu0 0.0
        %8576 = vmatprep.subr.mxu0 0.0
        %8577 = vmatpush2.msra.mxu0 0.0
        %8578 = vmatprep.subr.mxu0 0.0
        %8579 = vmatpush2.msra.mxu0 0.0
        %8580 = vmatprep.subr.mxu0 0.0
        %8581 = vmatpush2.msra.mxu0 0.0
        %8582 = vmatprep.subr.mxu0 0.0
        %8583 = vmatpush2.msra.mxu0 0.0
        %8584 = vmatprep.subr.mxu0 0.0
        %8585 = vmatpush2.msra.mxu0 0.0
        %8586 = vmatprep.subr.mxu0 0.0
        %8587 = vmatpush2.msra.mxu0 0.0
        %8588 = vmatprep.subr.mxu0 0.0
        %8589 = vmatpush2.msra.mxu0 0.0
        %8590 = vmatprep.subr.mxu0 0.0
        %8591 = vmatpush2.msra.mxu0 0.0
        %8592 = vmatprep.subr.mxu0 0.0
        %8593 = vmatpush2.msra.mxu0 0.0
        %8594 = vmatprep.mubr.f32.mxu0 0.0
        %8595 = vmatmul.mubr.f32.gmra.mxu0 %v3345
        %v8596 = vpop.f32.mrf.mxu0
        %v8597 = vadd.f32 0.0, %v8596
        %v8598 = vpop.f32.mrf.mxu0
        %8599 = vmatprep.mubr.f32.mxu0 0.0
        %8600 = vmatmul.mubr.f32.gmra.mxu0 %v3348
        %v8601 = vpop.f32.mrf.mxu0
        %v8602 = vadd.f32 0.0, %v8601
        %v8603 = vpop.f32.mrf.mxu0
        %8604 = vmatprep.mubr.f32.mxu0 0.0
        %8605 = vmatmul.mubr.f32.gmra.mxu0 %v3351
        %v8606 = vpop.f32.mrf.mxu0
        %v8607 = vadd.f32 0.0, %v8606
        %v8608 = vpop.f32.mrf.mxu0
        %8609 = vmatprep.mubr.f32.mxu0 0.0
        %8610 = vmatmul.mubr.f32.gmra.mxu0 %v3354
        %v8611 = vpop.f32.mrf.mxu0
        %v8612 = vadd.f32 0.0, %v8611
        %v8613 = vpop.f32.mrf.mxu0
        %8614 = vdwg.mxu0
        %v8615 = vmul.f32 %v8597, 1.442695
        %v8616 = vpow.pop %v8615
        %v8617 = vmul.f32 %v8602, 1.442695
        %v8618 = vpow.pop %v8617
        %v8619 = vmul.f32 %v8607, 1.442695
        %v8620 = vpow.pop %v8619
        %v8621 = vmul.f32 %v8612, 1.442695
        %v8622 = vpow.pop %v8621
        %s8623 = scalar_lea.vmem %s243, 672 [#allocation8]
        %8624 = vst.msk [vmem:[%s8623] sm:$0xff] %vm3441, %v8616
        %8625 = vst.msk [vmem:[%s8623 + $0x8] sm:$0xff] %vm3441, %v8618
        %8626 = vst.msk [vmem:[%s8623 + $0x10] sm:$0xff] %vm3441, %v8620
        %8627 = vst.msk [vmem:[%s8623 + $0x18] sm:$0xff] %vm3441, %v8622
        %v8628 = vld [vmem:[%s4299] sm:$0xff]
        %v8629 = vld [vmem:[%s4299 + $0x8] sm:$0xff]
        %8630 = vmatprep.subr.mxu0 0.0
        %8631 = vmatpush1.msra.mxu0 0.0
        %8632 = vmatprep.subr.mxu0 0.0
        %8633 = vmatpush1.msra.mxu0 0.0
        %8634 = vmatprep.subr.mxu0 0.0
        %8635 = vmatpush1.msra.mxu0 0.0
        %8636 = vmatprep.subr.mxu0 0.0
        %8637 = vmatpush1.msra.mxu0 0.0
        %8638 = vmatprep.subr.mxu0 0.0
        %8639 = vmatpush1.msra.mxu0 0.0
        %8640 = vmatprep.subr.mxu0 0.0
        %8641 = vmatpush1.msra.mxu0 0.0
        %8642 = vmatprep.subr.mxu0 0.0
        %8643 = vmatpush1.msra.mxu0 0.0
        %8644 = vmatprep.subr.mxu0 0.0
        %8645 = vmatpush1.msra.mxu0 0.0
        %8646 = vmatprep.subr.mxu0 0.0
        %8647 = vmatpush1.msra.mxu0 0.0
        %8648 = vmatprep.subr.mxu0 0.0
        %8649 = vmatpush1.msra.mxu0 0.0
        %8650 = vmatprep.subr.mxu0 0.0
        %8651 = vmatpush1.msra.mxu0 0.0
        %8652 = vmatprep.subr.mxu0 0.0
        %8653 = vmatpush1.msra.mxu0 0.0
        %8654 = vmatprep.subr.mxu0 0.0
        %8655 = vmatpush1.msra.mxu0 0.0
        %8656 = vmatprep.subr.mxu0 0.0
        %8657 = vmatpush1.msra.mxu0 0.0
        %8658 = vmatprep.subr.mxu0 0.0
        %8659 = vmatpush1.msra.mxu0 %v8629
        %8660 = vmatprep.subr.mxu0 0.0
        %8661 = vmatpush1.msra.mxu0 %v8628
        %8662 = vmatprep.subr.mxu0 0.0
        %8663 = vmatpush2.msra.mxu0 0.0
        %8664 = vmatprep.subr.mxu0 0.0
        %8665 = vmatpush2.msra.mxu0 0.0
        %8666 = vmatprep.subr.mxu0 0.0
        %8667 = vmatpush2.msra.mxu0 0.0
        %8668 = vmatprep.subr.mxu0 0.0
        %8669 = vmatpush2.msra.mxu0 0.0
        %8670 = vmatprep.subr.mxu0 0.0
        %8671 = vmatpush2.msra.mxu0 0.0
        %8672 = vmatprep.subr.mxu0 0.0
        %8673 = vmatpush2.msra.mxu0 0.0
        %8674 = vmatprep.subr.mxu0 0.0
        %8675 = vmatpush2.msra.mxu0 0.0
        %8676 = vmatprep.subr.mxu0 0.0
        %8677 = vmatpush2.msra.mxu0 0.0
        %8678 = vmatprep.subr.mxu0 0.0
        %8679 = vmatpush2.msra.mxu0 0.0
        %8680 = vmatprep.subr.mxu0 0.0
        %8681 = vmatpush2.msra.mxu0 0.0
        %8682 = vmatprep.subr.mxu0 0.0
        %8683 = vmatpush2.msra.mxu0 0.0
        %8684 = vmatprep.subr.mxu0 0.0
        %8685 = vmatpush2.msra.mxu0 0.0
        %8686 = vmatprep.subr.mxu0 0.0
        %8687 = vmatpush2.msra.mxu0 0.0
        %8688 = vmatprep.subr.mxu0 0.0
        %8689 = vmatpush2.msra.mxu0 0.0
        %8690 = vmatprep.subr.mxu0 0.0
        %8691 = vmatpush2.msra.mxu0 0.0
        %8692 = vmatprep.subr.mxu0 0.0
        %8693 = vmatpush2.msra.mxu0 0.0
        %8694 = vmatprep.mubr.f32.mxu0 0.0
        %8695 = vmatmul.mubr.f32.gmra.mxu0 %v3345
        %v8696 = vpop.f32.mrf.mxu0
        %v8697 = vadd.f32 0.0, %v8696
        %v8698 = vpop.f32.mrf.mxu0
        %8699 = vmatprep.mubr.f32.mxu0 0.0
        %8700 = vmatmul.mubr.f32.gmra.mxu0 %v3348
        %v8701 = vpop.f32.mrf.mxu0
        %v8702 = vadd.f32 0.0, %v8701
        %v8703 = vpop.f32.mrf.mxu0
        %8704 = vmatprep.mubr.f32.mxu0 0.0
        %8705 = vmatmul.mubr.f32.gmra.mxu0 %v3351
        %v8706 = vpop.f32.mrf.mxu0
        %v8707 = vadd.f32 0.0, %v8706
        %v8708 = vpop.f32.mrf.mxu0
        %8709 = vmatprep.mubr.f32.mxu0 0.0
        %8710 = vmatmul.mubr.f32.gmra.mxu0 %v3354
        %v8711 = vpop.f32.mrf.mxu0
        %v8712 = vadd.f32 0.0, %v8711
        %v8713 = vpop.f32.mrf.mxu0
        %8714 = vdwg.mxu0
        %v8715 = vmul.f32 %v8697, 1.442695
        %v8716 = vpow.pop %v8715
        %v8717 = vmul.f32 %v8702, 1.442695
        %v8718 = vpow.pop %v8717
        %v8719 = vmul.f32 %v8707, 1.442695
        %v8720 = vpow.pop %v8719
        %v8721 = vmul.f32 %v8712, 1.442695
        %v8722 = vpow.pop %v8721
        %s8723 = scalar_lea.vmem %s243, 704 [#allocation8]
        %8724 = vst.msk [vmem:[%s8723] sm:$0xff] %vm3441, %v8716
        %8725 = vst.msk [vmem:[%s8723 + $0x8] sm:$0xff] %vm3441, %v8718
        %8726 = vst.msk [vmem:[%s8723 + $0x10] sm:$0xff] %vm3441, %v8720
        %8727 = vst.msk [vmem:[%s8723 + $0x18] sm:$0xff] %vm3441, %v8722
        %v8728 = vld [vmem:[%s4400] sm:$0xff]
        %v8729 = vld [vmem:[%s4400 + $0x8] sm:$0xff]
        %8730 = vmatprep.subr.mxu0 0.0
        %8731 = vmatpush1.msra.mxu0 0.0
        %8732 = vmatprep.subr.mxu0 0.0
        %8733 = vmatpush1.msra.mxu0 0.0
        %8734 = vmatprep.subr.mxu0 0.0
        %8735 = vmatpush1.msra.mxu0 0.0
        %8736 = vmatprep.subr.mxu0 0.0
        %8737 = vmatpush1.msra.mxu0 0.0
        %8738 = vmatprep.subr.mxu0 0.0
        %8739 = vmatpush1.msra.mxu0 0.0
        %8740 = vmatprep.subr.mxu0 0.0
        %8741 = vmatpush1.msra.mxu0 0.0
        %8742 = vmatprep.subr.mxu0 0.0
        %8743 = vmatpush1.msra.mxu0 0.0
        %8744 = vmatprep.subr.mxu0 0.0
        %8745 = vmatpush1.msra.mxu0 0.0
        %8746 = vmatprep.subr.mxu0 0.0
        %8747 = vmatpush1.msra.mxu0 0.0
        %8748 = vmatprep.subr.mxu0 0.0
        %8749 = vmatpush1.msra.mxu0 0.0
        %8750 = vmatprep.subr.mxu0 0.0
        %8751 = vmatpush1.msra.mxu0 0.0
        %8752 = vmatprep.subr.mxu0 0.0
        %8753 = vmatpush1.msra.mxu0 0.0
        %8754 = vmatprep.subr.mxu0 0.0
        %8755 = vmatpush1.msra.mxu0 0.0
        %8756 = vmatprep.subr.mxu0 0.0
        %8757 = vmatpush1.msra.mxu0 0.0
        %8758 = vmatprep.subr.mxu0 0.0
        %8759 = vmatpush1.msra.mxu0 %v8729
        %8760 = vmatprep.subr.mxu0 0.0
        %8761 = vmatpush1.msra.mxu0 %v8728
        %8762 = vmatprep.subr.mxu0 0.0
        %8763 = vmatpush2.msra.mxu0 0.0
        %8764 = vmatprep.subr.mxu0 0.0
        %8765 = vmatpush2.msra.mxu0 0.0
        %8766 = vmatprep.subr.mxu0 0.0
        %8767 = vmatpush2.msra.mxu0 0.0
        %8768 = vmatprep.subr.mxu0 0.0
        %8769 = vmatpush2.msra.mxu0 0.0
        %8770 = vmatprep.subr.mxu0 0.0
        %8771 = vmatpush2.msra.mxu0 0.0
        %8772 = vmatprep.subr.mxu0 0.0
        %8773 = vmatpush2.msra.mxu0 0.0
        %8774 = vmatprep.subr.mxu0 0.0
        %8775 = vmatpush2.msra.mxu0 0.0
        %8776 = vmatprep.subr.mxu0 0.0
        %8777 = vmatpush2.msra.mxu0 0.0
        %8778 = vmatprep.subr.mxu0 0.0
        %8779 = vmatpush2.msra.mxu0 0.0
        %8780 = vmatprep.subr.mxu0 0.0
        %8781 = vmatpush2.msra.mxu0 0.0
        %8782 = vmatprep.subr.mxu0 0.0
        %8783 = vmatpush2.msra.mxu0 0.0
        %8784 = vmatprep.subr.mxu0 0.0
        %8785 = vmatpush2.msra.mxu0 0.0
        %8786 = vmatprep.subr.mxu0 0.0
        %8787 = vmatpush2.msra.mxu0 0.0
        %8788 = vmatprep.subr.mxu0 0.0
        %8789 = vmatpush2.msra.mxu0 0.0
        %8790 = vmatprep.subr.mxu0 0.0
        %8791 = vmatpush2.msra.mxu0 0.0
        %8792 = vmatprep.subr.mxu0 0.0
        %8793 = vmatpush2.msra.mxu0 0.0
        %8794 = vmatprep.mubr.f32.mxu0 0.0
        %8795 = vmatmul.mubr.f32.gmra.mxu0 %v3345
        %v8796 = vpop.f32.mrf.mxu0
        %v8797 = vadd.f32 0.0, %v8796
        %v8798 = vpop.f32.mrf.mxu0
        %8799 = vmatprep.mubr.f32.mxu0 0.0
        %8800 = vmatmul.mubr.f32.gmra.mxu0 %v3348
        %v8801 = vpop.f32.mrf.mxu0
        %v8802 = vadd.f32 0.0, %v8801
        %v8803 = vpop.f32.mrf.mxu0
        %8804 = vmatprep.mubr.f32.mxu0 0.0
        %8805 = vmatmul.mubr.f32.gmra.mxu0 %v3351
        %v8806 = vpop.f32.mrf.mxu0
        %v8807 = vadd.f32 0.0, %v8806
        %v8808 = vpop.f32.mrf.mxu0
        %8809 = vmatprep.mubr.f32.mxu0 0.0
        %8810 = vmatmul.mubr.f32.gmra.mxu0 %v3354
        %v8811 = vpop.f32.mrf.mxu0
        %v8812 = vadd.f32 0.0, %v8811
        %v8813 = vpop.f32.mrf.mxu0
        %8814 = vdwg.mxu0
        %v8815 = vmul.f32 %v8797, 1.442695
        %v8816 = vpow.pop %v8815
        %v8817 = vmul.f32 %v8802, 1.442695
        %v8818 = vpow.pop %v8817
        %v8819 = vmul.f32 %v8807, 1.442695
        %v8820 = vpow.pop %v8819
        %v8821 = vmul.f32 %v8812, 1.442695
        %v8822 = vpow.pop %v8821
        %s8823 = scalar_lea.vmem %s243, 736 [#allocation8]
        %8824 = vst.msk [vmem:[%s8823] sm:$0xff] %vm3441, %v8816
        %8825 = vst.msk [vmem:[%s8823 + $0x8] sm:$0xff] %vm3441, %v8818
        %8826 = vst.msk [vmem:[%s8823 + $0x10] sm:$0xff] %vm3441, %v8820
        %8827 = vst.msk [vmem:[%s8823 + $0x18] sm:$0xff] %vm3441, %v8822
        %v8828 = vld [vmem:[#allocation4] sm:$0xff]
        %v8829 = vld [vmem:[#allocation4 + $0x8] sm:$0xff]
        %v8830 = vld [vmem:[#allocation4 + $0x10] sm:$0xff]
        %v8831 = vld [vmem:[#allocation4 + $0x18] sm:$0xff]
        %v8832 = vld [vmem:[%s3534] sm:$0xff]
        %v8833 = vld [vmem:[%s3534 + $0x8] sm:$0xff]
        %v8834 = vld [vmem:[%s3534 + $0x10] sm:$0xff]
        %v8835 = vld [vmem:[%s3534 + $0x18] sm:$0xff]
        %v8836 = vmax.f32 %v8828, %v8832
        %v8837 = vmax.f32 %v8829, %v8833
        %v8838 = vmax.f32 %v8830, %v8834
        %v8839 = vmax.f32 %v8831, %v8835
        %v8840 = vld [vmem:[%s3627] sm:$0xff]
        %v8841 = vld [vmem:[%s3627 + $0x8] sm:$0xff]
        %v8842 = vld [vmem:[%s3627 + $0x10] sm:$0xff]
        %v8843 = vld [vmem:[%s3627 + $0x18] sm:$0xff]
        %v8844 = vmax.f32 %v8836, %v8840
        %v8845 = vmax.f32 %v8837, %v8841
        %v8846 = vmax.f32 %v8838, %v8842
        %v8847 = vmax.f32 %v8839, %v8843
        %v8848 = vld [vmem:[%s3720] sm:$0xff]
        %v8849 = vld [vmem:[%s3720 + $0x8] sm:$0xff]
        %v8850 = vld [vmem:[%s3720 + $0x10] sm:$0xff]
        %v8851 = vld [vmem:[%s3720 + $0x18] sm:$0xff]
        %v8852 = vmax.f32 %v8844, %v8848
        %v8853 = vmax.f32 %v8845, %v8849
        %v8854 = vmax.f32 %v8846, %v8850
        %v8855 = vmax.f32 %v8847, %v8851
        %v8856 = vsub.f32 %v8828, %v8852
        %v8857 = vsub.f32 %v8829, %v8853
        %v8858 = vsub.f32 %v8830, %v8854
        %v8859 = vsub.f32 %v8831, %v8855
        %v8860 = vmul.f32 %v8856, 1.442695
        %v8861 = vpow.pop %v8860
        %v8862 = vmul.f32 %v8857, 1.442695
        %v8863 = vpow.pop %v8862
        %v8864 = vmul.f32 %v8858, 1.442695
        %v8865 = vpow.pop %v8864
        %v8866 = vmul.f32 %v8859, 1.442695
        %v8867 = vpow.pop %v8866
        %v8868 = vsub.f32 %v8832, %v8852
        %v8869 = vsub.f32 %v8833, %v8853
        %v8870 = vsub.f32 %v8834, %v8854
        %v8871 = vsub.f32 %v8835, %v8855
        %v8872 = vmul.f32 %v8868, 1.442695
        %v8873 = vpow.pop %v8872
        %v8874 = vmul.f32 %v8869, 1.442695
        %v8875 = vpow.pop %v8874
        %v8876 = vmul.f32 %v8870, 1.442695
        %v8877 = vpow.pop %v8876
        %v8878 = vmul.f32 %v8871, 1.442695
        %v8879 = vpow.pop %v8878
        %v8880 = vadd.f32 %v8861, %v8873
        %v8881 = vadd.f32 %v8863, %v8875
        %v8882 = vadd.f32 %v8865, %v8877
        %v8883 = vadd.f32 %v8867, %v8879
        %v8884 = vsub.f32 %v8840, %v8852
        %v8885 = vsub.f32 %v8841, %v8853
        %v8886 = vsub.f32 %v8842, %v8854
        %v8887 = vsub.f32 %v8843, %v8855
        %v8888 = vmul.f32 %v8884, 1.442695
        %v8889 = vpow.pop %v8888
        %v8890 = vmul.f32 %v8885, 1.442695
        %v8891 = vpow.pop %v8890
        %v8892 = vmul.f32 %v8886, 1.442695
        %v8893 = vpow.pop %v8892
        %v8894 = vmul.f32 %v8887, 1.442695
        %v8895 = vpow.pop %v8894
        %v8896 = vadd.f32 %v8880, %v8889
        %v8897 = vadd.f32 %v8881, %v8891
        %v8898 = vadd.f32 %v8882, %v8893
        %v8899 = vadd.f32 %v8883, %v8895
        %v8900 = vsub.f32 %v8848, %v8852
        %v8901 = vsub.f32 %v8849, %v8853
        %v8902 = vsub.f32 %v8850, %v8854
        %v8903 = vsub.f32 %v8851, %v8855
        %v8904 = vmul.f32 %v8900, 1.442695
        %v8905 = vpow.pop %v8904
        %v8906 = vmul.f32 %v8901, 1.442695
        %v8907 = vpow.pop %v8906
        %v8908 = vmul.f32 %v8902, 1.442695
        %v8909 = vpow.pop %v8908
        %v8910 = vmul.f32 %v8903, 1.442695
        %v8911 = vpow.pop %v8910
        %v8912 = vadd.f32 %v8896, %v8905
        %v8913 = vadd.f32 %v8897, %v8907
        %v8914 = vadd.f32 %v8898, %v8909
        %v8915 = vadd.f32 %v8899, %v8911
        %v8916 = vrcp.pop %v8912
        %v8917 = vrcp.pop %v8913
        %v8918 = vrcp.pop %v8914
        %v8919 = vrcp.pop %v8915
        %v8920 = vmul.f32 %v8861, %v8916
        %v8921 = vmul.f32 %v8863, %v8917
        %v8922 = vmul.f32 %v8865, %v8918
        %v8923 = vmul.f32 %v8867, %v8919
        %s8924 = scalar_lea.vmem %s243, 384 [#allocation8]
        %8925 = vst.msk [vmem:[%s8924] sm:$0xff] %vm3441, %v8920
        %8926 = vst.msk [vmem:[%s8924 + $0x8] sm:$0xff] %vm3441, %v8921
        %8927 = vst.msk [vmem:[%s8924 + $0x10] sm:$0xff] %vm3441, %v8922
        %8928 = vst.msk [vmem:[%s8924 + $0x18] sm:$0xff] %vm3441, %v8923
        %v8929 = vmul.f32 %v8873, %v8916
        %v8930 = vmul.f32 %v8875, %v8917
        %v8931 = vmul.f32 %v8877, %v8918
        %v8932 = vmul.f32 %v8879, %v8919
        %s8933 = scalar_lea.vmem %s243, 416 [#allocation8]
        %8934 = vst.msk [vmem:[%s8933] sm:$0xff] %vm3441, %v8929
        %8935 = vst.msk [vmem:[%s8933 + $0x8] sm:$0xff] %vm3441, %v8930
        %8936 = vst.msk [vmem:[%s8933 + $0x10] sm:$0xff] %vm3441, %v8931
        %8937 = vst.msk [vmem:[%s8933 + $0x18] sm:$0xff] %vm3441, %v8932
        %v8938 = vmul.f32 %v8889, %v8916
        %v8939 = vmul.f32 %v8891, %v8917
        %v8940 = vmul.f32 %v8893, %v8918
        %v8941 = vmul.f32 %v8895, %v8919
        %s8942 = scalar_lea.vmem %s243, 448 [#allocation8]
        %8943 = vst.msk [vmem:[%s8942] sm:$0xff] %vm3441, %v8938
        %8944 = vst.msk [vmem:[%s8942 + $0x8] sm:$0xff] %vm3441, %v8939
        %8945 = vst.msk [vmem:[%s8942 + $0x10] sm:$0xff] %vm3441, %v8940
        %8946 = vst.msk [vmem:[%s8942 + $0x18] sm:$0xff] %vm3441, %v8941
        %v8947 = vmul.f32 %v8905, %v8916
        %v8948 = vmul.f32 %v8907, %v8917
        %v8949 = vmul.f32 %v8909, %v8918
        %v8950 = vmul.f32 %v8911, %v8919
        %s8951 = scalar_lea.vmem %s243, 480 [#allocation8]
        %8952 = vst.msk [vmem:[%s8951] sm:$0xff] %vm3441, %v8947
        %8953 = vst.msk [vmem:[%s8951 + $0x8] sm:$0xff] %vm3441, %v8948
        %8954 = vst.msk [vmem:[%s8951 + $0x10] sm:$0xff] %vm3441, %v8949
        %8955 = vst.msk [vmem:[%s8951 + $0x18] sm:$0xff] %vm3441, %v8950
        %s8956 = sand.u32 %s140, 1
        %s8957 = scalar_lea.sflag [#allocation7], %s8956
        %s8958 = sand.u32 %s140, 1
        %s8959 = smul.addr %s8958, 768
        %s8960 = scalar_lea.vmem [#allocation8], %s8959
        // Predicated region
        $region45: #{tpu_custom_call.1} parent=39 // pred_check
          %p8961 = pneg %p150
        $region46: #{tpu_custom_call.1} parent=39 // pred_check_branch
          %8963 = sbr.rel (%p8961) target = $region48
        $region47: #{tpu_custom_call.1} parent=39 // pred_region
          %s8964 = smul.u32 2, %s22
          %s8966 = ssub.s32 12288, 12288
          %8967 = vsyncadd %s8957, %s8966
          %s8968 = smul.addr %s8964, 48
          %s8969 = smul.addr %s8968, 128
          %s8970 = scalar_lea.hbm %s5, %s8969
          %s8971 = sshll.u32 %s8960, 4
          %s8972 = int_to_ptr.vmem [resolvable:$true] %s8971
          %8977 = dma.vmem_to_hbm [thread:$0]  %s8972, 12288, %s8970, %s8957, 128, 128, 8
        $region48: #{tpu_custom_call.1} parent=39 // pred_fallthru
          _
      $region40: #{tpu_custom_call.1} parent=5 // pred_fallthru
        _
      %p8978 = scmp.le.s32.totalorder 2, %s17
      // Predicated region
      $region49: #{tpu_custom_call.1} parent=5 // pred_check
        %p8979 = pneg %p8978
      $region50: #{tpu_custom_call.1} parent=5 // pred_check_branch
        %8981 = sbr.rel (%p8979) target = $region52
      $region51: #{tpu_custom_call.1} parent=5 // pred_region
        %s8982 = ssub.s32 %s17, 2
        // Predicated region
        $region53: #{tpu_custom_call.1} parent=51 // pred_check
          %p8983 = pneg %p156
        $region54: #{tpu_custom_call.1} parent=51 // pred_check_branch
          %8985 = sbr.rel (%p8983) target = $region56
        $region55: #{tpu_custom_call.1} parent=51 // pred_region
          %s8986 = sand.u32 %s141, 1
          %s8987 = scalar_lea.sflag [#allocation7], %s8986
          %s8988 = sand.u32 %s141, 1
          %s8989 = smul.addr %s8988, 768
          %s8990 = scalar_lea.vmem [#allocation8], %s8989
          %8991 = dma.done %s8987, 12288
        $region56: #{tpu_custom_call.1} parent=51 // pred_fallthru
          _
      $region52: #{tpu_custom_call.1} parent=5 // pred_fallthru
        _
    $region6: #{tpu_custom_call.1} parent=1 // loop_footer
      %s21 = sadd.s32 1, %s17
    $region7: #{tpu_custom_call.1} parent=1 // loop_footer_branch
      %16 = sbr.rel target = $region3
    $region8: #{tpu_custom_call.1} parent=1 // loop_exit
      _
    %8992 = vsyncpa [#allocation6], 1
    %s8993 = scalar_lea.sflag [#allocation6], 1
    %8994 = vsyncpa %s8993, 1
    %8995 = vsyncpa [#allocation7], 1
    %s8996 = scalar_lea.sflag [#allocation7], 1
    %8997 = vsyncpa %s8996, 1

</llo_original>
